<compile_context>
chip_gen: v7x
topology: tpu7x:2x2x1
jax: 0.10.0
libtpu: 0.0.40
codegen_flags: <defaults>
</compile_context>

<pallas_src>
import functools

import jax
import jax.numpy as jnp
from jax.experimental import pallas as pl
from jax.experimental.pallas import tpu as pltpu

VOCAB = 80
EMBED = 8
HIDDEN = 256
NUM_LAYERS = 2
OUT_PAD = 128     # lane-padded head width (sliced back to VOCAB outside)
SUBLANES = 8      # f32 sublane count; batch padded to a multiple of this


# ----------------------------------------------------------------------------
# Fused kernel: 2-layer LSTM recurrence + Linear head, all in VMEM.
# ----------------------------------------------------------------------------
def _gate_update(gates, c_prev, H):
    i = jax.nn.sigmoid(gates[:, 0 * H:1 * H])
    f = jax.nn.sigmoid(gates[:, 1 * H:2 * H])
    g = jnp.tanh(gates[:, 2 * H:3 * H])
    o = jax.nn.sigmoid(gates[:, 3 * H:4 * H])
    c_new = f * c_prev + i * g
    h_new = o * jnp.tanh(c_new)
    return h_new, c_new


def _fused_lstm_kernel(gx0_ref, whh0_ref, wih1_ref, whh1_ref, b1_ref,
                       wout_ref, bout_ref, out_ref,
                       h0_all, gx1_scr, *, seq_len, batch_p):
    H = whh0_ref.shape[0]
    T = seq_len
    Bp = batch_p

    # ---- layer 0: only the recurrent matmul per step (embedding, input
    #      projection and bias are pre-folded into gx0 outside the loop). ----
    h = jnp.zeros((Bp, H), jnp.float32)
    c = jnp.zeros((Bp, H), jnp.float32)
    for t in range(T):                                  # static unroll, T small
        gates = gx0_ref[pl.ds(t * Bp, Bp), :] + jnp.dot(
            h, whh0_ref[...], preferred_element_type=jnp.float32)
        h, c = _gate_update(gates, c, H)
        h0_all[pl.ds(t * Bp, Bp), :] = h

    # ---- layer-1 input projection: one (T*Bp, H) @ (H, 4H) matmul ----
    gx1_scr[...] = jnp.dot(h0_all[...], wih1_ref[...],
                           preferred_element_type=jnp.float32) + b1_ref[...]

    # ---- layer 1 recurrence; only the final h feeds the head ----
    h = jnp.zeros((Bp, H), jnp.float32)
    c = jnp.zeros((Bp, H), jnp.float32)
    for t in range(T):
        gates = gx1_scr[pl.ds(t * Bp, Bp), :] + jnp.dot(
            h, whh1_ref[...], preferred_element_type=jnp.float32)
        h, c = _gate_update(gates, c, H)

    # ---- head: Linear(H -> VOCAB), lane-padded to OUT_PAD ----
    out_ref[...] = (jnp.dot(h, wout_ref[...],
                            preferred_element_type=jnp.float32)
                    + bout_ref[...]).astype(out_ref.dtype)


def fused_forward(gx0, whh0_t, wih1_t, whh1_t, b1, wout_t, bout,
                  *, seq_len, batch_p):
    H = whh0_t.shape[0]
    kernel = functools.partial(_fused_lstm_kernel,
                               seq_len=seq_len, batch_p=batch_p)
    vmem = pl.BlockSpec(memory_space=pltpu.MemorySpace.VMEM)
    return pl.pallas_call(
        kernel,
        out_shape=jax.ShapeDtypeStruct((batch_p, wout_t.shape[1]), jnp.float32),
        in_specs=[vmem] * 7,
        out_specs=vmem,
        scratch_shapes=[
            pltpu.VMEM((seq_len * batch_p, H), jnp.float32),       # h0 (all t)
            pltpu.VMEM((seq_len * batch_p, 4 * H), jnp.float32),   # layer-1 x-gates
        ],
    )(gx0, whh0_t, wih1_t, whh1_t, b1, wout_t, bout)


# ----------------------------------------------------------------------------
# Parameter init (PyTorch-shaped) + one-time preprocessing (fold/transpose/pad).
# ----------------------------------------------------------------------------
def init_params(key):
    ks = jax.random.split(key, 12)
    params = {}
    params["embed"] = jax.random.normal(ks[0], (VOCAB, EMBED), jnp.float32)

    bound = 1.0 / jnp.sqrt(HIDDEN)
    lstm = []
    ki = 1
    for layer in range(NUM_LAYERS):
        in_size = EMBED if layer == 0 else HIDDEN
        w_ih = jax.random.uniform(ks[ki + 0], (4 * HIDDEN, in_size),
                                  jnp.float32, -bound, bound)
        w_hh = jax.random.uniform(ks[ki + 1], (4 * HIDDEN, HIDDEN),
                                  jnp.float32, -bound, bound)
        b_ih = jax.random.uniform(ks[ki + 2], (4 * HIDDEN,),
                                  jnp.float32, -bound, bound)
        b_hh = jax.random.uniform(ks[ki + 3], (4 * HIDDEN,),
                                  jnp.float32, -bound, bound)
        lstm.append((w_ih, w_hh, b_ih, b_hh))
        ki += 4
    params["lstm"] = lstm

    params["out_w"] = jax.random.uniform(ks[ki], (VOCAB, HIDDEN),
                                         jnp.float32, -bound, bound)
    params["out_b"] = jax.random.uniform(ks[ki + 1], (VOCAB,),
                                         jnp.float32, -bound, bound)
    return params


def prepare_params(params):
    """One-time: fold embedding into layer-0 input proj, transpose, pad."""
    w_ih0, w_hh0, b_ih0, b_hh0 = params["lstm"][0]
    w_ih1, w_hh1, b_ih1, b_hh1 = params["lstm"][1]
    # table0[tok] == W_ih0 @ embed[tok] + b_ih0 + b_hh0   (shape (VOCAB, 4H))
    table0 = params["embed"] @ w_ih0.T + (b_ih0 + b_hh0)[None, :]
    wout_t = jnp.zeros((HIDDEN, OUT_PAD), jnp.float32)
    wout_t = wout_t.at[:, :VOCAB].set(params["out_w"].T)
    bout = jnp.zeros((1, OUT_PAD), jnp.float32)
    bout = bout.at[:, :VOCAB].set(params["out_b"][None, :])
    return {
        "table0": table0,
        "whh0_t": w_hh0.T,                                  # (H, 4H)
        "wih1_t": w_ih1.T,                                  # (H, 4H)
        "whh1_t": w_hh1.T,                                  # (H, 4H)
        "b1": (b_ih1 + b_hh1).reshape(1, 4 * HIDDEN),       # (1, 4H)
        "wout_t": wout_t,                                   # (H, 128) zero-padded
        "bout": bout,                                       # (1, 128) zero-padded
    }


# ----------------------------------------------------------------------------
# Forward pass matching LSTM.forward (eval mode).
# ----------------------------------------------------------------------------
@jax.jit
def lstm_model_forward(prep, tokens):
    # tokens: (B, T) int32
    B, T = tokens.shape
    Bp = max(SUBLANES, ((B + SUBLANES - 1) // SUBLANES) * SUBLANES)
    tokens_p = jnp.pad(tokens, ((0, Bp - B), (0, 0)))        # pad batch rows
    # Embedding + layer-0 input projection + layer-0 bias as a single gather.
    gx0 = jnp.take(prep["table0"], tokens_p, axis=0)         # (Bp, T, 4H)
    gx0 = jnp.transpose(gx0, (1, 0, 2)).reshape(T * Bp, 4 * HIDDEN)
    logits_p = fused_forward(
        gx0, prep["whh0_t"], prep["wih1_t"], prep["whh1_t"],
        prep["b1"], prep["wout_t"], prep["bout"],
        seq_len=T, batch_p=Bp)                               # (Bp, OUT_PAD)
    # TODO(synk): nn.Dropout() is identity in eval mode; training-mode masking not applied.
    return logits_p[:B, :VOCAB]                              # (B, VOCAB)


if __name__ == "__main__":
    key = jax.random.PRNGKey(0)
    pkey, dkey = jax.random.split(key)
    params = init_params(pkey)
    prep = prepare_params(params)

    B, T = 2, 8
    tokens = jax.random.randint(dkey, (B, T), 0, VOCAB, dtype=jnp.int32)

    logits = lstm_model_forward(prep, tokens)
    jax.block_until_ready(logits)
    assert logits.shape == (B, VOCAB) and logits.dtype == jnp.float32
    assert bool(jnp.all(jnp.isfinite(logits)))
    print("KERNEL_OK")
</pallas_src>

<mosaic_0001>
module attributes {stable_mosaic.version = 11 : i64} {
  func.func @_fused_lstm_kernel(%arg0: memref<64x1024xf32, #tpu.memory_space<vmem>>, %arg1: memref<256x1024xf32, #tpu.memory_space<vmem>>, %arg2: memref<256x1024xf32, #tpu.memory_space<vmem>>, %arg3: memref<256x1024xf32, #tpu.memory_space<vmem>>, %arg4: memref<1x1024xf32, #tpu.memory_space<vmem>>, %arg5: memref<256x128xf32, #tpu.memory_space<vmem>>, %arg6: memref<1x128xf32, #tpu.memory_space<vmem>>, %arg7: memref<8x128xf32, #tpu.memory_space<vmem>>, %arg8: memref<64x256xf32, #tpu.memory_space<vmem>>, %arg9: memref<64x1024xf32, #tpu.memory_space<vmem>>) attributes {dimension_semantics = [], scalar_prefetch = 0 : i64, scratch_operands = 2 : i64, tpu.core_type = #tpu.core_type<tc>} {
    %cst = arith.constant 0.000000e+00 : f32
    %0 = vector.broadcast %cst : f32 to vector<8x256xf32>
    %cst_0 = arith.constant 0.000000e+00 : f32
    %1 = vector.broadcast %cst_0 : f32 to vector<8x256xf32>
    %c0 = arith.constant 0 : index
    %c0_1 = arith.constant 0 : index
    %2 = vector.load %arg0[%c0, %c0_1] : memref<64x1024xf32, #tpu.memory_space<vmem>>, vector<8x1024xf32>
    %c0_2 = arith.constant 0 : index
    %c0_3 = arith.constant 0 : index
    %3 = vector.load %arg1[%c0_2, %c0_3] : memref<256x1024xf32, #tpu.memory_space<vmem>>, vector<256x1024xf32>
    %cst_4 = arith.constant dense<0.000000e+00> : vector<8x1024xf32>
    %4 = tpu.matmul %0, %3, %cst_4 {dimension_numbers = #tpu.dot_dimension_numbers<[1], [0], [0], [1], [0, 0, 1, 1], [], []>} : vector<8x256xf32>, vector<256x1024xf32>, vector<8x1024xf32> -> vector<8x1024xf32>
    %5 = arith.addf %2, %4 : vector<8x1024xf32>
    %6 = vector.extract_strided_slice %5 {offsets = [0, 0], sizes = [8, 256], strides = [1, 1]} : vector<8x1024xf32> to vector<8x256xf32>
    %7 = arith.negf %6 : vector<8x256xf32>
    %8 = math.exp %7 : vector<8x256xf32>
    %cst_5 = arith.constant 1.000000e+00 : f32
    %9 = vector.broadcast %cst_5 : f32 to vector<8x256xf32>
    %10 = arith.addf %9, %8 : vector<8x256xf32>
    %11 = arith.divf %9, %10 : vector<8x256xf32>
    %12 = vector.extract_strided_slice %5 {offsets = [0, 256], sizes = [8, 256], strides = [1, 1]} : vector<8x1024xf32> to vector<8x256xf32>
    %13 = arith.negf %12 : vector<8x256xf32>
    %14 = math.exp %13 : vector<8x256xf32>
    %cst_6 = arith.constant 1.000000e+00 : f32
    %15 = vector.broadcast %cst_6 : f32 to vector<8x256xf32>
    %16 = arith.addf %15, %14 : vector<8x256xf32>
    %17 = arith.divf %15, %16 : vector<8x256xf32>
    %18 = vector.extract_strided_slice %5 {offsets = [0, 512], sizes = [8, 256], strides = [1, 1]} : vector<8x1024xf32> to vector<8x256xf32>
    %19 = math.tanh %18 : vector<8x256xf32>
    %20 = vector.extract_strided_slice %5 {offsets = [0, 768], sizes = [8, 256], strides = [1, 1]} : vector<8x1024xf32> to vector<8x256xf32>
    %21 = arith.negf %20 : vector<8x256xf32>
    %22 = math.exp %21 : vector<8x256xf32>
    %cst_7 = arith.constant 1.000000e+00 : f32
    %23 = vector.broadcast %cst_7 : f32 to vector<8x256xf32>
    %24 = arith.addf %23, %22 : vector<8x256xf32>
    %25 = arith.divf %23, %24 : vector<8x256xf32>
    %26 = arith.mulf %17, %1 : vector<8x256xf32>
    %27 = arith.mulf %11, %19 : vector<8x256xf32>
    %28 = arith.addf %26, %27 : vector<8x256xf32>
    %29 = math.tanh %28 : vector<8x256xf32>
    %30 = arith.mulf %25, %29 : vector<8x256xf32>
    %c0_8 = arith.constant 0 : index
    %c0_9 = arith.constant 0 : index
    %31 = vector.load %arg8[%c0_8, %c0_9] : memref<64x256xf32, #tpu.memory_space<vmem>>, vector<8x256xf32>
    tpu.vector_store %arg8[%c0_8, %c0_9], %30 {strides = array<i32>} : memref<64x256xf32, #tpu.memory_space<vmem>>, vector<8x256xf32>,
    %c8 = arith.constant 8 : index
    %c0_10 = arith.constant 0 : index
    %32 = vector.load %arg0[%c8, %c0_10] : memref<64x1024xf32, #tpu.memory_space<vmem>>, vector<8x1024xf32>
    %c0_11 = arith.constant 0 : index
    %c0_12 = arith.constant 0 : index
    %33 = vector.load %arg1[%c0_11, %c0_12] : memref<256x1024xf32, #tpu.memory_space<vmem>>, vector<256x1024xf32>
    %cst_13 = arith.constant dense<0.000000e+00> : vector<8x1024xf32>
    %34 = tpu.matmul %30, %33, %cst_13 {dimension_numbers = #tpu.dot_dimension_numbers<[1], [0], [0], [1], [0, 0, 1, 1], [], []>} : vector<8x256xf32>, vector<256x1024xf32>, vector<8x1024xf32> -> vector<8x1024xf32>
    %35 = arith.addf %32, %34 : vector<8x1024xf32>
    %36 = vector.extract_strided_slice %35 {offsets = [0, 0], sizes = [8, 256], strides = [1, 1]} : vector<8x1024xf32> to vector<8x256xf32>
    %37 = arith.negf %36 : vector<8x256xf32>
    %38 = math.exp %37 : vector<8x256xf32>
    %cst_14 = arith.constant 1.000000e+00 : f32
    %39 = vector.broadcast %cst_14 : f32 to vector<8x256xf32>
    %40 = arith.addf %39, %38 : vector<8x256xf32>
    %41 = arith.divf %39, %40 : vector<8x256xf32>
    %42 = vector.extract_strided_slice %35 {offsets = [0, 256], sizes = [8, 256], strides = [1, 1]} : vector<8x1024xf32> to vector<8x256xf32>
    %43 = arith.negf %42 : vector<8x256xf32>
    %44 = math.exp %43 : vector<8x256xf32>
    %cst_15 = arith.constant 1.000000e+00 : f32
    %45 = vector.broadcast %cst_15 : f32 to vector<8x256xf32>
    %46 = arith.addf %45, %44 : vector<8x256xf32>
    %47 = arith.divf %45, %46 : vector<8x256xf32>
    %48 = vector.extract_strided_slice %35 {offsets = [0, 512], sizes = [8, 256], strides = [1, 1]} : vector<8x1024xf32> to vector<8x256xf32>
    %49 = math.tanh %48 : vector<8x256xf32>
    %50 = vector.extract_strided_slice %35 {offsets = [0, 768], sizes = [8, 256], strides = [1, 1]} : vector<8x1024xf32> to vector<8x256xf32>
    %51 = arith.negf %50 : vector<8x256xf32>
    %52 = math.exp %51 : vector<8x256xf32>
    %cst_16 = arith.constant 1.000000e+00 : f32
    %53 = vector.broadcast %cst_16 : f32 to vector<8x256xf32>
    %54 = arith.addf %53, %52 : vector<8x256xf32>
    %55 = arith.divf %53, %54 : vector<8x256xf32>
    %56 = arith.mulf %47, %28 : vector<8x256xf32>
    %57 = arith.mulf %41, %49 : vector<8x256xf32>
    %58 = arith.addf %56, %57 : vector<8x256xf32>
    %59 = math.tanh %58 : vector<8x256xf32>
    %60 = arith.mulf %55, %59 : vector<8x256xf32>
    %c8_17 = arith.constant 8 : index
    %c0_18 = arith.constant 0 : index
    %61 = vector.load %arg8[%c8_17, %c0_18] : memref<64x256xf32, #tpu.memory_space<vmem>>, vector<8x256xf32>
    tpu.vector_store %arg8[%c8_17, %c0_18], %60 {strides = array<i32>} : memref<64x256xf32, #tpu.memory_space<vmem>>, vector<8x256xf32>,
    %c16 = arith.constant 16 : index
    %c0_19 = arith.constant 0 : index
    %62 = vector.load %arg0[%c16, %c0_19] : memref<64x1024xf32, #tpu.memory_space<vmem>>, vector<8x1024xf32>
    %c0_20 = arith.constant 0 : index
    %c0_21 = arith.constant 0 : index
    %63 = vector.load %arg1[%c0_20, %c0_21] : memref<256x1024xf32, #tpu.memory_space<vmem>>, vector<256x1024xf32>
    %cst_22 = arith.constant dense<0.000000e+00> : vector<8x1024xf32>
    %64 = tpu.matmul %60, %63, %cst_22 {dimension_numbers = #tpu.dot_dimension_numbers<[1], [0], [0], [1], [0, 0, 1, 1], [], []>} : vector<8x256xf32>, vector<256x1024xf32>, vector<8x1024xf32> -> vector<8x1024xf32>
    %65 = arith.addf %62, %64 : vector<8x1024xf32>
    %66 = vector.extract_strided_slice %65 {offsets = [0, 0], sizes = [8, 256], strides = [1, 1]} : vector<8x1024xf32> to vector<8x256xf32>
    %67 = arith.negf %66 : vector<8x256xf32>
    %68 = math.exp %67 : vector<8x256xf32>
    %cst_23 = arith.constant 1.000000e+00 : f32
    %69 = vector.broadcast %cst_23 : f32 to vector<8x256xf32>
    %70 = arith.addf %69, %68 : vector<8x256xf32>
    %71 = arith.divf %69, %70 : vector<8x256xf32>
    %72 = vector.extract_strided_slice %65 {offsets = [0, 256], sizes = [8, 256], strides = [1, 1]} : vector<8x1024xf32> to vector<8x256xf32>
    %73 = arith.negf %72 : vector<8x256xf32>
    %74 = math.exp %73 : vector<8x256xf32>
    %cst_24 = arith.constant 1.000000e+00 : f32
    %75 = vector.broadcast %cst_24 : f32 to vector<8x256xf32>
    %76 = arith.addf %75, %74 : vector<8x256xf32>
    %77 = arith.divf %75, %76 : vector<8x256xf32>
    %78 = vector.extract_strided_slice %65 {offsets = [0, 512], sizes = [8, 256], strides = [1, 1]} : vector<8x1024xf32> to vector<8x256xf32>
    %79 = math.tanh %78 : vector<8x256xf32>
    %80 = vector.extract_strided_slice %65 {offsets = [0, 768], sizes = [8, 256], strides = [1, 1]} : vector<8x1024xf32> to vector<8x256xf32>
    %81 = arith.negf %80 : vector<8x256xf32>
    %82 = math.exp %81 : vector<8x256xf32>
    %cst_25 = arith.constant 1.000000e+00 : f32
    %83 = vector.broadcast %cst_25 : f32 to vector<8x256xf32>
    %84 = arith.addf %83, %82 : vector<8x256xf32>
    %85 = arith.divf %83, %84 : vector<8x256xf32>
    %86 = arith.mulf %77, %58 : vector<8x256xf32>
    %87 = arith.mulf %71, %79 : vector<8x256xf32>
    %88 = arith.addf %86, %87 : vector<8x256xf32>
    %89 = math.tanh %88 : vector<8x256xf32>
    %90 = arith.mulf %85, %89 : vector<8x256xf32>
    %c16_26 = arith.constant 16 : index
    %c0_27 = arith.constant 0 : index
    %91 = vector.load %arg8[%c16_26, %c0_27] : memref<64x256xf32, #tpu.memory_space<vmem>>, vector<8x256xf32>
    tpu.vector_store %arg8[%c16_26, %c0_27], %90 {strides = array<i32>} : memref<64x256xf32, #tpu.memory_space<vmem>>, vector<8x256xf32>,
    %c24 = arith.constant 24 : index
    %c0_28 = arith.constant 0 : index
    %92 = vector.load %arg0[%c24, %c0_28] : memref<64x1024xf32, #tpu.memory_space<vmem>>, vector<8x1024xf32>
    %c0_29 = arith.constant 0 : index
    %c0_30 = arith.constant 0 : index
    %93 = vector.load %arg1[%c0_29, %c0_30] : memref<256x1024xf32, #tpu.memory_space<vmem>>, vector<256x1024xf32>
    %cst_31 = arith.constant dense<0.000000e+00> : vector<8x1024xf32>
    %94 = tpu.matmul %90, %93, %cst_31 {dimension_numbers = #tpu.dot_dimension_numbers<[1], [0], [0], [1], [0, 0, 1, 1], [], []>} : vector<8x256xf32>, vector<256x1024xf32>, vector<8x1024xf32> -> vector<8x1024xf32>
    %95 = arith.addf %92, %94 : vector<8x1024xf32>
    %96 = vector.extract_strided_slice %95 {offsets = [0, 0], sizes = [8, 256], strides = [1, 1]} : vector<8x1024xf32> to vector<8x256xf32>
    %97 = arith.negf %96 : vector<8x256xf32>
    %98 = math.exp %97 : vector<8x256xf32>
    %cst_32 = arith.constant 1.000000e+00 : f32
    %99 = vector.broadcast %cst_32 : f32 to vector<8x256xf32>
    %100 = arith.addf %99, %98 : vector<8x256xf32>
    %101 = arith.divf %99, %100 : vector<8x256xf32>
    %102 = vector.extract_strided_slice %95 {offsets = [0, 256], sizes = [8, 256], strides = [1, 1]} : vector<8x1024xf32> to vector<8x256xf32>
    %103 = arith.negf %102 : vector<8x256xf32>
    %104 = math.exp %103 : vector<8x256xf32>
    %cst_33 = arith.constant 1.000000e+00 : f32
    %105 = vector.broadcast %cst_33 : f32 to vector<8x256xf32>
    %106 = arith.addf %105, %104 : vector<8x256xf32>
    %107 = arith.divf %105, %106 : vector<8x256xf32>
    %108 = vector.extract_strided_slice %95 {offsets = [0, 512], sizes = [8, 256], strides = [1, 1]} : vector<8x1024xf32> to vector<8x256xf32>
    %109 = math.tanh %108 : vector<8x256xf32>
    %110 = vector.extract_strided_slice %95 {offsets = [0, 768], sizes = [8, 256], strides = [1, 1]} : vector<8x1024xf32> to vector<8x256xf32>
    %111 = arith.negf %110 : vector<8x256xf32>
    %112 = math.exp %111 : vector<8x256xf32>
    %cst_34 = arith.constant 1.000000e+00 : f32
    %113 = vector.broadcast %cst_34 : f32 to vector<8x256xf32>
    %114 = arith.addf %113, %112 : vector<8x256xf32>
    %115 = arith.divf %113, %114 : vector<8x256xf32>
    %116 = arith.mulf %107, %88 : vector<8x256xf32>
    %117 = arith.mulf %101, %109 : vector<8x256xf32>
    %118 = arith.addf %116, %117 : vector<8x256xf32>
    %119 = math.tanh %118 : vector<8x256xf32>
    %120 = arith.mulf %115, %119 : vector<8x256xf32>
    %c24_35 = arith.constant 24 : index
    %c0_36 = arith.constant 0 : index
    %121 = vector.load %arg8[%c24_35, %c0_36] : memref<64x256xf32, #tpu.memory_space<vmem>>, vector<8x256xf32>
    tpu.vector_store %arg8[%c24_35, %c0_36], %120 {strides = array<i32>} : memref<64x256xf32, #tpu.memory_space<vmem>>, vector<8x256xf32>,
    %c32 = arith.constant 32 : index
    %c0_37 = arith.constant 0 : index
    %122 = vector.load %arg0[%c32, %c0_37] : memref<64x1024xf32, #tpu.memory_space<vmem>>, vector<8x1024xf32>
    %c0_38 = arith.constant 0 : index
    %c0_39 = arith.constant 0 : index
    %123 = vector.load %arg1[%c0_38, %c0_39] : memref<256x1024xf32, #tpu.memory_space<vmem>>, vector<256x1024xf32>
    %cst_40 = arith.constant dense<0.000000e+00> : vector<8x1024xf32>
    %124 = tpu.matmul %120, %123, %cst_40 {dimension_numbers = #tpu.dot_dimension_numbers<[1], [0], [0], [1], [0, 0, 1, 1], [], []>} : vector<8x256xf32>, vector<256x1024xf32>, vector<8x1024xf32> -> vector<8x1024xf32>
    %125 = arith.addf %122, %124 : vector<8x1024xf32>
    %126 = vector.extract_strided_slice %125 {offsets = [0, 0], sizes = [8, 256], strides = [1, 1]} : vector<8x1024xf32> to vector<8x256xf32>
    %127 = arith.negf %126 : vector<8x256xf32>
    %128 = math.exp %127 : vector<8x256xf32>
    %cst_41 = arith.constant 1.000000e+00 : f32
    %129 = vector.broadcast %cst_41 : f32 to vector<8x256xf32>
    %130 = arith.addf %129, %128 : vector<8x256xf32>
    %131 = arith.divf %129, %130 : vector<8x256xf32>
    %132 = vector.extract_strided_slice %125 {offsets = [0, 256], sizes = [8, 256], strides = [1, 1]} : vector<8x1024xf32> to vector<8x256xf32>
    %133 = arith.negf %132 : vector<8x256xf32>
    %134 = math.exp %133 : vector<8x256xf32>
    %cst_42 = arith.constant 1.000000e+00 : f32
    %135 = vector.broadcast %cst_42 : f32 to vector<8x256xf32>
    %136 = arith.addf %135, %134 : vector<8x256xf32>
    %137 = arith.divf %135, %136 : vector<8x256xf32>
    %138 = vector.extract_strided_slice %125 {offsets = [0, 512], sizes = [8, 256], strides = [1, 1]} : vector<8x1024xf32> to vector<8x256xf32>
    %139 = math.tanh %138 : vector<8x256xf32>
    %140 = vector.extract_strided_slice %125 {offsets = [0, 768], sizes = [8, 256], strides = [1, 1]} : vector<8x1024xf32> to vector<8x256xf32>
    %141 = arith.negf %140 : vector<8x256xf32>
    %142 = math.exp %141 : vector<8x256xf32>
    %cst_43 = arith.constant 1.000000e+00 : f32
    %143 = vector.broadcast %cst_43 : f32 to vector<8x256xf32>
    %144 = arith.addf %143, %142 : vector<8x256xf32>
    %145 = arith.divf %143, %144 : vector<8x256xf32>
    %146 = arith.mulf %137, %118 : vector<8x256xf32>
    %147 = arith.mulf %131, %139 : vector<8x256xf32>
    %148 = arith.addf %146, %147 : vector<8x256xf32>
    %149 = math.tanh %148 : vector<8x256xf32>
    %150 = arith.mulf %145, %149 : vector<8x256xf32>
    %c32_44 = arith.constant 32 : index
    %c0_45 = arith.constant 0 : index
    %151 = vector.load %arg8[%c32_44, %c0_45] : memref<64x256xf32, #tpu.memory_space<vmem>>, vector<8x256xf32>
    tpu.vector_store %arg8[%c32_44, %c0_45], %150 {strides = array<i32>} : memref<64x256xf32, #tpu.memory_space<vmem>>, vector<8x256xf32>,
    %c40 = arith.constant 40 : index
    %c0_46 = arith.constant 0 : index
    %152 = vector.load %arg0[%c40, %c0_46] : memref<64x1024xf32, #tpu.memory_space<vmem>>, vector<8x1024xf32>
    %c0_47 = arith.constant 0 : index
    %c0_48 = arith.constant 0 : index
    %153 = vector.load %arg1[%c0_47, %c0_48] : memref<256x1024xf32, #tpu.memory_space<vmem>>, vector<256x1024xf32>
    %cst_49 = arith.constant dense<0.000000e+00> : vector<8x1024xf32>
    %154 = tpu.matmul %150, %153, %cst_49 {dimension_numbers = #tpu.dot_dimension_numbers<[1], [0], [0], [1], [0, 0, 1, 1], [], []>} : vector<8x256xf32>, vector<256x1024xf32>, vector<8x1024xf32> -> vector<8x1024xf32>
    %155 = arith.addf %152, %154 : vector<8x1024xf32>
    %156 = vector.extract_strided_slice %155 {offsets = [0, 0], sizes = [8, 256], strides = [1, 1]} : vector<8x1024xf32> to vector<8x256xf32>
    %157 = arith.negf %156 : vector<8x256xf32>
    %158 = math.exp %157 : vector<8x256xf32>
    %cst_50 = arith.constant 1.000000e+00 : f32
    %159 = vector.broadcast %cst_50 : f32 to vector<8x256xf32>
    %160 = arith.addf %159, %158 : vector<8x256xf32>
    %161 = arith.divf %159, %160 : vector<8x256xf32>
    %162 = vector.extract_strided_slice %155 {offsets = [0, 256], sizes = [8, 256], strides = [1, 1]} : vector<8x1024xf32> to vector<8x256xf32>
    %163 = arith.negf %162 : vector<8x256xf32>
    %164 = math.exp %163 : vector<8x256xf32>
    %cst_51 = arith.constant 1.000000e+00 : f32
    %165 = vector.broadcast %cst_51 : f32 to vector<8x256xf32>
    %166 = arith.addf %165, %164 : vector<8x256xf32>
    %167 = arith.divf %165, %166 : vector<8x256xf32>
    %168 = vector.extract_strided_slice %155 {offsets = [0, 512], sizes = [8, 256], strides = [1, 1]} : vector<8x1024xf32> to vector<8x256xf32>
    %169 = math.tanh %168 : vector<8x256xf32>
    %170 = vector.extract_strided_slice %155 {offsets = [0, 768], sizes = [8, 256], strides = [1, 1]} : vector<8x1024xf32> to vector<8x256xf32>
    %171 = arith.negf %170 : vector<8x256xf32>
    %172 = math.exp %171 : vector<8x256xf32>
    %cst_52 = arith.constant 1.000000e+00 : f32
    %173 = vector.broadcast %cst_52 : f32 to vector<8x256xf32>
    %174 = arith.addf %173, %172 : vector<8x256xf32>
    %175 = arith.divf %173, %174 : vector<8x256xf32>
    %176 = arith.mulf %167, %148 : vector<8x256xf32>
    %177 = arith.mulf %161, %169 : vector<8x256xf32>
    %178 = arith.addf %176, %177 : vector<8x256xf32>
    %179 = math.tanh %178 : vector<8x256xf32>
    %180 = arith.mulf %175, %179 : vector<8x256xf32>
    %c40_53 = arith.constant 40 : index
    %c0_54 = arith.constant 0 : index
    %181 = vector.load %arg8[%c40_53, %c0_54] : memref<64x256xf32, #tpu.memory_space<vmem>>, vector<8x256xf32>
    tpu.vector_store %arg8[%c40_53, %c0_54], %180 {strides = array<i32>} : memref<64x256xf32, #tpu.memory_space<vmem>>, vector<8x256xf32>,
    %c48 = arith.constant 48 : index
    %c0_55 = arith.constant 0 : index
    %182 = vector.load %arg0[%c48, %c0_55] : memref<64x1024xf32, #tpu.memory_space<vmem>>, vector<8x1024xf32>
    %c0_56 = arith.constant 0 : index
    %c0_57 = arith.constant 0 : index
    %183 = vector.load %arg1[%c0_56, %c0_57] : memref<256x1024xf32, #tpu.memory_space<vmem>>, vector<256x1024xf32>
    %cst_58 = arith.constant dense<0.000000e+00> : vector<8x1024xf32>
    %184 = tpu.matmul %180, %183, %cst_58 {dimension_numbers = #tpu.dot_dimension_numbers<[1], [0], [0], [1], [0, 0, 1, 1], [], []>} : vector<8x256xf32>, vector<256x1024xf32>, vector<8x1024xf32> -> vector<8x1024xf32>
    %185 = arith.addf %182, %184 : vector<8x1024xf32>
    %186 = vector.extract_strided_slice %185 {offsets = [0, 0], sizes = [8, 256], strides = [1, 1]} : vector<8x1024xf32> to vector<8x256xf32>
    %187 = arith.negf %186 : vector<8x256xf32>
    %188 = math.exp %187 : vector<8x256xf32>
    %cst_59 = arith.constant 1.000000e+00 : f32
    %189 = vector.broadcast %cst_59 : f32 to vector<8x256xf32>
    %190 = arith.addf %189, %188 : vector<8x256xf32>
    %191 = arith.divf %189, %190 : vector<8x256xf32>
    %192 = vector.extract_strided_slice %185 {offsets = [0, 256], sizes = [8, 256], strides = [1, 1]} : vector<8x1024xf32> to vector<8x256xf32>
    %193 = arith.negf %192 : vector<8x256xf32>
    %194 = math.exp %193 : vector<8x256xf32>
    %cst_60 = arith.constant 1.000000e+00 : f32
    %195 = vector.broadcast %cst_60 : f32 to vector<8x256xf32>
    %196 = arith.addf %195, %194 : vector<8x256xf32>
    %197 = arith.divf %195, %196 : vector<8x256xf32>
    %198 = vector.extract_strided_slice %185 {offsets = [0, 512], sizes = [8, 256], strides = [1, 1]} : vector<8x1024xf32> to vector<8x256xf32>
    %199 = math.tanh %198 : vector<8x256xf32>
    %200 = vector.extract_strided_slice %185 {offsets = [0, 768], sizes = [8, 256], strides = [1, 1]} : vector<8x1024xf32> to vector<8x256xf32>
    %201 = arith.negf %200 : vector<8x256xf32>
    %202 = math.exp %201 : vector<8x256xf32>
    %cst_61 = arith.constant 1.000000e+00 : f32
    %203 = vector.broadcast %cst_61 : f32 to vector<8x256xf32>
    %204 = arith.addf %203, %202 : vector<8x256xf32>
    %205 = arith.divf %203, %204 : vector<8x256xf32>
    %206 = arith.mulf %197, %178 : vector<8x256xf32>
    %207 = arith.mulf %191, %199 : vector<8x256xf32>
    %208 = arith.addf %206, %207 : vector<8x256xf32>
    %209 = math.tanh %208 : vector<8x256xf32>
    %210 = arith.mulf %205, %209 : vector<8x256xf32>
    %c48_62 = arith.constant 48 : index
    %c0_63 = arith.constant 0 : index
    %211 = vector.load %arg8[%c48_62, %c0_63] : memref<64x256xf32, #tpu.memory_space<vmem>>, vector<8x256xf32>
    tpu.vector_store %arg8[%c48_62, %c0_63], %210 {strides = array<i32>} : memref<64x256xf32, #tpu.memory_space<vmem>>, vector<8x256xf32>,
    %c56 = arith.constant 56 : index
    %c0_64 = arith.constant 0 : index
    %212 = vector.load %arg0[%c56, %c0_64] : memref<64x1024xf32, #tpu.memory_space<vmem>>, vector<8x1024xf32>
    %c0_65 = arith.constant 0 : index
    %c0_66 = arith.constant 0 : index
    %213 = vector.load %arg1[%c0_65, %c0_66] : memref<256x1024xf32, #tpu.memory_space<vmem>>, vector<256x1024xf32>
    %cst_67 = arith.constant dense<0.000000e+00> : vector<8x1024xf32>
    %214 = tpu.matmul %210, %213, %cst_67 {dimension_numbers = #tpu.dot_dimension_numbers<[1], [0], [0], [1], [0, 0, 1, 1], [], []>} : vector<8x256xf32>, vector<256x1024xf32>, vector<8x1024xf32> -> vector<8x1024xf32>
    %215 = arith.addf %212, %214 : vector<8x1024xf32>
    %216 = vector.extract_strided_slice %215 {offsets = [0, 0], sizes = [8, 256], strides = [1, 1]} : vector<8x1024xf32> to vector<8x256xf32>
    %217 = arith.negf %216 : vector<8x256xf32>
    %218 = math.exp %217 : vector<8x256xf32>
    %cst_68 = arith.constant 1.000000e+00 : f32
    %219 = vector.broadcast %cst_68 : f32 to vector<8x256xf32>
    %220 = arith.addf %219, %218 : vector<8x256xf32>
    %221 = arith.divf %219, %220 : vector<8x256xf32>
    %222 = vector.extract_strided_slice %215 {offsets = [0, 256], sizes = [8, 256], strides = [1, 1]} : vector<8x1024xf32> to vector<8x256xf32>
    %223 = arith.negf %222 : vector<8x256xf32>
    %224 = math.exp %223 : vector<8x256xf32>
    %cst_69 = arith.constant 1.000000e+00 : f32
    %225 = vector.broadcast %cst_69 : f32 to vector<8x256xf32>
    %226 = arith.addf %225, %224 : vector<8x256xf32>
    %227 = arith.divf %225, %226 : vector<8x256xf32>
    %228 = vector.extract_strided_slice %215 {offsets = [0, 512], sizes = [8, 256], strides = [1, 1]} : vector<8x1024xf32> to vector<8x256xf32>
    %229 = math.tanh %228 : vector<8x256xf32>
    %230 = vector.extract_strided_slice %215 {offsets = [0, 768], sizes = [8, 256], strides = [1, 1]} : vector<8x1024xf32> to vector<8x256xf32>
    %231 = arith.negf %230 : vector<8x256xf32>
    %232 = math.exp %231 : vector<8x256xf32>
    %cst_70 = arith.constant 1.000000e+00 : f32
    %233 = vector.broadcast %cst_70 : f32 to vector<8x256xf32>
    %234 = arith.addf %233, %232 : vector<8x256xf32>
    %235 = arith.divf %233, %234 : vector<8x256xf32>
    %236 = arith.mulf %227, %208 : vector<8x256xf32>
    %237 = arith.mulf %221, %229 : vector<8x256xf32>
    %238 = arith.addf %236, %237 : vector<8x256xf32>
    %239 = math.tanh %238 : vector<8x256xf32>
    %240 = arith.mulf %235, %239 : vector<8x256xf32>
    %c56_71 = arith.constant 56 : index
    %c0_72 = arith.constant 0 : index
    %241 = vector.load %arg8[%c56_71, %c0_72] : memref<64x256xf32, #tpu.memory_space<vmem>>, vector<8x256xf32>
    tpu.vector_store %arg8[%c56_71, %c0_72], %240 {strides = array<i32>} : memref<64x256xf32, #tpu.memory_space<vmem>>, vector<8x256xf32>,
    %c0_73 = arith.constant 0 : index
    %c0_74 = arith.constant 0 : index
    %242 = vector.load %arg8[%c0_73, %c0_74] : memref<64x256xf32, #tpu.memory_space<vmem>>, vector<64x256xf32>
    %c0_75 = arith.constant 0 : index
    %c0_76 = arith.constant 0 : index
    %243 = vector.load %arg2[%c0_75, %c0_76] : memref<256x1024xf32, #tpu.memory_space<vmem>>, vector<256x1024xf32>
    %cst_77 = arith.constant dense<0.000000e+00> : vector<64x1024xf32>
    %244 = tpu.matmul %242, %243, %cst_77 {dimension_numbers = #tpu.dot_dimension_numbers<[1], [0], [0], [1], [0, 0, 1, 1], [], []>} : vector<64x256xf32>, vector<256x1024xf32>, vector<64x1024xf32> -> vector<64x1024xf32>
    %c0_78 = arith.constant 0 : index
    %c0_79 = arith.constant 0 : index
    %245 = vector.load %arg4[%c0_78, %c0_79] : memref<1x1024xf32, #tpu.memory_space<vmem>>, vector<1x1024xf32>
    %246 = vector.broadcast %245 : vector<1x1024xf32> to vector<64x1024xf32>
    %247 = arith.addf %244, %246 : vector<64x1024xf32>
    %c0_80 = arith.constant 0 : index
    %c0_81 = arith.constant 0 : index
    %248 = vector.load %arg9[%c0_80, %c0_81] : memref<64x1024xf32, #tpu.memory_space<vmem>>, vector<64x1024xf32>
    tpu.vector_store %arg9[%c0_80, %c0_81], %247 {strides = array<i32>} : memref<64x1024xf32, #tpu.memory_space<vmem>>, vector<64x1024xf32>,
    %cst_82 = arith.constant 0.000000e+00 : f32
    %249 = vector.broadcast %cst_82 : f32 to vector<8x256xf32>
    %cst_83 = arith.constant 0.000000e+00 : f32
    %250 = vector.broadcast %cst_83 : f32 to vector<8x256xf32>
    %c0_84 = arith.constant 0 : index
    %c0_85 = arith.constant 0 : index
    %251 = vector.load %arg9[%c0_84, %c0_85] : memref<64x1024xf32, #tpu.memory_space<vmem>>, vector<8x1024xf32>
    %c0_86 = arith.constant 0 : index
    %c0_87 = arith.constant 0 : index
    %252 = vector.load %arg3[%c0_86, %c0_87] : memref<256x1024xf32, #tpu.memory_space<vmem>>, vector<256x1024xf32>
    %cst_88 = arith.constant dense<0.000000e+00> : vector<8x1024xf32>
    %253 = tpu.matmul %249, %252, %cst_88 {dimension_numbers = #tpu.dot_dimension_numbers<[1], [0], [0], [1], [0, 0, 1, 1], [], []>} : vector<8x256xf32>, vector<256x1024xf32>, vector<8x1024xf32> -> vector<8x1024xf32>
    %254 = arith.addf %251, %253 : vector<8x1024xf32>
    %255 = vector.extract_strided_slice %254 {offsets = [0, 0], sizes = [8, 256], strides = [1, 1]} : vector<8x1024xf32> to vector<8x256xf32>
    %256 = arith.negf %255 : vector<8x256xf32>
    %257 = math.exp %256 : vector<8x256xf32>
    %cst_89 = arith.constant 1.000000e+00 : f32
    %258 = vector.broadcast %cst_89 : f32 to vector<8x256xf32>
    %259 = arith.addf %258, %257 : vector<8x256xf32>
    %260 = arith.divf %258, %259 : vector<8x256xf32>
    %261 = vector.extract_strided_slice %254 {offsets = [0, 256], sizes = [8, 256], strides = [1, 1]} : vector<8x1024xf32> to vector<8x256xf32>
    %262 = arith.negf %261 : vector<8x256xf32>
    %263 = math.exp %262 : vector<8x256xf32>
    %cst_90 = arith.constant 1.000000e+00 : f32
    %264 = vector.broadcast %cst_90 : f32 to vector<8x256xf32>
    %265 = arith.addf %264, %263 : vector<8x256xf32>
    %266 = arith.divf %264, %265 : vector<8x256xf32>
    %267 = vector.extract_strided_slice %254 {offsets = [0, 512], sizes = [8, 256], strides = [1, 1]} : vector<8x1024xf32> to vector<8x256xf32>
    %268 = math.tanh %267 : vector<8x256xf32>
    %269 = vector.extract_strided_slice %254 {offsets = [0, 768], sizes = [8, 256], strides = [1, 1]} : vector<8x1024xf32> to vector<8x256xf32>
    %270 = arith.negf %269 : vector<8x256xf32>
    %271 = math.exp %270 : vector<8x256xf32>
    %cst_91 = arith.constant 1.000000e+00 : f32
    %272 = vector.broadcast %cst_91 : f32 to vector<8x256xf32>
    %273 = arith.addf %272, %271 : vector<8x256xf32>
    %274 = arith.divf %272, %273 : vector<8x256xf32>
    %275 = arith.mulf %266, %250 : vector<8x256xf32>
    %276 = arith.mulf %260, %268 : vector<8x256xf32>
    %277 = arith.addf %275, %276 : vector<8x256xf32>
    %278 = math.tanh %277 : vector<8x256xf32>
    %279 = arith.mulf %274, %278 : vector<8x256xf32>
    %c8_92 = arith.constant 8 : index
    %c0_93 = arith.constant 0 : index
    %280 = vector.load %arg9[%c8_92, %c0_93] : memref<64x1024xf32, #tpu.memory_space<vmem>>, vector<8x1024xf32>
    %c0_94 = arith.constant 0 : index
    %c0_95 = arith.constant 0 : index
    %281 = vector.load %arg3[%c0_94, %c0_95] : memref<256x1024xf32, #tpu.memory_space<vmem>>, vector<256x1024xf32>
    %cst_96 = arith.constant dense<0.000000e+00> : vector<8x1024xf32>
    %282 = tpu.matmul %279, %281, %cst_96 {dimension_numbers = #tpu.dot_dimension_numbers<[1], [0], [0], [1], [0, 0, 1, 1], [], []>} : vector<8x256xf32>, vector<256x1024xf32>, vector<8x1024xf32> -> vector<8x1024xf32>
    %283 = arith.addf %280, %282 : vector<8x1024xf32>
    %284 = vector.extract_strided_slice %283 {offsets = [0, 0], sizes = [8, 256], strides = [1, 1]} : vector<8x1024xf32> to vector<8x256xf32>
    %285 = arith.negf %284 : vector<8x256xf32>
    %286 = math.exp %285 : vector<8x256xf32>
    %cst_97 = arith.constant 1.000000e+00 : f32
    %287 = vector.broadcast %cst_97 : f32 to vector<8x256xf32>
    %288 = arith.addf %287, %286 : vector<8x256xf32>
    %289 = arith.divf %287, %288 : vector<8x256xf32>
    %290 = vector.extract_strided_slice %283 {offsets = [0, 256], sizes = [8, 256], strides = [1, 1]} : vector<8x1024xf32> to vector<8x256xf32>
    %291 = arith.negf %290 : vector<8x256xf32>
    %292 = math.exp %291 : vector<8x256xf32>
    %cst_98 = arith.constant 1.000000e+00 : f32
    %293 = vector.broadcast %cst_98 : f32 to vector<8x256xf32>
    %294 = arith.addf %293, %292 : vector<8x256xf32>
    %295 = arith.divf %293, %294 : vector<8x256xf32>
    %296 = vector.extract_strided_slice %283 {offsets = [0, 512], sizes = [8, 256], strides = [1, 1]} : vector<8x1024xf32> to vector<8x256xf32>
    %297 = math.tanh %296 : vector<8x256xf32>
    %298 = vector.extract_strided_slice %283 {offsets = [0, 768], sizes = [8, 256], strides = [1, 1]} : vector<8x1024xf32> to vector<8x256xf32>
    %299 = arith.negf %298 : vector<8x256xf32>
    %300 = math.exp %299 : vector<8x256xf32>
    %cst_99 = arith.constant 1.000000e+00 : f32
    %301 = vector.broadcast %cst_99 : f32 to vector<8x256xf32>
    %302 = arith.addf %301, %300 : vector<8x256xf32>
    %303 = arith.divf %301, %302 : vector<8x256xf32>
    %304 = arith.mulf %295, %277 : vector<8x256xf32>
    %305 = arith.mulf %289, %297 : vector<8x256xf32>
    %306 = arith.addf %304, %305 : vector<8x256xf32>
    %307 = math.tanh %306 : vector<8x256xf32>
    %308 = arith.mulf %303, %307 : vector<8x256xf32>
    %c16_100 = arith.constant 16 : index
    %c0_101 = arith.constant 0 : index
    %309 = vector.load %arg9[%c16_100, %c0_101] : memref<64x1024xf32, #tpu.memory_space<vmem>>, vector<8x1024xf32>
    %c0_102 = arith.constant 0 : index
    %c0_103 = arith.constant 0 : index
    %310 = vector.load %arg3[%c0_102, %c0_103] : memref<256x1024xf32, #tpu.memory_space<vmem>>, vector<256x1024xf32>
    %cst_104 = arith.constant dense<0.000000e+00> : vector<8x1024xf32>
    %311 = tpu.matmul %308, %310, %cst_104 {dimension_numbers = #tpu.dot_dimension_numbers<[1], [0], [0], [1], [0, 0, 1, 1], [], []>} : vector<8x256xf32>, vector<256x1024xf32>, vector<8x1024xf32> -> vector<8x1024xf32>
    %312 = arith.addf %309, %311 : vector<8x1024xf32>
    %313 = vector.extract_strided_slice %312 {offsets = [0, 0], sizes = [8, 256], strides = [1, 1]} : vector<8x1024xf32> to vector<8x256xf32>
    %314 = arith.negf %313 : vector<8x256xf32>
    %315 = math.exp %314 : vector<8x256xf32>
    %cst_105 = arith.constant 1.000000e+00 : f32
    %316 = vector.broadcast %cst_105 : f32 to vector<8x256xf32>
    %317 = arith.addf %316, %315 : vector<8x256xf32>
    %318 = arith.divf %316, %317 : vector<8x256xf32>
    %319 = vector.extract_strided_slice %312 {offsets = [0, 256], sizes = [8, 256], strides = [1, 1]} : vector<8x1024xf32> to vector<8x256xf32>
    %320 = arith.negf %319 : vector<8x256xf32>
    %321 = math.exp %320 : vector<8x256xf32>
    %cst_106 = arith.constant 1.000000e+00 : f32
    %322 = vector.broadcast %cst_106 : f32 to vector<8x256xf32>
    %323 = arith.addf %322, %321 : vector<8x256xf32>
    %324 = arith.divf %322, %323 : vector<8x256xf32>
    %325 = vector.extract_strided_slice %312 {offsets = [0, 512], sizes = [8, 256], strides = [1, 1]} : vector<8x1024xf32> to vector<8x256xf32>
    %326 = math.tanh %325 : vector<8x256xf32>
    %327 = vector.extract_strided_slice %312 {offsets = [0, 768], sizes = [8, 256], strides = [1, 1]} : vector<8x1024xf32> to vector<8x256xf32>
    %328 = arith.negf %327 : vector<8x256xf32>
    %329 = math.exp %328 : vector<8x256xf32>
    %cst_107 = arith.constant 1.000000e+00 : f32
    %330 = vector.broadcast %cst_107 : f32 to vector<8x256xf32>
    %331 = arith.addf %330, %329 : vector<8x256xf32>
    %332 = arith.divf %330, %331 : vector<8x256xf32>
    %333 = arith.mulf %324, %306 : vector<8x256xf32>
    %334 = arith.mulf %318, %326 : vector<8x256xf32>
    %335 = arith.addf %333, %334 : vector<8x256xf32>
    %336 = math.tanh %335 : vector<8x256xf32>
    %337 = arith.mulf %332, %336 : vector<8x256xf32>
    %c24_108 = arith.constant 24 : index
    %c0_109 = arith.constant 0 : index
    %338 = vector.load %arg9[%c24_108, %c0_109] : memref<64x1024xf32, #tpu.memory_space<vmem>>, vector<8x1024xf32>
    %c0_110 = arith.constant 0 : index
    %c0_111 = arith.constant 0 : index
    %339 = vector.load %arg3[%c0_110, %c0_111] : memref<256x1024xf32, #tpu.memory_space<vmem>>, vector<256x1024xf32>
    %cst_112 = arith.constant dense<0.000000e+00> : vector<8x1024xf32>
    %340 = tpu.matmul %337, %339, %cst_112 {dimension_numbers = #tpu.dot_dimension_numbers<[1], [0], [0], [1], [0, 0, 1, 1], [], []>} : vector<8x256xf32>, vector<256x1024xf32>, vector<8x1024xf32> -> vector<8x1024xf32>
    %341 = arith.addf %338, %340 : vector<8x1024xf32>
    %342 = vector.extract_strided_slice %341 {offsets = [0, 0], sizes = [8, 256], strides = [1, 1]} : vector<8x1024xf32> to vector<8x256xf32>
    %343 = arith.negf %342 : vector<8x256xf32>
    %344 = math.exp %343 : vector<8x256xf32>
    %cst_113 = arith.constant 1.000000e+00 : f32
    %345 = vector.broadcast %cst_113 : f32 to vector<8x256xf32>
    %346 = arith.addf %345, %344 : vector<8x256xf32>
    %347 = arith.divf %345, %346 : vector<8x256xf32>
    %348 = vector.extract_strided_slice %341 {offsets = [0, 256], sizes = [8, 256], strides = [1, 1]} : vector<8x1024xf32> to vector<8x256xf32>
    %349 = arith.negf %348 : vector<8x256xf32>
    %350 = math.exp %349 : vector<8x256xf32>
    %cst_114 = arith.constant 1.000000e+00 : f32
    %351 = vector.broadcast %cst_114 : f32 to vector<8x256xf32>
    %352 = arith.addf %351, %350 : vector<8x256xf32>
    %353 = arith.divf %351, %352 : vector<8x256xf32>
    %354 = vector.extract_strided_slice %341 {offsets = [0, 512], sizes = [8, 256], strides = [1, 1]} : vector<8x1024xf32> to vector<8x256xf32>
    %355 = math.tanh %354 : vector<8x256xf32>
    %356 = vector.extract_strided_slice %341 {offsets = [0, 768], sizes = [8, 256], strides = [1, 1]} : vector<8x1024xf32> to vector<8x256xf32>
    %357 = arith.negf %356 : vector<8x256xf32>
    %358 = math.exp %357 : vector<8x256xf32>
    %cst_115 = arith.constant 1.000000e+00 : f32
    %359 = vector.broadcast %cst_115 : f32 to vector<8x256xf32>
    %360 = arith.addf %359, %358 : vector<8x256xf32>
    %361 = arith.divf %359, %360 : vector<8x256xf32>
    %362 = arith.mulf %353, %335 : vector<8x256xf32>
    %363 = arith.mulf %347, %355 : vector<8x256xf32>
    %364 = arith.addf %362, %363 : vector<8x256xf32>
    %365 = math.tanh %364 : vector<8x256xf32>
    %366 = arith.mulf %361, %365 : vector<8x256xf32>
    %c32_116 = arith.constant 32 : index
    %c0_117 = arith.constant 0 : index
    %367 = vector.load %arg9[%c32_116, %c0_117] : memref<64x1024xf32, #tpu.memory_space<vmem>>, vector<8x1024xf32>
    %c0_118 = arith.constant 0 : index
    %c0_119 = arith.constant 0 : index
    %368 = vector.load %arg3[%c0_118, %c0_119] : memref<256x1024xf32, #tpu.memory_space<vmem>>, vector<256x1024xf32>
    %cst_120 = arith.constant dense<0.000000e+00> : vector<8x1024xf32>
    %369 = tpu.matmul %366, %368, %cst_120 {dimension_numbers = #tpu.dot_dimension_numbers<[1], [0], [0], [1], [0, 0, 1, 1], [], []>} : vector<8x256xf32>, vector<256x1024xf32>, vector<8x1024xf32> -> vector<8x1024xf32>
    %370 = arith.addf %367, %369 : vector<8x1024xf32>
    %371 = vector.extract_strided_slice %370 {offsets = [0, 0], sizes = [8, 256], strides = [1, 1]} : vector<8x1024xf32> to vector<8x256xf32>
    %372 = arith.negf %371 : vector<8x256xf32>
    %373 = math.exp %372 : vector<8x256xf32>
    %cst_121 = arith.constant 1.000000e+00 : f32
    %374 = vector.broadcast %cst_121 : f32 to vector<8x256xf32>
    %375 = arith.addf %374, %373 : vector<8x256xf32>
    %376 = arith.divf %374, %375 : vector<8x256xf32>
    %377 = vector.extract_strided_slice %370 {offsets = [0, 256], sizes = [8, 256], strides = [1, 1]} : vector<8x1024xf32> to vector<8x256xf32>
    %378 = arith.negf %377 : vector<8x256xf32>
    %379 = math.exp %378 : vector<8x256xf32>
    %cst_122 = arith.constant 1.000000e+00 : f32
    %380 = vector.broadcast %cst_122 : f32 to vector<8x256xf32>
    %381 = arith.addf %380, %379 : vector<8x256xf32>
    %382 = arith.divf %380, %381 : vector<8x256xf32>
    %383 = vector.extract_strided_slice %370 {offsets = [0, 512], sizes = [8, 256], strides = [1, 1]} : vector<8x1024xf32> to vector<8x256xf32>
    %384 = math.tanh %383 : vector<8x256xf32>
    %385 = vector.extract_strided_slice %370 {offsets = [0, 768], sizes = [8, 256], strides = [1, 1]} : vector<8x1024xf32> to vector<8x256xf32>
    %386 = arith.negf %385 : vector<8x256xf32>
    %387 = math.exp %386 : vector<8x256xf32>
    %cst_123 = arith.constant 1.000000e+00 : f32
    %388 = vector.broadcast %cst_123 : f32 to vector<8x256xf32>
    %389 = arith.addf %388, %387 : vector<8x256xf32>
    %390 = arith.divf %388, %389 : vector<8x256xf32>
    %391 = arith.mulf %382, %364 : vector<8x256xf32>
    %392 = arith.mulf %376, %384 : vector<8x256xf32>
    %393 = arith.addf %391, %392 : vector<8x256xf32>
    %394 = math.tanh %393 : vector<8x256xf32>
    %395 = arith.mulf %390, %394 : vector<8x256xf32>
    %c40_124 = arith.constant 40 : index
    %c0_125 = arith.constant 0 : index
    %396 = vector.load %arg9[%c40_124, %c0_125] : memref<64x1024xf32, #tpu.memory_space<vmem>>, vector<8x1024xf32>
    %c0_126 = arith.constant 0 : index
    %c0_127 = arith.constant 0 : index
    %397 = vector.load %arg3[%c0_126, %c0_127] : memref<256x1024xf32, #tpu.memory_space<vmem>>, vector<256x1024xf32>
    %cst_128 = arith.constant dense<0.000000e+00> : vector<8x1024xf32>
    %398 = tpu.matmul %395, %397, %cst_128 {dimension_numbers = #tpu.dot_dimension_numbers<[1], [0], [0], [1], [0, 0, 1, 1], [], []>} : vector<8x256xf32>, vector<256x1024xf32>, vector<8x1024xf32> -> vector<8x1024xf32>
    %399 = arith.addf %396, %398 : vector<8x1024xf32>
    %400 = vector.extract_strided_slice %399 {offsets = [0, 0], sizes = [8, 256], strides = [1, 1]} : vector<8x1024xf32> to vector<8x256xf32>
    %401 = arith.negf %400 : vector<8x256xf32>
    %402 = math.exp %401 : vector<8x256xf32>
    %cst_129 = arith.constant 1.000000e+00 : f32
    %403 = vector.broadcast %cst_129 : f32 to vector<8x256xf32>
    %404 = arith.addf %403, %402 : vector<8x256xf32>
    %405 = arith.divf %403, %404 : vector<8x256xf32>
    %406 = vector.extract_strided_slice %399 {offsets = [0, 256], sizes = [8, 256], strides = [1, 1]} : vector<8x1024xf32> to vector<8x256xf32>
    %407 = arith.negf %406 : vector<8x256xf32>
    %408 = math.exp %407 : vector<8x256xf32>
    %cst_130 = arith.constant 1.000000e+00 : f32
    %409 = vector.broadcast %cst_130 : f32 to vector<8x256xf32>
    %410 = arith.addf %409, %408 : vector<8x256xf32>
    %411 = arith.divf %409, %410 : vector<8x256xf32>
    %412 = vector.extract_strided_slice %399 {offsets = [0, 512], sizes = [8, 256], strides = [1, 1]} : vector<8x1024xf32> to vector<8x256xf32>
    %413 = math.tanh %412 : vector<8x256xf32>
    %414 = vector.extract_strided_slice %399 {offsets = [0, 768], sizes = [8, 256], strides = [1, 1]} : vector<8x1024xf32> to vector<8x256xf32>
    %415 = arith.negf %414 : vector<8x256xf32>
    %416 = math.exp %415 : vector<8x256xf32>
    %cst_131 = arith.constant 1.000000e+00 : f32
    %417 = vector.broadcast %cst_131 : f32 to vector<8x256xf32>
    %418 = arith.addf %417, %416 : vector<8x256xf32>
    %419 = arith.divf %417, %418 : vector<8x256xf32>
    %420 = arith.mulf %411, %393 : vector<8x256xf32>
    %421 = arith.mulf %405, %413 : vector<8x256xf32>
    %422 = arith.addf %420, %421 : vector<8x256xf32>
    %423 = math.tanh %422 : vector<8x256xf32>
    %424 = arith.mulf %419, %423 : vector<8x256xf32>
    %c48_132 = arith.constant 48 : index
    %c0_133 = arith.constant 0 : index
    %425 = vector.load %arg9[%c48_132, %c0_133] : memref<64x1024xf32, #tpu.memory_space<vmem>>, vector<8x1024xf32>
    %c0_134 = arith.constant 0 : index
    %c0_135 = arith.constant 0 : index
    %426 = vector.load %arg3[%c0_134, %c0_135] : memref<256x1024xf32, #tpu.memory_space<vmem>>, vector<256x1024xf32>
    %cst_136 = arith.constant dense<0.000000e+00> : vector<8x1024xf32>
    %427 = tpu.matmul %424, %426, %cst_136 {dimension_numbers = #tpu.dot_dimension_numbers<[1], [0], [0], [1], [0, 0, 1, 1], [], []>} : vector<8x256xf32>, vector<256x1024xf32>, vector<8x1024xf32> -> vector<8x1024xf32>
    %428 = arith.addf %425, %427 : vector<8x1024xf32>
    %429 = vector.extract_strided_slice %428 {offsets = [0, 0], sizes = [8, 256], strides = [1, 1]} : vector<8x1024xf32> to vector<8x256xf32>
    %430 = arith.negf %429 : vector<8x256xf32>
    %431 = math.exp %430 : vector<8x256xf32>
    %cst_137 = arith.constant 1.000000e+00 : f32
    %432 = vector.broadcast %cst_137 : f32 to vector<8x256xf32>
    %433 = arith.addf %432, %431 : vector<8x256xf32>
    %434 = arith.divf %432, %433 : vector<8x256xf32>
    %435 = vector.extract_strided_slice %428 {offsets = [0, 256], sizes = [8, 256], strides = [1, 1]} : vector<8x1024xf32> to vector<8x256xf32>
    %436 = arith.negf %435 : vector<8x256xf32>
    %437 = math.exp %436 : vector<8x256xf32>
    %cst_138 = arith.constant 1.000000e+00 : f32
    %438 = vector.broadcast %cst_138 : f32 to vector<8x256xf32>
    %439 = arith.addf %438, %437 : vector<8x256xf32>
    %440 = arith.divf %438, %439 : vector<8x256xf32>
    %441 = vector.extract_strided_slice %428 {offsets = [0, 512], sizes = [8, 256], strides = [1, 1]} : vector<8x1024xf32> to vector<8x256xf32>
    %442 = math.tanh %441 : vector<8x256xf32>
    %443 = vector.extract_strided_slice %428 {offsets = [0, 768], sizes = [8, 256], strides = [1, 1]} : vector<8x1024xf32> to vector<8x256xf32>
    %444 = arith.negf %443 : vector<8x256xf32>
    %445 = math.exp %444 : vector<8x256xf32>
    %cst_139 = arith.constant 1.000000e+00 : f32
    %446 = vector.broadcast %cst_139 : f32 to vector<8x256xf32>
    %447 = arith.addf %446, %445 : vector<8x256xf32>
    %448 = arith.divf %446, %447 : vector<8x256xf32>
    %449 = arith.mulf %440, %422 : vector<8x256xf32>
    %450 = arith.mulf %434, %442 : vector<8x256xf32>
    %451 = arith.addf %449, %450 : vector<8x256xf32>
    %452 = math.tanh %451 : vector<8x256xf32>
    %453 = arith.mulf %448, %452 : vector<8x256xf32>
    %c56_140 = arith.constant 56 : index
    %c0_141 = arith.constant 0 : index
    %454 = vector.load %arg9[%c56_140, %c0_141] : memref<64x1024xf32, #tpu.memory_space<vmem>>, vector<8x1024xf32>
    %c0_142 = arith.constant 0 : index
    %c0_143 = arith.constant 0 : index
    %455 = vector.load %arg3[%c0_142, %c0_143] : memref<256x1024xf32, #tpu.memory_space<vmem>>, vector<256x1024xf32>
    %cst_144 = arith.constant dense<0.000000e+00> : vector<8x1024xf32>
    %456 = tpu.matmul %453, %455, %cst_144 {dimension_numbers = #tpu.dot_dimension_numbers<[1], [0], [0], [1], [0, 0, 1, 1], [], []>} : vector<8x256xf32>, vector<256x1024xf32>, vector<8x1024xf32> -> vector<8x1024xf32>
    %457 = arith.addf %454, %456 : vector<8x1024xf32>
    %458 = vector.extract_strided_slice %457 {offsets = [0, 0], sizes = [8, 256], strides = [1, 1]} : vector<8x1024xf32> to vector<8x256xf32>
    %459 = arith.negf %458 : vector<8x256xf32>
    %460 = math.exp %459 : vector<8x256xf32>
    %cst_145 = arith.constant 1.000000e+00 : f32
    %461 = vector.broadcast %cst_145 : f32 to vector<8x256xf32>
    %462 = arith.addf %461, %460 : vector<8x256xf32>
    %463 = arith.divf %461, %462 : vector<8x256xf32>
    %464 = vector.extract_strided_slice %457 {offsets = [0, 256], sizes = [8, 256], strides = [1, 1]} : vector<8x1024xf32> to vector<8x256xf32>
    %465 = arith.negf %464 : vector<8x256xf32>
    %466 = math.exp %465 : vector<8x256xf32>
    %cst_146 = arith.constant 1.000000e+00 : f32
    %467 = vector.broadcast %cst_146 : f32 to vector<8x256xf32>
    %468 = arith.addf %467, %466 : vector<8x256xf32>
    %469 = arith.divf %467, %468 : vector<8x256xf32>
    %470 = vector.extract_strided_slice %457 {offsets = [0, 512], sizes = [8, 256], strides = [1, 1]} : vector<8x1024xf32> to vector<8x256xf32>
    %471 = math.tanh %470 : vector<8x256xf32>
    %472 = vector.extract_strided_slice %457 {offsets = [0, 768], sizes = [8, 256], strides = [1, 1]} : vector<8x1024xf32> to vector<8x256xf32>
    %473 = arith.negf %472 : vector<8x256xf32>
    %474 = math.exp %473 : vector<8x256xf32>
    %cst_147 = arith.constant 1.000000e+00 : f32
    %475 = vector.broadcast %cst_147 : f32 to vector<8x256xf32>
    %476 = arith.addf %475, %474 : vector<8x256xf32>
    %477 = arith.divf %475, %476 : vector<8x256xf32>
    %478 = arith.mulf %469, %451 : vector<8x256xf32>
    %479 = arith.mulf %463, %471 : vector<8x256xf32>
    %480 = arith.addf %478, %479 : vector<8x256xf32>
    %481 = math.tanh %480 : vector<8x256xf32>
    %482 = arith.mulf %477, %481 : vector<8x256xf32>
    %c0_148 = arith.constant 0 : index
    %c0_149 = arith.constant 0 : index
    %483 = vector.load %arg5[%c0_148, %c0_149] : memref<256x128xf32, #tpu.memory_space<vmem>>, vector<256x128xf32>
    %cst_150 = arith.constant dense<0.000000e+00> : vector<8x128xf32>
    %484 = tpu.matmul %482, %483, %cst_150 {dimension_numbers = #tpu.dot_dimension_numbers<[1], [0], [0], [1], [0, 0, 1, 1], [], []>} : vector<8x256xf32>, vector<256x128xf32>, vector<8x128xf32> -> vector<8x128xf32>
    %c0_151 = arith.constant 0 : index
    %c0_152 = arith.constant 0 : index
    %485 = vector.load %arg6[%c0_151, %c0_152] : memref<1x128xf32, #tpu.memory_space<vmem>>, vector<1x128xf32>
    %486 = vector.broadcast %485 : vector<1x128xf32> to vector<8x128xf32>
    %487 = arith.addf %484, %486 : vector<8x128xf32>
    %c0_153 = arith.constant 0 : index
    %c0_154 = arith.constant 0 : index
    %488 = vector.load %arg7[%c0_153, %c0_154] : memref<8x128xf32, #tpu.memory_space<vmem>>, vector<8x128xf32>
    tpu.vector_store %arg7[%c0_153, %c0_154], %487 {strides = array<i32>} : memref<8x128xf32, #tpu.memory_space<vmem>>, vector<8x128xf32>,
    return
  }
}

</mosaic_0001>

<llo_original>
// kernel: lstm_model_forward.1
$region0: #{lstm_model_forward.1}
  #allocation0 [shape = 'u32[]', space=smem, size = 0x4, offset = 0x4, fixed_abs, tag = 'smem constant byte address 0x4 - core index']
  #allocation1 [shape = 'u32[144,128]{1,0:T(1,128)}', space=vmem, size = 0x12000, scoped, tag = 'internal scratch']
  #allocation2 [shape = 'f32[64,256]{1,0:T(8,128)}', space=vmem, size = 0x10000, scoped, tag = 'scratch operand']
  #allocation3 [shape = 'f32[64,1024]{1,0:T(8,128)}', space=vmem, size = 0x40000, scoped, tag = 'scratch operand']
  %s0 = inlined_call_operand.vmem [shape: f32[64,1024], index: 0, kind: input, shape index: {}]
  %s1 = inlined_call_operand.vmem [shape: f32[256,1024], index: 1, kind: input, shape index: {}]
  %s2 = inlined_call_operand.vmem [shape: f32[256,1024], index: 2, kind: input, shape index: {}]
  %s3 = inlined_call_operand.hbm [shape: f32[256,1024], index: 3, kind: input, shape index: {}]
  %s4 = inlined_call_operand.vmem [shape: f32[1,1024], index: 4, kind: input, shape index: {}]
  %s5 = inlined_call_operand.vmem [shape: f32[256,128], index: 5, kind: input, shape index: {}]
  %s6 = inlined_call_operand.vmem [shape: f32[1,128], index: 6, kind: input, shape index: {}]
  %s7 = inlined_call_operand.vmem [shape: f32[8,128], index: 7, kind: output, shape index: {}]
  %s8 = sld [smem:[#allocation0]]
  $region42: #{lstm_model_forward.1} parent=0
    _
  %s10 = ssub.s32 1, %s8
  %s11 = scalar_select 0, %s10, %s8
  $region1: #{lstm_model_forward.1} parent=0
    #allocation4 [shape = 'u8[1048576]{0}', space=vmem, size = 0x100000, scoped, tag = 'input window, operand 3, single buffered']
    #allocation5 [shape = 's32[1]{0}', space=sflag, size = 0x4, scoped, tag = 'scoped memory for lstm_model_forward.1']
    %12 = vsyncpa [#allocation5], 0
    // Predicated region
    $region2: #{lstm_model_forward.1} parent=1 // pred_check
      _
    $region3: #{lstm_model_forward.1} parent=1 // pred_check_branch
      %14 = sbr.rel (0) target = $region5
    $region4: #{lstm_model_forward.1} parent=1 // pred_region
      _
    $region5: #{lstm_model_forward.1} parent=1 // pred_fallthru
      _
    // Predicated region
    $region6: #{lstm_model_forward.1} parent=1 // pred_check
      _
    $region7: #{lstm_model_forward.1} parent=1 // pred_check_branch
      %16 = sbr.rel (0) target = $region9
    $region8: #{lstm_model_forward.1} parent=1 // pred_region
      _
    $region9: #{lstm_model_forward.1} parent=1 // pred_fallthru
      _
    // Predicated region
    $region10: #{lstm_model_forward.1} parent=1 // pred_check
      _
    $region11: #{lstm_model_forward.1} parent=1 // pred_check_branch
      %18 = sbr.rel (0) target = $region13
    $region12: #{lstm_model_forward.1} parent=1 // pred_region
      _
    $region13: #{lstm_model_forward.1} parent=1 // pred_fallthru
      _
    // Predicated region
    $region14: #{lstm_model_forward.1} parent=1 // pred_check
      _
    $region15: #{lstm_model_forward.1} parent=1 // pred_check_branch
      %20 = sbr.rel (0) target = $region17
    $region16: #{lstm_model_forward.1} parent=1 // pred_region
      %s22 = ssub.s32 32768, 32768
      %23 = vsyncadd [#allocation5], %s22
      %s24 = sshll.u32 [#allocation4], 4
      %s25 = int_to_ptr.vmem [resolvable:$true] %s24
      %30 = dma.hbm_to_vmem [thread:$0]  %s3, 32768, %s25, [#allocation5], 1024, 1024, 64
    $region17: #{lstm_model_forward.1} parent=1 // pred_fallthru
      _
    // Predicated region
    $region18: #{lstm_model_forward.1} parent=1 // pred_check
      _
    $region19: #{lstm_model_forward.1} parent=1 // pred_check_branch
      %32 = sbr.rel (0) target = $region21
    $region20: #{lstm_model_forward.1} parent=1 // pred_region
      _
    $region21: #{lstm_model_forward.1} parent=1 // pred_fallthru
      _
    // Predicated region
    $region22: #{lstm_model_forward.1} parent=1 // pred_check
      _
    $region23: #{lstm_model_forward.1} parent=1 // pred_check_branch
      %34 = sbr.rel (0) target = $region25
    $region24: #{lstm_model_forward.1} parent=1 // pred_region
      _
    $region25: #{lstm_model_forward.1} parent=1 // pred_fallthru
      _
    // Predicated region
    $region26: #{lstm_model_forward.1} parent=1 // pred_check
      _
    $region27: #{lstm_model_forward.1} parent=1 // pred_check_branch
      %36 = sbr.rel (0) target = $region29
    $region28: #{lstm_model_forward.1} parent=1 // pred_region
      _
    $region29: #{lstm_model_forward.1} parent=1 // pred_fallthru
      _
    // Predicated region
    $region30: #{lstm_model_forward.1} parent=1 // pred_check
      _
    $region31: #{lstm_model_forward.1} parent=1 // pred_check_branch
      %38 = sbr.rel (0) target = $region33
    $region32: #{lstm_model_forward.1} parent=1 // pred_region
      %39 = dma.done [#allocation5], 32768
    $region33: #{lstm_model_forward.1} parent=1 // pred_fallthru
      _
    %v40 = vld [vmem:[%s0] sm:$0xff]
    %v41 = vld [vmem:[%s0 + $0x8] sm:$0xff]
    %v42 = vld [vmem:[%s0 + $0x10] sm:$0xff]
    %v43 = vld [vmem:[%s0 + $0x18] sm:$0xff]
    %v44 = vld [vmem:[%s0 + $0x20] sm:$0xff]
    %v45 = vld [vmem:[%s0 + $0x28] sm:$0xff]
    %v46 = vld [vmem:[%s0 + $0x30] sm:$0xff]
    %v47 = vld [vmem:[%s0 + $0x38] sm:$0xff]
    %v48 = vld [vmem:[%s1] sm:$0xff]
    %v49 = vld [vmem:[%s1 + $0x8] sm:$0xff]
    %v50 = vld [vmem:[%s1 + $0x10] sm:$0xff]
    %v51 = vld [vmem:[%s1 + $0x18] sm:$0xff]
    %v52 = vld [vmem:[%s1 + $0x20] sm:$0xff]
    %v53 = vld [vmem:[%s1 + $0x28] sm:$0xff]
    %v54 = vld [vmem:[%s1 + $0x30] sm:$0xff]
    %v55 = vld [vmem:[%s1 + $0x38] sm:$0xff]
    %v56 = vld [vmem:[%s1 + $0x40] sm:$0xff]
    %v57 = vld [vmem:[%s1 + $0x48] sm:$0xff]
    %v58 = vld [vmem:[%s1 + $0x50] sm:$0xff]
    %v59 = vld [vmem:[%s1 + $0x58] sm:$0xff]
    %v60 = vld [vmem:[%s1 + $0x60] sm:$0xff]
    %v61 = vld [vmem:[%s1 + $0x68] sm:$0xff]
    %v62 = vld [vmem:[%s1 + $0x70] sm:$0xff]
    %v63 = vld [vmem:[%s1 + $0x78] sm:$0xff]
    %v64 = vld [vmem:[%s1 + $0x80] sm:$0xff]
    %v65 = vld [vmem:[%s1 + $0x88] sm:$0xff]
    %v66 = vld [vmem:[%s1 + $0x90] sm:$0xff]
    %v67 = vld [vmem:[%s1 + $0x98] sm:$0xff]
    %v68 = vld [vmem:[%s1 + $0xa0] sm:$0xff]
    %v69 = vld [vmem:[%s1 + $0xa8] sm:$0xff]
    %v70 = vld [vmem:[%s1 + $0xb0] sm:$0xff]
    %v71 = vld [vmem:[%s1 + $0xb8] sm:$0xff]
    %v72 = vld [vmem:[%s1 + $0xc0] sm:$0xff]
    %v73 = vld [vmem:[%s1 + $0xc8] sm:$0xff]
    %v74 = vld [vmem:[%s1 + $0xd0] sm:$0xff]
    %v75 = vld [vmem:[%s1 + $0xd8] sm:$0xff]
    %v76 = vld [vmem:[%s1 + $0xe0] sm:$0xff]
    %v77 = vld [vmem:[%s1 + $0xe8] sm:$0xff]
    %v78 = vld [vmem:[%s1 + $0xf0] sm:$0xff]
    %v79 = vld [vmem:[%s1 + $0xf8] sm:$0xff]
    %v80 = vld [vmem:[%s1 + $0x100] sm:$0xff]
    %v81 = vld [vmem:[%s1 + $0x108] sm:$0xff]
    %v82 = vld [vmem:[%s1 + $0x110] sm:$0xff]
    %v83 = vld [vmem:[%s1 + $0x118] sm:$0xff]
    %v84 = vld [vmem:[%s1 + $0x120] sm:$0xff]
    %v85 = vld [vmem:[%s1 + $0x128] sm:$0xff]
    %v86 = vld [vmem:[%s1 + $0x130] sm:$0xff]
    %v87 = vld [vmem:[%s1 + $0x138] sm:$0xff]
    %v88 = vld [vmem:[%s1 + $0x140] sm:$0xff]
    %v89 = vld [vmem:[%s1 + $0x148] sm:$0xff]
    %v90 = vld [vmem:[%s1 + $0x150] sm:$0xff]
    %v91 = vld [vmem:[%s1 + $0x158] sm:$0xff]
    %v92 = vld [vmem:[%s1 + $0x160] sm:$0xff]
    %v93 = vld [vmem:[%s1 + $0x168] sm:$0xff]
    %v94 = vld [vmem:[%s1 + $0x170] sm:$0xff]
    %v95 = vld [vmem:[%s1 + $0x178] sm:$0xff]
    %v96 = vld [vmem:[%s1 + $0x180] sm:$0xff]
    %v97 = vld [vmem:[%s1 + $0x188] sm:$0xff]
    %v98 = vld [vmem:[%s1 + $0x190] sm:$0xff]
    %v99 = vld [vmem:[%s1 + $0x198] sm:$0xff]
    %v100 = vld [vmem:[%s1 + $0x1a0] sm:$0xff]
    %v101 = vld [vmem:[%s1 + $0x1a8] sm:$0xff]
    %v102 = vld [vmem:[%s1 + $0x1b0] sm:$0xff]
    %v103 = vld [vmem:[%s1 + $0x1b8] sm:$0xff]
    %v104 = vld [vmem:[%s1 + $0x1c0] sm:$0xff]
    %v105 = vld [vmem:[%s1 + $0x1c8] sm:$0xff]
    %v106 = vld [vmem:[%s1 + $0x1d0] sm:$0xff]
    %v107 = vld [vmem:[%s1 + $0x1d8] sm:$0xff]
    %v108 = vld [vmem:[%s1 + $0x1e0] sm:$0xff]
    %v109 = vld [vmem:[%s1 + $0x1e8] sm:$0xff]
    %v110 = vld [vmem:[%s1 + $0x1f0] sm:$0xff]
    %v111 = vld [vmem:[%s1 + $0x1f8] sm:$0xff]
    %v112 = vld [vmem:[%s1 + $0x200] sm:$0xff]
    %v113 = vld [vmem:[%s1 + $0x208] sm:$0xff]
    %v114 = vld [vmem:[%s1 + $0x210] sm:$0xff]
    %v115 = vld [vmem:[%s1 + $0x218] sm:$0xff]
    %v116 = vld [vmem:[%s1 + $0x220] sm:$0xff]
    %v117 = vld [vmem:[%s1 + $0x228] sm:$0xff]
    %v118 = vld [vmem:[%s1 + $0x230] sm:$0xff]
    %v119 = vld [vmem:[%s1 + $0x238] sm:$0xff]
    %v120 = vld [vmem:[%s1 + $0x240] sm:$0xff]
    %v121 = vld [vmem:[%s1 + $0x248] sm:$0xff]
    %v122 = vld [vmem:[%s1 + $0x250] sm:$0xff]
    %v123 = vld [vmem:[%s1 + $0x258] sm:$0xff]
    %v124 = vld [vmem:[%s1 + $0x260] sm:$0xff]
    %v125 = vld [vmem:[%s1 + $0x268] sm:$0xff]
    %v126 = vld [vmem:[%s1 + $0x270] sm:$0xff]
    %v127 = vld [vmem:[%s1 + $0x278] sm:$0xff]
    %v128 = vld [vmem:[%s1 + $0x280] sm:$0xff]
    %v129 = vld [vmem:[%s1 + $0x288] sm:$0xff]
    %v130 = vld [vmem:[%s1 + $0x290] sm:$0xff]
    %v131 = vld [vmem:[%s1 + $0x298] sm:$0xff]
    %v132 = vld [vmem:[%s1 + $0x2a0] sm:$0xff]
    %v133 = vld [vmem:[%s1 + $0x2a8] sm:$0xff]
    %v134 = vld [vmem:[%s1 + $0x2b0] sm:$0xff]
    %v135 = vld [vmem:[%s1 + $0x2b8] sm:$0xff]
    %v136 = vld [vmem:[%s1 + $0x2c0] sm:$0xff]
    %v137 = vld [vmem:[%s1 + $0x2c8] sm:$0xff]
    %v138 = vld [vmem:[%s1 + $0x2d0] sm:$0xff]
    %v139 = vld [vmem:[%s1 + $0x2d8] sm:$0xff]
    %v140 = vld [vmem:[%s1 + $0x2e0] sm:$0xff]
    %v141 = vld [vmem:[%s1 + $0x2e8] sm:$0xff]
    %v142 = vld [vmem:[%s1 + $0x2f0] sm:$0xff]
    %v143 = vld [vmem:[%s1 + $0x2f8] sm:$0xff]
    %v144 = vld [vmem:[%s1 + $0x300] sm:$0xff]
    %v145 = vld [vmem:[%s1 + $0x308] sm:$0xff]
    %v146 = vld [vmem:[%s1 + $0x310] sm:$0xff]
    %v147 = vld [vmem:[%s1 + $0x318] sm:$0xff]
    %v148 = vld [vmem:[%s1 + $0x320] sm:$0xff]
    %v149 = vld [vmem:[%s1 + $0x328] sm:$0xff]
    %v150 = vld [vmem:[%s1 + $0x330] sm:$0xff]
    %v151 = vld [vmem:[%s1 + $0x338] sm:$0xff]
    %v152 = vld [vmem:[%s1 + $0x340] sm:$0xff]
    %v153 = vld [vmem:[%s1 + $0x348] sm:$0xff]
    %v154 = vld [vmem:[%s1 + $0x350] sm:$0xff]
    %v155 = vld [vmem:[%s1 + $0x358] sm:$0xff]
    %v156 = vld [vmem:[%s1 + $0x360] sm:$0xff]
    %v157 = vld [vmem:[%s1 + $0x368] sm:$0xff]
    %v158 = vld [vmem:[%s1 + $0x370] sm:$0xff]
    %v159 = vld [vmem:[%s1 + $0x378] sm:$0xff]
    %v160 = vld [vmem:[%s1 + $0x380] sm:$0xff]
    %v161 = vld [vmem:[%s1 + $0x388] sm:$0xff]
    %v162 = vld [vmem:[%s1 + $0x390] sm:$0xff]
    %v163 = vld [vmem:[%s1 + $0x398] sm:$0xff]
    %v164 = vld [vmem:[%s1 + $0x3a0] sm:$0xff]
    %v165 = vld [vmem:[%s1 + $0x3a8] sm:$0xff]
    %v166 = vld [vmem:[%s1 + $0x3b0] sm:$0xff]
    %v167 = vld [vmem:[%s1 + $0x3b8] sm:$0xff]
    %v168 = vld [vmem:[%s1 + $0x3c0] sm:$0xff]
    %v169 = vld [vmem:[%s1 + $0x3c8] sm:$0xff]
    %v170 = vld [vmem:[%s1 + $0x3d0] sm:$0xff]
    %v171 = vld [vmem:[%s1 + $0x3d8] sm:$0xff]
    %v172 = vld [vmem:[%s1 + $0x3e0] sm:$0xff]
    %v173 = vld [vmem:[%s1 + $0x3e8] sm:$0xff]
    %v174 = vld [vmem:[%s1 + $0x3f0] sm:$0xff]
    %v175 = vld [vmem:[%s1 + $0x3f8] sm:$0xff]
    %v176 = vld [vmem:[%s1 + $0x400] sm:$0xff]
    %v177 = vld [vmem:[%s1 + $0x408] sm:$0xff]
    %v178 = vld [vmem:[%s1 + $0x410] sm:$0xff]
    %v179 = vld [vmem:[%s1 + $0x418] sm:$0xff]
    %v180 = vld [vmem:[%s1 + $0x420] sm:$0xff]
    %v181 = vld [vmem:[%s1 + $0x428] sm:$0xff]
    %v182 = vld [vmem:[%s1 + $0x430] sm:$0xff]
    %v183 = vld [vmem:[%s1 + $0x438] sm:$0xff]
    %v184 = vld [vmem:[%s1 + $0x440] sm:$0xff]
    %v185 = vld [vmem:[%s1 + $0x448] sm:$0xff]
    %v186 = vld [vmem:[%s1 + $0x450] sm:$0xff]
    %v187 = vld [vmem:[%s1 + $0x458] sm:$0xff]
    %v188 = vld [vmem:[%s1 + $0x460] sm:$0xff]
    %v189 = vld [vmem:[%s1 + $0x468] sm:$0xff]
    %v190 = vld [vmem:[%s1 + $0x470] sm:$0xff]
    %v191 = vld [vmem:[%s1 + $0x478] sm:$0xff]
    %v192 = vld [vmem:[%s1 + $0x480] sm:$0xff]
    %v193 = vld [vmem:[%s1 + $0x488] sm:$0xff]
    %v194 = vld [vmem:[%s1 + $0x490] sm:$0xff]
    %v195 = vld [vmem:[%s1 + $0x498] sm:$0xff]
    %v196 = vld [vmem:[%s1 + $0x4a0] sm:$0xff]
    %v197 = vld [vmem:[%s1 + $0x4a8] sm:$0xff]
    %v198 = vld [vmem:[%s1 + $0x4b0] sm:$0xff]
    %v199 = vld [vmem:[%s1 + $0x4b8] sm:$0xff]
    %v200 = vld [vmem:[%s1 + $0x4c0] sm:$0xff]
    %v201 = vld [vmem:[%s1 + $0x4c8] sm:$0xff]
    %v202 = vld [vmem:[%s1 + $0x4d0] sm:$0xff]
    %v203 = vld [vmem:[%s1 + $0x4d8] sm:$0xff]
    %v204 = vld [vmem:[%s1 + $0x4e0] sm:$0xff]
    %v205 = vld [vmem:[%s1 + $0x4e8] sm:$0xff]
    %v206 = vld [vmem:[%s1 + $0x4f0] sm:$0xff]
    %v207 = vld [vmem:[%s1 + $0x4f8] sm:$0xff]
    %v208 = vld [vmem:[%s1 + $0x500] sm:$0xff]
    %v209 = vld [vmem:[%s1 + $0x508] sm:$0xff]
    %v210 = vld [vmem:[%s1 + $0x510] sm:$0xff]
    %v211 = vld [vmem:[%s1 + $0x518] sm:$0xff]
    %v212 = vld [vmem:[%s1 + $0x520] sm:$0xff]
    %v213 = vld [vmem:[%s1 + $0x528] sm:$0xff]
    %v214 = vld [vmem:[%s1 + $0x530] sm:$0xff]
    %v215 = vld [vmem:[%s1 + $0x538] sm:$0xff]
    %v216 = vld [vmem:[%s1 + $0x540] sm:$0xff]
    %v217 = vld [vmem:[%s1 + $0x548] sm:$0xff]
    %v218 = vld [vmem:[%s1 + $0x550] sm:$0xff]
    %v219 = vld [vmem:[%s1 + $0x558] sm:$0xff]
    %v220 = vld [vmem:[%s1 + $0x560] sm:$0xff]
    %v221 = vld [vmem:[%s1 + $0x568] sm:$0xff]
    %v222 = vld [vmem:[%s1 + $0x570] sm:$0xff]
    %v223 = vld [vmem:[%s1 + $0x578] sm:$0xff]
    %v224 = vld [vmem:[%s1 + $0x580] sm:$0xff]
    %v225 = vld [vmem:[%s1 + $0x588] sm:$0xff]
    %v226 = vld [vmem:[%s1 + $0x590] sm:$0xff]
    %v227 = vld [vmem:[%s1 + $0x598] sm:$0xff]
    %v228 = vld [vmem:[%s1 + $0x5a0] sm:$0xff]
    %v229 = vld [vmem:[%s1 + $0x5a8] sm:$0xff]
    %v230 = vld [vmem:[%s1 + $0x5b0] sm:$0xff]
    %v231 = vld [vmem:[%s1 + $0x5b8] sm:$0xff]
    %v232 = vld [vmem:[%s1 + $0x5c0] sm:$0xff]
    %v233 = vld [vmem:[%s1 + $0x5c8] sm:$0xff]
    %v234 = vld [vmem:[%s1 + $0x5d0] sm:$0xff]
    %v235 = vld [vmem:[%s1 + $0x5d8] sm:$0xff]
    %v236 = vld [vmem:[%s1 + $0x5e0] sm:$0xff]
    %v237 = vld [vmem:[%s1 + $0x5e8] sm:$0xff]
    %v238 = vld [vmem:[%s1 + $0x5f0] sm:$0xff]
    %v239 = vld [vmem:[%s1 + $0x5f8] sm:$0xff]
    %v240 = vld [vmem:[%s1 + $0x600] sm:$0xff]
    %v241 = vld [vmem:[%s1 + $0x608] sm:$0xff]
    %v242 = vld [vmem:[%s1 + $0x610] sm:$0xff]
    %v243 = vld [vmem:[%s1 + $0x618] sm:$0xff]
    %v244 = vld [vmem:[%s1 + $0x620] sm:$0xff]
    %v245 = vld [vmem:[%s1 + $0x628] sm:$0xff]
    %v246 = vld [vmem:[%s1 + $0x630] sm:$0xff]
    %v247 = vld [vmem:[%s1 + $0x638] sm:$0xff]
    %v248 = vld [vmem:[%s1 + $0x640] sm:$0xff]
    %v249 = vld [vmem:[%s1 + $0x648] sm:$0xff]
    %v250 = vld [vmem:[%s1 + $0x650] sm:$0xff]
    %v251 = vld [vmem:[%s1 + $0x658] sm:$0xff]
    %v252 = vld [vmem:[%s1 + $0x660] sm:$0xff]
    %v253 = vld [vmem:[%s1 + $0x668] sm:$0xff]
    %v254 = vld [vmem:[%s1 + $0x670] sm:$0xff]
    %v255 = vld [vmem:[%s1 + $0x678] sm:$0xff]
    %v256 = vld [vmem:[%s1 + $0x680] sm:$0xff]
    %v257 = vld [vmem:[%s1 + $0x688] sm:$0xff]
    %v258 = vld [vmem:[%s1 + $0x690] sm:$0xff]
    %v259 = vld [vmem:[%s1 + $0x698] sm:$0xff]
    %v260 = vld [vmem:[%s1 + $0x6a0] sm:$0xff]
    %v261 = vld [vmem:[%s1 + $0x6a8] sm:$0xff]
    %v262 = vld [vmem:[%s1 + $0x6b0] sm:$0xff]
    %v263 = vld [vmem:[%s1 + $0x6b8] sm:$0xff]
    %v264 = vld [vmem:[%s1 + $0x6c0] sm:$0xff]
    %v265 = vld [vmem:[%s1 + $0x6c8] sm:$0xff]
    %v266 = vld [vmem:[%s1 + $0x6d0] sm:$0xff]
    %v267 = vld [vmem:[%s1 + $0x6d8] sm:$0xff]
    %v268 = vld [vmem:[%s1 + $0x6e0] sm:$0xff]
    %v269 = vld [vmem:[%s1 + $0x6e8] sm:$0xff]
    %v270 = vld [vmem:[%s1 + $0x6f0] sm:$0xff]
    %v271 = vld [vmem:[%s1 + $0x6f8] sm:$0xff]
    %v272 = vld [vmem:[%s1 + $0x700] sm:$0xff]
    %v273 = vld [vmem:[%s1 + $0x708] sm:$0xff]
    %v274 = vld [vmem:[%s1 + $0x710] sm:$0xff]
    %v275 = vld [vmem:[%s1 + $0x718] sm:$0xff]
    %v276 = vld [vmem:[%s1 + $0x720] sm:$0xff]
    %v277 = vld [vmem:[%s1 + $0x728] sm:$0xff]
    %v278 = vld [vmem:[%s1 + $0x730] sm:$0xff]
    %v279 = vld [vmem:[%s1 + $0x738] sm:$0xff]
    %v280 = vld [vmem:[%s1 + $0x740] sm:$0xff]
    %v281 = vld [vmem:[%s1 + $0x748] sm:$0xff]
    %v282 = vld [vmem:[%s1 + $0x750] sm:$0xff]
    %v283 = vld [vmem:[%s1 + $0x758] sm:$0xff]
    %v284 = vld [vmem:[%s1 + $0x760] sm:$0xff]
    %v285 = vld [vmem:[%s1 + $0x768] sm:$0xff]
    %v286 = vld [vmem:[%s1 + $0x770] sm:$0xff]
    %v287 = vld [vmem:[%s1 + $0x778] sm:$0xff]
    %v288 = vld [vmem:[%s1 + $0x780] sm:$0xff]
    %v289 = vld [vmem:[%s1 + $0x788] sm:$0xff]
    %v290 = vld [vmem:[%s1 + $0x790] sm:$0xff]
    %v291 = vld [vmem:[%s1 + $0x798] sm:$0xff]
    %v292 = vld [vmem:[%s1 + $0x7a0] sm:$0xff]
    %v293 = vld [vmem:[%s1 + $0x7a8] sm:$0xff]
    %v294 = vld [vmem:[%s1 + $0x7b0] sm:$0xff]
    %v295 = vld [vmem:[%s1 + $0x7b8] sm:$0xff]
    %v296 = vld [vmem:[%s1 + $0x7c0] sm:$0xff]
    %v297 = vld [vmem:[%s1 + $0x7c8] sm:$0xff]
    %v298 = vld [vmem:[%s1 + $0x7d0] sm:$0xff]
    %v299 = vld [vmem:[%s1 + $0x7d8] sm:$0xff]
    %v300 = vld [vmem:[%s1 + $0x7e0] sm:$0xff]
    %v301 = vld [vmem:[%s1 + $0x7e8] sm:$0xff]
    %v302 = vld [vmem:[%s1 + $0x7f0] sm:$0xff]
    %v303 = vld [vmem:[%s1 + $0x7f8] sm:$0xff]
    %304 = vmatprep.subr.mxu0 %v49
    %305 = vmatpush1.msra.mxu0 %v48
    %306 = vmatprep.subr.mxu0 %v57
    %307 = vmatpush1.msra.mxu0 %v56
    %308 = vmatprep.subr.mxu0 %v65
    %309 = vmatpush1.msra.mxu0 %v64
    %310 = vmatprep.subr.mxu0 %v73
    %311 = vmatpush1.msra.mxu0 %v72
    %312 = vmatprep.subr.mxu0 %v81
    %313 = vmatpush1.msra.mxu0 %v80
    %314 = vmatprep.subr.mxu0 %v89
    %315 = vmatpush1.msra.mxu0 %v88
    %316 = vmatprep.subr.mxu0 %v97
    %317 = vmatpush1.msra.mxu0 %v96
    %318 = vmatprep.subr.mxu0 %v105
    %319 = vmatpush1.msra.mxu0 %v104
    %320 = vmatprep.subr.mxu0 %v113
    %321 = vmatpush1.msra.mxu0 %v112
    %322 = vmatprep.subr.mxu0 %v121
    %323 = vmatpush1.msra.mxu0 %v120
    %324 = vmatprep.subr.mxu0 %v129
    %325 = vmatpush1.msra.mxu0 %v128
    %326 = vmatprep.subr.mxu0 %v137
    %327 = vmatpush1.msra.mxu0 %v136
    %328 = vmatprep.subr.mxu0 %v145
    %329 = vmatpush1.msra.mxu0 %v144
    %330 = vmatprep.subr.mxu0 %v153
    %331 = vmatpush1.msra.mxu0 %v152
    %332 = vmatprep.subr.mxu0 %v161
    %333 = vmatpush1.msra.mxu0 %v160
    %334 = vmatprep.subr.mxu0 %v169
    %335 = vmatpush1.msra.mxu0 %v168
    %336 = vmatprep.subr.mxu0 %v177
    %337 = vmatpush1.msra.mxu0 %v176
    %338 = vmatprep.subr.mxu0 %v185
    %339 = vmatpush1.msra.mxu0 %v184
    %340 = vmatprep.subr.mxu0 %v193
    %341 = vmatpush1.msra.mxu0 %v192
    %342 = vmatprep.subr.mxu0 %v201
    %343 = vmatpush1.msra.mxu0 %v200
    %344 = vmatprep.subr.mxu0 %v209
    %345 = vmatpush1.msra.mxu0 %v208
    %346 = vmatprep.subr.mxu0 %v217
    %347 = vmatpush1.msra.mxu0 %v216
    %348 = vmatprep.subr.mxu0 %v225
    %349 = vmatpush1.msra.mxu0 %v224
    %350 = vmatprep.subr.mxu0 %v233
    %351 = vmatpush1.msra.mxu0 %v232
    %352 = vmatprep.subr.mxu0 %v241
    %353 = vmatpush1.msra.mxu0 %v240
    %354 = vmatprep.subr.mxu0 %v249
    %355 = vmatpush1.msra.mxu0 %v248
    %356 = vmatprep.subr.mxu0 %v257
    %357 = vmatpush1.msra.mxu0 %v256
    %358 = vmatprep.subr.mxu0 %v265
    %359 = vmatpush1.msra.mxu0 %v264
    %360 = vmatprep.subr.mxu0 %v273
    %361 = vmatpush1.msra.mxu0 %v272
    %362 = vmatprep.subr.mxu0 %v281
    %363 = vmatpush1.msra.mxu0 %v280
    %364 = vmatprep.subr.mxu0 %v289
    %365 = vmatpush1.msra.mxu0 %v288
    %366 = vmatprep.subr.mxu0 %v297
    %367 = vmatpush1.msra.mxu0 %v296
    %368 = vmatprep.mubr.f32.mxu0 0.0
    %369 = vmatmul.mubr.f32.gmra.mrb[0].mxu0 0.0
    %v370 = vpop.f32.mrb[0].mxu0
    %v371 = vadd.f32 0.0, %v370
    %v372 = vpop.f32.mrb[0].mxu0
    %v373 = vadd.f32 0.0, %v372
    %374 = vdwg.mxu0
    %375 = vmatprep.subr.mxu0 %v51
    %376 = vmatpush1.msra.mxu0 %v50
    %377 = vmatprep.subr.mxu0 %v59
    %378 = vmatpush1.msra.mxu0 %v58
    %379 = vmatprep.subr.mxu0 %v67
    %380 = vmatpush1.msra.mxu0 %v66
    %381 = vmatprep.subr.mxu0 %v75
    %382 = vmatpush1.msra.mxu0 %v74
    %383 = vmatprep.subr.mxu0 %v83
    %384 = vmatpush1.msra.mxu0 %v82
    %385 = vmatprep.subr.mxu0 %v91
    %386 = vmatpush1.msra.mxu0 %v90
    %387 = vmatprep.subr.mxu0 %v99
    %388 = vmatpush1.msra.mxu0 %v98
    %389 = vmatprep.subr.mxu0 %v107
    %390 = vmatpush1.msra.mxu0 %v106
    %391 = vmatprep.subr.mxu0 %v115
    %392 = vmatpush1.msra.mxu0 %v114
    %393 = vmatprep.subr.mxu0 %v123
    %394 = vmatpush1.msra.mxu0 %v122
    %395 = vmatprep.subr.mxu0 %v131
    %396 = vmatpush1.msra.mxu0 %v130
    %397 = vmatprep.subr.mxu0 %v139
    %398 = vmatpush1.msra.mxu0 %v138
    %399 = vmatprep.subr.mxu0 %v147
    %400 = vmatpush1.msra.mxu0 %v146
    %401 = vmatprep.subr.mxu0 %v155
    %402 = vmatpush1.msra.mxu0 %v154
    %403 = vmatprep.subr.mxu0 %v163
    %404 = vmatpush1.msra.mxu0 %v162
    %405 = vmatprep.subr.mxu0 %v171
    %406 = vmatpush1.msra.mxu0 %v170
    %407 = vmatprep.subr.mxu0 %v179
    %408 = vmatpush1.msra.mxu0 %v178
    %409 = vmatprep.subr.mxu0 %v187
    %410 = vmatpush1.msra.mxu0 %v186
    %411 = vmatprep.subr.mxu0 %v195
    %412 = vmatpush1.msra.mxu0 %v194
    %413 = vmatprep.subr.mxu0 %v203
    %414 = vmatpush1.msra.mxu0 %v202
    %415 = vmatprep.subr.mxu0 %v211
    %416 = vmatpush1.msra.mxu0 %v210
    %417 = vmatprep.subr.mxu0 %v219
    %418 = vmatpush1.msra.mxu0 %v218
    %419 = vmatprep.subr.mxu0 %v227
    %420 = vmatpush1.msra.mxu0 %v226
    %421 = vmatprep.subr.mxu0 %v235
    %422 = vmatpush1.msra.mxu0 %v234
    %423 = vmatprep.subr.mxu0 %v243
    %424 = vmatpush1.msra.mxu0 %v242
    %425 = vmatprep.subr.mxu0 %v251
    %426 = vmatpush1.msra.mxu0 %v250
    %427 = vmatprep.subr.mxu0 %v259
    %428 = vmatpush1.msra.mxu0 %v258
    %429 = vmatprep.subr.mxu0 %v267
    %430 = vmatpush1.msra.mxu0 %v266
    %431 = vmatprep.subr.mxu0 %v275
    %432 = vmatpush1.msra.mxu0 %v274
    %433 = vmatprep.subr.mxu0 %v283
    %434 = vmatpush1.msra.mxu0 %v282
    %435 = vmatprep.subr.mxu0 %v291
    %436 = vmatpush1.msra.mxu0 %v290
    %437 = vmatprep.subr.mxu0 %v299
    %438 = vmatpush1.msra.mxu0 %v298
    %439 = vmatprep.mubr.f32.mxu0 0.0
    %440 = vmatmul.mubr.f32.gmra.mrb[0].mxu0 0.0
    %v441 = vpop.f32.mrb[0].mxu0
    %v442 = vadd.f32 0.0, %v441
    %v443 = vpop.f32.mrb[0].mxu0
    %v444 = vadd.f32 0.0, %v443
    %445 = vdwg.mxu0
    %446 = vmatprep.subr.mxu0 %v53
    %447 = vmatpush1.msra.mxu0 %v52
    %448 = vmatprep.subr.mxu0 %v61
    %449 = vmatpush1.msra.mxu0 %v60
    %450 = vmatprep.subr.mxu0 %v69
    %451 = vmatpush1.msra.mxu0 %v68
    %452 = vmatprep.subr.mxu0 %v77
    %453 = vmatpush1.msra.mxu0 %v76
    %454 = vmatprep.subr.mxu0 %v85
    %455 = vmatpush1.msra.mxu0 %v84
    %456 = vmatprep.subr.mxu0 %v93
    %457 = vmatpush1.msra.mxu0 %v92
    %458 = vmatprep.subr.mxu0 %v101
    %459 = vmatpush1.msra.mxu0 %v100
    %460 = vmatprep.subr.mxu0 %v109
    %461 = vmatpush1.msra.mxu0 %v108
    %462 = vmatprep.subr.mxu0 %v117
    %463 = vmatpush1.msra.mxu0 %v116
    %464 = vmatprep.subr.mxu0 %v125
    %465 = vmatpush1.msra.mxu0 %v124
    %466 = vmatprep.subr.mxu0 %v133
    %467 = vmatpush1.msra.mxu0 %v132
    %468 = vmatprep.subr.mxu0 %v141
    %469 = vmatpush1.msra.mxu0 %v140
    %470 = vmatprep.subr.mxu0 %v149
    %471 = vmatpush1.msra.mxu0 %v148
    %472 = vmatprep.subr.mxu0 %v157
    %473 = vmatpush1.msra.mxu0 %v156
    %474 = vmatprep.subr.mxu0 %v165
    %475 = vmatpush1.msra.mxu0 %v164
    %476 = vmatprep.subr.mxu0 %v173
    %477 = vmatpush1.msra.mxu0 %v172
    %478 = vmatprep.subr.mxu0 %v181
    %479 = vmatpush1.msra.mxu0 %v180
    %480 = vmatprep.subr.mxu0 %v189
    %481 = vmatpush1.msra.mxu0 %v188
    %482 = vmatprep.subr.mxu0 %v197
    %483 = vmatpush1.msra.mxu0 %v196
    %484 = vmatprep.subr.mxu0 %v205
    %485 = vmatpush1.msra.mxu0 %v204
    %486 = vmatprep.subr.mxu0 %v213
    %487 = vmatpush1.msra.mxu0 %v212
    %488 = vmatprep.subr.mxu0 %v221
    %489 = vmatpush1.msra.mxu0 %v220
    %490 = vmatprep.subr.mxu0 %v229
    %491 = vmatpush1.msra.mxu0 %v228
    %492 = vmatprep.subr.mxu0 %v237
    %493 = vmatpush1.msra.mxu0 %v236
    %494 = vmatprep.subr.mxu0 %v245
    %495 = vmatpush1.msra.mxu0 %v244
    %496 = vmatprep.subr.mxu0 %v253
    %497 = vmatpush1.msra.mxu0 %v252
    %498 = vmatprep.subr.mxu0 %v261
    %499 = vmatpush1.msra.mxu0 %v260
    %500 = vmatprep.subr.mxu0 %v269
    %501 = vmatpush1.msra.mxu0 %v268
    %502 = vmatprep.subr.mxu0 %v277
    %503 = vmatpush1.msra.mxu0 %v276
    %504 = vmatprep.subr.mxu0 %v285
    %505 = vmatpush1.msra.mxu0 %v284
    %506 = vmatprep.subr.mxu0 %v293
    %507 = vmatpush1.msra.mxu0 %v292
    %508 = vmatprep.subr.mxu0 %v301
    %509 = vmatpush1.msra.mxu0 %v300
    %510 = vmatprep.mubr.f32.mxu0 0.0
    %511 = vmatmul.mubr.f32.gmra.mrb[0].mxu0 0.0
    %v512 = vpop.f32.mrb[0].mxu0
    %v513 = vadd.f32 0.0, %v512
    %v514 = vpop.f32.mrb[0].mxu0
    %v515 = vadd.f32 0.0, %v514
    %516 = vdwg.mxu0
    %517 = vmatprep.subr.mxu0 %v55
    %518 = vmatpush1.msra.mxu0 %v54
    %519 = vmatprep.subr.mxu0 %v63
    %520 = vmatpush1.msra.mxu0 %v62
    %521 = vmatprep.subr.mxu0 %v71
    %522 = vmatpush1.msra.mxu0 %v70
    %523 = vmatprep.subr.mxu0 %v79
    %524 = vmatpush1.msra.mxu0 %v78
    %525 = vmatprep.subr.mxu0 %v87
    %526 = vmatpush1.msra.mxu0 %v86
    %527 = vmatprep.subr.mxu0 %v95
    %528 = vmatpush1.msra.mxu0 %v94
    %529 = vmatprep.subr.mxu0 %v103
    %530 = vmatpush1.msra.mxu0 %v102
    %531 = vmatprep.subr.mxu0 %v111
    %532 = vmatpush1.msra.mxu0 %v110
    %533 = vmatprep.subr.mxu0 %v119
    %534 = vmatpush1.msra.mxu0 %v118
    %535 = vmatprep.subr.mxu0 %v127
    %536 = vmatpush1.msra.mxu0 %v126
    %537 = vmatprep.subr.mxu0 %v135
    %538 = vmatpush1.msra.mxu0 %v134
    %539 = vmatprep.subr.mxu0 %v143
    %540 = vmatpush1.msra.mxu0 %v142
    %541 = vmatprep.subr.mxu0 %v151
    %542 = vmatpush1.msra.mxu0 %v150
    %543 = vmatprep.subr.mxu0 %v159
    %544 = vmatpush1.msra.mxu0 %v158
    %545 = vmatprep.subr.mxu0 %v167
    %546 = vmatpush1.msra.mxu0 %v166
    %547 = vmatprep.subr.mxu0 %v175
    %548 = vmatpush1.msra.mxu0 %v174
    %549 = vmatprep.subr.mxu0 %v183
    %550 = vmatpush1.msra.mxu0 %v182
    %551 = vmatprep.subr.mxu0 %v191
    %552 = vmatpush1.msra.mxu0 %v190
    %553 = vmatprep.subr.mxu0 %v199
    %554 = vmatpush1.msra.mxu0 %v198
    %555 = vmatprep.subr.mxu0 %v207
    %556 = vmatpush1.msra.mxu0 %v206
    %557 = vmatprep.subr.mxu0 %v215
    %558 = vmatpush1.msra.mxu0 %v214
    %559 = vmatprep.subr.mxu0 %v223
    %560 = vmatpush1.msra.mxu0 %v222
    %561 = vmatprep.subr.mxu0 %v231
    %562 = vmatpush1.msra.mxu0 %v230
    %563 = vmatprep.subr.mxu0 %v239
    %564 = vmatpush1.msra.mxu0 %v238
    %565 = vmatprep.subr.mxu0 %v247
    %566 = vmatpush1.msra.mxu0 %v246
    %567 = vmatprep.subr.mxu0 %v255
    %568 = vmatpush1.msra.mxu0 %v254
    %569 = vmatprep.subr.mxu0 %v263
    %570 = vmatpush1.msra.mxu0 %v262
    %571 = vmatprep.subr.mxu0 %v271
    %572 = vmatpush1.msra.mxu0 %v270
    %573 = vmatprep.subr.mxu0 %v279
    %574 = vmatpush1.msra.mxu0 %v278
    %575 = vmatprep.subr.mxu0 %v287
    %576 = vmatpush1.msra.mxu0 %v286
    %577 = vmatprep.subr.mxu0 %v295
    %578 = vmatpush1.msra.mxu0 %v294
    %579 = vmatprep.subr.mxu0 %v303
    %580 = vmatpush1.msra.mxu0 %v302
    %581 = vmatprep.mubr.f32.mxu0 0.0
    %582 = vmatmul.mubr.f32.gmra.mrb[0].mxu0 0.0
    %v583 = vpop.f32.mrb[0].mxu0
    %v584 = vadd.f32 0.0, %v583
    %v585 = vpop.f32.mrb[0].mxu0
    %v586 = vadd.f32 0.0, %v585
    %587 = vdwg.mxu0
    %v588 = vadd.f32 %v40, %v371
    %v589 = vadd.f32 %v41, %v373
    %v590 = vadd.f32 %v42, %v442
    %v591 = vadd.f32 %v43, %v444
    %v592 = vadd.f32 %v44, %v513
    %v593 = vadd.f32 %v45, %v515
    %v594 = vadd.f32 %v46, %v584
    %v595 = vadd.f32 %v47, %v586
    %v596 = vxor.u32 %v588, 2147483648
    %v597 = vxor.u32 %v589, 2147483648
    %v598 = vmul.f32 %v596, 1.442695
    %v599 = vpow.pop %v598
    %v600 = vmul.f32 %v597, 1.442695
    %v601 = vpow.pop %v600
    %v602 = vadd.f32 %v599, 1.0
    %v603 = vadd.f32 %v601, 1.0
    %v604 = vrcp.pop %v602
    %v605 = vmul.f32 1.0, %v604
    %v606 = vrcp.pop %v603
    %v607 = vmul.f32 1.0, %v606
    %v608 = vxor.u32 %v590, 2147483648
    %v609 = vxor.u32 %v591, 2147483648
    %v610 = vmul.f32 %v608, 1.442695
    %v611 = vpow.pop %v610
    %v612 = vmul.f32 %v609, 1.442695
    %v613 = vpow.pop %v612
    %v614 = vadd.f32 %v611, 1.0
    %v615 = vadd.f32 %v613, 1.0
    %v616 = vrcp.pop %v614
    %v617 = vmul.f32 1.0, %v616
    %v618 = vrcp.pop %v615
    %v619 = vmul.f32 1.0, %v618
    %v620 = vtanh.pop %v592
    %v621 = vtanh.pop %v593
    %v622 = vxor.u32 %v594, 2147483648
    %v623 = vxor.u32 %v595, 2147483648
    %v624 = vmul.f32 %v622, 1.442695
    %v625 = vpow.pop %v624
    %v626 = vmul.f32 %v623, 1.442695
    %v627 = vpow.pop %v626
    %v628 = vadd.f32 %v625, 1.0
    %v629 = vadd.f32 %v627, 1.0
    %v630 = vrcp.pop %v628
    %v631 = vmul.f32 1.0, %v630
    %v632 = vrcp.pop %v629
    %v633 = vmul.f32 1.0, %v632
    %v634 = vmul.f32 %v617, 0.0
    %v635 = vmul.f32 %v619, 0.0
    %v636 = vmul.f32 %v605, %v620
    %v637 = vmul.f32 %v607, %v621
    %v638 = vadd.f32 %v634, %v636
    %v639 = vadd.f32 %v635, %v637
    %v640 = vtanh.pop %v638
    %v641 = vtanh.pop %v639
    %v642 = vmul.f32 %v631, %v640
    %v643 = vmul.f32 %v633, %v641
    %644 = vst [vmem:[#allocation2] sm:$0xff] %v642
    %645 = vst [vmem:[#allocation2 + $0x8] sm:$0xff] %v643
    %v646 = vld [vmem:[%s0 + $0x40] sm:$0xff]
    %v647 = vld [vmem:[%s0 + $0x48] sm:$0xff]
    %v648 = vld [vmem:[%s0 + $0x50] sm:$0xff]
    %v649 = vld [vmem:[%s0 + $0x58] sm:$0xff]
    %v650 = vld [vmem:[%s0 + $0x60] sm:$0xff]
    %v651 = vld [vmem:[%s0 + $0x68] sm:$0xff]
    %v652 = vld [vmem:[%s0 + $0x70] sm:$0xff]
    %v653 = vld [vmem:[%s0 + $0x78] sm:$0xff]
    %v654 = vld [vmem:[%s1] sm:$0xff]
    %v655 = vld [vmem:[%s1 + $0x8] sm:$0xff]
    %v656 = vld [vmem:[%s1 + $0x10] sm:$0xff]
    %v657 = vld [vmem:[%s1 + $0x18] sm:$0xff]
    %v658 = vld [vmem:[%s1 + $0x20] sm:$0xff]
    %v659 = vld [vmem:[%s1 + $0x28] sm:$0xff]
    %v660 = vld [vmem:[%s1 + $0x30] sm:$0xff]
    %v661 = vld [vmem:[%s1 + $0x38] sm:$0xff]
    %v662 = vld [vmem:[%s1 + $0x40] sm:$0xff]
    %v663 = vld [vmem:[%s1 + $0x48] sm:$0xff]
    %v664 = vld [vmem:[%s1 + $0x50] sm:$0xff]
    %v665 = vld [vmem:[%s1 + $0x58] sm:$0xff]
    %v666 = vld [vmem:[%s1 + $0x60] sm:$0xff]
    %v667 = vld [vmem:[%s1 + $0x68] sm:$0xff]
    %v668 = vld [vmem:[%s1 + $0x70] sm:$0xff]
    %v669 = vld [vmem:[%s1 + $0x78] sm:$0xff]
    %v670 = vld [vmem:[%s1 + $0x80] sm:$0xff]
    %v671 = vld [vmem:[%s1 + $0x88] sm:$0xff]
    %v672 = vld [vmem:[%s1 + $0x90] sm:$0xff]
    %v673 = vld [vmem:[%s1 + $0x98] sm:$0xff]
    %v674 = vld [vmem:[%s1 + $0xa0] sm:$0xff]
    %v675 = vld [vmem:[%s1 + $0xa8] sm:$0xff]
    %v676 = vld [vmem:[%s1 + $0xb0] sm:$0xff]
    %v677 = vld [vmem:[%s1 + $0xb8] sm:$0xff]
    %v678 = vld [vmem:[%s1 + $0xc0] sm:$0xff]
    %v679 = vld [vmem:[%s1 + $0xc8] sm:$0xff]
    %v680 = vld [vmem:[%s1 + $0xd0] sm:$0xff]
    %v681 = vld [vmem:[%s1 + $0xd8] sm:$0xff]
    %v682 = vld [vmem:[%s1 + $0xe0] sm:$0xff]
    %v683 = vld [vmem:[%s1 + $0xe8] sm:$0xff]
    %v684 = vld [vmem:[%s1 + $0xf0] sm:$0xff]
    %v685 = vld [vmem:[%s1 + $0xf8] sm:$0xff]
    %v686 = vld [vmem:[%s1 + $0x100] sm:$0xff]
    %v687 = vld [vmem:[%s1 + $0x108] sm:$0xff]
    %v688 = vld [vmem:[%s1 + $0x110] sm:$0xff]
    %v689 = vld [vmem:[%s1 + $0x118] sm:$0xff]
    %v690 = vld [vmem:[%s1 + $0x120] sm:$0xff]
    %v691 = vld [vmem:[%s1 + $0x128] sm:$0xff]
    %v692 = vld [vmem:[%s1 + $0x130] sm:$0xff]
    %v693 = vld [vmem:[%s1 + $0x138] sm:$0xff]
    %v694 = vld [vmem:[%s1 + $0x140] sm:$0xff]
    %v695 = vld [vmem:[%s1 + $0x148] sm:$0xff]
    %v696 = vld [vmem:[%s1 + $0x150] sm:$0xff]
    %v697 = vld [vmem:[%s1 + $0x158] sm:$0xff]
    %v698 = vld [vmem:[%s1 + $0x160] sm:$0xff]
    %v699 = vld [vmem:[%s1 + $0x168] sm:$0xff]
    %v700 = vld [vmem:[%s1 + $0x170] sm:$0xff]
    %v701 = vld [vmem:[%s1 + $0x178] sm:$0xff]
    %v702 = vld [vmem:[%s1 + $0x180] sm:$0xff]
    %v703 = vld [vmem:[%s1 + $0x188] sm:$0xff]
    %v704 = vld [vmem:[%s1 + $0x190] sm:$0xff]
    %v705 = vld [vmem:[%s1 + $0x198] sm:$0xff]
    %v706 = vld [vmem:[%s1 + $0x1a0] sm:$0xff]
    %v707 = vld [vmem:[%s1 + $0x1a8] sm:$0xff]
    %v708 = vld [vmem:[%s1 + $0x1b0] sm:$0xff]
    %v709 = vld [vmem:[%s1 + $0x1b8] sm:$0xff]
    %v710 = vld [vmem:[%s1 + $0x1c0] sm:$0xff]
    %v711 = vld [vmem:[%s1 + $0x1c8] sm:$0xff]
    %v712 = vld [vmem:[%s1 + $0x1d0] sm:$0xff]
    %v713 = vld [vmem:[%s1 + $0x1d8] sm:$0xff]
    %v714 = vld [vmem:[%s1 + $0x1e0] sm:$0xff]
    %v715 = vld [vmem:[%s1 + $0x1e8] sm:$0xff]
    %v716 = vld [vmem:[%s1 + $0x1f0] sm:$0xff]
    %v717 = vld [vmem:[%s1 + $0x1f8] sm:$0xff]
    %v718 = vld [vmem:[%s1 + $0x200] sm:$0xff]
    %v719 = vld [vmem:[%s1 + $0x208] sm:$0xff]
    %v720 = vld [vmem:[%s1 + $0x210] sm:$0xff]
    %v721 = vld [vmem:[%s1 + $0x218] sm:$0xff]
    %v722 = vld [vmem:[%s1 + $0x220] sm:$0xff]
    %v723 = vld [vmem:[%s1 + $0x228] sm:$0xff]
    %v724 = vld [vmem:[%s1 + $0x230] sm:$0xff]
    %v725 = vld [vmem:[%s1 + $0x238] sm:$0xff]
    %v726 = vld [vmem:[%s1 + $0x240] sm:$0xff]
    %v727 = vld [vmem:[%s1 + $0x248] sm:$0xff]
    %v728 = vld [vmem:[%s1 + $0x250] sm:$0xff]
    %v729 = vld [vmem:[%s1 + $0x258] sm:$0xff]
    %v730 = vld [vmem:[%s1 + $0x260] sm:$0xff]
    %v731 = vld [vmem:[%s1 + $0x268] sm:$0xff]
    %v732 = vld [vmem:[%s1 + $0x270] sm:$0xff]
    %v733 = vld [vmem:[%s1 + $0x278] sm:$0xff]
    %v734 = vld [vmem:[%s1 + $0x280] sm:$0xff]
    %v735 = vld [vmem:[%s1 + $0x288] sm:$0xff]
    %v736 = vld [vmem:[%s1 + $0x290] sm:$0xff]
    %v737 = vld [vmem:[%s1 + $0x298] sm:$0xff]
    %v738 = vld [vmem:[%s1 + $0x2a0] sm:$0xff]
    %v739 = vld [vmem:[%s1 + $0x2a8] sm:$0xff]
    %v740 = vld [vmem:[%s1 + $0x2b0] sm:$0xff]
    %v741 = vld [vmem:[%s1 + $0x2b8] sm:$0xff]
    %v742 = vld [vmem:[%s1 + $0x2c0] sm:$0xff]
    %v743 = vld [vmem:[%s1 + $0x2c8] sm:$0xff]
    %v744 = vld [vmem:[%s1 + $0x2d0] sm:$0xff]
    %v745 = vld [vmem:[%s1 + $0x2d8] sm:$0xff]
    %v746 = vld [vmem:[%s1 + $0x2e0] sm:$0xff]
    %v747 = vld [vmem:[%s1 + $0x2e8] sm:$0xff]
    %v748 = vld [vmem:[%s1 + $0x2f0] sm:$0xff]
    %v749 = vld [vmem:[%s1 + $0x2f8] sm:$0xff]
    %v750 = vld [vmem:[%s1 + $0x300] sm:$0xff]
    %v751 = vld [vmem:[%s1 + $0x308] sm:$0xff]
    %v752 = vld [vmem:[%s1 + $0x310] sm:$0xff]
    %v753 = vld [vmem:[%s1 + $0x318] sm:$0xff]
    %v754 = vld [vmem:[%s1 + $0x320] sm:$0xff]
    %v755 = vld [vmem:[%s1 + $0x328] sm:$0xff]
    %v756 = vld [vmem:[%s1 + $0x330] sm:$0xff]
    %v757 = vld [vmem:[%s1 + $0x338] sm:$0xff]
    %v758 = vld [vmem:[%s1 + $0x340] sm:$0xff]
    %v759 = vld [vmem:[%s1 + $0x348] sm:$0xff]
    %v760 = vld [vmem:[%s1 + $0x350] sm:$0xff]
    %v761 = vld [vmem:[%s1 + $0x358] sm:$0xff]
    %v762 = vld [vmem:[%s1 + $0x360] sm:$0xff]
    %v763 = vld [vmem:[%s1 + $0x368] sm:$0xff]
    %v764 = vld [vmem:[%s1 + $0x370] sm:$0xff]
    %v765 = vld [vmem:[%s1 + $0x378] sm:$0xff]
    %v766 = vld [vmem:[%s1 + $0x380] sm:$0xff]
    %v767 = vld [vmem:[%s1 + $0x388] sm:$0xff]
    %v768 = vld [vmem:[%s1 + $0x390] sm:$0xff]
    %v769 = vld [vmem:[%s1 + $0x398] sm:$0xff]
    %v770 = vld [vmem:[%s1 + $0x3a0] sm:$0xff]
    %v771 = vld [vmem:[%s1 + $0x3a8] sm:$0xff]
    %v772 = vld [vmem:[%s1 + $0x3b0] sm:$0xff]
    %v773 = vld [vmem:[%s1 + $0x3b8] sm:$0xff]
    %v774 = vld [vmem:[%s1 + $0x3c0] sm:$0xff]
    %v775 = vld [vmem:[%s1 + $0x3c8] sm:$0xff]
    %v776 = vld [vmem:[%s1 + $0x3d0] sm:$0xff]
    %v777 = vld [vmem:[%s1 + $0x3d8] sm:$0xff]
    %v778 = vld [vmem:[%s1 + $0x3e0] sm:$0xff]
    %v779 = vld [vmem:[%s1 + $0x3e8] sm:$0xff]
    %v780 = vld [vmem:[%s1 + $0x3f0] sm:$0xff]
    %v781 = vld [vmem:[%s1 + $0x3f8] sm:$0xff]
    %v782 = vld [vmem:[%s1 + $0x400] sm:$0xff]
    %v783 = vld [vmem:[%s1 + $0x408] sm:$0xff]
    %v784 = vld [vmem:[%s1 + $0x410] sm:$0xff]
    %v785 = vld [vmem:[%s1 + $0x418] sm:$0xff]
    %v786 = vld [vmem:[%s1 + $0x420] sm:$0xff]
    %v787 = vld [vmem:[%s1 + $0x428] sm:$0xff]
    %v788 = vld [vmem:[%s1 + $0x430] sm:$0xff]
    %v789 = vld [vmem:[%s1 + $0x438] sm:$0xff]
    %v790 = vld [vmem:[%s1 + $0x440] sm:$0xff]
    %v791 = vld [vmem:[%s1 + $0x448] sm:$0xff]
    %v792 = vld [vmem:[%s1 + $0x450] sm:$0xff]
    %v793 = vld [vmem:[%s1 + $0x458] sm:$0xff]
    %v794 = vld [vmem:[%s1 + $0x460] sm:$0xff]
    %v795 = vld [vmem:[%s1 + $0x468] sm:$0xff]
    %v796 = vld [vmem:[%s1 + $0x470] sm:$0xff]
    %v797 = vld [vmem:[%s1 + $0x478] sm:$0xff]
    %v798 = vld [vmem:[%s1 + $0x480] sm:$0xff]
    %v799 = vld [vmem:[%s1 + $0x488] sm:$0xff]
    %v800 = vld [vmem:[%s1 + $0x490] sm:$0xff]
    %v801 = vld [vmem:[%s1 + $0x498] sm:$0xff]
    %v802 = vld [vmem:[%s1 + $0x4a0] sm:$0xff]
    %v803 = vld [vmem:[%s1 + $0x4a8] sm:$0xff]
    %v804 = vld [vmem:[%s1 + $0x4b0] sm:$0xff]
    %v805 = vld [vmem:[%s1 + $0x4b8] sm:$0xff]
    %v806 = vld [vmem:[%s1 + $0x4c0] sm:$0xff]
    %v807 = vld [vmem:[%s1 + $0x4c8] sm:$0xff]
    %v808 = vld [vmem:[%s1 + $0x4d0] sm:$0xff]
    %v809 = vld [vmem:[%s1 + $0x4d8] sm:$0xff]
    %v810 = vld [vmem:[%s1 + $0x4e0] sm:$0xff]
    %v811 = vld [vmem:[%s1 + $0x4e8] sm:$0xff]
    %v812 = vld [vmem:[%s1 + $0x4f0] sm:$0xff]
    %v813 = vld [vmem:[%s1 + $0x4f8] sm:$0xff]
    %v814 = vld [vmem:[%s1 + $0x500] sm:$0xff]
    %v815 = vld [vmem:[%s1 + $0x508] sm:$0xff]
    %v816 = vld [vmem:[%s1 + $0x510] sm:$0xff]
    %v817 = vld [vmem:[%s1 + $0x518] sm:$0xff]
    %v818 = vld [vmem:[%s1 + $0x520] sm:$0xff]
    %v819 = vld [vmem:[%s1 + $0x528] sm:$0xff]
    %v820 = vld [vmem:[%s1 + $0x530] sm:$0xff]
    %v821 = vld [vmem:[%s1 + $0x538] sm:$0xff]
    %v822 = vld [vmem:[%s1 + $0x540] sm:$0xff]
    %v823 = vld [vmem:[%s1 + $0x548] sm:$0xff]
    %v824 = vld [vmem:[%s1 + $0x550] sm:$0xff]
    %v825 = vld [vmem:[%s1 + $0x558] sm:$0xff]
    %v826 = vld [vmem:[%s1 + $0x560] sm:$0xff]
    %v827 = vld [vmem:[%s1 + $0x568] sm:$0xff]
    %v828 = vld [vmem:[%s1 + $0x570] sm:$0xff]
    %v829 = vld [vmem:[%s1 + $0x578] sm:$0xff]
    %v830 = vld [vmem:[%s1 + $0x580] sm:$0xff]
    %v831 = vld [vmem:[%s1 + $0x588] sm:$0xff]
    %v832 = vld [vmem:[%s1 + $0x590] sm:$0xff]
    %v833 = vld [vmem:[%s1 + $0x598] sm:$0xff]
    %v834 = vld [vmem:[%s1 + $0x5a0] sm:$0xff]
    %v835 = vld [vmem:[%s1 + $0x5a8] sm:$0xff]
    %v836 = vld [vmem:[%s1 + $0x5b0] sm:$0xff]
    %v837 = vld [vmem:[%s1 + $0x5b8] sm:$0xff]
    %v838 = vld [vmem:[%s1 + $0x5c0] sm:$0xff]
    %v839 = vld [vmem:[%s1 + $0x5c8] sm:$0xff]
    %v840 = vld [vmem:[%s1 + $0x5d0] sm:$0xff]
    %v841 = vld [vmem:[%s1 + $0x5d8] sm:$0xff]
    %v842 = vld [vmem:[%s1 + $0x5e0] sm:$0xff]
    %v843 = vld [vmem:[%s1 + $0x5e8] sm:$0xff]
    %v844 = vld [vmem:[%s1 + $0x5f0] sm:$0xff]
    %v845 = vld [vmem:[%s1 + $0x5f8] sm:$0xff]
    %v846 = vld [vmem:[%s1 + $0x600] sm:$0xff]
    %v847 = vld [vmem:[%s1 + $0x608] sm:$0xff]
    %v848 = vld [vmem:[%s1 + $0x610] sm:$0xff]
    %v849 = vld [vmem:[%s1 + $0x618] sm:$0xff]
    %v850 = vld [vmem:[%s1 + $0x620] sm:$0xff]
    %v851 = vld [vmem:[%s1 + $0x628] sm:$0xff]
    %v852 = vld [vmem:[%s1 + $0x630] sm:$0xff]
    %v853 = vld [vmem:[%s1 + $0x638] sm:$0xff]
    %v854 = vld [vmem:[%s1 + $0x640] sm:$0xff]
    %v855 = vld [vmem:[%s1 + $0x648] sm:$0xff]
    %v856 = vld [vmem:[%s1 + $0x650] sm:$0xff]
    %v857 = vld [vmem:[%s1 + $0x658] sm:$0xff]
    %v858 = vld [vmem:[%s1 + $0x660] sm:$0xff]
    %v859 = vld [vmem:[%s1 + $0x668] sm:$0xff]
    %v860 = vld [vmem:[%s1 + $0x670] sm:$0xff]
    %v861 = vld [vmem:[%s1 + $0x678] sm:$0xff]
    %v862 = vld [vmem:[%s1 + $0x680] sm:$0xff]
    %v863 = vld [vmem:[%s1 + $0x688] sm:$0xff]
    %v864 = vld [vmem:[%s1 + $0x690] sm:$0xff]
    %v865 = vld [vmem:[%s1 + $0x698] sm:$0xff]
    %v866 = vld [vmem:[%s1 + $0x6a0] sm:$0xff]
    %v867 = vld [vmem:[%s1 + $0x6a8] sm:$0xff]
    %v868 = vld [vmem:[%s1 + $0x6b0] sm:$0xff]
    %v869 = vld [vmem:[%s1 + $0x6b8] sm:$0xff]
    %v870 = vld [vmem:[%s1 + $0x6c0] sm:$0xff]
    %v871 = vld [vmem:[%s1 + $0x6c8] sm:$0xff]
    %v872 = vld [vmem:[%s1 + $0x6d0] sm:$0xff]
    %v873 = vld [vmem:[%s1 + $0x6d8] sm:$0xff]
    %v874 = vld [vmem:[%s1 + $0x6e0] sm:$0xff]
    %v875 = vld [vmem:[%s1 + $0x6e8] sm:$0xff]
    %v876 = vld [vmem:[%s1 + $0x6f0] sm:$0xff]
    %v877 = vld [vmem:[%s1 + $0x6f8] sm:$0xff]
    %v878 = vld [vmem:[%s1 + $0x700] sm:$0xff]
    %v879 = vld [vmem:[%s1 + $0x708] sm:$0xff]
    %v880 = vld [vmem:[%s1 + $0x710] sm:$0xff]
    %v881 = vld [vmem:[%s1 + $0x718] sm:$0xff]
    %v882 = vld [vmem:[%s1 + $0x720] sm:$0xff]
    %v883 = vld [vmem:[%s1 + $0x728] sm:$0xff]
    %v884 = vld [vmem:[%s1 + $0x730] sm:$0xff]
    %v885 = vld [vmem:[%s1 + $0x738] sm:$0xff]
    %v886 = vld [vmem:[%s1 + $0x740] sm:$0xff]
    %v887 = vld [vmem:[%s1 + $0x748] sm:$0xff]
    %v888 = vld [vmem:[%s1 + $0x750] sm:$0xff]
    %v889 = vld [vmem:[%s1 + $0x758] sm:$0xff]
    %v890 = vld [vmem:[%s1 + $0x760] sm:$0xff]
    %v891 = vld [vmem:[%s1 + $0x768] sm:$0xff]
    %v892 = vld [vmem:[%s1 + $0x770] sm:$0xff]
    %v893 = vld [vmem:[%s1 + $0x778] sm:$0xff]
    %v894 = vld [vmem:[%s1 + $0x780] sm:$0xff]
    %v895 = vld [vmem:[%s1 + $0x788] sm:$0xff]
    %v896 = vld [vmem:[%s1 + $0x790] sm:$0xff]
    %v897 = vld [vmem:[%s1 + $0x798] sm:$0xff]
    %v898 = vld [vmem:[%s1 + $0x7a0] sm:$0xff]
    %v899 = vld [vmem:[%s1 + $0x7a8] sm:$0xff]
    %v900 = vld [vmem:[%s1 + $0x7b0] sm:$0xff]
    %v901 = vld [vmem:[%s1 + $0x7b8] sm:$0xff]
    %v902 = vld [vmem:[%s1 + $0x7c0] sm:$0xff]
    %v903 = vld [vmem:[%s1 + $0x7c8] sm:$0xff]
    %v904 = vld [vmem:[%s1 + $0x7d0] sm:$0xff]
    %v905 = vld [vmem:[%s1 + $0x7d8] sm:$0xff]
    %v906 = vld [vmem:[%s1 + $0x7e0] sm:$0xff]
    %v907 = vld [vmem:[%s1 + $0x7e8] sm:$0xff]
    %v908 = vld [vmem:[%s1 + $0x7f0] sm:$0xff]
    %v909 = vld [vmem:[%s1 + $0x7f8] sm:$0xff]
    %910 = vmatprep.subr.mxu0 %v655
    %911 = vmatpush1.msra.mxu0 %v654
    %912 = vmatprep.subr.mxu0 %v663
    %913 = vmatpush1.msra.mxu0 %v662
    %914 = vmatprep.subr.mxu0 %v671
    %915 = vmatpush1.msra.mxu0 %v670
    %916 = vmatprep.subr.mxu0 %v679
    %917 = vmatpush1.msra.mxu0 %v678
    %918 = vmatprep.subr.mxu0 %v687
    %919 = vmatpush1.msra.mxu0 %v686
    %920 = vmatprep.subr.mxu0 %v695
    %921 = vmatpush1.msra.mxu0 %v694
    %922 = vmatprep.subr.mxu0 %v703
    %923 = vmatpush1.msra.mxu0 %v702
    %924 = vmatprep.subr.mxu0 %v711
    %925 = vmatpush1.msra.mxu0 %v710
    %926 = vmatprep.subr.mxu0 %v719
    %927 = vmatpush1.msra.mxu0 %v718
    %928 = vmatprep.subr.mxu0 %v727
    %929 = vmatpush1.msra.mxu0 %v726
    %930 = vmatprep.subr.mxu0 %v735
    %931 = vmatpush1.msra.mxu0 %v734
    %932 = vmatprep.subr.mxu0 %v743
    %933 = vmatpush1.msra.mxu0 %v742
    %934 = vmatprep.subr.mxu0 %v751
    %935 = vmatpush1.msra.mxu0 %v750
    %936 = vmatprep.subr.mxu0 %v759
    %937 = vmatpush1.msra.mxu0 %v758
    %938 = vmatprep.subr.mxu0 %v767
    %939 = vmatpush1.msra.mxu0 %v766
    %940 = vmatprep.subr.mxu0 %v775
    %941 = vmatpush1.msra.mxu0 %v774
    %942 = vmatprep.subr.mxu0 %v783
    %943 = vmatpush1.msra.mxu0 %v782
    %944 = vmatprep.subr.mxu0 %v791
    %945 = vmatpush1.msra.mxu0 %v790
    %946 = vmatprep.subr.mxu0 %v799
    %947 = vmatpush1.msra.mxu0 %v798
    %948 = vmatprep.subr.mxu0 %v807
    %949 = vmatpush1.msra.mxu0 %v806
    %950 = vmatprep.subr.mxu0 %v815
    %951 = vmatpush1.msra.mxu0 %v814
    %952 = vmatprep.subr.mxu0 %v823
    %953 = vmatpush1.msra.mxu0 %v822
    %954 = vmatprep.subr.mxu0 %v831
    %955 = vmatpush1.msra.mxu0 %v830
    %956 = vmatprep.subr.mxu0 %v839
    %957 = vmatpush1.msra.mxu0 %v838
    %958 = vmatprep.subr.mxu0 %v847
    %959 = vmatpush1.msra.mxu0 %v846
    %960 = vmatprep.subr.mxu0 %v855
    %961 = vmatpush1.msra.mxu0 %v854
    %962 = vmatprep.subr.mxu0 %v863
    %963 = vmatpush1.msra.mxu0 %v862
    %964 = vmatprep.subr.mxu0 %v871
    %965 = vmatpush1.msra.mxu0 %v870
    %966 = vmatprep.subr.mxu0 %v879
    %967 = vmatpush1.msra.mxu0 %v878
    %968 = vmatprep.subr.mxu0 %v887
    %969 = vmatpush1.msra.mxu0 %v886
    %970 = vmatprep.subr.mxu0 %v895
    %971 = vmatpush1.msra.mxu0 %v894
    %972 = vmatprep.subr.mxu0 %v903
    %973 = vmatpush1.msra.mxu0 %v902
    %974 = vmatprep.mubr.f32.mxu0 %v643
    %975 = vmatmul.mubr.f32.gmra.mrb[0].mxu0 %v642
    %v976 = vpop.f32.mrb[0].mxu0
    %v977 = vadd.f32 0.0, %v976
    %v978 = vpop.f32.mrb[0].mxu0
    %v979 = vadd.f32 0.0, %v978
    %980 = vdwg.mxu0
    %981 = vmatprep.subr.mxu0 %v657
    %982 = vmatpush1.msra.mxu0 %v656
    %983 = vmatprep.subr.mxu0 %v665
    %984 = vmatpush1.msra.mxu0 %v664
    %985 = vmatprep.subr.mxu0 %v673
    %986 = vmatpush1.msra.mxu0 %v672
    %987 = vmatprep.subr.mxu0 %v681
    %988 = vmatpush1.msra.mxu0 %v680
    %989 = vmatprep.subr.mxu0 %v689
    %990 = vmatpush1.msra.mxu0 %v688
    %991 = vmatprep.subr.mxu0 %v697
    %992 = vmatpush1.msra.mxu0 %v696
    %993 = vmatprep.subr.mxu0 %v705
    %994 = vmatpush1.msra.mxu0 %v704
    %995 = vmatprep.subr.mxu0 %v713
    %996 = vmatpush1.msra.mxu0 %v712
    %997 = vmatprep.subr.mxu0 %v721
    %998 = vmatpush1.msra.mxu0 %v720
    %999 = vmatprep.subr.mxu0 %v729
    %1000 = vmatpush1.msra.mxu0 %v728
    %1001 = vmatprep.subr.mxu0 %v737
    %1002 = vmatpush1.msra.mxu0 %v736
    %1003 = vmatprep.subr.mxu0 %v745
    %1004 = vmatpush1.msra.mxu0 %v744
    %1005 = vmatprep.subr.mxu0 %v753
    %1006 = vmatpush1.msra.mxu0 %v752
    %1007 = vmatprep.subr.mxu0 %v761
    %1008 = vmatpush1.msra.mxu0 %v760
    %1009 = vmatprep.subr.mxu0 %v769
    %1010 = vmatpush1.msra.mxu0 %v768
    %1011 = vmatprep.subr.mxu0 %v777
    %1012 = vmatpush1.msra.mxu0 %v776
    %1013 = vmatprep.subr.mxu0 %v785
    %1014 = vmatpush1.msra.mxu0 %v784
    %1015 = vmatprep.subr.mxu0 %v793
    %1016 = vmatpush1.msra.mxu0 %v792
    %1017 = vmatprep.subr.mxu0 %v801
    %1018 = vmatpush1.msra.mxu0 %v800
    %1019 = vmatprep.subr.mxu0 %v809
    %1020 = vmatpush1.msra.mxu0 %v808
    %1021 = vmatprep.subr.mxu0 %v817
    %1022 = vmatpush1.msra.mxu0 %v816
    %1023 = vmatprep.subr.mxu0 %v825
    %1024 = vmatpush1.msra.mxu0 %v824
    %1025 = vmatprep.subr.mxu0 %v833
    %1026 = vmatpush1.msra.mxu0 %v832
    %1027 = vmatprep.subr.mxu0 %v841
    %1028 = vmatpush1.msra.mxu0 %v840
    %1029 = vmatprep.subr.mxu0 %v849
    %1030 = vmatpush1.msra.mxu0 %v848
    %1031 = vmatprep.subr.mxu0 %v857
    %1032 = vmatpush1.msra.mxu0 %v856
    %1033 = vmatprep.subr.mxu0 %v865
    %1034 = vmatpush1.msra.mxu0 %v864
    %1035 = vmatprep.subr.mxu0 %v873
    %1036 = vmatpush1.msra.mxu0 %v872
    %1037 = vmatprep.subr.mxu0 %v881
    %1038 = vmatpush1.msra.mxu0 %v880
    %1039 = vmatprep.subr.mxu0 %v889
    %1040 = vmatpush1.msra.mxu0 %v888
    %1041 = vmatprep.subr.mxu0 %v897
    %1042 = vmatpush1.msra.mxu0 %v896
    %1043 = vmatprep.subr.mxu0 %v905
    %1044 = vmatpush1.msra.mxu0 %v904
    %1045 = vmatprep.mubr.f32.mxu0 %v643
    %1046 = vmatmul.mubr.f32.gmra.mrb[0].mxu0 %v642
    %v1047 = vpop.f32.mrb[0].mxu0
    %v1048 = vadd.f32 0.0, %v1047
    %v1049 = vpop.f32.mrb[0].mxu0
    %v1050 = vadd.f32 0.0, %v1049
    %1051 = vdwg.mxu0
    %1052 = vmatprep.subr.mxu0 %v659
    %1053 = vmatpush1.msra.mxu0 %v658
    %1054 = vmatprep.subr.mxu0 %v667
    %1055 = vmatpush1.msra.mxu0 %v666
    %1056 = vmatprep.subr.mxu0 %v675
    %1057 = vmatpush1.msra.mxu0 %v674
    %1058 = vmatprep.subr.mxu0 %v683
    %1059 = vmatpush1.msra.mxu0 %v682
    %1060 = vmatprep.subr.mxu0 %v691
    %1061 = vmatpush1.msra.mxu0 %v690
    %1062 = vmatprep.subr.mxu0 %v699
    %1063 = vmatpush1.msra.mxu0 %v698
    %1064 = vmatprep.subr.mxu0 %v707
    %1065 = vmatpush1.msra.mxu0 %v706
    %1066 = vmatprep.subr.mxu0 %v715
    %1067 = vmatpush1.msra.mxu0 %v714
    %1068 = vmatprep.subr.mxu0 %v723
    %1069 = vmatpush1.msra.mxu0 %v722
    %1070 = vmatprep.subr.mxu0 %v731
    %1071 = vmatpush1.msra.mxu0 %v730
    %1072 = vmatprep.subr.mxu0 %v739
    %1073 = vmatpush1.msra.mxu0 %v738
    %1074 = vmatprep.subr.mxu0 %v747
    %1075 = vmatpush1.msra.mxu0 %v746
    %1076 = vmatprep.subr.mxu0 %v755
    %1077 = vmatpush1.msra.mxu0 %v754
    %1078 = vmatprep.subr.mxu0 %v763
    %1079 = vmatpush1.msra.mxu0 %v762
    %1080 = vmatprep.subr.mxu0 %v771
    %1081 = vmatpush1.msra.mxu0 %v770
    %1082 = vmatprep.subr.mxu0 %v779
    %1083 = vmatpush1.msra.mxu0 %v778
    %1084 = vmatprep.subr.mxu0 %v787
    %1085 = vmatpush1.msra.mxu0 %v786
    %1086 = vmatprep.subr.mxu0 %v795
    %1087 = vmatpush1.msra.mxu0 %v794
    %1088 = vmatprep.subr.mxu0 %v803
    %1089 = vmatpush1.msra.mxu0 %v802
    %1090 = vmatprep.subr.mxu0 %v811
    %1091 = vmatpush1.msra.mxu0 %v810
    %1092 = vmatprep.subr.mxu0 %v819
    %1093 = vmatpush1.msra.mxu0 %v818
    %1094 = vmatprep.subr.mxu0 %v827
    %1095 = vmatpush1.msra.mxu0 %v826
    %1096 = vmatprep.subr.mxu0 %v835
    %1097 = vmatpush1.msra.mxu0 %v834
    %1098 = vmatprep.subr.mxu0 %v843
    %1099 = vmatpush1.msra.mxu0 %v842
    %1100 = vmatprep.subr.mxu0 %v851
    %1101 = vmatpush1.msra.mxu0 %v850
    %1102 = vmatprep.subr.mxu0 %v859
    %1103 = vmatpush1.msra.mxu0 %v858
    %1104 = vmatprep.subr.mxu0 %v867
    %1105 = vmatpush1.msra.mxu0 %v866
    %1106 = vmatprep.subr.mxu0 %v875
    %1107 = vmatpush1.msra.mxu0 %v874
    %1108 = vmatprep.subr.mxu0 %v883
    %1109 = vmatpush1.msra.mxu0 %v882
    %1110 = vmatprep.subr.mxu0 %v891
    %1111 = vmatpush1.msra.mxu0 %v890
    %1112 = vmatprep.subr.mxu0 %v899
    %1113 = vmatpush1.msra.mxu0 %v898
    %1114 = vmatprep.subr.mxu0 %v907
    %1115 = vmatpush1.msra.mxu0 %v906
    %1116 = vmatprep.mubr.f32.mxu0 %v643
    %1117 = vmatmul.mubr.f32.gmra.mrb[0].mxu0 %v642
    %v1118 = vpop.f32.mrb[0].mxu0
    %v1119 = vadd.f32 0.0, %v1118
    %v1120 = vpop.f32.mrb[0].mxu0
    %v1121 = vadd.f32 0.0, %v1120
    %1122 = vdwg.mxu0
    %1123 = vmatprep.subr.mxu0 %v661
    %1124 = vmatpush1.msra.mxu0 %v660
    %1125 = vmatprep.subr.mxu0 %v669
    %1126 = vmatpush1.msra.mxu0 %v668
    %1127 = vmatprep.subr.mxu0 %v677
    %1128 = vmatpush1.msra.mxu0 %v676
    %1129 = vmatprep.subr.mxu0 %v685
    %1130 = vmatpush1.msra.mxu0 %v684
    %1131 = vmatprep.subr.mxu0 %v693
    %1132 = vmatpush1.msra.mxu0 %v692
    %1133 = vmatprep.subr.mxu0 %v701
    %1134 = vmatpush1.msra.mxu0 %v700
    %1135 = vmatprep.subr.mxu0 %v709
    %1136 = vmatpush1.msra.mxu0 %v708
    %1137 = vmatprep.subr.mxu0 %v717
    %1138 = vmatpush1.msra.mxu0 %v716
    %1139 = vmatprep.subr.mxu0 %v725
    %1140 = vmatpush1.msra.mxu0 %v724
    %1141 = vmatprep.subr.mxu0 %v733
    %1142 = vmatpush1.msra.mxu0 %v732
    %1143 = vmatprep.subr.mxu0 %v741
    %1144 = vmatpush1.msra.mxu0 %v740
    %1145 = vmatprep.subr.mxu0 %v749
    %1146 = vmatpush1.msra.mxu0 %v748
    %1147 = vmatprep.subr.mxu0 %v757
    %1148 = vmatpush1.msra.mxu0 %v756
    %1149 = vmatprep.subr.mxu0 %v765
    %1150 = vmatpush1.msra.mxu0 %v764
    %1151 = vmatprep.subr.mxu0 %v773
    %1152 = vmatpush1.msra.mxu0 %v772
    %1153 = vmatprep.subr.mxu0 %v781
    %1154 = vmatpush1.msra.mxu0 %v780
    %1155 = vmatprep.subr.mxu0 %v789
    %1156 = vmatpush1.msra.mxu0 %v788
    %1157 = vmatprep.subr.mxu0 %v797
    %1158 = vmatpush1.msra.mxu0 %v796
    %1159 = vmatprep.subr.mxu0 %v805
    %1160 = vmatpush1.msra.mxu0 %v804
    %1161 = vmatprep.subr.mxu0 %v813
    %1162 = vmatpush1.msra.mxu0 %v812
    %1163 = vmatprep.subr.mxu0 %v821
    %1164 = vmatpush1.msra.mxu0 %v820
    %1165 = vmatprep.subr.mxu0 %v829
    %1166 = vmatpush1.msra.mxu0 %v828
    %1167 = vmatprep.subr.mxu0 %v837
    %1168 = vmatpush1.msra.mxu0 %v836
    %1169 = vmatprep.subr.mxu0 %v845
    %1170 = vmatpush1.msra.mxu0 %v844
    %1171 = vmatprep.subr.mxu0 %v853
    %1172 = vmatpush1.msra.mxu0 %v852
    %1173 = vmatprep.subr.mxu0 %v861
    %1174 = vmatpush1.msra.mxu0 %v860
    %1175 = vmatprep.subr.mxu0 %v869
    %1176 = vmatpush1.msra.mxu0 %v868
    %1177 = vmatprep.subr.mxu0 %v877
    %1178 = vmatpush1.msra.mxu0 %v876
    %1179 = vmatprep.subr.mxu0 %v885
    %1180 = vmatpush1.msra.mxu0 %v884
    %1181 = vmatprep.subr.mxu0 %v893
    %1182 = vmatpush1.msra.mxu0 %v892
    %1183 = vmatprep.subr.mxu0 %v901
    %1184 = vmatpush1.msra.mxu0 %v900
    %1185 = vmatprep.subr.mxu0 %v909
    %1186 = vmatpush1.msra.mxu0 %v908
    %1187 = vmatprep.mubr.f32.mxu0 %v643
    %1188 = vmatmul.mubr.f32.gmra.mrb[0].mxu0 %v642
    %v1189 = vpop.f32.mrb[0].mxu0
    %v1190 = vadd.f32 0.0, %v1189
    %v1191 = vpop.f32.mrb[0].mxu0
    %v1192 = vadd.f32 0.0, %v1191
    %1193 = vdwg.mxu0
    %v1194 = vadd.f32 %v646, %v977
    %v1195 = vadd.f32 %v647, %v979
    %v1196 = vadd.f32 %v648, %v1048
    %v1197 = vadd.f32 %v649, %v1050
    %v1198 = vadd.f32 %v650, %v1119
    %v1199 = vadd.f32 %v651, %v1121
    %v1200 = vadd.f32 %v652, %v1190
    %v1201 = vadd.f32 %v653, %v1192
    %v1202 = vxor.u32 %v1194, 2147483648
    %v1203 = vxor.u32 %v1195, 2147483648
    %v1204 = vmul.f32 %v1202, 1.442695
    %v1205 = vpow.pop %v1204
    %v1206 = vmul.f32 %v1203, 1.442695
    %v1207 = vpow.pop %v1206
    %v1208 = vadd.f32 %v1205, 1.0
    %v1209 = vadd.f32 %v1207, 1.0
    %v1210 = vrcp.pop %v1208
    %v1211 = vmul.f32 1.0, %v1210
    %v1212 = vrcp.pop %v1209
    %v1213 = vmul.f32 1.0, %v1212
    %v1214 = vxor.u32 %v1196, 2147483648
    %v1215 = vxor.u32 %v1197, 2147483648
    %v1216 = vmul.f32 %v1214, 1.442695
    %v1217 = vpow.pop %v1216
    %v1218 = vmul.f32 %v1215, 1.442695
    %v1219 = vpow.pop %v1218
    %v1220 = vadd.f32 %v1217, 1.0
    %v1221 = vadd.f32 %v1219, 1.0
    %v1222 = vrcp.pop %v1220
    %v1223 = vmul.f32 1.0, %v1222
    %v1224 = vrcp.pop %v1221
    %v1225 = vmul.f32 1.0, %v1224
    %v1226 = vtanh.pop %v1198
    %v1227 = vtanh.pop %v1199
    %v1228 = vxor.u32 %v1200, 2147483648
    %v1229 = vxor.u32 %v1201, 2147483648
    %v1230 = vmul.f32 %v1228, 1.442695
    %v1231 = vpow.pop %v1230
    %v1232 = vmul.f32 %v1229, 1.442695
    %v1233 = vpow.pop %v1232
    %v1234 = vadd.f32 %v1231, 1.0
    %v1235 = vadd.f32 %v1233, 1.0
    %v1236 = vrcp.pop %v1234
    %v1237 = vmul.f32 1.0, %v1236
    %v1238 = vrcp.pop %v1235
    %v1239 = vmul.f32 1.0, %v1238
    %v1240 = vmul.f32 %v1223, %v638
    %v1241 = vmul.f32 %v1225, %v639
    %v1242 = vmul.f32 %v1211, %v1226
    %v1243 = vmul.f32 %v1213, %v1227
    %v1244 = vadd.f32 %v1240, %v1242
    %v1245 = vadd.f32 %v1241, %v1243
    %v1246 = vtanh.pop %v1244
    %v1247 = vtanh.pop %v1245
    %v1248 = vmul.f32 %v1237, %v1246
    %v1249 = vmul.f32 %v1239, %v1247
    %1250 = vst [vmem:[#allocation2 + $0x10] sm:$0xff] %v1248
    %1251 = vst [vmem:[#allocation2 + $0x18] sm:$0xff] %v1249
    %v1252 = vld [vmem:[%s0 + $0x80] sm:$0xff]
    %v1253 = vld [vmem:[%s0 + $0x88] sm:$0xff]
    %v1254 = vld [vmem:[%s0 + $0x90] sm:$0xff]
    %v1255 = vld [vmem:[%s0 + $0x98] sm:$0xff]
    %v1256 = vld [vmem:[%s0 + $0xa0] sm:$0xff]
    %v1257 = vld [vmem:[%s0 + $0xa8] sm:$0xff]
    %v1258 = vld [vmem:[%s0 + $0xb0] sm:$0xff]
    %v1259 = vld [vmem:[%s0 + $0xb8] sm:$0xff]
    %v1260 = vld [vmem:[%s1] sm:$0xff]
    %v1261 = vld [vmem:[%s1 + $0x8] sm:$0xff]
    %v1262 = vld [vmem:[%s1 + $0x10] sm:$0xff]
    %v1263 = vld [vmem:[%s1 + $0x18] sm:$0xff]
    %v1264 = vld [vmem:[%s1 + $0x20] sm:$0xff]
    %v1265 = vld [vmem:[%s1 + $0x28] sm:$0xff]
    %v1266 = vld [vmem:[%s1 + $0x30] sm:$0xff]
    %v1267 = vld [vmem:[%s1 + $0x38] sm:$0xff]
    %v1268 = vld [vmem:[%s1 + $0x40] sm:$0xff]
    %v1269 = vld [vmem:[%s1 + $0x48] sm:$0xff]
    %v1270 = vld [vmem:[%s1 + $0x50] sm:$0xff]
    %v1271 = vld [vmem:[%s1 + $0x58] sm:$0xff]
    %v1272 = vld [vmem:[%s1 + $0x60] sm:$0xff]
    %v1273 = vld [vmem:[%s1 + $0x68] sm:$0xff]
    %v1274 = vld [vmem:[%s1 + $0x70] sm:$0xff]
    %v1275 = vld [vmem:[%s1 + $0x78] sm:$0xff]
    %v1276 = vld [vmem:[%s1 + $0x80] sm:$0xff]
    %v1277 = vld [vmem:[%s1 + $0x88] sm:$0xff]
    %v1278 = vld [vmem:[%s1 + $0x90] sm:$0xff]
    %v1279 = vld [vmem:[%s1 + $0x98] sm:$0xff]
    %v1280 = vld [vmem:[%s1 + $0xa0] sm:$0xff]
    %v1281 = vld [vmem:[%s1 + $0xa8] sm:$0xff]
    %v1282 = vld [vmem:[%s1 + $0xb0] sm:$0xff]
    %v1283 = vld [vmem:[%s1 + $0xb8] sm:$0xff]
    %v1284 = vld [vmem:[%s1 + $0xc0] sm:$0xff]
    %v1285 = vld [vmem:[%s1 + $0xc8] sm:$0xff]
    %v1286 = vld [vmem:[%s1 + $0xd0] sm:$0xff]
    %v1287 = vld [vmem:[%s1 + $0xd8] sm:$0xff]
    %v1288 = vld [vmem:[%s1 + $0xe0] sm:$0xff]
    %v1289 = vld [vmem:[%s1 + $0xe8] sm:$0xff]
    %v1290 = vld [vmem:[%s1 + $0xf0] sm:$0xff]
    %v1291 = vld [vmem:[%s1 + $0xf8] sm:$0xff]
    %v1292 = vld [vmem:[%s1 + $0x100] sm:$0xff]
    %v1293 = vld [vmem:[%s1 + $0x108] sm:$0xff]
    %v1294 = vld [vmem:[%s1 + $0x110] sm:$0xff]
    %v1295 = vld [vmem:[%s1 + $0x118] sm:$0xff]
    %v1296 = vld [vmem:[%s1 + $0x120] sm:$0xff]
    %v1297 = vld [vmem:[%s1 + $0x128] sm:$0xff]
    %v1298 = vld [vmem:[%s1 + $0x130] sm:$0xff]
    %v1299 = vld [vmem:[%s1 + $0x138] sm:$0xff]
    %v1300 = vld [vmem:[%s1 + $0x140] sm:$0xff]
    %v1301 = vld [vmem:[%s1 + $0x148] sm:$0xff]
    %v1302 = vld [vmem:[%s1 + $0x150] sm:$0xff]
    %v1303 = vld [vmem:[%s1 + $0x158] sm:$0xff]
    %v1304 = vld [vmem:[%s1 + $0x160] sm:$0xff]
    %v1305 = vld [vmem:[%s1 + $0x168] sm:$0xff]
    %v1306 = vld [vmem:[%s1 + $0x170] sm:$0xff]
    %v1307 = vld [vmem:[%s1 + $0x178] sm:$0xff]
    %v1308 = vld [vmem:[%s1 + $0x180] sm:$0xff]
    %v1309 = vld [vmem:[%s1 + $0x188] sm:$0xff]
    %v1310 = vld [vmem:[%s1 + $0x190] sm:$0xff]
    %v1311 = vld [vmem:[%s1 + $0x198] sm:$0xff]
    %v1312 = vld [vmem:[%s1 + $0x1a0] sm:$0xff]
    %v1313 = vld [vmem:[%s1 + $0x1a8] sm:$0xff]
    %v1314 = vld [vmem:[%s1 + $0x1b0] sm:$0xff]
    %v1315 = vld [vmem:[%s1 + $0x1b8] sm:$0xff]
    %v1316 = vld [vmem:[%s1 + $0x1c0] sm:$0xff]
    %v1317 = vld [vmem:[%s1 + $0x1c8] sm:$0xff]
    %v1318 = vld [vmem:[%s1 + $0x1d0] sm:$0xff]
    %v1319 = vld [vmem:[%s1 + $0x1d8] sm:$0xff]
    %v1320 = vld [vmem:[%s1 + $0x1e0] sm:$0xff]
    %v1321 = vld [vmem:[%s1 + $0x1e8] sm:$0xff]
    %v1322 = vld [vmem:[%s1 + $0x1f0] sm:$0xff]
    %v1323 = vld [vmem:[%s1 + $0x1f8] sm:$0xff]
    %v1324 = vld [vmem:[%s1 + $0x200] sm:$0xff]
    %v1325 = vld [vmem:[%s1 + $0x208] sm:$0xff]
    %v1326 = vld [vmem:[%s1 + $0x210] sm:$0xff]
    %v1327 = vld [vmem:[%s1 + $0x218] sm:$0xff]
    %v1328 = vld [vmem:[%s1 + $0x220] sm:$0xff]
    %v1329 = vld [vmem:[%s1 + $0x228] sm:$0xff]
    %v1330 = vld [vmem:[%s1 + $0x230] sm:$0xff]
    %v1331 = vld [vmem:[%s1 + $0x238] sm:$0xff]
    %v1332 = vld [vmem:[%s1 + $0x240] sm:$0xff]
    %v1333 = vld [vmem:[%s1 + $0x248] sm:$0xff]
    %v1334 = vld [vmem:[%s1 + $0x250] sm:$0xff]
    %v1335 = vld [vmem:[%s1 + $0x258] sm:$0xff]
    %v1336 = vld [vmem:[%s1 + $0x260] sm:$0xff]
    %v1337 = vld [vmem:[%s1 + $0x268] sm:$0xff]
    %v1338 = vld [vmem:[%s1 + $0x270] sm:$0xff]
    %v1339 = vld [vmem:[%s1 + $0x278] sm:$0xff]
    %v1340 = vld [vmem:[%s1 + $0x280] sm:$0xff]
    %v1341 = vld [vmem:[%s1 + $0x288] sm:$0xff]
    %v1342 = vld [vmem:[%s1 + $0x290] sm:$0xff]
    %v1343 = vld [vmem:[%s1 + $0x298] sm:$0xff]
    %v1344 = vld [vmem:[%s1 + $0x2a0] sm:$0xff]
    %v1345 = vld [vmem:[%s1 + $0x2a8] sm:$0xff]
    %v1346 = vld [vmem:[%s1 + $0x2b0] sm:$0xff]
    %v1347 = vld [vmem:[%s1 + $0x2b8] sm:$0xff]
    %v1348 = vld [vmem:[%s1 + $0x2c0] sm:$0xff]
    %v1349 = vld [vmem:[%s1 + $0x2c8] sm:$0xff]
    %v1350 = vld [vmem:[%s1 + $0x2d0] sm:$0xff]
    %v1351 = vld [vmem:[%s1 + $0x2d8] sm:$0xff]
    %v1352 = vld [vmem:[%s1 + $0x2e0] sm:$0xff]
    %v1353 = vld [vmem:[%s1 + $0x2e8] sm:$0xff]
    %v1354 = vld [vmem:[%s1 + $0x2f0] sm:$0xff]
    %v1355 = vld [vmem:[%s1 + $0x2f8] sm:$0xff]
    %v1356 = vld [vmem:[%s1 + $0x300] sm:$0xff]
    %v1357 = vld [vmem:[%s1 + $0x308] sm:$0xff]
    %v1358 = vld [vmem:[%s1 + $0x310] sm:$0xff]
    %v1359 = vld [vmem:[%s1 + $0x318] sm:$0xff]
    %v1360 = vld [vmem:[%s1 + $0x320] sm:$0xff]
    %v1361 = vld [vmem:[%s1 + $0x328] sm:$0xff]
    %v1362 = vld [vmem:[%s1 + $0x330] sm:$0xff]
    %v1363 = vld [vmem:[%s1 + $0x338] sm:$0xff]
    %v1364 = vld [vmem:[%s1 + $0x340] sm:$0xff]
    %v1365 = vld [vmem:[%s1 + $0x348] sm:$0xff]
    %v1366 = vld [vmem:[%s1 + $0x350] sm:$0xff]
    %v1367 = vld [vmem:[%s1 + $0x358] sm:$0xff]
    %v1368 = vld [vmem:[%s1 + $0x360] sm:$0xff]
    %v1369 = vld [vmem:[%s1 + $0x368] sm:$0xff]
    %v1370 = vld [vmem:[%s1 + $0x370] sm:$0xff]
    %v1371 = vld [vmem:[%s1 + $0x378] sm:$0xff]
    %v1372 = vld [vmem:[%s1 + $0x380] sm:$0xff]
    %v1373 = vld [vmem:[%s1 + $0x388] sm:$0xff]
    %v1374 = vld [vmem:[%s1 + $0x390] sm:$0xff]
    %v1375 = vld [vmem:[%s1 + $0x398] sm:$0xff]
    %v1376 = vld [vmem:[%s1 + $0x3a0] sm:$0xff]
    %v1377 = vld [vmem:[%s1 + $0x3a8] sm:$0xff]
    %v1378 = vld [vmem:[%s1 + $0x3b0] sm:$0xff]
    %v1379 = vld [vmem:[%s1 + $0x3b8] sm:$0xff]
    %v1380 = vld [vmem:[%s1 + $0x3c0] sm:$0xff]
    %v1381 = vld [vmem:[%s1 + $0x3c8] sm:$0xff]
    %v1382 = vld [vmem:[%s1 + $0x3d0] sm:$0xff]
    %v1383 = vld [vmem:[%s1 + $0x3d8] sm:$0xff]
    %v1384 = vld [vmem:[%s1 + $0x3e0] sm:$0xff]
    %v1385 = vld [vmem:[%s1 + $0x3e8] sm:$0xff]
    %v1386 = vld [vmem:[%s1 + $0x3f0] sm:$0xff]
    %v1387 = vld [vmem:[%s1 + $0x3f8] sm:$0xff]
    %v1388 = vld [vmem:[%s1 + $0x400] sm:$0xff]
    %v1389 = vld [vmem:[%s1 + $0x408] sm:$0xff]
    %v1390 = vld [vmem:[%s1 + $0x410] sm:$0xff]
    %v1391 = vld [vmem:[%s1 + $0x418] sm:$0xff]
    %v1392 = vld [vmem:[%s1 + $0x420] sm:$0xff]
    %v1393 = vld [vmem:[%s1 + $0x428] sm:$0xff]
    %v1394 = vld [vmem:[%s1 + $0x430] sm:$0xff]
    %v1395 = vld [vmem:[%s1 + $0x438] sm:$0xff]
    %v1396 = vld [vmem:[%s1 + $0x440] sm:$0xff]
    %v1397 = vld [vmem:[%s1 + $0x448] sm:$0xff]
    %v1398 = vld [vmem:[%s1 + $0x450] sm:$0xff]
    %v1399 = vld [vmem:[%s1 + $0x458] sm:$0xff]
    %v1400 = vld [vmem:[%s1 + $0x460] sm:$0xff]
    %v1401 = vld [vmem:[%s1 + $0x468] sm:$0xff]
    %v1402 = vld [vmem:[%s1 + $0x470] sm:$0xff]
    %v1403 = vld [vmem:[%s1 + $0x478] sm:$0xff]
    %v1404 = vld [vmem:[%s1 + $0x480] sm:$0xff]
    %v1405 = vld [vmem:[%s1 + $0x488] sm:$0xff]
    %v1406 = vld [vmem:[%s1 + $0x490] sm:$0xff]
    %v1407 = vld [vmem:[%s1 + $0x498] sm:$0xff]
    %v1408 = vld [vmem:[%s1 + $0x4a0] sm:$0xff]
    %v1409 = vld [vmem:[%s1 + $0x4a8] sm:$0xff]
    %v1410 = vld [vmem:[%s1 + $0x4b0] sm:$0xff]
    %v1411 = vld [vmem:[%s1 + $0x4b8] sm:$0xff]
    %v1412 = vld [vmem:[%s1 + $0x4c0] sm:$0xff]
    %v1413 = vld [vmem:[%s1 + $0x4c8] sm:$0xff]
    %v1414 = vld [vmem:[%s1 + $0x4d0] sm:$0xff]
    %v1415 = vld [vmem:[%s1 + $0x4d8] sm:$0xff]
    %v1416 = vld [vmem:[%s1 + $0x4e0] sm:$0xff]
    %v1417 = vld [vmem:[%s1 + $0x4e8] sm:$0xff]
    %v1418 = vld [vmem:[%s1 + $0x4f0] sm:$0xff]
    %v1419 = vld [vmem:[%s1 + $0x4f8] sm:$0xff]
    %v1420 = vld [vmem:[%s1 + $0x500] sm:$0xff]
    %v1421 = vld [vmem:[%s1 + $0x508] sm:$0xff]
    %v1422 = vld [vmem:[%s1 + $0x510] sm:$0xff]
    %v1423 = vld [vmem:[%s1 + $0x518] sm:$0xff]
    %v1424 = vld [vmem:[%s1 + $0x520] sm:$0xff]
    %v1425 = vld [vmem:[%s1 + $0x528] sm:$0xff]
    %v1426 = vld [vmem:[%s1 + $0x530] sm:$0xff]
    %v1427 = vld [vmem:[%s1 + $0x538] sm:$0xff]
    %v1428 = vld [vmem:[%s1 + $0x540] sm:$0xff]
    %v1429 = vld [vmem:[%s1 + $0x548] sm:$0xff]
    %v1430 = vld [vmem:[%s1 + $0x550] sm:$0xff]
    %v1431 = vld [vmem:[%s1 + $0x558] sm:$0xff]
    %v1432 = vld [vmem:[%s1 + $0x560] sm:$0xff]
    %v1433 = vld [vmem:[%s1 + $0x568] sm:$0xff]
    %v1434 = vld [vmem:[%s1 + $0x570] sm:$0xff]
    %v1435 = vld [vmem:[%s1 + $0x578] sm:$0xff]
    %v1436 = vld [vmem:[%s1 + $0x580] sm:$0xff]
    %v1437 = vld [vmem:[%s1 + $0x588] sm:$0xff]
    %v1438 = vld [vmem:[%s1 + $0x590] sm:$0xff]
    %v1439 = vld [vmem:[%s1 + $0x598] sm:$0xff]
    %v1440 = vld [vmem:[%s1 + $0x5a0] sm:$0xff]
    %v1441 = vld [vmem:[%s1 + $0x5a8] sm:$0xff]
    %v1442 = vld [vmem:[%s1 + $0x5b0] sm:$0xff]
    %v1443 = vld [vmem:[%s1 + $0x5b8] sm:$0xff]
    %v1444 = vld [vmem:[%s1 + $0x5c0] sm:$0xff]
    %v1445 = vld [vmem:[%s1 + $0x5c8] sm:$0xff]
    %v1446 = vld [vmem:[%s1 + $0x5d0] sm:$0xff]
    %v1447 = vld [vmem:[%s1 + $0x5d8] sm:$0xff]
    %v1448 = vld [vmem:[%s1 + $0x5e0] sm:$0xff]
    %v1449 = vld [vmem:[%s1 + $0x5e8] sm:$0xff]
    %v1450 = vld [vmem:[%s1 + $0x5f0] sm:$0xff]
    %v1451 = vld [vmem:[%s1 + $0x5f8] sm:$0xff]
    %v1452 = vld [vmem:[%s1 + $0x600] sm:$0xff]
    %v1453 = vld [vmem:[%s1 + $0x608] sm:$0xff]
    %v1454 = vld [vmem:[%s1 + $0x610] sm:$0xff]
    %v1455 = vld [vmem:[%s1 + $0x618] sm:$0xff]
    %v1456 = vld [vmem:[%s1 + $0x620] sm:$0xff]
    %v1457 = vld [vmem:[%s1 + $0x628] sm:$0xff]
    %v1458 = vld [vmem:[%s1 + $0x630] sm:$0xff]
    %v1459 = vld [vmem:[%s1 + $0x638] sm:$0xff]
    %v1460 = vld [vmem:[%s1 + $0x640] sm:$0xff]
    %v1461 = vld [vmem:[%s1 + $0x648] sm:$0xff]
    %v1462 = vld [vmem:[%s1 + $0x650] sm:$0xff]
    %v1463 = vld [vmem:[%s1 + $0x658] sm:$0xff]
    %v1464 = vld [vmem:[%s1 + $0x660] sm:$0xff]
    %v1465 = vld [vmem:[%s1 + $0x668] sm:$0xff]
    %v1466 = vld [vmem:[%s1 + $0x670] sm:$0xff]
    %v1467 = vld [vmem:[%s1 + $0x678] sm:$0xff]
    %v1468 = vld [vmem:[%s1 + $0x680] sm:$0xff]
    %v1469 = vld [vmem:[%s1 + $0x688] sm:$0xff]
    %v1470 = vld [vmem:[%s1 + $0x690] sm:$0xff]
    %v1471 = vld [vmem:[%s1 + $0x698] sm:$0xff]
    %v1472 = vld [vmem:[%s1 + $0x6a0] sm:$0xff]
    %v1473 = vld [vmem:[%s1 + $0x6a8] sm:$0xff]
    %v1474 = vld [vmem:[%s1 + $0x6b0] sm:$0xff]
    %v1475 = vld [vmem:[%s1 + $0x6b8] sm:$0xff]
    %v1476 = vld [vmem:[%s1 + $0x6c0] sm:$0xff]
    %v1477 = vld [vmem:[%s1 + $0x6c8] sm:$0xff]
    %v1478 = vld [vmem:[%s1 + $0x6d0] sm:$0xff]
    %v1479 = vld [vmem:[%s1 + $0x6d8] sm:$0xff]
    %v1480 = vld [vmem:[%s1 + $0x6e0] sm:$0xff]
    %v1481 = vld [vmem:[%s1 + $0x6e8] sm:$0xff]
    %v1482 = vld [vmem:[%s1 + $0x6f0] sm:$0xff]
    %v1483 = vld [vmem:[%s1 + $0x6f8] sm:$0xff]
    %v1484 = vld [vmem:[%s1 + $0x700] sm:$0xff]
    %v1485 = vld [vmem:[%s1 + $0x708] sm:$0xff]
    %v1486 = vld [vmem:[%s1 + $0x710] sm:$0xff]
    %v1487 = vld [vmem:[%s1 + $0x718] sm:$0xff]
    %v1488 = vld [vmem:[%s1 + $0x720] sm:$0xff]
    %v1489 = vld [vmem:[%s1 + $0x728] sm:$0xff]
    %v1490 = vld [vmem:[%s1 + $0x730] sm:$0xff]
    %v1491 = vld [vmem:[%s1 + $0x738] sm:$0xff]
    %v1492 = vld [vmem:[%s1 + $0x740] sm:$0xff]
    %v1493 = vld [vmem:[%s1 + $0x748] sm:$0xff]
    %v1494 = vld [vmem:[%s1 + $0x750] sm:$0xff]
    %v1495 = vld [vmem:[%s1 + $0x758] sm:$0xff]
    %v1496 = vld [vmem:[%s1 + $0x760] sm:$0xff]
    %v1497 = vld [vmem:[%s1 + $0x768] sm:$0xff]
    %v1498 = vld [vmem:[%s1 + $0x770] sm:$0xff]
    %v1499 = vld [vmem:[%s1 + $0x778] sm:$0xff]
    %v1500 = vld [vmem:[%s1 + $0x780] sm:$0xff]
    %v1501 = vld [vmem:[%s1 + $0x788] sm:$0xff]
    %v1502 = vld [vmem:[%s1 + $0x790] sm:$0xff]
    %v1503 = vld [vmem:[%s1 + $0x798] sm:$0xff]
    %v1504 = vld [vmem:[%s1 + $0x7a0] sm:$0xff]
    %v1505 = vld [vmem:[%s1 + $0x7a8] sm:$0xff]
    %v1506 = vld [vmem:[%s1 + $0x7b0] sm:$0xff]
    %v1507 = vld [vmem:[%s1 + $0x7b8] sm:$0xff]
    %v1508 = vld [vmem:[%s1 + $0x7c0] sm:$0xff]
    %v1509 = vld [vmem:[%s1 + $0x7c8] sm:$0xff]
    %v1510 = vld [vmem:[%s1 + $0x7d0] sm:$0xff]
    %v1511 = vld [vmem:[%s1 + $0x7d8] sm:$0xff]
    %v1512 = vld [vmem:[%s1 + $0x7e0] sm:$0xff]
    %v1513 = vld [vmem:[%s1 + $0x7e8] sm:$0xff]
    %v1514 = vld [vmem:[%s1 + $0x7f0] sm:$0xff]
    %v1515 = vld [vmem:[%s1 + $0x7f8] sm:$0xff]
    %1516 = vmatprep.subr.mxu0 %v1261
    %1517 = vmatpush1.msra.mxu0 %v1260
    %1518 = vmatprep.subr.mxu0 %v1269
    %1519 = vmatpush1.msra.mxu0 %v1268
    %1520 = vmatprep.subr.mxu0 %v1277
    %1521 = vmatpush1.msra.mxu0 %v1276
    %1522 = vmatprep.subr.mxu0 %v1285
    %1523 = vmatpush1.msra.mxu0 %v1284
    %1524 = vmatprep.subr.mxu0 %v1293
    %1525 = vmatpush1.msra.mxu0 %v1292
    %1526 = vmatprep.subr.mxu0 %v1301
    %1527 = vmatpush1.msra.mxu0 %v1300
    %1528 = vmatprep.subr.mxu0 %v1309
    %1529 = vmatpush1.msra.mxu0 %v1308
    %1530 = vmatprep.subr.mxu0 %v1317
    %1531 = vmatpush1.msra.mxu0 %v1316
    %1532 = vmatprep.subr.mxu0 %v1325
    %1533 = vmatpush1.msra.mxu0 %v1324
    %1534 = vmatprep.subr.mxu0 %v1333
    %1535 = vmatpush1.msra.mxu0 %v1332
    %1536 = vmatprep.subr.mxu0 %v1341
    %1537 = vmatpush1.msra.mxu0 %v1340
    %1538 = vmatprep.subr.mxu0 %v1349
    %1539 = vmatpush1.msra.mxu0 %v1348
    %1540 = vmatprep.subr.mxu0 %v1357
    %1541 = vmatpush1.msra.mxu0 %v1356
    %1542 = vmatprep.subr.mxu0 %v1365
    %1543 = vmatpush1.msra.mxu0 %v1364
    %1544 = vmatprep.subr.mxu0 %v1373
    %1545 = vmatpush1.msra.mxu0 %v1372
    %1546 = vmatprep.subr.mxu0 %v1381
    %1547 = vmatpush1.msra.mxu0 %v1380
    %1548 = vmatprep.subr.mxu0 %v1389
    %1549 = vmatpush1.msra.mxu0 %v1388
    %1550 = vmatprep.subr.mxu0 %v1397
    %1551 = vmatpush1.msra.mxu0 %v1396
    %1552 = vmatprep.subr.mxu0 %v1405
    %1553 = vmatpush1.msra.mxu0 %v1404
    %1554 = vmatprep.subr.mxu0 %v1413
    %1555 = vmatpush1.msra.mxu0 %v1412
    %1556 = vmatprep.subr.mxu0 %v1421
    %1557 = vmatpush1.msra.mxu0 %v1420
    %1558 = vmatprep.subr.mxu0 %v1429
    %1559 = vmatpush1.msra.mxu0 %v1428
    %1560 = vmatprep.subr.mxu0 %v1437
    %1561 = vmatpush1.msra.mxu0 %v1436
    %1562 = vmatprep.subr.mxu0 %v1445
    %1563 = vmatpush1.msra.mxu0 %v1444
    %1564 = vmatprep.subr.mxu0 %v1453
    %1565 = vmatpush1.msra.mxu0 %v1452
    %1566 = vmatprep.subr.mxu0 %v1461
    %1567 = vmatpush1.msra.mxu0 %v1460
    %1568 = vmatprep.subr.mxu0 %v1469
    %1569 = vmatpush1.msra.mxu0 %v1468
    %1570 = vmatprep.subr.mxu0 %v1477
    %1571 = vmatpush1.msra.mxu0 %v1476
    %1572 = vmatprep.subr.mxu0 %v1485
    %1573 = vmatpush1.msra.mxu0 %v1484
    %1574 = vmatprep.subr.mxu0 %v1493
    %1575 = vmatpush1.msra.mxu0 %v1492
    %1576 = vmatprep.subr.mxu0 %v1501
    %1577 = vmatpush1.msra.mxu0 %v1500
    %1578 = vmatprep.subr.mxu0 %v1509
    %1579 = vmatpush1.msra.mxu0 %v1508
    %1580 = vmatprep.mubr.f32.mxu0 %v1249
    %1581 = vmatmul.mubr.f32.gmra.mrb[0].mxu0 %v1248
    %v1582 = vpop.f32.mrb[0].mxu0
    %v1583 = vadd.f32 0.0, %v1582
    %v1584 = vpop.f32.mrb[0].mxu0
    %v1585 = vadd.f32 0.0, %v1584
    %1586 = vdwg.mxu0
    %1587 = vmatprep.subr.mxu0 %v1263
    %1588 = vmatpush1.msra.mxu0 %v1262
    %1589 = vmatprep.subr.mxu0 %v1271
    %1590 = vmatpush1.msra.mxu0 %v1270
    %1591 = vmatprep.subr.mxu0 %v1279
    %1592 = vmatpush1.msra.mxu0 %v1278
    %1593 = vmatprep.subr.mxu0 %v1287
    %1594 = vmatpush1.msra.mxu0 %v1286
    %1595 = vmatprep.subr.mxu0 %v1295
    %1596 = vmatpush1.msra.mxu0 %v1294
    %1597 = vmatprep.subr.mxu0 %v1303
    %1598 = vmatpush1.msra.mxu0 %v1302
    %1599 = vmatprep.subr.mxu0 %v1311
    %1600 = vmatpush1.msra.mxu0 %v1310
    %1601 = vmatprep.subr.mxu0 %v1319
    %1602 = vmatpush1.msra.mxu0 %v1318
    %1603 = vmatprep.subr.mxu0 %v1327
    %1604 = vmatpush1.msra.mxu0 %v1326
    %1605 = vmatprep.subr.mxu0 %v1335
    %1606 = vmatpush1.msra.mxu0 %v1334
    %1607 = vmatprep.subr.mxu0 %v1343
    %1608 = vmatpush1.msra.mxu0 %v1342
    %1609 = vmatprep.subr.mxu0 %v1351
    %1610 = vmatpush1.msra.mxu0 %v1350
    %1611 = vmatprep.subr.mxu0 %v1359
    %1612 = vmatpush1.msra.mxu0 %v1358
    %1613 = vmatprep.subr.mxu0 %v1367
    %1614 = vmatpush1.msra.mxu0 %v1366
    %1615 = vmatprep.subr.mxu0 %v1375
    %1616 = vmatpush1.msra.mxu0 %v1374
    %1617 = vmatprep.subr.mxu0 %v1383
    %1618 = vmatpush1.msra.mxu0 %v1382
    %1619 = vmatprep.subr.mxu0 %v1391
    %1620 = vmatpush1.msra.mxu0 %v1390
    %1621 = vmatprep.subr.mxu0 %v1399
    %1622 = vmatpush1.msra.mxu0 %v1398
    %1623 = vmatprep.subr.mxu0 %v1407
    %1624 = vmatpush1.msra.mxu0 %v1406
    %1625 = vmatprep.subr.mxu0 %v1415
    %1626 = vmatpush1.msra.mxu0 %v1414
    %1627 = vmatprep.subr.mxu0 %v1423
    %1628 = vmatpush1.msra.mxu0 %v1422
    %1629 = vmatprep.subr.mxu0 %v1431
    %1630 = vmatpush1.msra.mxu0 %v1430
    %1631 = vmatprep.subr.mxu0 %v1439
    %1632 = vmatpush1.msra.mxu0 %v1438
    %1633 = vmatprep.subr.mxu0 %v1447
    %1634 = vmatpush1.msra.mxu0 %v1446
    %1635 = vmatprep.subr.mxu0 %v1455
    %1636 = vmatpush1.msra.mxu0 %v1454
    %1637 = vmatprep.subr.mxu0 %v1463
    %1638 = vmatpush1.msra.mxu0 %v1462
    %1639 = vmatprep.subr.mxu0 %v1471
    %1640 = vmatpush1.msra.mxu0 %v1470
    %1641 = vmatprep.subr.mxu0 %v1479
    %1642 = vmatpush1.msra.mxu0 %v1478
    %1643 = vmatprep.subr.mxu0 %v1487
    %1644 = vmatpush1.msra.mxu0 %v1486
    %1645 = vmatprep.subr.mxu0 %v1495
    %1646 = vmatpush1.msra.mxu0 %v1494
    %1647 = vmatprep.subr.mxu0 %v1503
    %1648 = vmatpush1.msra.mxu0 %v1502
    %1649 = vmatprep.subr.mxu0 %v1511
    %1650 = vmatpush1.msra.mxu0 %v1510
    %1651 = vmatprep.mubr.f32.mxu0 %v1249
    %1652 = vmatmul.mubr.f32.gmra.mrb[0].mxu0 %v1248
    %v1653 = vpop.f32.mrb[0].mxu0
    %v1654 = vadd.f32 0.0, %v1653
    %v1655 = vpop.f32.mrb[0].mxu0
    %v1656 = vadd.f32 0.0, %v1655
    %1657 = vdwg.mxu0
    %1658 = vmatprep.subr.mxu0 %v1265
    %1659 = vmatpush1.msra.mxu0 %v1264
    %1660 = vmatprep.subr.mxu0 %v1273
    %1661 = vmatpush1.msra.mxu0 %v1272
    %1662 = vmatprep.subr.mxu0 %v1281
    %1663 = vmatpush1.msra.mxu0 %v1280
    %1664 = vmatprep.subr.mxu0 %v1289
    %1665 = vmatpush1.msra.mxu0 %v1288
    %1666 = vmatprep.subr.mxu0 %v1297
    %1667 = vmatpush1.msra.mxu0 %v1296
    %1668 = vmatprep.subr.mxu0 %v1305
    %1669 = vmatpush1.msra.mxu0 %v1304
    %1670 = vmatprep.subr.mxu0 %v1313
    %1671 = vmatpush1.msra.mxu0 %v1312
    %1672 = vmatprep.subr.mxu0 %v1321
    %1673 = vmatpush1.msra.mxu0 %v1320
    %1674 = vmatprep.subr.mxu0 %v1329
    %1675 = vmatpush1.msra.mxu0 %v1328
    %1676 = vmatprep.subr.mxu0 %v1337
    %1677 = vmatpush1.msra.mxu0 %v1336
    %1678 = vmatprep.subr.mxu0 %v1345
    %1679 = vmatpush1.msra.mxu0 %v1344
    %1680 = vmatprep.subr.mxu0 %v1353
    %1681 = vmatpush1.msra.mxu0 %v1352
    %1682 = vmatprep.subr.mxu0 %v1361
    %1683 = vmatpush1.msra.mxu0 %v1360
    %1684 = vmatprep.subr.mxu0 %v1369
    %1685 = vmatpush1.msra.mxu0 %v1368
    %1686 = vmatprep.subr.mxu0 %v1377
    %1687 = vmatpush1.msra.mxu0 %v1376
    %1688 = vmatprep.subr.mxu0 %v1385
    %1689 = vmatpush1.msra.mxu0 %v1384
    %1690 = vmatprep.subr.mxu0 %v1393
    %1691 = vmatpush1.msra.mxu0 %v1392
    %1692 = vmatprep.subr.mxu0 %v1401
    %1693 = vmatpush1.msra.mxu0 %v1400
    %1694 = vmatprep.subr.mxu0 %v1409
    %1695 = vmatpush1.msra.mxu0 %v1408
    %1696 = vmatprep.subr.mxu0 %v1417
    %1697 = vmatpush1.msra.mxu0 %v1416
    %1698 = vmatprep.subr.mxu0 %v1425
    %1699 = vmatpush1.msra.mxu0 %v1424
    %1700 = vmatprep.subr.mxu0 %v1433
    %1701 = vmatpush1.msra.mxu0 %v1432
    %1702 = vmatprep.subr.mxu0 %v1441
    %1703 = vmatpush1.msra.mxu0 %v1440
    %1704 = vmatprep.subr.mxu0 %v1449
    %1705 = vmatpush1.msra.mxu0 %v1448
    %1706 = vmatprep.subr.mxu0 %v1457
    %1707 = vmatpush1.msra.mxu0 %v1456
    %1708 = vmatprep.subr.mxu0 %v1465
    %1709 = vmatpush1.msra.mxu0 %v1464
    %1710 = vmatprep.subr.mxu0 %v1473
    %1711 = vmatpush1.msra.mxu0 %v1472
    %1712 = vmatprep.subr.mxu0 %v1481
    %1713 = vmatpush1.msra.mxu0 %v1480
    %1714 = vmatprep.subr.mxu0 %v1489
    %1715 = vmatpush1.msra.mxu0 %v1488
    %1716 = vmatprep.subr.mxu0 %v1497
    %1717 = vmatpush1.msra.mxu0 %v1496
    %1718 = vmatprep.subr.mxu0 %v1505
    %1719 = vmatpush1.msra.mxu0 %v1504
    %1720 = vmatprep.subr.mxu0 %v1513
    %1721 = vmatpush1.msra.mxu0 %v1512
    %1722 = vmatprep.mubr.f32.mxu0 %v1249
    %1723 = vmatmul.mubr.f32.gmra.mrb[0].mxu0 %v1248
    %v1724 = vpop.f32.mrb[0].mxu0
    %v1725 = vadd.f32 0.0, %v1724
    %v1726 = vpop.f32.mrb[0].mxu0
    %v1727 = vadd.f32 0.0, %v1726
    %1728 = vdwg.mxu0
    %1729 = vmatprep.subr.mxu0 %v1267
    %1730 = vmatpush1.msra.mxu0 %v1266
    %1731 = vmatprep.subr.mxu0 %v1275
    %1732 = vmatpush1.msra.mxu0 %v1274
    %1733 = vmatprep.subr.mxu0 %v1283
    %1734 = vmatpush1.msra.mxu0 %v1282
    %1735 = vmatprep.subr.mxu0 %v1291
    %1736 = vmatpush1.msra.mxu0 %v1290
    %1737 = vmatprep.subr.mxu0 %v1299
    %1738 = vmatpush1.msra.mxu0 %v1298
    %1739 = vmatprep.subr.mxu0 %v1307
    %1740 = vmatpush1.msra.mxu0 %v1306
    %1741 = vmatprep.subr.mxu0 %v1315
    %1742 = vmatpush1.msra.mxu0 %v1314
    %1743 = vmatprep.subr.mxu0 %v1323
    %1744 = vmatpush1.msra.mxu0 %v1322
    %1745 = vmatprep.subr.mxu0 %v1331
    %1746 = vmatpush1.msra.mxu0 %v1330
    %1747 = vmatprep.subr.mxu0 %v1339
    %1748 = vmatpush1.msra.mxu0 %v1338
    %1749 = vmatprep.subr.mxu0 %v1347
    %1750 = vmatpush1.msra.mxu0 %v1346
    %1751 = vmatprep.subr.mxu0 %v1355
    %1752 = vmatpush1.msra.mxu0 %v1354
    %1753 = vmatprep.subr.mxu0 %v1363
    %1754 = vmatpush1.msra.mxu0 %v1362
    %1755 = vmatprep.subr.mxu0 %v1371
    %1756 = vmatpush1.msra.mxu0 %v1370
    %1757 = vmatprep.subr.mxu0 %v1379
    %1758 = vmatpush1.msra.mxu0 %v1378
    %1759 = vmatprep.subr.mxu0 %v1387
    %1760 = vmatpush1.msra.mxu0 %v1386
    %1761 = vmatprep.subr.mxu0 %v1395
    %1762 = vmatpush1.msra.mxu0 %v1394
    %1763 = vmatprep.subr.mxu0 %v1403
    %1764 = vmatpush1.msra.mxu0 %v1402
    %1765 = vmatprep.subr.mxu0 %v1411
    %1766 = vmatpush1.msra.mxu0 %v1410
    %1767 = vmatprep.subr.mxu0 %v1419
    %1768 = vmatpush1.msra.mxu0 %v1418
    %1769 = vmatprep.subr.mxu0 %v1427
    %1770 = vmatpush1.msra.mxu0 %v1426
    %1771 = vmatprep.subr.mxu0 %v1435
    %1772 = vmatpush1.msra.mxu0 %v1434
    %1773 = vmatprep.subr.mxu0 %v1443
    %1774 = vmatpush1.msra.mxu0 %v1442
    %1775 = vmatprep.subr.mxu0 %v1451
    %1776 = vmatpush1.msra.mxu0 %v1450
    %1777 = vmatprep.subr.mxu0 %v1459
    %1778 = vmatpush1.msra.mxu0 %v1458
    %1779 = vmatprep.subr.mxu0 %v1467
    %1780 = vmatpush1.msra.mxu0 %v1466
    %1781 = vmatprep.subr.mxu0 %v1475
    %1782 = vmatpush1.msra.mxu0 %v1474
    %1783 = vmatprep.subr.mxu0 %v1483
    %1784 = vmatpush1.msra.mxu0 %v1482
    %1785 = vmatprep.subr.mxu0 %v1491
    %1786 = vmatpush1.msra.mxu0 %v1490
    %1787 = vmatprep.subr.mxu0 %v1499
    %1788 = vmatpush1.msra.mxu0 %v1498
    %1789 = vmatprep.subr.mxu0 %v1507
    %1790 = vmatpush1.msra.mxu0 %v1506
    %1791 = vmatprep.subr.mxu0 %v1515
    %1792 = vmatpush1.msra.mxu0 %v1514
    %1793 = vmatprep.mubr.f32.mxu0 %v1249
    %1794 = vmatmul.mubr.f32.gmra.mrb[0].mxu0 %v1248
    %v1795 = vpop.f32.mrb[0].mxu0
    %v1796 = vadd.f32 0.0, %v1795
    %v1797 = vpop.f32.mrb[0].mxu0
    %v1798 = vadd.f32 0.0, %v1797
    %1799 = vdwg.mxu0
    %v1800 = vadd.f32 %v1252, %v1583
    %v1801 = vadd.f32 %v1253, %v1585
    %v1802 = vadd.f32 %v1254, %v1654
    %v1803 = vadd.f32 %v1255, %v1656
    %v1804 = vadd.f32 %v1256, %v1725
    %v1805 = vadd.f32 %v1257, %v1727
    %v1806 = vadd.f32 %v1258, %v1796
    %v1807 = vadd.f32 %v1259, %v1798
    %v1808 = vxor.u32 %v1800, 2147483648
    %v1809 = vxor.u32 %v1801, 2147483648
    %v1810 = vmul.f32 %v1808, 1.442695
    %v1811 = vpow.pop %v1810
    %v1812 = vmul.f32 %v1809, 1.442695
    %v1813 = vpow.pop %v1812
    %v1814 = vadd.f32 %v1811, 1.0
    %v1815 = vadd.f32 %v1813, 1.0
    %v1816 = vrcp.pop %v1814
    %v1817 = vmul.f32 1.0, %v1816
    %v1818 = vrcp.pop %v1815
    %v1819 = vmul.f32 1.0, %v1818
    %v1820 = vxor.u32 %v1802, 2147483648
    %v1821 = vxor.u32 %v1803, 2147483648
    %v1822 = vmul.f32 %v1820, 1.442695
    %v1823 = vpow.pop %v1822
    %v1824 = vmul.f32 %v1821, 1.442695
    %v1825 = vpow.pop %v1824
    %v1826 = vadd.f32 %v1823, 1.0
    %v1827 = vadd.f32 %v1825, 1.0
    %v1828 = vrcp.pop %v1826
    %v1829 = vmul.f32 1.0, %v1828
    %v1830 = vrcp.pop %v1827
    %v1831 = vmul.f32 1.0, %v1830
    %v1832 = vtanh.pop %v1804
    %v1833 = vtanh.pop %v1805
    %v1834 = vxor.u32 %v1806, 2147483648
    %v1835 = vxor.u32 %v1807, 2147483648
    %v1836 = vmul.f32 %v1834, 1.442695
    %v1837 = vpow.pop %v1836
    %v1838 = vmul.f32 %v1835, 1.442695
    %v1839 = vpow.pop %v1838
    %v1840 = vadd.f32 %v1837, 1.0
    %v1841 = vadd.f32 %v1839, 1.0
    %v1842 = vrcp.pop %v1840
    %v1843 = vmul.f32 1.0, %v1842
    %v1844 = vrcp.pop %v1841
    %v1845 = vmul.f32 1.0, %v1844
    %v1846 = vmul.f32 %v1829, %v1244
    %v1847 = vmul.f32 %v1831, %v1245
    %v1848 = vmul.f32 %v1817, %v1832
    %v1849 = vmul.f32 %v1819, %v1833
    %v1850 = vadd.f32 %v1846, %v1848
    %v1851 = vadd.f32 %v1847, %v1849
    %v1852 = vtanh.pop %v1850
    %v1853 = vtanh.pop %v1851
    %v1854 = vmul.f32 %v1843, %v1852
    %v1855 = vmul.f32 %v1845, %v1853
    %1856 = vst [vmem:[#allocation2 + $0x20] sm:$0xff] %v1854
    %1857 = vst [vmem:[#allocation2 + $0x28] sm:$0xff] %v1855
    %v1858 = vld [vmem:[%s0 + $0xc0] sm:$0xff]
    %v1859 = vld [vmem:[%s0 + $0xc8] sm:$0xff]
    %v1860 = vld [vmem:[%s0 + $0xd0] sm:$0xff]
    %v1861 = vld [vmem:[%s0 + $0xd8] sm:$0xff]
    %v1862 = vld [vmem:[%s0 + $0xe0] sm:$0xff]
    %v1863 = vld [vmem:[%s0 + $0xe8] sm:$0xff]
    %v1864 = vld [vmem:[%s0 + $0xf0] sm:$0xff]
    %v1865 = vld [vmem:[%s0 + $0xf8] sm:$0xff]
    %v1866 = vld [vmem:[%s1] sm:$0xff]
    %v1867 = vld [vmem:[%s1 + $0x8] sm:$0xff]
    %v1868 = vld [vmem:[%s1 + $0x10] sm:$0xff]
    %v1869 = vld [vmem:[%s1 + $0x18] sm:$0xff]
    %v1870 = vld [vmem:[%s1 + $0x20] sm:$0xff]
    %v1871 = vld [vmem:[%s1 + $0x28] sm:$0xff]
    %v1872 = vld [vmem:[%s1 + $0x30] sm:$0xff]
    %v1873 = vld [vmem:[%s1 + $0x38] sm:$0xff]
    %v1874 = vld [vmem:[%s1 + $0x40] sm:$0xff]
    %v1875 = vld [vmem:[%s1 + $0x48] sm:$0xff]
    %v1876 = vld [vmem:[%s1 + $0x50] sm:$0xff]
    %v1877 = vld [vmem:[%s1 + $0x58] sm:$0xff]
    %v1878 = vld [vmem:[%s1 + $0x60] sm:$0xff]
    %v1879 = vld [vmem:[%s1 + $0x68] sm:$0xff]
    %v1880 = vld [vmem:[%s1 + $0x70] sm:$0xff]
    %v1881 = vld [vmem:[%s1 + $0x78] sm:$0xff]
    %v1882 = vld [vmem:[%s1 + $0x80] sm:$0xff]
    %v1883 = vld [vmem:[%s1 + $0x88] sm:$0xff]
    %v1884 = vld [vmem:[%s1 + $0x90] sm:$0xff]
    %v1885 = vld [vmem:[%s1 + $0x98] sm:$0xff]
    %v1886 = vld [vmem:[%s1 + $0xa0] sm:$0xff]
    %v1887 = vld [vmem:[%s1 + $0xa8] sm:$0xff]
    %v1888 = vld [vmem:[%s1 + $0xb0] sm:$0xff]
    %v1889 = vld [vmem:[%s1 + $0xb8] sm:$0xff]
    %v1890 = vld [vmem:[%s1 + $0xc0] sm:$0xff]
    %v1891 = vld [vmem:[%s1 + $0xc8] sm:$0xff]
    %v1892 = vld [vmem:[%s1 + $0xd0] sm:$0xff]
    %v1893 = vld [vmem:[%s1 + $0xd8] sm:$0xff]
    %v1894 = vld [vmem:[%s1 + $0xe0] sm:$0xff]
    %v1895 = vld [vmem:[%s1 + $0xe8] sm:$0xff]
    %v1896 = vld [vmem:[%s1 + $0xf0] sm:$0xff]
    %v1897 = vld [vmem:[%s1 + $0xf8] sm:$0xff]
    %v1898 = vld [vmem:[%s1 + $0x100] sm:$0xff]
    %v1899 = vld [vmem:[%s1 + $0x108] sm:$0xff]
    %v1900 = vld [vmem:[%s1 + $0x110] sm:$0xff]
    %v1901 = vld [vmem:[%s1 + $0x118] sm:$0xff]
    %v1902 = vld [vmem:[%s1 + $0x120] sm:$0xff]
    %v1903 = vld [vmem:[%s1 + $0x128] sm:$0xff]
    %v1904 = vld [vmem:[%s1 + $0x130] sm:$0xff]
    %v1905 = vld [vmem:[%s1 + $0x138] sm:$0xff]
    %v1906 = vld [vmem:[%s1 + $0x140] sm:$0xff]
    %v1907 = vld [vmem:[%s1 + $0x148] sm:$0xff]
    %v1908 = vld [vmem:[%s1 + $0x150] sm:$0xff]
    %v1909 = vld [vmem:[%s1 + $0x158] sm:$0xff]
    %v1910 = vld [vmem:[%s1 + $0x160] sm:$0xff]
    %v1911 = vld [vmem:[%s1 + $0x168] sm:$0xff]
    %v1912 = vld [vmem:[%s1 + $0x170] sm:$0xff]
    %v1913 = vld [vmem:[%s1 + $0x178] sm:$0xff]
    %v1914 = vld [vmem:[%s1 + $0x180] sm:$0xff]
    %v1915 = vld [vmem:[%s1 + $0x188] sm:$0xff]
    %v1916 = vld [vmem:[%s1 + $0x190] sm:$0xff]
    %v1917 = vld [vmem:[%s1 + $0x198] sm:$0xff]
    %v1918 = vld [vmem:[%s1 + $0x1a0] sm:$0xff]
    %v1919 = vld [vmem:[%s1 + $0x1a8] sm:$0xff]
    %v1920 = vld [vmem:[%s1 + $0x1b0] sm:$0xff]
    %v1921 = vld [vmem:[%s1 + $0x1b8] sm:$0xff]
    %v1922 = vld [vmem:[%s1 + $0x1c0] sm:$0xff]
    %v1923 = vld [vmem:[%s1 + $0x1c8] sm:$0xff]
    %v1924 = vld [vmem:[%s1 + $0x1d0] sm:$0xff]
    %v1925 = vld [vmem:[%s1 + $0x1d8] sm:$0xff]
    %v1926 = vld [vmem:[%s1 + $0x1e0] sm:$0xff]
    %v1927 = vld [vmem:[%s1 + $0x1e8] sm:$0xff]
    %v1928 = vld [vmem:[%s1 + $0x1f0] sm:$0xff]
    %v1929 = vld [vmem:[%s1 + $0x1f8] sm:$0xff]
    %v1930 = vld [vmem:[%s1 + $0x200] sm:$0xff]
    %v1931 = vld [vmem:[%s1 + $0x208] sm:$0xff]
    %v1932 = vld [vmem:[%s1 + $0x210] sm:$0xff]
    %v1933 = vld [vmem:[%s1 + $0x218] sm:$0xff]
    %v1934 = vld [vmem:[%s1 + $0x220] sm:$0xff]
    %v1935 = vld [vmem:[%s1 + $0x228] sm:$0xff]
    %v1936 = vld [vmem:[%s1 + $0x230] sm:$0xff]
    %v1937 = vld [vmem:[%s1 + $0x238] sm:$0xff]
    %v1938 = vld [vmem:[%s1 + $0x240] sm:$0xff]
    %v1939 = vld [vmem:[%s1 + $0x248] sm:$0xff]
    %v1940 = vld [vmem:[%s1 + $0x250] sm:$0xff]
    %v1941 = vld [vmem:[%s1 + $0x258] sm:$0xff]
    %v1942 = vld [vmem:[%s1 + $0x260] sm:$0xff]
    %v1943 = vld [vmem:[%s1 + $0x268] sm:$0xff]
    %v1944 = vld [vmem:[%s1 + $0x270] sm:$0xff]
    %v1945 = vld [vmem:[%s1 + $0x278] sm:$0xff]
    %v1946 = vld [vmem:[%s1 + $0x280] sm:$0xff]
    %v1947 = vld [vmem:[%s1 + $0x288] sm:$0xff]
    %v1948 = vld [vmem:[%s1 + $0x290] sm:$0xff]
    %v1949 = vld [vmem:[%s1 + $0x298] sm:$0xff]
    %v1950 = vld [vmem:[%s1 + $0x2a0] sm:$0xff]
    %v1951 = vld [vmem:[%s1 + $0x2a8] sm:$0xff]
    %v1952 = vld [vmem:[%s1 + $0x2b0] sm:$0xff]
    %v1953 = vld [vmem:[%s1 + $0x2b8] sm:$0xff]
    %v1954 = vld [vmem:[%s1 + $0x2c0] sm:$0xff]
    %v1955 = vld [vmem:[%s1 + $0x2c8] sm:$0xff]
    %v1956 = vld [vmem:[%s1 + $0x2d0] sm:$0xff]
    %v1957 = vld [vmem:[%s1 + $0x2d8] sm:$0xff]
    %v1958 = vld [vmem:[%s1 + $0x2e0] sm:$0xff]
    %v1959 = vld [vmem:[%s1 + $0x2e8] sm:$0xff]
    %v1960 = vld [vmem:[%s1 + $0x2f0] sm:$0xff]
    %v1961 = vld [vmem:[%s1 + $0x2f8] sm:$0xff]
    %v1962 = vld [vmem:[%s1 + $0x300] sm:$0xff]
    %v1963 = vld [vmem:[%s1 + $0x308] sm:$0xff]
    %v1964 = vld [vmem:[%s1 + $0x310] sm:$0xff]
    %v1965 = vld [vmem:[%s1 + $0x318] sm:$0xff]
    %v1966 = vld [vmem:[%s1 + $0x320] sm:$0xff]
    %v1967 = vld [vmem:[%s1 + $0x328] sm:$0xff]
    %v1968 = vld [vmem:[%s1 + $0x330] sm:$0xff]
    %v1969 = vld [vmem:[%s1 + $0x338] sm:$0xff]
    %v1970 = vld [vmem:[%s1 + $0x340] sm:$0xff]
    %v1971 = vld [vmem:[%s1 + $0x348] sm:$0xff]
    %v1972 = vld [vmem:[%s1 + $0x350] sm:$0xff]
    %v1973 = vld [vmem:[%s1 + $0x358] sm:$0xff]
    %v1974 = vld [vmem:[%s1 + $0x360] sm:$0xff]
    %v1975 = vld [vmem:[%s1 + $0x368] sm:$0xff]
    %v1976 = vld [vmem:[%s1 + $0x370] sm:$0xff]
    %v1977 = vld [vmem:[%s1 + $0x378] sm:$0xff]
    %v1978 = vld [vmem:[%s1 + $0x380] sm:$0xff]
    %v1979 = vld [vmem:[%s1 + $0x388] sm:$0xff]
    %v1980 = vld [vmem:[%s1 + $0x390] sm:$0xff]
    %v1981 = vld [vmem:[%s1 + $0x398] sm:$0xff]
    %v1982 = vld [vmem:[%s1 + $0x3a0] sm:$0xff]
    %v1983 = vld [vmem:[%s1 + $0x3a8] sm:$0xff]
    %v1984 = vld [vmem:[%s1 + $0x3b0] sm:$0xff]
    %v1985 = vld [vmem:[%s1 + $0x3b8] sm:$0xff]
    %v1986 = vld [vmem:[%s1 + $0x3c0] sm:$0xff]
    %v1987 = vld [vmem:[%s1 + $0x3c8] sm:$0xff]
    %v1988 = vld [vmem:[%s1 + $0x3d0] sm:$0xff]
    %v1989 = vld [vmem:[%s1 + $0x3d8] sm:$0xff]
    %v1990 = vld [vmem:[%s1 + $0x3e0] sm:$0xff]
    %v1991 = vld [vmem:[%s1 + $0x3e8] sm:$0xff]
    %v1992 = vld [vmem:[%s1 + $0x3f0] sm:$0xff]
    %v1993 = vld [vmem:[%s1 + $0x3f8] sm:$0xff]
    %v1994 = vld [vmem:[%s1 + $0x400] sm:$0xff]
    %v1995 = vld [vmem:[%s1 + $0x408] sm:$0xff]
    %v1996 = vld [vmem:[%s1 + $0x410] sm:$0xff]
    %v1997 = vld [vmem:[%s1 + $0x418] sm:$0xff]
    %v1998 = vld [vmem:[%s1 + $0x420] sm:$0xff]
    %v1999 = vld [vmem:[%s1 + $0x428] sm:$0xff]
    %v2000 = vld [vmem:[%s1 + $0x430] sm:$0xff]
    %v2001 = vld [vmem:[%s1 + $0x438] sm:$0xff]
    %v2002 = vld [vmem:[%s1 + $0x440] sm:$0xff]
    %v2003 = vld [vmem:[%s1 + $0x448] sm:$0xff]
    %v2004 = vld [vmem:[%s1 + $0x450] sm:$0xff]
    %v2005 = vld [vmem:[%s1 + $0x458] sm:$0xff]
    %v2006 = vld [vmem:[%s1 + $0x460] sm:$0xff]
    %v2007 = vld [vmem:[%s1 + $0x468] sm:$0xff]
    %v2008 = vld [vmem:[%s1 + $0x470] sm:$0xff]
    %v2009 = vld [vmem:[%s1 + $0x478] sm:$0xff]
    %v2010 = vld [vmem:[%s1 + $0x480] sm:$0xff]
    %v2011 = vld [vmem:[%s1 + $0x488] sm:$0xff]
    %v2012 = vld [vmem:[%s1 + $0x490] sm:$0xff]
    %v2013 = vld [vmem:[%s1 + $0x498] sm:$0xff]
    %v2014 = vld [vmem:[%s1 + $0x4a0] sm:$0xff]
    %v2015 = vld [vmem:[%s1 + $0x4a8] sm:$0xff]
    %v2016 = vld [vmem:[%s1 + $0x4b0] sm:$0xff]
    %v2017 = vld [vmem:[%s1 + $0x4b8] sm:$0xff]
    %v2018 = vld [vmem:[%s1 + $0x4c0] sm:$0xff]
    %v2019 = vld [vmem:[%s1 + $0x4c8] sm:$0xff]
    %v2020 = vld [vmem:[%s1 + $0x4d0] sm:$0xff]
    %v2021 = vld [vmem:[%s1 + $0x4d8] sm:$0xff]
    %v2022 = vld [vmem:[%s1 + $0x4e0] sm:$0xff]
    %v2023 = vld [vmem:[%s1 + $0x4e8] sm:$0xff]
    %v2024 = vld [vmem:[%s1 + $0x4f0] sm:$0xff]
    %v2025 = vld [vmem:[%s1 + $0x4f8] sm:$0xff]
    %v2026 = vld [vmem:[%s1 + $0x500] sm:$0xff]
    %v2027 = vld [vmem:[%s1 + $0x508] sm:$0xff]
    %v2028 = vld [vmem:[%s1 + $0x510] sm:$0xff]
    %v2029 = vld [vmem:[%s1 + $0x518] sm:$0xff]
    %v2030 = vld [vmem:[%s1 + $0x520] sm:$0xff]
    %v2031 = vld [vmem:[%s1 + $0x528] sm:$0xff]
    %v2032 = vld [vmem:[%s1 + $0x530] sm:$0xff]
    %v2033 = vld [vmem:[%s1 + $0x538] sm:$0xff]
    %v2034 = vld [vmem:[%s1 + $0x540] sm:$0xff]
    %v2035 = vld [vmem:[%s1 + $0x548] sm:$0xff]
    %v2036 = vld [vmem:[%s1 + $0x550] sm:$0xff]
    %v2037 = vld [vmem:[%s1 + $0x558] sm:$0xff]
    %v2038 = vld [vmem:[%s1 + $0x560] sm:$0xff]
    %v2039 = vld [vmem:[%s1 + $0x568] sm:$0xff]
    %v2040 = vld [vmem:[%s1 + $0x570] sm:$0xff]
    %v2041 = vld [vmem:[%s1 + $0x578] sm:$0xff]
    %v2042 = vld [vmem:[%s1 + $0x580] sm:$0xff]
    %v2043 = vld [vmem:[%s1 + $0x588] sm:$0xff]
    %v2044 = vld [vmem:[%s1 + $0x590] sm:$0xff]
    %v2045 = vld [vmem:[%s1 + $0x598] sm:$0xff]
    %v2046 = vld [vmem:[%s1 + $0x5a0] sm:$0xff]
    %v2047 = vld [vmem:[%s1 + $0x5a8] sm:$0xff]
    %v2048 = vld [vmem:[%s1 + $0x5b0] sm:$0xff]
    %v2049 = vld [vmem:[%s1 + $0x5b8] sm:$0xff]
    %v2050 = vld [vmem:[%s1 + $0x5c0] sm:$0xff]
    %v2051 = vld [vmem:[%s1 + $0x5c8] sm:$0xff]
    %v2052 = vld [vmem:[%s1 + $0x5d0] sm:$0xff]
    %v2053 = vld [vmem:[%s1 + $0x5d8] sm:$0xff]
    %v2054 = vld [vmem:[%s1 + $0x5e0] sm:$0xff]
    %v2055 = vld [vmem:[%s1 + $0x5e8] sm:$0xff]
    %v2056 = vld [vmem:[%s1 + $0x5f0] sm:$0xff]
    %v2057 = vld [vmem:[%s1 + $0x5f8] sm:$0xff]
    %v2058 = vld [vmem:[%s1 + $0x600] sm:$0xff]
    %v2059 = vld [vmem:[%s1 + $0x608] sm:$0xff]
    %v2060 = vld [vmem:[%s1 + $0x610] sm:$0xff]
    %v2061 = vld [vmem:[%s1 + $0x618] sm:$0xff]
    %v2062 = vld [vmem:[%s1 + $0x620] sm:$0xff]
    %v2063 = vld [vmem:[%s1 + $0x628] sm:$0xff]
    %v2064 = vld [vmem:[%s1 + $0x630] sm:$0xff]
    %v2065 = vld [vmem:[%s1 + $0x638] sm:$0xff]
    %v2066 = vld [vmem:[%s1 + $0x640] sm:$0xff]
    %v2067 = vld [vmem:[%s1 + $0x648] sm:$0xff]
    %v2068 = vld [vmem:[%s1 + $0x650] sm:$0xff]
    %v2069 = vld [vmem:[%s1 + $0x658] sm:$0xff]
    %v2070 = vld [vmem:[%s1 + $0x660] sm:$0xff]
    %v2071 = vld [vmem:[%s1 + $0x668] sm:$0xff]
    %v2072 = vld [vmem:[%s1 + $0x670] sm:$0xff]
    %v2073 = vld [vmem:[%s1 + $0x678] sm:$0xff]
    %v2074 = vld [vmem:[%s1 + $0x680] sm:$0xff]
    %v2075 = vld [vmem:[%s1 + $0x688] sm:$0xff]
    %v2076 = vld [vmem:[%s1 + $0x690] sm:$0xff]
    %v2077 = vld [vmem:[%s1 + $0x698] sm:$0xff]
    %v2078 = vld [vmem:[%s1 + $0x6a0] sm:$0xff]
    %v2079 = vld [vmem:[%s1 + $0x6a8] sm:$0xff]
    %v2080 = vld [vmem:[%s1 + $0x6b0] sm:$0xff]
    %v2081 = vld [vmem:[%s1 + $0x6b8] sm:$0xff]
    %v2082 = vld [vmem:[%s1 + $0x6c0] sm:$0xff]
    %v2083 = vld [vmem:[%s1 + $0x6c8] sm:$0xff]
    %v2084 = vld [vmem:[%s1 + $0x6d0] sm:$0xff]
    %v2085 = vld [vmem:[%s1 + $0x6d8] sm:$0xff]
    %v2086 = vld [vmem:[%s1 + $0x6e0] sm:$0xff]
    %v2087 = vld [vmem:[%s1 + $0x6e8] sm:$0xff]
    %v2088 = vld [vmem:[%s1 + $0x6f0] sm:$0xff]
    %v2089 = vld [vmem:[%s1 + $0x6f8] sm:$0xff]
    %v2090 = vld [vmem:[%s1 + $0x700] sm:$0xff]
    %v2091 = vld [vmem:[%s1 + $0x708] sm:$0xff]
    %v2092 = vld [vmem:[%s1 + $0x710] sm:$0xff]
    %v2093 = vld [vmem:[%s1 + $0x718] sm:$0xff]
    %v2094 = vld [vmem:[%s1 + $0x720] sm:$0xff]
    %v2095 = vld [vmem:[%s1 + $0x728] sm:$0xff]
    %v2096 = vld [vmem:[%s1 + $0x730] sm:$0xff]
    %v2097 = vld [vmem:[%s1 + $0x738] sm:$0xff]
    %v2098 = vld [vmem:[%s1 + $0x740] sm:$0xff]
    %v2099 = vld [vmem:[%s1 + $0x748] sm:$0xff]
    %v2100 = vld [vmem:[%s1 + $0x750] sm:$0xff]
    %v2101 = vld [vmem:[%s1 + $0x758] sm:$0xff]
    %v2102 = vld [vmem:[%s1 + $0x760] sm:$0xff]
    %v2103 = vld [vmem:[%s1 + $0x768] sm:$0xff]
    %v2104 = vld [vmem:[%s1 + $0x770] sm:$0xff]
    %v2105 = vld [vmem:[%s1 + $0x778] sm:$0xff]
    %v2106 = vld [vmem:[%s1 + $0x780] sm:$0xff]
    %v2107 = vld [vmem:[%s1 + $0x788] sm:$0xff]
    %v2108 = vld [vmem:[%s1 + $0x790] sm:$0xff]
    %v2109 = vld [vmem:[%s1 + $0x798] sm:$0xff]
    %v2110 = vld [vmem:[%s1 + $0x7a0] sm:$0xff]
    %v2111 = vld [vmem:[%s1 + $0x7a8] sm:$0xff]
    %v2112 = vld [vmem:[%s1 + $0x7b0] sm:$0xff]
    %v2113 = vld [vmem:[%s1 + $0x7b8] sm:$0xff]
    %v2114 = vld [vmem:[%s1 + $0x7c0] sm:$0xff]
    %v2115 = vld [vmem:[%s1 + $0x7c8] sm:$0xff]
    %v2116 = vld [vmem:[%s1 + $0x7d0] sm:$0xff]
    %v2117 = vld [vmem:[%s1 + $0x7d8] sm:$0xff]
    %v2118 = vld [vmem:[%s1 + $0x7e0] sm:$0xff]
    %v2119 = vld [vmem:[%s1 + $0x7e8] sm:$0xff]
    %v2120 = vld [vmem:[%s1 + $0x7f0] sm:$0xff]
    %v2121 = vld [vmem:[%s1 + $0x7f8] sm:$0xff]
    %2122 = vmatprep.subr.mxu0 %v1867
    %2123 = vmatpush1.msra.mxu0 %v1866
    %2124 = vmatprep.subr.mxu0 %v1875
    %2125 = vmatpush1.msra.mxu0 %v1874
    %2126 = vmatprep.subr.mxu0 %v1883
    %2127 = vmatpush1.msra.mxu0 %v1882
    %2128 = vmatprep.subr.mxu0 %v1891
    %2129 = vmatpush1.msra.mxu0 %v1890
    %2130 = vmatprep.subr.mxu0 %v1899
    %2131 = vmatpush1.msra.mxu0 %v1898
    %2132 = vmatprep.subr.mxu0 %v1907
    %2133 = vmatpush1.msra.mxu0 %v1906
    %2134 = vmatprep.subr.mxu0 %v1915
    %2135 = vmatpush1.msra.mxu0 %v1914
    %2136 = vmatprep.subr.mxu0 %v1923
    %2137 = vmatpush1.msra.mxu0 %v1922
    %2138 = vmatprep.subr.mxu0 %v1931
    %2139 = vmatpush1.msra.mxu0 %v1930
    %2140 = vmatprep.subr.mxu0 %v1939
    %2141 = vmatpush1.msra.mxu0 %v1938
    %2142 = vmatprep.subr.mxu0 %v1947
    %2143 = vmatpush1.msra.mxu0 %v1946
    %2144 = vmatprep.subr.mxu0 %v1955
    %2145 = vmatpush1.msra.mxu0 %v1954
    %2146 = vmatprep.subr.mxu0 %v1963
    %2147 = vmatpush1.msra.mxu0 %v1962
    %2148 = vmatprep.subr.mxu0 %v1971
    %2149 = vmatpush1.msra.mxu0 %v1970
    %2150 = vmatprep.subr.mxu0 %v1979
    %2151 = vmatpush1.msra.mxu0 %v1978
    %2152 = vmatprep.subr.mxu0 %v1987
    %2153 = vmatpush1.msra.mxu0 %v1986
    %2154 = vmatprep.subr.mxu0 %v1995
    %2155 = vmatpush1.msra.mxu0 %v1994
    %2156 = vmatprep.subr.mxu0 %v2003
    %2157 = vmatpush1.msra.mxu0 %v2002
    %2158 = vmatprep.subr.mxu0 %v2011
    %2159 = vmatpush1.msra.mxu0 %v2010
    %2160 = vmatprep.subr.mxu0 %v2019
    %2161 = vmatpush1.msra.mxu0 %v2018
    %2162 = vmatprep.subr.mxu0 %v2027
    %2163 = vmatpush1.msra.mxu0 %v2026
    %2164 = vmatprep.subr.mxu0 %v2035
    %2165 = vmatpush1.msra.mxu0 %v2034
    %2166 = vmatprep.subr.mxu0 %v2043
    %2167 = vmatpush1.msra.mxu0 %v2042
    %2168 = vmatprep.subr.mxu0 %v2051
    %2169 = vmatpush1.msra.mxu0 %v2050
    %2170 = vmatprep.subr.mxu0 %v2059
    %2171 = vmatpush1.msra.mxu0 %v2058
    %2172 = vmatprep.subr.mxu0 %v2067
    %2173 = vmatpush1.msra.mxu0 %v2066
    %2174 = vmatprep.subr.mxu0 %v2075
    %2175 = vmatpush1.msra.mxu0 %v2074
    %2176 = vmatprep.subr.mxu0 %v2083
    %2177 = vmatpush1.msra.mxu0 %v2082
    %2178 = vmatprep.subr.mxu0 %v2091
    %2179 = vmatpush1.msra.mxu0 %v2090
    %2180 = vmatprep.subr.mxu0 %v2099
    %2181 = vmatpush1.msra.mxu0 %v2098
    %2182 = vmatprep.subr.mxu0 %v2107
    %2183 = vmatpush1.msra.mxu0 %v2106
    %2184 = vmatprep.subr.mxu0 %v2115
    %2185 = vmatpush1.msra.mxu0 %v2114
    %2186 = vmatprep.mubr.f32.mxu0 %v1855
    %2187 = vmatmul.mubr.f32.gmra.mrb[0].mxu0 %v1854
    %v2188 = vpop.f32.mrb[0].mxu0
    %v2189 = vadd.f32 0.0, %v2188
    %v2190 = vpop.f32.mrb[0].mxu0
    %v2191 = vadd.f32 0.0, %v2190
    %2192 = vdwg.mxu0
    %2193 = vmatprep.subr.mxu0 %v1869
    %2194 = vmatpush1.msra.mxu0 %v1868
    %2195 = vmatprep.subr.mxu0 %v1877
    %2196 = vmatpush1.msra.mxu0 %v1876
    %2197 = vmatprep.subr.mxu0 %v1885
    %2198 = vmatpush1.msra.mxu0 %v1884
    %2199 = vmatprep.subr.mxu0 %v1893
    %2200 = vmatpush1.msra.mxu0 %v1892
    %2201 = vmatprep.subr.mxu0 %v1901
    %2202 = vmatpush1.msra.mxu0 %v1900
    %2203 = vmatprep.subr.mxu0 %v1909
    %2204 = vmatpush1.msra.mxu0 %v1908
    %2205 = vmatprep.subr.mxu0 %v1917
    %2206 = vmatpush1.msra.mxu0 %v1916
    %2207 = vmatprep.subr.mxu0 %v1925
    %2208 = vmatpush1.msra.mxu0 %v1924
    %2209 = vmatprep.subr.mxu0 %v1933
    %2210 = vmatpush1.msra.mxu0 %v1932
    %2211 = vmatprep.subr.mxu0 %v1941
    %2212 = vmatpush1.msra.mxu0 %v1940
    %2213 = vmatprep.subr.mxu0 %v1949
    %2214 = vmatpush1.msra.mxu0 %v1948
    %2215 = vmatprep.subr.mxu0 %v1957
    %2216 = vmatpush1.msra.mxu0 %v1956
    %2217 = vmatprep.subr.mxu0 %v1965
    %2218 = vmatpush1.msra.mxu0 %v1964
    %2219 = vmatprep.subr.mxu0 %v1973
    %2220 = vmatpush1.msra.mxu0 %v1972
    %2221 = vmatprep.subr.mxu0 %v1981
    %2222 = vmatpush1.msra.mxu0 %v1980
    %2223 = vmatprep.subr.mxu0 %v1989
    %2224 = vmatpush1.msra.mxu0 %v1988
    %2225 = vmatprep.subr.mxu0 %v1997
    %2226 = vmatpush1.msra.mxu0 %v1996
    %2227 = vmatprep.subr.mxu0 %v2005
    %2228 = vmatpush1.msra.mxu0 %v2004
    %2229 = vmatprep.subr.mxu0 %v2013
    %2230 = vmatpush1.msra.mxu0 %v2012
    %2231 = vmatprep.subr.mxu0 %v2021
    %2232 = vmatpush1.msra.mxu0 %v2020
    %2233 = vmatprep.subr.mxu0 %v2029
    %2234 = vmatpush1.msra.mxu0 %v2028
    %2235 = vmatprep.subr.mxu0 %v2037
    %2236 = vmatpush1.msra.mxu0 %v2036
    %2237 = vmatprep.subr.mxu0 %v2045
    %2238 = vmatpush1.msra.mxu0 %v2044
    %2239 = vmatprep.subr.mxu0 %v2053
    %2240 = vmatpush1.msra.mxu0 %v2052
    %2241 = vmatprep.subr.mxu0 %v2061
    %2242 = vmatpush1.msra.mxu0 %v2060
    %2243 = vmatprep.subr.mxu0 %v2069
    %2244 = vmatpush1.msra.mxu0 %v2068
    %2245 = vmatprep.subr.mxu0 %v2077
    %2246 = vmatpush1.msra.mxu0 %v2076
    %2247 = vmatprep.subr.mxu0 %v2085
    %2248 = vmatpush1.msra.mxu0 %v2084
    %2249 = vmatprep.subr.mxu0 %v2093
    %2250 = vmatpush1.msra.mxu0 %v2092
    %2251 = vmatprep.subr.mxu0 %v2101
    %2252 = vmatpush1.msra.mxu0 %v2100
    %2253 = vmatprep.subr.mxu0 %v2109
    %2254 = vmatpush1.msra.mxu0 %v2108
    %2255 = vmatprep.subr.mxu0 %v2117
    %2256 = vmatpush1.msra.mxu0 %v2116
    %2257 = vmatprep.mubr.f32.mxu0 %v1855
    %2258 = vmatmul.mubr.f32.gmra.mrb[0].mxu0 %v1854
    %v2259 = vpop.f32.mrb[0].mxu0
    %v2260 = vadd.f32 0.0, %v2259
    %v2261 = vpop.f32.mrb[0].mxu0
    %v2262 = vadd.f32 0.0, %v2261
    %2263 = vdwg.mxu0
    %2264 = vmatprep.subr.mxu0 %v1871
    %2265 = vmatpush1.msra.mxu0 %v1870
    %2266 = vmatprep.subr.mxu0 %v1879
    %2267 = vmatpush1.msra.mxu0 %v1878
    %2268 = vmatprep.subr.mxu0 %v1887
    %2269 = vmatpush1.msra.mxu0 %v1886
    %2270 = vmatprep.subr.mxu0 %v1895
    %2271 = vmatpush1.msra.mxu0 %v1894
    %2272 = vmatprep.subr.mxu0 %v1903
    %2273 = vmatpush1.msra.mxu0 %v1902
    %2274 = vmatprep.subr.mxu0 %v1911
    %2275 = vmatpush1.msra.mxu0 %v1910
    %2276 = vmatprep.subr.mxu0 %v1919
    %2277 = vmatpush1.msra.mxu0 %v1918
    %2278 = vmatprep.subr.mxu0 %v1927
    %2279 = vmatpush1.msra.mxu0 %v1926
    %2280 = vmatprep.subr.mxu0 %v1935
    %2281 = vmatpush1.msra.mxu0 %v1934
    %2282 = vmatprep.subr.mxu0 %v1943
    %2283 = vmatpush1.msra.mxu0 %v1942
    %2284 = vmatprep.subr.mxu0 %v1951
    %2285 = vmatpush1.msra.mxu0 %v1950
    %2286 = vmatprep.subr.mxu0 %v1959
    %2287 = vmatpush1.msra.mxu0 %v1958
    %2288 = vmatprep.subr.mxu0 %v1967
    %2289 = vmatpush1.msra.mxu0 %v1966
    %2290 = vmatprep.subr.mxu0 %v1975
    %2291 = vmatpush1.msra.mxu0 %v1974
    %2292 = vmatprep.subr.mxu0 %v1983
    %2293 = vmatpush1.msra.mxu0 %v1982
    %2294 = vmatprep.subr.mxu0 %v1991
    %2295 = vmatpush1.msra.mxu0 %v1990
    %2296 = vmatprep.subr.mxu0 %v1999
    %2297 = vmatpush1.msra.mxu0 %v1998
    %2298 = vmatprep.subr.mxu0 %v2007
    %2299 = vmatpush1.msra.mxu0 %v2006
    %2300 = vmatprep.subr.mxu0 %v2015
    %2301 = vmatpush1.msra.mxu0 %v2014
    %2302 = vmatprep.subr.mxu0 %v2023
    %2303 = vmatpush1.msra.mxu0 %v2022
    %2304 = vmatprep.subr.mxu0 %v2031
    %2305 = vmatpush1.msra.mxu0 %v2030
    %2306 = vmatprep.subr.mxu0 %v2039
    %2307 = vmatpush1.msra.mxu0 %v2038
    %2308 = vmatprep.subr.mxu0 %v2047
    %2309 = vmatpush1.msra.mxu0 %v2046
    %2310 = vmatprep.subr.mxu0 %v2055
    %2311 = vmatpush1.msra.mxu0 %v2054
    %2312 = vmatprep.subr.mxu0 %v2063
    %2313 = vmatpush1.msra.mxu0 %v2062
    %2314 = vmatprep.subr.mxu0 %v2071
    %2315 = vmatpush1.msra.mxu0 %v2070
    %2316 = vmatprep.subr.mxu0 %v2079
    %2317 = vmatpush1.msra.mxu0 %v2078
    %2318 = vmatprep.subr.mxu0 %v2087
    %2319 = vmatpush1.msra.mxu0 %v2086
    %2320 = vmatprep.subr.mxu0 %v2095
    %2321 = vmatpush1.msra.mxu0 %v2094
    %2322 = vmatprep.subr.mxu0 %v2103
    %2323 = vmatpush1.msra.mxu0 %v2102
    %2324 = vmatprep.subr.mxu0 %v2111
    %2325 = vmatpush1.msra.mxu0 %v2110
    %2326 = vmatprep.subr.mxu0 %v2119
    %2327 = vmatpush1.msra.mxu0 %v2118
    %2328 = vmatprep.mubr.f32.mxu0 %v1855
    %2329 = vmatmul.mubr.f32.gmra.mrb[0].mxu0 %v1854
    %v2330 = vpop.f32.mrb[0].mxu0
    %v2331 = vadd.f32 0.0, %v2330
    %v2332 = vpop.f32.mrb[0].mxu0
    %v2333 = vadd.f32 0.0, %v2332
    %2334 = vdwg.mxu0
    %2335 = vmatprep.subr.mxu0 %v1873
    %2336 = vmatpush1.msra.mxu0 %v1872
    %2337 = vmatprep.subr.mxu0 %v1881
    %2338 = vmatpush1.msra.mxu0 %v1880
    %2339 = vmatprep.subr.mxu0 %v1889
    %2340 = vmatpush1.msra.mxu0 %v1888
    %2341 = vmatprep.subr.mxu0 %v1897
    %2342 = vmatpush1.msra.mxu0 %v1896
    %2343 = vmatprep.subr.mxu0 %v1905
    %2344 = vmatpush1.msra.mxu0 %v1904
    %2345 = vmatprep.subr.mxu0 %v1913
    %2346 = vmatpush1.msra.mxu0 %v1912
    %2347 = vmatprep.subr.mxu0 %v1921
    %2348 = vmatpush1.msra.mxu0 %v1920
    %2349 = vmatprep.subr.mxu0 %v1929
    %2350 = vmatpush1.msra.mxu0 %v1928
    %2351 = vmatprep.subr.mxu0 %v1937
    %2352 = vmatpush1.msra.mxu0 %v1936
    %2353 = vmatprep.subr.mxu0 %v1945
    %2354 = vmatpush1.msra.mxu0 %v1944
    %2355 = vmatprep.subr.mxu0 %v1953
    %2356 = vmatpush1.msra.mxu0 %v1952
    %2357 = vmatprep.subr.mxu0 %v1961
    %2358 = vmatpush1.msra.mxu0 %v1960
    %2359 = vmatprep.subr.mxu0 %v1969
    %2360 = vmatpush1.msra.mxu0 %v1968
    %2361 = vmatprep.subr.mxu0 %v1977
    %2362 = vmatpush1.msra.mxu0 %v1976
    %2363 = vmatprep.subr.mxu0 %v1985
    %2364 = vmatpush1.msra.mxu0 %v1984
    %2365 = vmatprep.subr.mxu0 %v1993
    %2366 = vmatpush1.msra.mxu0 %v1992
    %2367 = vmatprep.subr.mxu0 %v2001
    %2368 = vmatpush1.msra.mxu0 %v2000
    %2369 = vmatprep.subr.mxu0 %v2009
    %2370 = vmatpush1.msra.mxu0 %v2008
    %2371 = vmatprep.subr.mxu0 %v2017
    %2372 = vmatpush1.msra.mxu0 %v2016
    %2373 = vmatprep.subr.mxu0 %v2025
    %2374 = vmatpush1.msra.mxu0 %v2024
    %2375 = vmatprep.subr.mxu0 %v2033
    %2376 = vmatpush1.msra.mxu0 %v2032
    %2377 = vmatprep.subr.mxu0 %v2041
    %2378 = vmatpush1.msra.mxu0 %v2040
    %2379 = vmatprep.subr.mxu0 %v2049
    %2380 = vmatpush1.msra.mxu0 %v2048
    %2381 = vmatprep.subr.mxu0 %v2057
    %2382 = vmatpush1.msra.mxu0 %v2056
    %2383 = vmatprep.subr.mxu0 %v2065
    %2384 = vmatpush1.msra.mxu0 %v2064
    %2385 = vmatprep.subr.mxu0 %v2073
    %2386 = vmatpush1.msra.mxu0 %v2072
    %2387 = vmatprep.subr.mxu0 %v2081
    %2388 = vmatpush1.msra.mxu0 %v2080
    %2389 = vmatprep.subr.mxu0 %v2089
    %2390 = vmatpush1.msra.mxu0 %v2088
    %2391 = vmatprep.subr.mxu0 %v2097
    %2392 = vmatpush1.msra.mxu0 %v2096
    %2393 = vmatprep.subr.mxu0 %v2105
    %2394 = vmatpush1.msra.mxu0 %v2104
    %2395 = vmatprep.subr.mxu0 %v2113
    %2396 = vmatpush1.msra.mxu0 %v2112
    %2397 = vmatprep.subr.mxu0 %v2121
    %2398 = vmatpush1.msra.mxu0 %v2120
    %2399 = vmatprep.mubr.f32.mxu0 %v1855
    %2400 = vmatmul.mubr.f32.gmra.mrb[0].mxu0 %v1854
    %v2401 = vpop.f32.mrb[0].mxu0
    %v2402 = vadd.f32 0.0, %v2401
    %v2403 = vpop.f32.mrb[0].mxu0
    %v2404 = vadd.f32 0.0, %v2403
    %2405 = vdwg.mxu0
    %v2406 = vadd.f32 %v1858, %v2189
    %v2407 = vadd.f32 %v1859, %v2191
    %v2408 = vadd.f32 %v1860, %v2260
    %v2409 = vadd.f32 %v1861, %v2262
    %v2410 = vadd.f32 %v1862, %v2331
    %v2411 = vadd.f32 %v1863, %v2333
    %v2412 = vadd.f32 %v1864, %v2402
    %v2413 = vadd.f32 %v1865, %v2404
    %v2414 = vxor.u32 %v2406, 2147483648
    %v2415 = vxor.u32 %v2407, 2147483648
    %v2416 = vmul.f32 %v2414, 1.442695
    %v2417 = vpow.pop %v2416
    %v2418 = vmul.f32 %v2415, 1.442695
    %v2419 = vpow.pop %v2418
    %v2420 = vadd.f32 %v2417, 1.0
    %v2421 = vadd.f32 %v2419, 1.0
    %v2422 = vrcp.pop %v2420
    %v2423 = vmul.f32 1.0, %v2422
    %v2424 = vrcp.pop %v2421
    %v2425 = vmul.f32 1.0, %v2424
    %v2426 = vxor.u32 %v2408, 2147483648
    %v2427 = vxor.u32 %v2409, 2147483648
    %v2428 = vmul.f32 %v2426, 1.442695
    %v2429 = vpow.pop %v2428
    %v2430 = vmul.f32 %v2427, 1.442695
    %v2431 = vpow.pop %v2430
    %v2432 = vadd.f32 %v2429, 1.0
    %v2433 = vadd.f32 %v2431, 1.0
    %v2434 = vrcp.pop %v2432
    %v2435 = vmul.f32 1.0, %v2434
    %v2436 = vrcp.pop %v2433
    %v2437 = vmul.f32 1.0, %v2436
    %v2438 = vtanh.pop %v2410
    %v2439 = vtanh.pop %v2411
    %v2440 = vxor.u32 %v2412, 2147483648
    %v2441 = vxor.u32 %v2413, 2147483648
    %v2442 = vmul.f32 %v2440, 1.442695
    %v2443 = vpow.pop %v2442
    %v2444 = vmul.f32 %v2441, 1.442695
    %v2445 = vpow.pop %v2444
    %v2446 = vadd.f32 %v2443, 1.0
    %v2447 = vadd.f32 %v2445, 1.0
    %v2448 = vrcp.pop %v2446
    %v2449 = vmul.f32 1.0, %v2448
    %v2450 = vrcp.pop %v2447
    %v2451 = vmul.f32 1.0, %v2450
    %v2452 = vmul.f32 %v2435, %v1850
    %v2453 = vmul.f32 %v2437, %v1851
    %v2454 = vmul.f32 %v2423, %v2438
    %v2455 = vmul.f32 %v2425, %v2439
    %v2456 = vadd.f32 %v2452, %v2454
    %v2457 = vadd.f32 %v2453, %v2455
    %v2458 = vtanh.pop %v2456
    %v2459 = vtanh.pop %v2457
    %v2460 = vmul.f32 %v2449, %v2458
    %v2461 = vmul.f32 %v2451, %v2459
    %2462 = vst [vmem:[#allocation2 + $0x30] sm:$0xff] %v2460
    %2463 = vst [vmem:[#allocation2 + $0x38] sm:$0xff] %v2461
    %v2464 = vld [vmem:[%s0 + $0x100] sm:$0xff]
    %v2465 = vld [vmem:[%s0 + $0x108] sm:$0xff]
    %v2466 = vld [vmem:[%s0 + $0x110] sm:$0xff]
    %v2467 = vld [vmem:[%s0 + $0x118] sm:$0xff]
    %v2468 = vld [vmem:[%s0 + $0x120] sm:$0xff]
    %v2469 = vld [vmem:[%s0 + $0x128] sm:$0xff]
    %v2470 = vld [vmem:[%s0 + $0x130] sm:$0xff]
    %v2471 = vld [vmem:[%s0 + $0x138] sm:$0xff]
    %v2472 = vld [vmem:[%s1] sm:$0xff]
    %v2473 = vld [vmem:[%s1 + $0x8] sm:$0xff]
    %v2474 = vld [vmem:[%s1 + $0x10] sm:$0xff]
    %v2475 = vld [vmem:[%s1 + $0x18] sm:$0xff]
    %v2476 = vld [vmem:[%s1 + $0x20] sm:$0xff]
    %v2477 = vld [vmem:[%s1 + $0x28] sm:$0xff]
    %v2478 = vld [vmem:[%s1 + $0x30] sm:$0xff]
    %v2479 = vld [vmem:[%s1 + $0x38] sm:$0xff]
    %v2480 = vld [vmem:[%s1 + $0x40] sm:$0xff]
    %v2481 = vld [vmem:[%s1 + $0x48] sm:$0xff]
    %v2482 = vld [vmem:[%s1 + $0x50] sm:$0xff]
    %v2483 = vld [vmem:[%s1 + $0x58] sm:$0xff]
    %v2484 = vld [vmem:[%s1 + $0x60] sm:$0xff]
    %v2485 = vld [vmem:[%s1 + $0x68] sm:$0xff]
    %v2486 = vld [vmem:[%s1 + $0x70] sm:$0xff]
    %v2487 = vld [vmem:[%s1 + $0x78] sm:$0xff]
    %v2488 = vld [vmem:[%s1 + $0x80] sm:$0xff]
    %v2489 = vld [vmem:[%s1 + $0x88] sm:$0xff]
    %v2490 = vld [vmem:[%s1 + $0x90] sm:$0xff]
    %v2491 = vld [vmem:[%s1 + $0x98] sm:$0xff]
    %v2492 = vld [vmem:[%s1 + $0xa0] sm:$0xff]
    %v2493 = vld [vmem:[%s1 + $0xa8] sm:$0xff]
    %v2494 = vld [vmem:[%s1 + $0xb0] sm:$0xff]
    %v2495 = vld [vmem:[%s1 + $0xb8] sm:$0xff]
    %v2496 = vld [vmem:[%s1 + $0xc0] sm:$0xff]
    %v2497 = vld [vmem:[%s1 + $0xc8] sm:$0xff]
    %v2498 = vld [vmem:[%s1 + $0xd0] sm:$0xff]
    %v2499 = vld [vmem:[%s1 + $0xd8] sm:$0xff]
    %v2500 = vld [vmem:[%s1 + $0xe0] sm:$0xff]
    %v2501 = vld [vmem:[%s1 + $0xe8] sm:$0xff]
    %v2502 = vld [vmem:[%s1 + $0xf0] sm:$0xff]
    %v2503 = vld [vmem:[%s1 + $0xf8] sm:$0xff]
    %v2504 = vld [vmem:[%s1 + $0x100] sm:$0xff]
    %v2505 = vld [vmem:[%s1 + $0x108] sm:$0xff]
    %v2506 = vld [vmem:[%s1 + $0x110] sm:$0xff]
    %v2507 = vld [vmem:[%s1 + $0x118] sm:$0xff]
    %v2508 = vld [vmem:[%s1 + $0x120] sm:$0xff]
    %v2509 = vld [vmem:[%s1 + $0x128] sm:$0xff]
    %v2510 = vld [vmem:[%s1 + $0x130] sm:$0xff]
    %v2511 = vld [vmem:[%s1 + $0x138] sm:$0xff]
    %v2512 = vld [vmem:[%s1 + $0x140] sm:$0xff]
    %v2513 = vld [vmem:[%s1 + $0x148] sm:$0xff]
    %v2514 = vld [vmem:[%s1 + $0x150] sm:$0xff]
    %v2515 = vld [vmem:[%s1 + $0x158] sm:$0xff]
    %v2516 = vld [vmem:[%s1 + $0x160] sm:$0xff]
    %v2517 = vld [vmem:[%s1 + $0x168] sm:$0xff]
    %v2518 = vld [vmem:[%s1 + $0x170] sm:$0xff]
    %v2519 = vld [vmem:[%s1 + $0x178] sm:$0xff]
    %v2520 = vld [vmem:[%s1 + $0x180] sm:$0xff]
    %v2521 = vld [vmem:[%s1 + $0x188] sm:$0xff]
    %v2522 = vld [vmem:[%s1 + $0x190] sm:$0xff]
    %v2523 = vld [vmem:[%s1 + $0x198] sm:$0xff]
    %v2524 = vld [vmem:[%s1 + $0x1a0] sm:$0xff]
    %v2525 = vld [vmem:[%s1 + $0x1a8] sm:$0xff]
    %v2526 = vld [vmem:[%s1 + $0x1b0] sm:$0xff]
    %v2527 = vld [vmem:[%s1 + $0x1b8] sm:$0xff]
    %v2528 = vld [vmem:[%s1 + $0x1c0] sm:$0xff]
    %v2529 = vld [vmem:[%s1 + $0x1c8] sm:$0xff]
    %v2530 = vld [vmem:[%s1 + $0x1d0] sm:$0xff]
    %v2531 = vld [vmem:[%s1 + $0x1d8] sm:$0xff]
    %v2532 = vld [vmem:[%s1 + $0x1e0] sm:$0xff]
    %v2533 = vld [vmem:[%s1 + $0x1e8] sm:$0xff]
    %v2534 = vld [vmem:[%s1 + $0x1f0] sm:$0xff]
    %v2535 = vld [vmem:[%s1 + $0x1f8] sm:$0xff]
    %v2536 = vld [vmem:[%s1 + $0x200] sm:$0xff]
    %v2537 = vld [vmem:[%s1 + $0x208] sm:$0xff]
    %v2538 = vld [vmem:[%s1 + $0x210] sm:$0xff]
    %v2539 = vld [vmem:[%s1 + $0x218] sm:$0xff]
    %v2540 = vld [vmem:[%s1 + $0x220] sm:$0xff]
    %v2541 = vld [vmem:[%s1 + $0x228] sm:$0xff]
    %v2542 = vld [vmem:[%s1 + $0x230] sm:$0xff]
    %v2543 = vld [vmem:[%s1 + $0x238] sm:$0xff]
    %v2544 = vld [vmem:[%s1 + $0x240] sm:$0xff]
    %v2545 = vld [vmem:[%s1 + $0x248] sm:$0xff]
    %v2546 = vld [vmem:[%s1 + $0x250] sm:$0xff]
    %v2547 = vld [vmem:[%s1 + $0x258] sm:$0xff]
    %v2548 = vld [vmem:[%s1 + $0x260] sm:$0xff]
    %v2549 = vld [vmem:[%s1 + $0x268] sm:$0xff]
    %v2550 = vld [vmem:[%s1 + $0x270] sm:$0xff]
    %v2551 = vld [vmem:[%s1 + $0x278] sm:$0xff]
    %v2552 = vld [vmem:[%s1 + $0x280] sm:$0xff]
    %v2553 = vld [vmem:[%s1 + $0x288] sm:$0xff]
    %v2554 = vld [vmem:[%s1 + $0x290] sm:$0xff]
    %v2555 = vld [vmem:[%s1 + $0x298] sm:$0xff]
    %v2556 = vld [vmem:[%s1 + $0x2a0] sm:$0xff]
    %v2557 = vld [vmem:[%s1 + $0x2a8] sm:$0xff]
    %v2558 = vld [vmem:[%s1 + $0x2b0] sm:$0xff]
    %v2559 = vld [vmem:[%s1 + $0x2b8] sm:$0xff]
    %v2560 = vld [vmem:[%s1 + $0x2c0] sm:$0xff]
    %v2561 = vld [vmem:[%s1 + $0x2c8] sm:$0xff]
    %v2562 = vld [vmem:[%s1 + $0x2d0] sm:$0xff]
    %v2563 = vld [vmem:[%s1 + $0x2d8] sm:$0xff]
    %v2564 = vld [vmem:[%s1 + $0x2e0] sm:$0xff]
    %v2565 = vld [vmem:[%s1 + $0x2e8] sm:$0xff]
    %v2566 = vld [vmem:[%s1 + $0x2f0] sm:$0xff]
    %v2567 = vld [vmem:[%s1 + $0x2f8] sm:$0xff]
    %v2568 = vld [vmem:[%s1 + $0x300] sm:$0xff]
    %v2569 = vld [vmem:[%s1 + $0x308] sm:$0xff]
    %v2570 = vld [vmem:[%s1 + $0x310] sm:$0xff]
    %v2571 = vld [vmem:[%s1 + $0x318] sm:$0xff]
    %v2572 = vld [vmem:[%s1 + $0x320] sm:$0xff]
    %v2573 = vld [vmem:[%s1 + $0x328] sm:$0xff]
    %v2574 = vld [vmem:[%s1 + $0x330] sm:$0xff]
    %v2575 = vld [vmem:[%s1 + $0x338] sm:$0xff]
    %v2576 = vld [vmem:[%s1 + $0x340] sm:$0xff]
    %v2577 = vld [vmem:[%s1 + $0x348] sm:$0xff]
    %v2578 = vld [vmem:[%s1 + $0x350] sm:$0xff]
    %v2579 = vld [vmem:[%s1 + $0x358] sm:$0xff]
    %v2580 = vld [vmem:[%s1 + $0x360] sm:$0xff]
    %v2581 = vld [vmem:[%s1 + $0x368] sm:$0xff]
    %v2582 = vld [vmem:[%s1 + $0x370] sm:$0xff]
    %v2583 = vld [vmem:[%s1 + $0x378] sm:$0xff]
    %v2584 = vld [vmem:[%s1 + $0x380] sm:$0xff]
    %v2585 = vld [vmem:[%s1 + $0x388] sm:$0xff]
    %v2586 = vld [vmem:[%s1 + $0x390] sm:$0xff]
    %v2587 = vld [vmem:[%s1 + $0x398] sm:$0xff]
    %v2588 = vld [vmem:[%s1 + $0x3a0] sm:$0xff]
    %v2589 = vld [vmem:[%s1 + $0x3a8] sm:$0xff]
    %v2590 = vld [vmem:[%s1 + $0x3b0] sm:$0xff]
    %v2591 = vld [vmem:[%s1 + $0x3b8] sm:$0xff]
    %v2592 = vld [vmem:[%s1 + $0x3c0] sm:$0xff]
    %v2593 = vld [vmem:[%s1 + $0x3c8] sm:$0xff]
    %v2594 = vld [vmem:[%s1 + $0x3d0] sm:$0xff]
    %v2595 = vld [vmem:[%s1 + $0x3d8] sm:$0xff]
    %v2596 = vld [vmem:[%s1 + $0x3e0] sm:$0xff]
    %v2597 = vld [vmem:[%s1 + $0x3e8] sm:$0xff]
    %v2598 = vld [vmem:[%s1 + $0x3f0] sm:$0xff]
    %v2599 = vld [vmem:[%s1 + $0x3f8] sm:$0xff]
    %v2600 = vld [vmem:[%s1 + $0x400] sm:$0xff]
    %v2601 = vld [vmem:[%s1 + $0x408] sm:$0xff]
    %v2602 = vld [vmem:[%s1 + $0x410] sm:$0xff]
    %v2603 = vld [vmem:[%s1 + $0x418] sm:$0xff]
    %v2604 = vld [vmem:[%s1 + $0x420] sm:$0xff]
    %v2605 = vld [vmem:[%s1 + $0x428] sm:$0xff]
    %v2606 = vld [vmem:[%s1 + $0x430] sm:$0xff]
    %v2607 = vld [vmem:[%s1 + $0x438] sm:$0xff]
    %v2608 = vld [vmem:[%s1 + $0x440] sm:$0xff]
    %v2609 = vld [vmem:[%s1 + $0x448] sm:$0xff]
    %v2610 = vld [vmem:[%s1 + $0x450] sm:$0xff]
    %v2611 = vld [vmem:[%s1 + $0x458] sm:$0xff]
    %v2612 = vld [vmem:[%s1 + $0x460] sm:$0xff]
    %v2613 = vld [vmem:[%s1 + $0x468] sm:$0xff]
    %v2614 = vld [vmem:[%s1 + $0x470] sm:$0xff]
    %v2615 = vld [vmem:[%s1 + $0x478] sm:$0xff]
    %v2616 = vld [vmem:[%s1 + $0x480] sm:$0xff]
    %v2617 = vld [vmem:[%s1 + $0x488] sm:$0xff]
    %v2618 = vld [vmem:[%s1 + $0x490] sm:$0xff]
    %v2619 = vld [vmem:[%s1 + $0x498] sm:$0xff]
    %v2620 = vld [vmem:[%s1 + $0x4a0] sm:$0xff]
    %v2621 = vld [vmem:[%s1 + $0x4a8] sm:$0xff]
    %v2622 = vld [vmem:[%s1 + $0x4b0] sm:$0xff]
    %v2623 = vld [vmem:[%s1 + $0x4b8] sm:$0xff]
    %v2624 = vld [vmem:[%s1 + $0x4c0] sm:$0xff]
    %v2625 = vld [vmem:[%s1 + $0x4c8] sm:$0xff]
    %v2626 = vld [vmem:[%s1 + $0x4d0] sm:$0xff]
    %v2627 = vld [vmem:[%s1 + $0x4d8] sm:$0xff]
    %v2628 = vld [vmem:[%s1 + $0x4e0] sm:$0xff]
    %v2629 = vld [vmem:[%s1 + $0x4e8] sm:$0xff]
    %v2630 = vld [vmem:[%s1 + $0x4f0] sm:$0xff]
    %v2631 = vld [vmem:[%s1 + $0x4f8] sm:$0xff]
    %v2632 = vld [vmem:[%s1 + $0x500] sm:$0xff]
    %v2633 = vld [vmem:[%s1 + $0x508] sm:$0xff]
    %v2634 = vld [vmem:[%s1 + $0x510] sm:$0xff]
    %v2635 = vld [vmem:[%s1 + $0x518] sm:$0xff]
    %v2636 = vld [vmem:[%s1 + $0x520] sm:$0xff]
    %v2637 = vld [vmem:[%s1 + $0x528] sm:$0xff]
    %v2638 = vld [vmem:[%s1 + $0x530] sm:$0xff]
    %v2639 = vld [vmem:[%s1 + $0x538] sm:$0xff]
    %v2640 = vld [vmem:[%s1 + $0x540] sm:$0xff]
    %v2641 = vld [vmem:[%s1 + $0x548] sm:$0xff]
    %v2642 = vld [vmem:[%s1 + $0x550] sm:$0xff]
    %v2643 = vld [vmem:[%s1 + $0x558] sm:$0xff]
    %v2644 = vld [vmem:[%s1 + $0x560] sm:$0xff]
    %v2645 = vld [vmem:[%s1 + $0x568] sm:$0xff]
    %v2646 = vld [vmem:[%s1 + $0x570] sm:$0xff]
    %v2647 = vld [vmem:[%s1 + $0x578] sm:$0xff]
    %v2648 = vld [vmem:[%s1 + $0x580] sm:$0xff]
    %v2649 = vld [vmem:[%s1 + $0x588] sm:$0xff]
    %v2650 = vld [vmem:[%s1 + $0x590] sm:$0xff]
    %v2651 = vld [vmem:[%s1 + $0x598] sm:$0xff]
    %v2652 = vld [vmem:[%s1 + $0x5a0] sm:$0xff]
    %v2653 = vld [vmem:[%s1 + $0x5a8] sm:$0xff]
    %v2654 = vld [vmem:[%s1 + $0x5b0] sm:$0xff]
    %v2655 = vld [vmem:[%s1 + $0x5b8] sm:$0xff]
    %v2656 = vld [vmem:[%s1 + $0x5c0] sm:$0xff]
    %v2657 = vld [vmem:[%s1 + $0x5c8] sm:$0xff]
    %v2658 = vld [vmem:[%s1 + $0x5d0] sm:$0xff]
    %v2659 = vld [vmem:[%s1 + $0x5d8] sm:$0xff]
    %v2660 = vld [vmem:[%s1 + $0x5e0] sm:$0xff]
    %v2661 = vld [vmem:[%s1 + $0x5e8] sm:$0xff]
    %v2662 = vld [vmem:[%s1 + $0x5f0] sm:$0xff]
    %v2663 = vld [vmem:[%s1 + $0x5f8] sm:$0xff]
    %v2664 = vld [vmem:[%s1 + $0x600] sm:$0xff]
    %v2665 = vld [vmem:[%s1 + $0x608] sm:$0xff]
    %v2666 = vld [vmem:[%s1 + $0x610] sm:$0xff]
    %v2667 = vld [vmem:[%s1 + $0x618] sm:$0xff]
    %v2668 = vld [vmem:[%s1 + $0x620] sm:$0xff]
    %v2669 = vld [vmem:[%s1 + $0x628] sm:$0xff]
    %v2670 = vld [vmem:[%s1 + $0x630] sm:$0xff]
    %v2671 = vld [vmem:[%s1 + $0x638] sm:$0xff]
    %v2672 = vld [vmem:[%s1 + $0x640] sm:$0xff]
    %v2673 = vld [vmem:[%s1 + $0x648] sm:$0xff]
    %v2674 = vld [vmem:[%s1 + $0x650] sm:$0xff]
    %v2675 = vld [vmem:[%s1 + $0x658] sm:$0xff]
    %v2676 = vld [vmem:[%s1 + $0x660] sm:$0xff]
    %v2677 = vld [vmem:[%s1 + $0x668] sm:$0xff]
    %v2678 = vld [vmem:[%s1 + $0x670] sm:$0xff]
    %v2679 = vld [vmem:[%s1 + $0x678] sm:$0xff]
    %v2680 = vld [vmem:[%s1 + $0x680] sm:$0xff]
    %v2681 = vld [vmem:[%s1 + $0x688] sm:$0xff]
    %v2682 = vld [vmem:[%s1 + $0x690] sm:$0xff]
    %v2683 = vld [vmem:[%s1 + $0x698] sm:$0xff]
    %v2684 = vld [vmem:[%s1 + $0x6a0] sm:$0xff]
    %v2685 = vld [vmem:[%s1 + $0x6a8] sm:$0xff]
    %v2686 = vld [vmem:[%s1 + $0x6b0] sm:$0xff]
    %v2687 = vld [vmem:[%s1 + $0x6b8] sm:$0xff]
    %v2688 = vld [vmem:[%s1 + $0x6c0] sm:$0xff]
    %v2689 = vld [vmem:[%s1 + $0x6c8] sm:$0xff]
    %v2690 = vld [vmem:[%s1 + $0x6d0] sm:$0xff]
    %v2691 = vld [vmem:[%s1 + $0x6d8] sm:$0xff]
    %v2692 = vld [vmem:[%s1 + $0x6e0] sm:$0xff]
    %v2693 = vld [vmem:[%s1 + $0x6e8] sm:$0xff]
    %v2694 = vld [vmem:[%s1 + $0x6f0] sm:$0xff]
    %v2695 = vld [vmem:[%s1 + $0x6f8] sm:$0xff]
    %v2696 = vld [vmem:[%s1 + $0x700] sm:$0xff]
    %v2697 = vld [vmem:[%s1 + $0x708] sm:$0xff]
    %v2698 = vld [vmem:[%s1 + $0x710] sm:$0xff]
    %v2699 = vld [vmem:[%s1 + $0x718] sm:$0xff]
    %v2700 = vld [vmem:[%s1 + $0x720] sm:$0xff]
    %v2701 = vld [vmem:[%s1 + $0x728] sm:$0xff]
    %v2702 = vld [vmem:[%s1 + $0x730] sm:$0xff]
    %v2703 = vld [vmem:[%s1 + $0x738] sm:$0xff]
    %v2704 = vld [vmem:[%s1 + $0x740] sm:$0xff]
    %v2705 = vld [vmem:[%s1 + $0x748] sm:$0xff]
    %v2706 = vld [vmem:[%s1 + $0x750] sm:$0xff]
    %v2707 = vld [vmem:[%s1 + $0x758] sm:$0xff]
    %v2708 = vld [vmem:[%s1 + $0x760] sm:$0xff]
    %v2709 = vld [vmem:[%s1 + $0x768] sm:$0xff]
    %v2710 = vld [vmem:[%s1 + $0x770] sm:$0xff]
    %v2711 = vld [vmem:[%s1 + $0x778] sm:$0xff]
    %v2712 = vld [vmem:[%s1 + $0x780] sm:$0xff]
    %v2713 = vld [vmem:[%s1 + $0x788] sm:$0xff]
    %v2714 = vld [vmem:[%s1 + $0x790] sm:$0xff]
    %v2715 = vld [vmem:[%s1 + $0x798] sm:$0xff]
    %v2716 = vld [vmem:[%s1 + $0x7a0] sm:$0xff]
    %v2717 = vld [vmem:[%s1 + $0x7a8] sm:$0xff]
    %v2718 = vld [vmem:[%s1 + $0x7b0] sm:$0xff]
    %v2719 = vld [vmem:[%s1 + $0x7b8] sm:$0xff]
    %v2720 = vld [vmem:[%s1 + $0x7c0] sm:$0xff]
    %v2721 = vld [vmem:[%s1 + $0x7c8] sm:$0xff]
    %v2722 = vld [vmem:[%s1 + $0x7d0] sm:$0xff]
    %v2723 = vld [vmem:[%s1 + $0x7d8] sm:$0xff]
    %v2724 = vld [vmem:[%s1 + $0x7e0] sm:$0xff]
    %v2725 = vld [vmem:[%s1 + $0x7e8] sm:$0xff]
    %v2726 = vld [vmem:[%s1 + $0x7f0] sm:$0xff]
    %v2727 = vld [vmem:[%s1 + $0x7f8] sm:$0xff]
    %2728 = vmatprep.subr.mxu0 %v2473
    %2729 = vmatpush1.msra.mxu0 %v2472
    %2730 = vmatprep.subr.mxu0 %v2481
    %2731 = vmatpush1.msra.mxu0 %v2480
    %2732 = vmatprep.subr.mxu0 %v2489
    %2733 = vmatpush1.msra.mxu0 %v2488
    %2734 = vmatprep.subr.mxu0 %v2497
    %2735 = vmatpush1.msra.mxu0 %v2496
    %2736 = vmatprep.subr.mxu0 %v2505
    %2737 = vmatpush1.msra.mxu0 %v2504
    %2738 = vmatprep.subr.mxu0 %v2513
    %2739 = vmatpush1.msra.mxu0 %v2512
    %2740 = vmatprep.subr.mxu0 %v2521
    %2741 = vmatpush1.msra.mxu0 %v2520
    %2742 = vmatprep.subr.mxu0 %v2529
    %2743 = vmatpush1.msra.mxu0 %v2528
    %2744 = vmatprep.subr.mxu0 %v2537
    %2745 = vmatpush1.msra.mxu0 %v2536
    %2746 = vmatprep.subr.mxu0 %v2545
    %2747 = vmatpush1.msra.mxu0 %v2544
    %2748 = vmatprep.subr.mxu0 %v2553
    %2749 = vmatpush1.msra.mxu0 %v2552
    %2750 = vmatprep.subr.mxu0 %v2561
    %2751 = vmatpush1.msra.mxu0 %v2560
    %2752 = vmatprep.subr.mxu0 %v2569
    %2753 = vmatpush1.msra.mxu0 %v2568
    %2754 = vmatprep.subr.mxu0 %v2577
    %2755 = vmatpush1.msra.mxu0 %v2576
    %2756 = vmatprep.subr.mxu0 %v2585
    %2757 = vmatpush1.msra.mxu0 %v2584
    %2758 = vmatprep.subr.mxu0 %v2593
    %2759 = vmatpush1.msra.mxu0 %v2592
    %2760 = vmatprep.subr.mxu0 %v2601
    %2761 = vmatpush1.msra.mxu0 %v2600
    %2762 = vmatprep.subr.mxu0 %v2609
    %2763 = vmatpush1.msra.mxu0 %v2608
    %2764 = vmatprep.subr.mxu0 %v2617
    %2765 = vmatpush1.msra.mxu0 %v2616
    %2766 = vmatprep.subr.mxu0 %v2625
    %2767 = vmatpush1.msra.mxu0 %v2624
    %2768 = vmatprep.subr.mxu0 %v2633
    %2769 = vmatpush1.msra.mxu0 %v2632
    %2770 = vmatprep.subr.mxu0 %v2641
    %2771 = vmatpush1.msra.mxu0 %v2640
    %2772 = vmatprep.subr.mxu0 %v2649
    %2773 = vmatpush1.msra.mxu0 %v2648
    %2774 = vmatprep.subr.mxu0 %v2657
    %2775 = vmatpush1.msra.mxu0 %v2656
    %2776 = vmatprep.subr.mxu0 %v2665
    %2777 = vmatpush1.msra.mxu0 %v2664
    %2778 = vmatprep.subr.mxu0 %v2673
    %2779 = vmatpush1.msra.mxu0 %v2672
    %2780 = vmatprep.subr.mxu0 %v2681
    %2781 = vmatpush1.msra.mxu0 %v2680
    %2782 = vmatprep.subr.mxu0 %v2689
    %2783 = vmatpush1.msra.mxu0 %v2688
    %2784 = vmatprep.subr.mxu0 %v2697
    %2785 = vmatpush1.msra.mxu0 %v2696
    %2786 = vmatprep.subr.mxu0 %v2705
    %2787 = vmatpush1.msra.mxu0 %v2704
    %2788 = vmatprep.subr.mxu0 %v2713
    %2789 = vmatpush1.msra.mxu0 %v2712
    %2790 = vmatprep.subr.mxu0 %v2721
    %2791 = vmatpush1.msra.mxu0 %v2720
    %2792 = vmatprep.mubr.f32.mxu0 %v2461
    %2793 = vmatmul.mubr.f32.gmra.mrb[0].mxu0 %v2460
    %v2794 = vpop.f32.mrb[0].mxu0
    %v2795 = vadd.f32 0.0, %v2794
    %v2796 = vpop.f32.mrb[0].mxu0
    %v2797 = vadd.f32 0.0, %v2796
    %2798 = vdwg.mxu0
    %2799 = vmatprep.subr.mxu0 %v2475
    %2800 = vmatpush1.msra.mxu0 %v2474
    %2801 = vmatprep.subr.mxu0 %v2483
    %2802 = vmatpush1.msra.mxu0 %v2482
    %2803 = vmatprep.subr.mxu0 %v2491
    %2804 = vmatpush1.msra.mxu0 %v2490
    %2805 = vmatprep.subr.mxu0 %v2499
    %2806 = vmatpush1.msra.mxu0 %v2498
    %2807 = vmatprep.subr.mxu0 %v2507
    %2808 = vmatpush1.msra.mxu0 %v2506
    %2809 = vmatprep.subr.mxu0 %v2515
    %2810 = vmatpush1.msra.mxu0 %v2514
    %2811 = vmatprep.subr.mxu0 %v2523
    %2812 = vmatpush1.msra.mxu0 %v2522
    %2813 = vmatprep.subr.mxu0 %v2531
    %2814 = vmatpush1.msra.mxu0 %v2530
    %2815 = vmatprep.subr.mxu0 %v2539
    %2816 = vmatpush1.msra.mxu0 %v2538
    %2817 = vmatprep.subr.mxu0 %v2547
    %2818 = vmatpush1.msra.mxu0 %v2546
    %2819 = vmatprep.subr.mxu0 %v2555
    %2820 = vmatpush1.msra.mxu0 %v2554
    %2821 = vmatprep.subr.mxu0 %v2563
    %2822 = vmatpush1.msra.mxu0 %v2562
    %2823 = vmatprep.subr.mxu0 %v2571
    %2824 = vmatpush1.msra.mxu0 %v2570
    %2825 = vmatprep.subr.mxu0 %v2579
    %2826 = vmatpush1.msra.mxu0 %v2578
    %2827 = vmatprep.subr.mxu0 %v2587
    %2828 = vmatpush1.msra.mxu0 %v2586
    %2829 = vmatprep.subr.mxu0 %v2595
    %2830 = vmatpush1.msra.mxu0 %v2594
    %2831 = vmatprep.subr.mxu0 %v2603
    %2832 = vmatpush1.msra.mxu0 %v2602
    %2833 = vmatprep.subr.mxu0 %v2611
    %2834 = vmatpush1.msra.mxu0 %v2610
    %2835 = vmatprep.subr.mxu0 %v2619
    %2836 = vmatpush1.msra.mxu0 %v2618
    %2837 = vmatprep.subr.mxu0 %v2627
    %2838 = vmatpush1.msra.mxu0 %v2626
    %2839 = vmatprep.subr.mxu0 %v2635
    %2840 = vmatpush1.msra.mxu0 %v2634
    %2841 = vmatprep.subr.mxu0 %v2643
    %2842 = vmatpush1.msra.mxu0 %v2642
    %2843 = vmatprep.subr.mxu0 %v2651
    %2844 = vmatpush1.msra.mxu0 %v2650
    %2845 = vmatprep.subr.mxu0 %v2659
    %2846 = vmatpush1.msra.mxu0 %v2658
    %2847 = vmatprep.subr.mxu0 %v2667
    %2848 = vmatpush1.msra.mxu0 %v2666
    %2849 = vmatprep.subr.mxu0 %v2675
    %2850 = vmatpush1.msra.mxu0 %v2674
    %2851 = vmatprep.subr.mxu0 %v2683
    %2852 = vmatpush1.msra.mxu0 %v2682
    %2853 = vmatprep.subr.mxu0 %v2691
    %2854 = vmatpush1.msra.mxu0 %v2690
    %2855 = vmatprep.subr.mxu0 %v2699
    %2856 = vmatpush1.msra.mxu0 %v2698
    %2857 = vmatprep.subr.mxu0 %v2707
    %2858 = vmatpush1.msra.mxu0 %v2706
    %2859 = vmatprep.subr.mxu0 %v2715
    %2860 = vmatpush1.msra.mxu0 %v2714
    %2861 = vmatprep.subr.mxu0 %v2723
    %2862 = vmatpush1.msra.mxu0 %v2722
    %2863 = vmatprep.mubr.f32.mxu0 %v2461
    %2864 = vmatmul.mubr.f32.gmra.mrb[0].mxu0 %v2460
    %v2865 = vpop.f32.mrb[0].mxu0
    %v2866 = vadd.f32 0.0, %v2865
    %v2867 = vpop.f32.mrb[0].mxu0
    %v2868 = vadd.f32 0.0, %v2867
    %2869 = vdwg.mxu0
    %2870 = vmatprep.subr.mxu0 %v2477
    %2871 = vmatpush1.msra.mxu0 %v2476
    %2872 = vmatprep.subr.mxu0 %v2485
    %2873 = vmatpush1.msra.mxu0 %v2484
    %2874 = vmatprep.subr.mxu0 %v2493
    %2875 = vmatpush1.msra.mxu0 %v2492
    %2876 = vmatprep.subr.mxu0 %v2501
    %2877 = vmatpush1.msra.mxu0 %v2500
    %2878 = vmatprep.subr.mxu0 %v2509
    %2879 = vmatpush1.msra.mxu0 %v2508
    %2880 = vmatprep.subr.mxu0 %v2517
    %2881 = vmatpush1.msra.mxu0 %v2516
    %2882 = vmatprep.subr.mxu0 %v2525
    %2883 = vmatpush1.msra.mxu0 %v2524
    %2884 = vmatprep.subr.mxu0 %v2533
    %2885 = vmatpush1.msra.mxu0 %v2532
    %2886 = vmatprep.subr.mxu0 %v2541
    %2887 = vmatpush1.msra.mxu0 %v2540
    %2888 = vmatprep.subr.mxu0 %v2549
    %2889 = vmatpush1.msra.mxu0 %v2548
    %2890 = vmatprep.subr.mxu0 %v2557
    %2891 = vmatpush1.msra.mxu0 %v2556
    %2892 = vmatprep.subr.mxu0 %v2565
    %2893 = vmatpush1.msra.mxu0 %v2564
    %2894 = vmatprep.subr.mxu0 %v2573
    %2895 = vmatpush1.msra.mxu0 %v2572
    %2896 = vmatprep.subr.mxu0 %v2581
    %2897 = vmatpush1.msra.mxu0 %v2580
    %2898 = vmatprep.subr.mxu0 %v2589
    %2899 = vmatpush1.msra.mxu0 %v2588
    %2900 = vmatprep.subr.mxu0 %v2597
    %2901 = vmatpush1.msra.mxu0 %v2596
    %2902 = vmatprep.subr.mxu0 %v2605
    %2903 = vmatpush1.msra.mxu0 %v2604
    %2904 = vmatprep.subr.mxu0 %v2613
    %2905 = vmatpush1.msra.mxu0 %v2612
    %2906 = vmatprep.subr.mxu0 %v2621
    %2907 = vmatpush1.msra.mxu0 %v2620
    %2908 = vmatprep.subr.mxu0 %v2629
    %2909 = vmatpush1.msra.mxu0 %v2628
    %2910 = vmatprep.subr.mxu0 %v2637
    %2911 = vmatpush1.msra.mxu0 %v2636
    %2912 = vmatprep.subr.mxu0 %v2645
    %2913 = vmatpush1.msra.mxu0 %v2644
    %2914 = vmatprep.subr.mxu0 %v2653
    %2915 = vmatpush1.msra.mxu0 %v2652
    %2916 = vmatprep.subr.mxu0 %v2661
    %2917 = vmatpush1.msra.mxu0 %v2660
    %2918 = vmatprep.subr.mxu0 %v2669
    %2919 = vmatpush1.msra.mxu0 %v2668
    %2920 = vmatprep.subr.mxu0 %v2677
    %2921 = vmatpush1.msra.mxu0 %v2676
    %2922 = vmatprep.subr.mxu0 %v2685
    %2923 = vmatpush1.msra.mxu0 %v2684
    %2924 = vmatprep.subr.mxu0 %v2693
    %2925 = vmatpush1.msra.mxu0 %v2692
    %2926 = vmatprep.subr.mxu0 %v2701
    %2927 = vmatpush1.msra.mxu0 %v2700
    %2928 = vmatprep.subr.mxu0 %v2709
    %2929 = vmatpush1.msra.mxu0 %v2708
    %2930 = vmatprep.subr.mxu0 %v2717
    %2931 = vmatpush1.msra.mxu0 %v2716
    %2932 = vmatprep.subr.mxu0 %v2725
    %2933 = vmatpush1.msra.mxu0 %v2724
    %2934 = vmatprep.mubr.f32.mxu0 %v2461
    %2935 = vmatmul.mubr.f32.gmra.mrb[0].mxu0 %v2460
    %v2936 = vpop.f32.mrb[0].mxu0
    %v2937 = vadd.f32 0.0, %v2936
    %v2938 = vpop.f32.mrb[0].mxu0
    %v2939 = vadd.f32 0.0, %v2938
    %2940 = vdwg.mxu0
    %2941 = vmatprep.subr.mxu0 %v2479
    %2942 = vmatpush1.msra.mxu0 %v2478
    %2943 = vmatprep.subr.mxu0 %v2487
    %2944 = vmatpush1.msra.mxu0 %v2486
    %2945 = vmatprep.subr.mxu0 %v2495
    %2946 = vmatpush1.msra.mxu0 %v2494
    %2947 = vmatprep.subr.mxu0 %v2503
    %2948 = vmatpush1.msra.mxu0 %v2502
    %2949 = vmatprep.subr.mxu0 %v2511
    %2950 = vmatpush1.msra.mxu0 %v2510
    %2951 = vmatprep.subr.mxu0 %v2519
    %2952 = vmatpush1.msra.mxu0 %v2518
    %2953 = vmatprep.subr.mxu0 %v2527
    %2954 = vmatpush1.msra.mxu0 %v2526
    %2955 = vmatprep.subr.mxu0 %v2535
    %2956 = vmatpush1.msra.mxu0 %v2534
    %2957 = vmatprep.subr.mxu0 %v2543
    %2958 = vmatpush1.msra.mxu0 %v2542
    %2959 = vmatprep.subr.mxu0 %v2551
    %2960 = vmatpush1.msra.mxu0 %v2550
    %2961 = vmatprep.subr.mxu0 %v2559
    %2962 = vmatpush1.msra.mxu0 %v2558
    %2963 = vmatprep.subr.mxu0 %v2567
    %2964 = vmatpush1.msra.mxu0 %v2566
    %2965 = vmatprep.subr.mxu0 %v2575
    %2966 = vmatpush1.msra.mxu0 %v2574
    %2967 = vmatprep.subr.mxu0 %v2583
    %2968 = vmatpush1.msra.mxu0 %v2582
    %2969 = vmatprep.subr.mxu0 %v2591
    %2970 = vmatpush1.msra.mxu0 %v2590
    %2971 = vmatprep.subr.mxu0 %v2599
    %2972 = vmatpush1.msra.mxu0 %v2598
    %2973 = vmatprep.subr.mxu0 %v2607
    %2974 = vmatpush1.msra.mxu0 %v2606
    %2975 = vmatprep.subr.mxu0 %v2615
    %2976 = vmatpush1.msra.mxu0 %v2614
    %2977 = vmatprep.subr.mxu0 %v2623
    %2978 = vmatpush1.msra.mxu0 %v2622
    %2979 = vmatprep.subr.mxu0 %v2631
    %2980 = vmatpush1.msra.mxu0 %v2630
    %2981 = vmatprep.subr.mxu0 %v2639
    %2982 = vmatpush1.msra.mxu0 %v2638
    %2983 = vmatprep.subr.mxu0 %v2647
    %2984 = vmatpush1.msra.mxu0 %v2646
    %2985 = vmatprep.subr.mxu0 %v2655
    %2986 = vmatpush1.msra.mxu0 %v2654
    %2987 = vmatprep.subr.mxu0 %v2663
    %2988 = vmatpush1.msra.mxu0 %v2662
    %2989 = vmatprep.subr.mxu0 %v2671
    %2990 = vmatpush1.msra.mxu0 %v2670
    %2991 = vmatprep.subr.mxu0 %v2679
    %2992 = vmatpush1.msra.mxu0 %v2678
    %2993 = vmatprep.subr.mxu0 %v2687
    %2994 = vmatpush1.msra.mxu0 %v2686
    %2995 = vmatprep.subr.mxu0 %v2695
    %2996 = vmatpush1.msra.mxu0 %v2694
    %2997 = vmatprep.subr.mxu0 %v2703
    %2998 = vmatpush1.msra.mxu0 %v2702
    %2999 = vmatprep.subr.mxu0 %v2711
    %3000 = vmatpush1.msra.mxu0 %v2710
    %3001 = vmatprep.subr.mxu0 %v2719
    %3002 = vmatpush1.msra.mxu0 %v2718
    %3003 = vmatprep.subr.mxu0 %v2727
    %3004 = vmatpush1.msra.mxu0 %v2726
    %3005 = vmatprep.mubr.f32.mxu0 %v2461
    %3006 = vmatmul.mubr.f32.gmra.mrb[0].mxu0 %v2460
    %v3007 = vpop.f32.mrb[0].mxu0
    %v3008 = vadd.f32 0.0, %v3007
    %v3009 = vpop.f32.mrb[0].mxu0
    %v3010 = vadd.f32 0.0, %v3009
    %3011 = vdwg.mxu0
    %v3012 = vadd.f32 %v2464, %v2795
    %v3013 = vadd.f32 %v2465, %v2797
    %v3014 = vadd.f32 %v2466, %v2866
    %v3015 = vadd.f32 %v2467, %v2868
    %v3016 = vadd.f32 %v2468, %v2937
    %v3017 = vadd.f32 %v2469, %v2939
    %v3018 = vadd.f32 %v2470, %v3008
    %v3019 = vadd.f32 %v2471, %v3010
    %v3020 = vxor.u32 %v3012, 2147483648
    %v3021 = vxor.u32 %v3013, 2147483648
    %v3022 = vmul.f32 %v3020, 1.442695
    %v3023 = vpow.pop %v3022
    %v3024 = vmul.f32 %v3021, 1.442695
    %v3025 = vpow.pop %v3024
    %v3026 = vadd.f32 %v3023, 1.0
    %v3027 = vadd.f32 %v3025, 1.0
    %v3028 = vrcp.pop %v3026
    %v3029 = vmul.f32 1.0, %v3028
    %v3030 = vrcp.pop %v3027
    %v3031 = vmul.f32 1.0, %v3030
    %v3032 = vxor.u32 %v3014, 2147483648
    %v3033 = vxor.u32 %v3015, 2147483648
    %v3034 = vmul.f32 %v3032, 1.442695
    %v3035 = vpow.pop %v3034
    %v3036 = vmul.f32 %v3033, 1.442695
    %v3037 = vpow.pop %v3036
    %v3038 = vadd.f32 %v3035, 1.0
    %v3039 = vadd.f32 %v3037, 1.0
    %v3040 = vrcp.pop %v3038
    %v3041 = vmul.f32 1.0, %v3040
    %v3042 = vrcp.pop %v3039
    %v3043 = vmul.f32 1.0, %v3042
    %v3044 = vtanh.pop %v3016
    %v3045 = vtanh.pop %v3017
    %v3046 = vxor.u32 %v3018, 2147483648
    %v3047 = vxor.u32 %v3019, 2147483648
    %v3048 = vmul.f32 %v3046, 1.442695
    %v3049 = vpow.pop %v3048
    %v3050 = vmul.f32 %v3047, 1.442695
    %v3051 = vpow.pop %v3050
    %v3052 = vadd.f32 %v3049, 1.0
    %v3053 = vadd.f32 %v3051, 1.0
    %v3054 = vrcp.pop %v3052
    %v3055 = vmul.f32 1.0, %v3054
    %v3056 = vrcp.pop %v3053
    %v3057 = vmul.f32 1.0, %v3056
    %v3058 = vmul.f32 %v3041, %v2456
    %v3059 = vmul.f32 %v3043, %v2457
    %v3060 = vmul.f32 %v3029, %v3044
    %v3061 = vmul.f32 %v3031, %v3045
    %v3062 = vadd.f32 %v3058, %v3060
    %v3063 = vadd.f32 %v3059, %v3061
    %v3064 = vtanh.pop %v3062
    %v3065 = vtanh.pop %v3063
    %v3066 = vmul.f32 %v3055, %v3064
    %v3067 = vmul.f32 %v3057, %v3065
    %3068 = vst [vmem:[#allocation2 + $0x40] sm:$0xff] %v3066
    %3069 = vst [vmem:[#allocation2 + $0x48] sm:$0xff] %v3067
    %v3070 = vld [vmem:[%s0 + $0x140] sm:$0xff]
    %v3071 = vld [vmem:[%s0 + $0x148] sm:$0xff]
    %v3072 = vld [vmem:[%s0 + $0x150] sm:$0xff]
    %v3073 = vld [vmem:[%s0 + $0x158] sm:$0xff]
    %v3074 = vld [vmem:[%s0 + $0x160] sm:$0xff]
    %v3075 = vld [vmem:[%s0 + $0x168] sm:$0xff]
    %v3076 = vld [vmem:[%s0 + $0x170] sm:$0xff]
    %v3077 = vld [vmem:[%s0 + $0x178] sm:$0xff]
    %v3078 = vld [vmem:[%s1] sm:$0xff]
    %v3079 = vld [vmem:[%s1 + $0x8] sm:$0xff]
    %v3080 = vld [vmem:[%s1 + $0x10] sm:$0xff]
    %v3081 = vld [vmem:[%s1 + $0x18] sm:$0xff]
    %v3082 = vld [vmem:[%s1 + $0x20] sm:$0xff]
    %v3083 = vld [vmem:[%s1 + $0x28] sm:$0xff]
    %v3084 = vld [vmem:[%s1 + $0x30] sm:$0xff]
    %v3085 = vld [vmem:[%s1 + $0x38] sm:$0xff]
    %v3086 = vld [vmem:[%s1 + $0x40] sm:$0xff]
    %v3087 = vld [vmem:[%s1 + $0x48] sm:$0xff]
    %v3088 = vld [vmem:[%s1 + $0x50] sm:$0xff]
    %v3089 = vld [vmem:[%s1 + $0x58] sm:$0xff]
    %v3090 = vld [vmem:[%s1 + $0x60] sm:$0xff]
    %v3091 = vld [vmem:[%s1 + $0x68] sm:$0xff]
    %v3092 = vld [vmem:[%s1 + $0x70] sm:$0xff]
    %v3093 = vld [vmem:[%s1 + $0x78] sm:$0xff]
    %v3094 = vld [vmem:[%s1 + $0x80] sm:$0xff]
    %v3095 = vld [vmem:[%s1 + $0x88] sm:$0xff]
    %v3096 = vld [vmem:[%s1 + $0x90] sm:$0xff]
    %v3097 = vld [vmem:[%s1 + $0x98] sm:$0xff]
    %v3098 = vld [vmem:[%s1 + $0xa0] sm:$0xff]
    %v3099 = vld [vmem:[%s1 + $0xa8] sm:$0xff]
    %v3100 = vld [vmem:[%s1 + $0xb0] sm:$0xff]
    %v3101 = vld [vmem:[%s1 + $0xb8] sm:$0xff]
    %v3102 = vld [vmem:[%s1 + $0xc0] sm:$0xff]
    %v3103 = vld [vmem:[%s1 + $0xc8] sm:$0xff]
    %v3104 = vld [vmem:[%s1 + $0xd0] sm:$0xff]
    %v3105 = vld [vmem:[%s1 + $0xd8] sm:$0xff]
    %v3106 = vld [vmem:[%s1 + $0xe0] sm:$0xff]
    %v3107 = vld [vmem:[%s1 + $0xe8] sm:$0xff]
    %v3108 = vld [vmem:[%s1 + $0xf0] sm:$0xff]
    %v3109 = vld [vmem:[%s1 + $0xf8] sm:$0xff]
    %v3110 = vld [vmem:[%s1 + $0x100] sm:$0xff]
    %v3111 = vld [vmem:[%s1 + $0x108] sm:$0xff]
    %v3112 = vld [vmem:[%s1 + $0x110] sm:$0xff]
    %v3113 = vld [vmem:[%s1 + $0x118] sm:$0xff]
    %v3114 = vld [vmem:[%s1 + $0x120] sm:$0xff]
    %v3115 = vld [vmem:[%s1 + $0x128] sm:$0xff]
    %v3116 = vld [vmem:[%s1 + $0x130] sm:$0xff]
    %v3117 = vld [vmem:[%s1 + $0x138] sm:$0xff]
    %v3118 = vld [vmem:[%s1 + $0x140] sm:$0xff]
    %v3119 = vld [vmem:[%s1 + $0x148] sm:$0xff]
    %v3120 = vld [vmem:[%s1 + $0x150] sm:$0xff]
    %v3121 = vld [vmem:[%s1 + $0x158] sm:$0xff]
    %v3122 = vld [vmem:[%s1 + $0x160] sm:$0xff]
    %v3123 = vld [vmem:[%s1 + $0x168] sm:$0xff]
    %v3124 = vld [vmem:[%s1 + $0x170] sm:$0xff]
    %v3125 = vld [vmem:[%s1 + $0x178] sm:$0xff]
    %v3126 = vld [vmem:[%s1 + $0x180] sm:$0xff]
    %v3127 = vld [vmem:[%s1 + $0x188] sm:$0xff]
    %v3128 = vld [vmem:[%s1 + $0x190] sm:$0xff]
    %v3129 = vld [vmem:[%s1 + $0x198] sm:$0xff]
    %v3130 = vld [vmem:[%s1 + $0x1a0] sm:$0xff]
    %v3131 = vld [vmem:[%s1 + $0x1a8] sm:$0xff]
    %v3132 = vld [vmem:[%s1 + $0x1b0] sm:$0xff]
    %v3133 = vld [vmem:[%s1 + $0x1b8] sm:$0xff]
    %v3134 = vld [vmem:[%s1 + $0x1c0] sm:$0xff]
    %v3135 = vld [vmem:[%s1 + $0x1c8] sm:$0xff]
    %v3136 = vld [vmem:[%s1 + $0x1d0] sm:$0xff]
    %v3137 = vld [vmem:[%s1 + $0x1d8] sm:$0xff]
    %v3138 = vld [vmem:[%s1 + $0x1e0] sm:$0xff]
    %v3139 = vld [vmem:[%s1 + $0x1e8] sm:$0xff]
    %v3140 = vld [vmem:[%s1 + $0x1f0] sm:$0xff]
    %v3141 = vld [vmem:[%s1 + $0x1f8] sm:$0xff]
    %v3142 = vld [vmem:[%s1 + $0x200] sm:$0xff]
    %v3143 = vld [vmem:[%s1 + $0x208] sm:$0xff]
    %v3144 = vld [vmem:[%s1 + $0x210] sm:$0xff]
    %v3145 = vld [vmem:[%s1 + $0x218] sm:$0xff]
    %v3146 = vld [vmem:[%s1 + $0x220] sm:$0xff]
    %v3147 = vld [vmem:[%s1 + $0x228] sm:$0xff]
    %v3148 = vld [vmem:[%s1 + $0x230] sm:$0xff]
    %v3149 = vld [vmem:[%s1 + $0x238] sm:$0xff]
    %v3150 = vld [vmem:[%s1 + $0x240] sm:$0xff]
    %v3151 = vld [vmem:[%s1 + $0x248] sm:$0xff]
    %v3152 = vld [vmem:[%s1 + $0x250] sm:$0xff]
    %v3153 = vld [vmem:[%s1 + $0x258] sm:$0xff]
    %v3154 = vld [vmem:[%s1 + $0x260] sm:$0xff]
    %v3155 = vld [vmem:[%s1 + $0x268] sm:$0xff]
    %v3156 = vld [vmem:[%s1 + $0x270] sm:$0xff]
    %v3157 = vld [vmem:[%s1 + $0x278] sm:$0xff]
    %v3158 = vld [vmem:[%s1 + $0x280] sm:$0xff]
    %v3159 = vld [vmem:[%s1 + $0x288] sm:$0xff]
    %v3160 = vld [vmem:[%s1 + $0x290] sm:$0xff]
    %v3161 = vld [vmem:[%s1 + $0x298] sm:$0xff]
    %v3162 = vld [vmem:[%s1 + $0x2a0] sm:$0xff]
    %v3163 = vld [vmem:[%s1 + $0x2a8] sm:$0xff]
    %v3164 = vld [vmem:[%s1 + $0x2b0] sm:$0xff]
    %v3165 = vld [vmem:[%s1 + $0x2b8] sm:$0xff]
    %v3166 = vld [vmem:[%s1 + $0x2c0] sm:$0xff]
    %v3167 = vld [vmem:[%s1 + $0x2c8] sm:$0xff]
    %v3168 = vld [vmem:[%s1 + $0x2d0] sm:$0xff]
    %v3169 = vld [vmem:[%s1 + $0x2d8] sm:$0xff]
    %v3170 = vld [vmem:[%s1 + $0x2e0] sm:$0xff]
    %v3171 = vld [vmem:[%s1 + $0x2e8] sm:$0xff]
    %v3172 = vld [vmem:[%s1 + $0x2f0] sm:$0xff]
    %v3173 = vld [vmem:[%s1 + $0x2f8] sm:$0xff]
    %v3174 = vld [vmem:[%s1 + $0x300] sm:$0xff]
    %v3175 = vld [vmem:[%s1 + $0x308] sm:$0xff]
    %v3176 = vld [vmem:[%s1 + $0x310] sm:$0xff]
    %v3177 = vld [vmem:[%s1 + $0x318] sm:$0xff]
    %v3178 = vld [vmem:[%s1 + $0x320] sm:$0xff]
    %v3179 = vld [vmem:[%s1 + $0x328] sm:$0xff]
    %v3180 = vld [vmem:[%s1 + $0x330] sm:$0xff]
    %v3181 = vld [vmem:[%s1 + $0x338] sm:$0xff]
    %v3182 = vld [vmem:[%s1 + $0x340] sm:$0xff]
    %v3183 = vld [vmem:[%s1 + $0x348] sm:$0xff]
    %v3184 = vld [vmem:[%s1 + $0x350] sm:$0xff]
    %v3185 = vld [vmem:[%s1 + $0x358] sm:$0xff]
    %v3186 = vld [vmem:[%s1 + $0x360] sm:$0xff]
    %v3187 = vld [vmem:[%s1 + $0x368] sm:$0xff]
    %v3188 = vld [vmem:[%s1 + $0x370] sm:$0xff]
    %v3189 = vld [vmem:[%s1 + $0x378] sm:$0xff]
    %v3190 = vld [vmem:[%s1 + $0x380] sm:$0xff]
    %v3191 = vld [vmem:[%s1 + $0x388] sm:$0xff]
    %v3192 = vld [vmem:[%s1 + $0x390] sm:$0xff]
    %v3193 = vld [vmem:[%s1 + $0x398] sm:$0xff]
    %v3194 = vld [vmem:[%s1 + $0x3a0] sm:$0xff]
    %v3195 = vld [vmem:[%s1 + $0x3a8] sm:$0xff]
    %v3196 = vld [vmem:[%s1 + $0x3b0] sm:$0xff]
    %v3197 = vld [vmem:[%s1 + $0x3b8] sm:$0xff]
    %v3198 = vld [vmem:[%s1 + $0x3c0] sm:$0xff]
    %v3199 = vld [vmem:[%s1 + $0x3c8] sm:$0xff]
    %v3200 = vld [vmem:[%s1 + $0x3d0] sm:$0xff]
    %v3201 = vld [vmem:[%s1 + $0x3d8] sm:$0xff]
    %v3202 = vld [vmem:[%s1 + $0x3e0] sm:$0xff]
    %v3203 = vld [vmem:[%s1 + $0x3e8] sm:$0xff]
    %v3204 = vld [vmem:[%s1 + $0x3f0] sm:$0xff]
    %v3205 = vld [vmem:[%s1 + $0x3f8] sm:$0xff]
    %v3206 = vld [vmem:[%s1 + $0x400] sm:$0xff]
    %v3207 = vld [vmem:[%s1 + $0x408] sm:$0xff]
    %v3208 = vld [vmem:[%s1 + $0x410] sm:$0xff]
    %v3209 = vld [vmem:[%s1 + $0x418] sm:$0xff]
    %v3210 = vld [vmem:[%s1 + $0x420] sm:$0xff]
    %v3211 = vld [vmem:[%s1 + $0x428] sm:$0xff]
    %v3212 = vld [vmem:[%s1 + $0x430] sm:$0xff]
    %v3213 = vld [vmem:[%s1 + $0x438] sm:$0xff]
    %v3214 = vld [vmem:[%s1 + $0x440] sm:$0xff]
    %v3215 = vld [vmem:[%s1 + $0x448] sm:$0xff]
    %v3216 = vld [vmem:[%s1 + $0x450] sm:$0xff]
    %v3217 = vld [vmem:[%s1 + $0x458] sm:$0xff]
    %v3218 = vld [vmem:[%s1 + $0x460] sm:$0xff]
    %v3219 = vld [vmem:[%s1 + $0x468] sm:$0xff]
    %v3220 = vld [vmem:[%s1 + $0x470] sm:$0xff]
    %v3221 = vld [vmem:[%s1 + $0x478] sm:$0xff]
    %v3222 = vld [vmem:[%s1 + $0x480] sm:$0xff]
    %v3223 = vld [vmem:[%s1 + $0x488] sm:$0xff]
    %v3224 = vld [vmem:[%s1 + $0x490] sm:$0xff]
    %v3225 = vld [vmem:[%s1 + $0x498] sm:$0xff]
    %v3226 = vld [vmem:[%s1 + $0x4a0] sm:$0xff]
    %v3227 = vld [vmem:[%s1 + $0x4a8] sm:$0xff]
    %v3228 = vld [vmem:[%s1 + $0x4b0] sm:$0xff]
    %v3229 = vld [vmem:[%s1 + $0x4b8] sm:$0xff]
    %v3230 = vld [vmem:[%s1 + $0x4c0] sm:$0xff]
    %v3231 = vld [vmem:[%s1 + $0x4c8] sm:$0xff]
    %v3232 = vld [vmem:[%s1 + $0x4d0] sm:$0xff]
    %v3233 = vld [vmem:[%s1 + $0x4d8] sm:$0xff]
    %v3234 = vld [vmem:[%s1 + $0x4e0] sm:$0xff]
    %v3235 = vld [vmem:[%s1 + $0x4e8] sm:$0xff]
    %v3236 = vld [vmem:[%s1 + $0x4f0] sm:$0xff]
    %v3237 = vld [vmem:[%s1 + $0x4f8] sm:$0xff]
    %v3238 = vld [vmem:[%s1 + $0x500] sm:$0xff]
    %v3239 = vld [vmem:[%s1 + $0x508] sm:$0xff]
    %v3240 = vld [vmem:[%s1 + $0x510] sm:$0xff]
    %v3241 = vld [vmem:[%s1 + $0x518] sm:$0xff]
    %v3242 = vld [vmem:[%s1 + $0x520] sm:$0xff]
    %v3243 = vld [vmem:[%s1 + $0x528] sm:$0xff]
    %v3244 = vld [vmem:[%s1 + $0x530] sm:$0xff]
    %v3245 = vld [vmem:[%s1 + $0x538] sm:$0xff]
    %v3246 = vld [vmem:[%s1 + $0x540] sm:$0xff]
    %v3247 = vld [vmem:[%s1 + $0x548] sm:$0xff]
    %v3248 = vld [vmem:[%s1 + $0x550] sm:$0xff]
    %v3249 = vld [vmem:[%s1 + $0x558] sm:$0xff]
    %v3250 = vld [vmem:[%s1 + $0x560] sm:$0xff]
    %v3251 = vld [vmem:[%s1 + $0x568] sm:$0xff]
    %v3252 = vld [vmem:[%s1 + $0x570] sm:$0xff]
    %v3253 = vld [vmem:[%s1 + $0x578] sm:$0xff]
    %v3254 = vld [vmem:[%s1 + $0x580] sm:$0xff]
    %v3255 = vld [vmem:[%s1 + $0x588] sm:$0xff]
    %v3256 = vld [vmem:[%s1 + $0x590] sm:$0xff]
    %v3257 = vld [vmem:[%s1 + $0x598] sm:$0xff]
    %v3258 = vld [vmem:[%s1 + $0x5a0] sm:$0xff]
    %v3259 = vld [vmem:[%s1 + $0x5a8] sm:$0xff]
    %v3260 = vld [vmem:[%s1 + $0x5b0] sm:$0xff]
    %v3261 = vld [vmem:[%s1 + $0x5b8] sm:$0xff]
    %v3262 = vld [vmem:[%s1 + $0x5c0] sm:$0xff]
    %v3263 = vld [vmem:[%s1 + $0x5c8] sm:$0xff]
    %v3264 = vld [vmem:[%s1 + $0x5d0] sm:$0xff]
    %v3265 = vld [vmem:[%s1 + $0x5d8] sm:$0xff]
    %v3266 = vld [vmem:[%s1 + $0x5e0] sm:$0xff]
    %v3267 = vld [vmem:[%s1 + $0x5e8] sm:$0xff]
    %v3268 = vld [vmem:[%s1 + $0x5f0] sm:$0xff]
    %v3269 = vld [vmem:[%s1 + $0x5f8] sm:$0xff]
    %v3270 = vld [vmem:[%s1 + $0x600] sm:$0xff]
    %v3271 = vld [vmem:[%s1 + $0x608] sm:$0xff]
    %v3272 = vld [vmem:[%s1 + $0x610] sm:$0xff]
    %v3273 = vld [vmem:[%s1 + $0x618] sm:$0xff]
    %v3274 = vld [vmem:[%s1 + $0x620] sm:$0xff]
    %v3275 = vld [vmem:[%s1 + $0x628] sm:$0xff]
    %v3276 = vld [vmem:[%s1 + $0x630] sm:$0xff]
    %v3277 = vld [vmem:[%s1 + $0x638] sm:$0xff]
    %v3278 = vld [vmem:[%s1 + $0x640] sm:$0xff]
    %v3279 = vld [vmem:[%s1 + $0x648] sm:$0xff]
    %v3280 = vld [vmem:[%s1 + $0x650] sm:$0xff]
    %v3281 = vld [vmem:[%s1 + $0x658] sm:$0xff]
    %v3282 = vld [vmem:[%s1 + $0x660] sm:$0xff]
    %v3283 = vld [vmem:[%s1 + $0x668] sm:$0xff]
    %v3284 = vld [vmem:[%s1 + $0x670] sm:$0xff]
    %v3285 = vld [vmem:[%s1 + $0x678] sm:$0xff]
    %v3286 = vld [vmem:[%s1 + $0x680] sm:$0xff]
    %v3287 = vld [vmem:[%s1 + $0x688] sm:$0xff]
    %v3288 = vld [vmem:[%s1 + $0x690] sm:$0xff]
    %v3289 = vld [vmem:[%s1 + $0x698] sm:$0xff]
    %v3290 = vld [vmem:[%s1 + $0x6a0] sm:$0xff]
    %v3291 = vld [vmem:[%s1 + $0x6a8] sm:$0xff]
    %v3292 = vld [vmem:[%s1 + $0x6b0] sm:$0xff]
    %v3293 = vld [vmem:[%s1 + $0x6b8] sm:$0xff]
    %v3294 = vld [vmem:[%s1 + $0x6c0] sm:$0xff]
    %v3295 = vld [vmem:[%s1 + $0x6c8] sm:$0xff]
    %v3296 = vld [vmem:[%s1 + $0x6d0] sm:$0xff]
    %v3297 = vld [vmem:[%s1 + $0x6d8] sm:$0xff]
    %v3298 = vld [vmem:[%s1 + $0x6e0] sm:$0xff]
    %v3299 = vld [vmem:[%s1 + $0x6e8] sm:$0xff]
    %v3300 = vld [vmem:[%s1 + $0x6f0] sm:$0xff]
    %v3301 = vld [vmem:[%s1 + $0x6f8] sm:$0xff]
    %v3302 = vld [vmem:[%s1 + $0x700] sm:$0xff]
    %v3303 = vld [vmem:[%s1 + $0x708] sm:$0xff]
    %v3304 = vld [vmem:[%s1 + $0x710] sm:$0xff]
    %v3305 = vld [vmem:[%s1 + $0x718] sm:$0xff]
    %v3306 = vld [vmem:[%s1 + $0x720] sm:$0xff]
    %v3307 = vld [vmem:[%s1 + $0x728] sm:$0xff]
    %v3308 = vld [vmem:[%s1 + $0x730] sm:$0xff]
    %v3309 = vld [vmem:[%s1 + $0x738] sm:$0xff]
    %v3310 = vld [vmem:[%s1 + $0x740] sm:$0xff]
    %v3311 = vld [vmem:[%s1 + $0x748] sm:$0xff]
    %v3312 = vld [vmem:[%s1 + $0x750] sm:$0xff]
    %v3313 = vld [vmem:[%s1 + $0x758] sm:$0xff]
    %v3314 = vld [vmem:[%s1 + $0x760] sm:$0xff]
    %v3315 = vld [vmem:[%s1 + $0x768] sm:$0xff]
    %v3316 = vld [vmem:[%s1 + $0x770] sm:$0xff]
    %v3317 = vld [vmem:[%s1 + $0x778] sm:$0xff]
    %v3318 = vld [vmem:[%s1 + $0x780] sm:$0xff]
    %v3319 = vld [vmem:[%s1 + $0x788] sm:$0xff]
    %v3320 = vld [vmem:[%s1 + $0x790] sm:$0xff]
    %v3321 = vld [vmem:[%s1 + $0x798] sm:$0xff]
    %v3322 = vld [vmem:[%s1 + $0x7a0] sm:$0xff]
    %v3323 = vld [vmem:[%s1 + $0x7a8] sm:$0xff]
    %v3324 = vld [vmem:[%s1 + $0x7b0] sm:$0xff]
    %v3325 = vld [vmem:[%s1 + $0x7b8] sm:$0xff]
    %v3326 = vld [vmem:[%s1 + $0x7c0] sm:$0xff]
    %v3327 = vld [vmem:[%s1 + $0x7c8] sm:$0xff]
    %v3328 = vld [vmem:[%s1 + $0x7d0] sm:$0xff]
    %v3329 = vld [vmem:[%s1 + $0x7d8] sm:$0xff]
    %v3330 = vld [vmem:[%s1 + $0x7e0] sm:$0xff]
    %v3331 = vld [vmem:[%s1 + $0x7e8] sm:$0xff]
    %v3332 = vld [vmem:[%s1 + $0x7f0] sm:$0xff]
    %v3333 = vld [vmem:[%s1 + $0x7f8] sm:$0xff]
    %3334 = vmatprep.subr.mxu0 %v3079
    %3335 = vmatpush1.msra.mxu0 %v3078
    %3336 = vmatprep.subr.mxu0 %v3087
    %3337 = vmatpush1.msra.mxu0 %v3086
    %3338 = vmatprep.subr.mxu0 %v3095
    %3339 = vmatpush1.msra.mxu0 %v3094
    %3340 = vmatprep.subr.mxu0 %v3103
    %3341 = vmatpush1.msra.mxu0 %v3102
    %3342 = vmatprep.subr.mxu0 %v3111
    %3343 = vmatpush1.msra.mxu0 %v3110
    %3344 = vmatprep.subr.mxu0 %v3119
    %3345 = vmatpush1.msra.mxu0 %v3118
    %3346 = vmatprep.subr.mxu0 %v3127
    %3347 = vmatpush1.msra.mxu0 %v3126
    %3348 = vmatprep.subr.mxu0 %v3135
    %3349 = vmatpush1.msra.mxu0 %v3134
    %3350 = vmatprep.subr.mxu0 %v3143
    %3351 = vmatpush1.msra.mxu0 %v3142
    %3352 = vmatprep.subr.mxu0 %v3151
    %3353 = vmatpush1.msra.mxu0 %v3150
    %3354 = vmatprep.subr.mxu0 %v3159
    %3355 = vmatpush1.msra.mxu0 %v3158
    %3356 = vmatprep.subr.mxu0 %v3167
    %3357 = vmatpush1.msra.mxu0 %v3166
    %3358 = vmatprep.subr.mxu0 %v3175
    %3359 = vmatpush1.msra.mxu0 %v3174
    %3360 = vmatprep.subr.mxu0 %v3183
    %3361 = vmatpush1.msra.mxu0 %v3182
    %3362 = vmatprep.subr.mxu0 %v3191
    %3363 = vmatpush1.msra.mxu0 %v3190
    %3364 = vmatprep.subr.mxu0 %v3199
    %3365 = vmatpush1.msra.mxu0 %v3198
    %3366 = vmatprep.subr.mxu0 %v3207
    %3367 = vmatpush1.msra.mxu0 %v3206
    %3368 = vmatprep.subr.mxu0 %v3215
    %3369 = vmatpush1.msra.mxu0 %v3214
    %3370 = vmatprep.subr.mxu0 %v3223
    %3371 = vmatpush1.msra.mxu0 %v3222
    %3372 = vmatprep.subr.mxu0 %v3231
    %3373 = vmatpush1.msra.mxu0 %v3230
    %3374 = vmatprep.subr.mxu0 %v3239
    %3375 = vmatpush1.msra.mxu0 %v3238
    %3376 = vmatprep.subr.mxu0 %v3247
    %3377 = vmatpush1.msra.mxu0 %v3246
    %3378 = vmatprep.subr.mxu0 %v3255
    %3379 = vmatpush1.msra.mxu0 %v3254
    %3380 = vmatprep.subr.mxu0 %v3263
    %3381 = vmatpush1.msra.mxu0 %v3262
    %3382 = vmatprep.subr.mxu0 %v3271
    %3383 = vmatpush1.msra.mxu0 %v3270
    %3384 = vmatprep.subr.mxu0 %v3279
    %3385 = vmatpush1.msra.mxu0 %v3278
    %3386 = vmatprep.subr.mxu0 %v3287
    %3387 = vmatpush1.msra.mxu0 %v3286
    %3388 = vmatprep.subr.mxu0 %v3295
    %3389 = vmatpush1.msra.mxu0 %v3294
    %3390 = vmatprep.subr.mxu0 %v3303
    %3391 = vmatpush1.msra.mxu0 %v3302
    %3392 = vmatprep.subr.mxu0 %v3311
    %3393 = vmatpush1.msra.mxu0 %v3310
    %3394 = vmatprep.subr.mxu0 %v3319
    %3395 = vmatpush1.msra.mxu0 %v3318
    %3396 = vmatprep.subr.mxu0 %v3327
    %3397 = vmatpush1.msra.mxu0 %v3326
    %3398 = vmatprep.mubr.f32.mxu0 %v3067
    %3399 = vmatmul.mubr.f32.gmra.mrb[0].mxu0 %v3066
    %v3400 = vpop.f32.mrb[0].mxu0
    %v3401 = vadd.f32 0.0, %v3400
    %v3402 = vpop.f32.mrb[0].mxu0
    %v3403 = vadd.f32 0.0, %v3402
    %3404 = vdwg.mxu0
    %3405 = vmatprep.subr.mxu0 %v3081
    %3406 = vmatpush1.msra.mxu0 %v3080
    %3407 = vmatprep.subr.mxu0 %v3089
    %3408 = vmatpush1.msra.mxu0 %v3088
    %3409 = vmatprep.subr.mxu0 %v3097
    %3410 = vmatpush1.msra.mxu0 %v3096
    %3411 = vmatprep.subr.mxu0 %v3105
    %3412 = vmatpush1.msra.mxu0 %v3104
    %3413 = vmatprep.subr.mxu0 %v3113
    %3414 = vmatpush1.msra.mxu0 %v3112
    %3415 = vmatprep.subr.mxu0 %v3121
    %3416 = vmatpush1.msra.mxu0 %v3120
    %3417 = vmatprep.subr.mxu0 %v3129
    %3418 = vmatpush1.msra.mxu0 %v3128
    %3419 = vmatprep.subr.mxu0 %v3137
    %3420 = vmatpush1.msra.mxu0 %v3136
    %3421 = vmatprep.subr.mxu0 %v3145
    %3422 = vmatpush1.msra.mxu0 %v3144
    %3423 = vmatprep.subr.mxu0 %v3153
    %3424 = vmatpush1.msra.mxu0 %v3152
    %3425 = vmatprep.subr.mxu0 %v3161
    %3426 = vmatpush1.msra.mxu0 %v3160
    %3427 = vmatprep.subr.mxu0 %v3169
    %3428 = vmatpush1.msra.mxu0 %v3168
    %3429 = vmatprep.subr.mxu0 %v3177
    %3430 = vmatpush1.msra.mxu0 %v3176
    %3431 = vmatprep.subr.mxu0 %v3185
    %3432 = vmatpush1.msra.mxu0 %v3184
    %3433 = vmatprep.subr.mxu0 %v3193
    %3434 = vmatpush1.msra.mxu0 %v3192
    %3435 = vmatprep.subr.mxu0 %v3201
    %3436 = vmatpush1.msra.mxu0 %v3200
    %3437 = vmatprep.subr.mxu0 %v3209
    %3438 = vmatpush1.msra.mxu0 %v3208
    %3439 = vmatprep.subr.mxu0 %v3217
    %3440 = vmatpush1.msra.mxu0 %v3216
    %3441 = vmatprep.subr.mxu0 %v3225
    %3442 = vmatpush1.msra.mxu0 %v3224
    %3443 = vmatprep.subr.mxu0 %v3233
    %3444 = vmatpush1.msra.mxu0 %v3232
    %3445 = vmatprep.subr.mxu0 %v3241
    %3446 = vmatpush1.msra.mxu0 %v3240
    %3447 = vmatprep.subr.mxu0 %v3249
    %3448 = vmatpush1.msra.mxu0 %v3248
    %3449 = vmatprep.subr.mxu0 %v3257
    %3450 = vmatpush1.msra.mxu0 %v3256
    %3451 = vmatprep.subr.mxu0 %v3265
    %3452 = vmatpush1.msra.mxu0 %v3264
    %3453 = vmatprep.subr.mxu0 %v3273
    %3454 = vmatpush1.msra.mxu0 %v3272
    %3455 = vmatprep.subr.mxu0 %v3281
    %3456 = vmatpush1.msra.mxu0 %v3280
    %3457 = vmatprep.subr.mxu0 %v3289
    %3458 = vmatpush1.msra.mxu0 %v3288
    %3459 = vmatprep.subr.mxu0 %v3297
    %3460 = vmatpush1.msra.mxu0 %v3296
    %3461 = vmatprep.subr.mxu0 %v3305
    %3462 = vmatpush1.msra.mxu0 %v3304
    %3463 = vmatprep.subr.mxu0 %v3313
    %3464 = vmatpush1.msra.mxu0 %v3312
    %3465 = vmatprep.subr.mxu0 %v3321
    %3466 = vmatpush1.msra.mxu0 %v3320
    %3467 = vmatprep.subr.mxu0 %v3329
    %3468 = vmatpush1.msra.mxu0 %v3328
    %3469 = vmatprep.mubr.f32.mxu0 %v3067
    %3470 = vmatmul.mubr.f32.gmra.mrb[0].mxu0 %v3066
    %v3471 = vpop.f32.mrb[0].mxu0
    %v3472 = vadd.f32 0.0, %v3471
    %v3473 = vpop.f32.mrb[0].mxu0
    %v3474 = vadd.f32 0.0, %v3473
    %3475 = vdwg.mxu0
    %3476 = vmatprep.subr.mxu0 %v3083
    %3477 = vmatpush1.msra.mxu0 %v3082
    %3478 = vmatprep.subr.mxu0 %v3091
    %3479 = vmatpush1.msra.mxu0 %v3090
    %3480 = vmatprep.subr.mxu0 %v3099
    %3481 = vmatpush1.msra.mxu0 %v3098
    %3482 = vmatprep.subr.mxu0 %v3107
    %3483 = vmatpush1.msra.mxu0 %v3106
    %3484 = vmatprep.subr.mxu0 %v3115
    %3485 = vmatpush1.msra.mxu0 %v3114
    %3486 = vmatprep.subr.mxu0 %v3123
    %3487 = vmatpush1.msra.mxu0 %v3122
    %3488 = vmatprep.subr.mxu0 %v3131
    %3489 = vmatpush1.msra.mxu0 %v3130
    %3490 = vmatprep.subr.mxu0 %v3139
    %3491 = vmatpush1.msra.mxu0 %v3138
    %3492 = vmatprep.subr.mxu0 %v3147
    %3493 = vmatpush1.msra.mxu0 %v3146
    %3494 = vmatprep.subr.mxu0 %v3155
    %3495 = vmatpush1.msra.mxu0 %v3154
    %3496 = vmatprep.subr.mxu0 %v3163
    %3497 = vmatpush1.msra.mxu0 %v3162
    %3498 = vmatprep.subr.mxu0 %v3171
    %3499 = vmatpush1.msra.mxu0 %v3170
    %3500 = vmatprep.subr.mxu0 %v3179
    %3501 = vmatpush1.msra.mxu0 %v3178
    %3502 = vmatprep.subr.mxu0 %v3187
    %3503 = vmatpush1.msra.mxu0 %v3186
    %3504 = vmatprep.subr.mxu0 %v3195
    %3505 = vmatpush1.msra.mxu0 %v3194
    %3506 = vmatprep.subr.mxu0 %v3203
    %3507 = vmatpush1.msra.mxu0 %v3202
    %3508 = vmatprep.subr.mxu0 %v3211
    %3509 = vmatpush1.msra.mxu0 %v3210
    %3510 = vmatprep.subr.mxu0 %v3219
    %3511 = vmatpush1.msra.mxu0 %v3218
    %3512 = vmatprep.subr.mxu0 %v3227
    %3513 = vmatpush1.msra.mxu0 %v3226
    %3514 = vmatprep.subr.mxu0 %v3235
    %3515 = vmatpush1.msra.mxu0 %v3234
    %3516 = vmatprep.subr.mxu0 %v3243
    %3517 = vmatpush1.msra.mxu0 %v3242
    %3518 = vmatprep.subr.mxu0 %v3251
    %3519 = vmatpush1.msra.mxu0 %v3250
    %3520 = vmatprep.subr.mxu0 %v3259
    %3521 = vmatpush1.msra.mxu0 %v3258
    %3522 = vmatprep.subr.mxu0 %v3267
    %3523 = vmatpush1.msra.mxu0 %v3266
    %3524 = vmatprep.subr.mxu0 %v3275
    %3525 = vmatpush1.msra.mxu0 %v3274
    %3526 = vmatprep.subr.mxu0 %v3283
    %3527 = vmatpush1.msra.mxu0 %v3282
    %3528 = vmatprep.subr.mxu0 %v3291
    %3529 = vmatpush1.msra.mxu0 %v3290
    %3530 = vmatprep.subr.mxu0 %v3299
    %3531 = vmatpush1.msra.mxu0 %v3298
    %3532 = vmatprep.subr.mxu0 %v3307
    %3533 = vmatpush1.msra.mxu0 %v3306
    %3534 = vmatprep.subr.mxu0 %v3315
    %3535 = vmatpush1.msra.mxu0 %v3314
    %3536 = vmatprep.subr.mxu0 %v3323
    %3537 = vmatpush1.msra.mxu0 %v3322
    %3538 = vmatprep.subr.mxu0 %v3331
    %3539 = vmatpush1.msra.mxu0 %v3330
    %3540 = vmatprep.mubr.f32.mxu0 %v3067
    %3541 = vmatmul.mubr.f32.gmra.mrb[0].mxu0 %v3066
    %v3542 = vpop.f32.mrb[0].mxu0
    %v3543 = vadd.f32 0.0, %v3542
    %v3544 = vpop.f32.mrb[0].mxu0
    %v3545 = vadd.f32 0.0, %v3544
    %3546 = vdwg.mxu0
    %3547 = vmatprep.subr.mxu0 %v3085
    %3548 = vmatpush1.msra.mxu0 %v3084
    %3549 = vmatprep.subr.mxu0 %v3093
    %3550 = vmatpush1.msra.mxu0 %v3092
    %3551 = vmatprep.subr.mxu0 %v3101
    %3552 = vmatpush1.msra.mxu0 %v3100
    %3553 = vmatprep.subr.mxu0 %v3109
    %3554 = vmatpush1.msra.mxu0 %v3108
    %3555 = vmatprep.subr.mxu0 %v3117
    %3556 = vmatpush1.msra.mxu0 %v3116
    %3557 = vmatprep.subr.mxu0 %v3125
    %3558 = vmatpush1.msra.mxu0 %v3124
    %3559 = vmatprep.subr.mxu0 %v3133
    %3560 = vmatpush1.msra.mxu0 %v3132
    %3561 = vmatprep.subr.mxu0 %v3141
    %3562 = vmatpush1.msra.mxu0 %v3140
    %3563 = vmatprep.subr.mxu0 %v3149
    %3564 = vmatpush1.msra.mxu0 %v3148
    %3565 = vmatprep.subr.mxu0 %v3157
    %3566 = vmatpush1.msra.mxu0 %v3156
    %3567 = vmatprep.subr.mxu0 %v3165
    %3568 = vmatpush1.msra.mxu0 %v3164
    %3569 = vmatprep.subr.mxu0 %v3173
    %3570 = vmatpush1.msra.mxu0 %v3172
    %3571 = vmatprep.subr.mxu0 %v3181
    %3572 = vmatpush1.msra.mxu0 %v3180
    %3573 = vmatprep.subr.mxu0 %v3189
    %3574 = vmatpush1.msra.mxu0 %v3188
    %3575 = vmatprep.subr.mxu0 %v3197
    %3576 = vmatpush1.msra.mxu0 %v3196
    %3577 = vmatprep.subr.mxu0 %v3205
    %3578 = vmatpush1.msra.mxu0 %v3204
    %3579 = vmatprep.subr.mxu0 %v3213
    %3580 = vmatpush1.msra.mxu0 %v3212
    %3581 = vmatprep.subr.mxu0 %v3221
    %3582 = vmatpush1.msra.mxu0 %v3220
    %3583 = vmatprep.subr.mxu0 %v3229
    %3584 = vmatpush1.msra.mxu0 %v3228
    %3585 = vmatprep.subr.mxu0 %v3237
    %3586 = vmatpush1.msra.mxu0 %v3236
    %3587 = vmatprep.subr.mxu0 %v3245
    %3588 = vmatpush1.msra.mxu0 %v3244
    %3589 = vmatprep.subr.mxu0 %v3253
    %3590 = vmatpush1.msra.mxu0 %v3252
    %3591 = vmatprep.subr.mxu0 %v3261
    %3592 = vmatpush1.msra.mxu0 %v3260
    %3593 = vmatprep.subr.mxu0 %v3269
    %3594 = vmatpush1.msra.mxu0 %v3268
    %3595 = vmatprep.subr.mxu0 %v3277
    %3596 = vmatpush1.msra.mxu0 %v3276
    %3597 = vmatprep.subr.mxu0 %v3285
    %3598 = vmatpush1.msra.mxu0 %v3284
    %3599 = vmatprep.subr.mxu0 %v3293
    %3600 = vmatpush1.msra.mxu0 %v3292
    %3601 = vmatprep.subr.mxu0 %v3301
    %3602 = vmatpush1.msra.mxu0 %v3300
    %3603 = vmatprep.subr.mxu0 %v3309
    %3604 = vmatpush1.msra.mxu0 %v3308
    %3605 = vmatprep.subr.mxu0 %v3317
    %3606 = vmatpush1.msra.mxu0 %v3316
    %3607 = vmatprep.subr.mxu0 %v3325
    %3608 = vmatpush1.msra.mxu0 %v3324
    %3609 = vmatprep.subr.mxu0 %v3333
    %3610 = vmatpush1.msra.mxu0 %v3332
    %3611 = vmatprep.mubr.f32.mxu0 %v3067
    %3612 = vmatmul.mubr.f32.gmra.mrb[0].mxu0 %v3066
    %v3613 = vpop.f32.mrb[0].mxu0
    %v3614 = vadd.f32 0.0, %v3613
    %v3615 = vpop.f32.mrb[0].mxu0
    %v3616 = vadd.f32 0.0, %v3615
    %3617 = vdwg.mxu0
    %v3618 = vadd.f32 %v3070, %v3401
    %v3619 = vadd.f32 %v3071, %v3403
    %v3620 = vadd.f32 %v3072, %v3472
    %v3621 = vadd.f32 %v3073, %v3474
    %v3622 = vadd.f32 %v3074, %v3543
    %v3623 = vadd.f32 %v3075, %v3545
    %v3624 = vadd.f32 %v3076, %v3614
    %v3625 = vadd.f32 %v3077, %v3616
    %v3626 = vxor.u32 %v3618, 2147483648
    %v3627 = vxor.u32 %v3619, 2147483648
    %v3628 = vmul.f32 %v3626, 1.442695
    %v3629 = vpow.pop %v3628
    %v3630 = vmul.f32 %v3627, 1.442695
    %v3631 = vpow.pop %v3630
    %v3632 = vadd.f32 %v3629, 1.0
    %v3633 = vadd.f32 %v3631, 1.0
    %v3634 = vrcp.pop %v3632
    %v3635 = vmul.f32 1.0, %v3634
    %v3636 = vrcp.pop %v3633
    %v3637 = vmul.f32 1.0, %v3636
    %v3638 = vxor.u32 %v3620, 2147483648
    %v3639 = vxor.u32 %v3621, 2147483648
    %v3640 = vmul.f32 %v3638, 1.442695
    %v3641 = vpow.pop %v3640
    %v3642 = vmul.f32 %v3639, 1.442695
    %v3643 = vpow.pop %v3642
    %v3644 = vadd.f32 %v3641, 1.0
    %v3645 = vadd.f32 %v3643, 1.0
    %v3646 = vrcp.pop %v3644
    %v3647 = vmul.f32 1.0, %v3646
    %v3648 = vrcp.pop %v3645
    %v3649 = vmul.f32 1.0, %v3648
    %v3650 = vtanh.pop %v3622
    %v3651 = vtanh.pop %v3623
    %v3652 = vxor.u32 %v3624, 2147483648
    %v3653 = vxor.u32 %v3625, 2147483648
    %v3654 = vmul.f32 %v3652, 1.442695
    %v3655 = vpow.pop %v3654
    %v3656 = vmul.f32 %v3653, 1.442695
    %v3657 = vpow.pop %v3656
    %v3658 = vadd.f32 %v3655, 1.0
    %v3659 = vadd.f32 %v3657, 1.0
    %v3660 = vrcp.pop %v3658
    %v3661 = vmul.f32 1.0, %v3660
    %v3662 = vrcp.pop %v3659
    %v3663 = vmul.f32 1.0, %v3662
    %v3664 = vmul.f32 %v3647, %v3062
    %v3665 = vmul.f32 %v3649, %v3063
    %v3666 = vmul.f32 %v3635, %v3650
    %v3667 = vmul.f32 %v3637, %v3651
    %v3668 = vadd.f32 %v3664, %v3666
    %v3669 = vadd.f32 %v3665, %v3667
    %v3670 = vtanh.pop %v3668
    %v3671 = vtanh.pop %v3669
    %v3672 = vmul.f32 %v3661, %v3670
    %v3673 = vmul.f32 %v3663, %v3671
    %3674 = vst [vmem:[#allocation2 + $0x50] sm:$0xff] %v3672
    %3675 = vst [vmem:[#allocation2 + $0x58] sm:$0xff] %v3673
    %v3676 = vld [vmem:[%s0 + $0x180] sm:$0xff]
    %v3677 = vld [vmem:[%s0 + $0x188] sm:$0xff]
    %v3678 = vld [vmem:[%s0 + $0x190] sm:$0xff]
    %v3679 = vld [vmem:[%s0 + $0x198] sm:$0xff]
    %v3680 = vld [vmem:[%s0 + $0x1a0] sm:$0xff]
    %v3681 = vld [vmem:[%s0 + $0x1a8] sm:$0xff]
    %v3682 = vld [vmem:[%s0 + $0x1b0] sm:$0xff]
    %v3683 = vld [vmem:[%s0 + $0x1b8] sm:$0xff]
    %v3684 = vld [vmem:[%s1] sm:$0xff]
    %v3685 = vld [vmem:[%s1 + $0x8] sm:$0xff]
    %v3686 = vld [vmem:[%s1 + $0x10] sm:$0xff]
    %v3687 = vld [vmem:[%s1 + $0x18] sm:$0xff]
    %v3688 = vld [vmem:[%s1 + $0x20] sm:$0xff]
    %v3689 = vld [vmem:[%s1 + $0x28] sm:$0xff]
    %v3690 = vld [vmem:[%s1 + $0x30] sm:$0xff]
    %v3691 = vld [vmem:[%s1 + $0x38] sm:$0xff]
    %v3692 = vld [vmem:[%s1 + $0x40] sm:$0xff]
    %v3693 = vld [vmem:[%s1 + $0x48] sm:$0xff]
    %v3694 = vld [vmem:[%s1 + $0x50] sm:$0xff]
    %v3695 = vld [vmem:[%s1 + $0x58] sm:$0xff]
    %v3696 = vld [vmem:[%s1 + $0x60] sm:$0xff]
    %v3697 = vld [vmem:[%s1 + $0x68] sm:$0xff]
    %v3698 = vld [vmem:[%s1 + $0x70] sm:$0xff]
    %v3699 = vld [vmem:[%s1 + $0x78] sm:$0xff]
    %v3700 = vld [vmem:[%s1 + $0x80] sm:$0xff]
    %v3701 = vld [vmem:[%s1 + $0x88] sm:$0xff]
    %v3702 = vld [vmem:[%s1 + $0x90] sm:$0xff]
    %v3703 = vld [vmem:[%s1 + $0x98] sm:$0xff]
    %v3704 = vld [vmem:[%s1 + $0xa0] sm:$0xff]
    %v3705 = vld [vmem:[%s1 + $0xa8] sm:$0xff]
    %v3706 = vld [vmem:[%s1 + $0xb0] sm:$0xff]
    %v3707 = vld [vmem:[%s1 + $0xb8] sm:$0xff]
    %v3708 = vld [vmem:[%s1 + $0xc0] sm:$0xff]
    %v3709 = vld [vmem:[%s1 + $0xc8] sm:$0xff]
    %v3710 = vld [vmem:[%s1 + $0xd0] sm:$0xff]
    %v3711 = vld [vmem:[%s1 + $0xd8] sm:$0xff]
    %v3712 = vld [vmem:[%s1 + $0xe0] sm:$0xff]
    %v3713 = vld [vmem:[%s1 + $0xe8] sm:$0xff]
    %v3714 = vld [vmem:[%s1 + $0xf0] sm:$0xff]
    %v3715 = vld [vmem:[%s1 + $0xf8] sm:$0xff]
    %v3716 = vld [vmem:[%s1 + $0x100] sm:$0xff]
    %v3717 = vld [vmem:[%s1 + $0x108] sm:$0xff]
    %v3718 = vld [vmem:[%s1 + $0x110] sm:$0xff]
    %v3719 = vld [vmem:[%s1 + $0x118] sm:$0xff]
    %v3720 = vld [vmem:[%s1 + $0x120] sm:$0xff]
    %v3721 = vld [vmem:[%s1 + $0x128] sm:$0xff]
    %v3722 = vld [vmem:[%s1 + $0x130] sm:$0xff]
    %v3723 = vld [vmem:[%s1 + $0x138] sm:$0xff]
    %v3724 = vld [vmem:[%s1 + $0x140] sm:$0xff]
    %v3725 = vld [vmem:[%s1 + $0x148] sm:$0xff]
    %v3726 = vld [vmem:[%s1 + $0x150] sm:$0xff]
    %v3727 = vld [vmem:[%s1 + $0x158] sm:$0xff]
    %v3728 = vld [vmem:[%s1 + $0x160] sm:$0xff]
    %v3729 = vld [vmem:[%s1 + $0x168] sm:$0xff]
    %v3730 = vld [vmem:[%s1 + $0x170] sm:$0xff]
    %v3731 = vld [vmem:[%s1 + $0x178] sm:$0xff]
    %v3732 = vld [vmem:[%s1 + $0x180] sm:$0xff]
    %v3733 = vld [vmem:[%s1 + $0x188] sm:$0xff]
    %v3734 = vld [vmem:[%s1 + $0x190] sm:$0xff]
    %v3735 = vld [vmem:[%s1 + $0x198] sm:$0xff]
    %v3736 = vld [vmem:[%s1 + $0x1a0] sm:$0xff]
    %v3737 = vld [vmem:[%s1 + $0x1a8] sm:$0xff]
    %v3738 = vld [vmem:[%s1 + $0x1b0] sm:$0xff]
    %v3739 = vld [vmem:[%s1 + $0x1b8] sm:$0xff]
    %v3740 = vld [vmem:[%s1 + $0x1c0] sm:$0xff]
    %v3741 = vld [vmem:[%s1 + $0x1c8] sm:$0xff]
    %v3742 = vld [vmem:[%s1 + $0x1d0] sm:$0xff]
    %v3743 = vld [vmem:[%s1 + $0x1d8] sm:$0xff]
    %v3744 = vld [vmem:[%s1 + $0x1e0] sm:$0xff]
    %v3745 = vld [vmem:[%s1 + $0x1e8] sm:$0xff]
    %v3746 = vld [vmem:[%s1 + $0x1f0] sm:$0xff]
    %v3747 = vld [vmem:[%s1 + $0x1f8] sm:$0xff]
    %v3748 = vld [vmem:[%s1 + $0x200] sm:$0xff]
    %v3749 = vld [vmem:[%s1 + $0x208] sm:$0xff]
    %v3750 = vld [vmem:[%s1 + $0x210] sm:$0xff]
    %v3751 = vld [vmem:[%s1 + $0x218] sm:$0xff]
    %v3752 = vld [vmem:[%s1 + $0x220] sm:$0xff]
    %v3753 = vld [vmem:[%s1 + $0x228] sm:$0xff]
    %v3754 = vld [vmem:[%s1 + $0x230] sm:$0xff]
    %v3755 = vld [vmem:[%s1 + $0x238] sm:$0xff]
    %v3756 = vld [vmem:[%s1 + $0x240] sm:$0xff]
    %v3757 = vld [vmem:[%s1 + $0x248] sm:$0xff]
    %v3758 = vld [vmem:[%s1 + $0x250] sm:$0xff]
    %v3759 = vld [vmem:[%s1 + $0x258] sm:$0xff]
    %v3760 = vld [vmem:[%s1 + $0x260] sm:$0xff]
    %v3761 = vld [vmem:[%s1 + $0x268] sm:$0xff]
    %v3762 = vld [vmem:[%s1 + $0x270] sm:$0xff]
    %v3763 = vld [vmem:[%s1 + $0x278] sm:$0xff]
    %v3764 = vld [vmem:[%s1 + $0x280] sm:$0xff]
    %v3765 = vld [vmem:[%s1 + $0x288] sm:$0xff]
    %v3766 = vld [vmem:[%s1 + $0x290] sm:$0xff]
    %v3767 = vld [vmem:[%s1 + $0x298] sm:$0xff]
    %v3768 = vld [vmem:[%s1 + $0x2a0] sm:$0xff]
    %v3769 = vld [vmem:[%s1 + $0x2a8] sm:$0xff]
    %v3770 = vld [vmem:[%s1 + $0x2b0] sm:$0xff]
    %v3771 = vld [vmem:[%s1 + $0x2b8] sm:$0xff]
    %v3772 = vld [vmem:[%s1 + $0x2c0] sm:$0xff]
    %v3773 = vld [vmem:[%s1 + $0x2c8] sm:$0xff]
    %v3774 = vld [vmem:[%s1 + $0x2d0] sm:$0xff]
    %v3775 = vld [vmem:[%s1 + $0x2d8] sm:$0xff]
    %v3776 = vld [vmem:[%s1 + $0x2e0] sm:$0xff]
    %v3777 = vld [vmem:[%s1 + $0x2e8] sm:$0xff]
    %v3778 = vld [vmem:[%s1 + $0x2f0] sm:$0xff]
    %v3779 = vld [vmem:[%s1 + $0x2f8] sm:$0xff]
    %v3780 = vld [vmem:[%s1 + $0x300] sm:$0xff]
    %v3781 = vld [vmem:[%s1 + $0x308] sm:$0xff]
    %v3782 = vld [vmem:[%s1 + $0x310] sm:$0xff]
    %v3783 = vld [vmem:[%s1 + $0x318] sm:$0xff]
    %v3784 = vld [vmem:[%s1 + $0x320] sm:$0xff]
    %v3785 = vld [vmem:[%s1 + $0x328] sm:$0xff]
    %v3786 = vld [vmem:[%s1 + $0x330] sm:$0xff]
    %v3787 = vld [vmem:[%s1 + $0x338] sm:$0xff]
    %v3788 = vld [vmem:[%s1 + $0x340] sm:$0xff]
    %v3789 = vld [vmem:[%s1 + $0x348] sm:$0xff]
    %v3790 = vld [vmem:[%s1 + $0x350] sm:$0xff]
    %v3791 = vld [vmem:[%s1 + $0x358] sm:$0xff]
    %v3792 = vld [vmem:[%s1 + $0x360] sm:$0xff]
    %v3793 = vld [vmem:[%s1 + $0x368] sm:$0xff]
    %v3794 = vld [vmem:[%s1 + $0x370] sm:$0xff]
    %v3795 = vld [vmem:[%s1 + $0x378] sm:$0xff]
    %v3796 = vld [vmem:[%s1 + $0x380] sm:$0xff]
    %v3797 = vld [vmem:[%s1 + $0x388] sm:$0xff]
    %v3798 = vld [vmem:[%s1 + $0x390] sm:$0xff]
    %v3799 = vld [vmem:[%s1 + $0x398] sm:$0xff]
    %v3800 = vld [vmem:[%s1 + $0x3a0] sm:$0xff]
    %v3801 = vld [vmem:[%s1 + $0x3a8] sm:$0xff]
    %v3802 = vld [vmem:[%s1 + $0x3b0] sm:$0xff]
    %v3803 = vld [vmem:[%s1 + $0x3b8] sm:$0xff]
    %v3804 = vld [vmem:[%s1 + $0x3c0] sm:$0xff]
    %v3805 = vld [vmem:[%s1 + $0x3c8] sm:$0xff]
    %v3806 = vld [vmem:[%s1 + $0x3d0] sm:$0xff]
    %v3807 = vld [vmem:[%s1 + $0x3d8] sm:$0xff]
    %v3808 = vld [vmem:[%s1 + $0x3e0] sm:$0xff]
    %v3809 = vld [vmem:[%s1 + $0x3e8] sm:$0xff]
    %v3810 = vld [vmem:[%s1 + $0x3f0] sm:$0xff]
    %v3811 = vld [vmem:[%s1 + $0x3f8] sm:$0xff]
    %v3812 = vld [vmem:[%s1 + $0x400] sm:$0xff]
    %v3813 = vld [vmem:[%s1 + $0x408] sm:$0xff]
    %v3814 = vld [vmem:[%s1 + $0x410] sm:$0xff]
    %v3815 = vld [vmem:[%s1 + $0x418] sm:$0xff]
    %v3816 = vld [vmem:[%s1 + $0x420] sm:$0xff]
    %v3817 = vld [vmem:[%s1 + $0x428] sm:$0xff]
    %v3818 = vld [vmem:[%s1 + $0x430] sm:$0xff]
    %v3819 = vld [vmem:[%s1 + $0x438] sm:$0xff]
    %v3820 = vld [vmem:[%s1 + $0x440] sm:$0xff]
    %v3821 = vld [vmem:[%s1 + $0x448] sm:$0xff]
    %v3822 = vld [vmem:[%s1 + $0x450] sm:$0xff]
    %v3823 = vld [vmem:[%s1 + $0x458] sm:$0xff]
    %v3824 = vld [vmem:[%s1 + $0x460] sm:$0xff]
    %v3825 = vld [vmem:[%s1 + $0x468] sm:$0xff]
    %v3826 = vld [vmem:[%s1 + $0x470] sm:$0xff]
    %v3827 = vld [vmem:[%s1 + $0x478] sm:$0xff]
    %v3828 = vld [vmem:[%s1 + $0x480] sm:$0xff]
    %v3829 = vld [vmem:[%s1 + $0x488] sm:$0xff]
    %v3830 = vld [vmem:[%s1 + $0x490] sm:$0xff]
    %v3831 = vld [vmem:[%s1 + $0x498] sm:$0xff]
    %v3832 = vld [vmem:[%s1 + $0x4a0] sm:$0xff]
    %v3833 = vld [vmem:[%s1 + $0x4a8] sm:$0xff]
    %v3834 = vld [vmem:[%s1 + $0x4b0] sm:$0xff]
    %v3835 = vld [vmem:[%s1 + $0x4b8] sm:$0xff]
    %v3836 = vld [vmem:[%s1 + $0x4c0] sm:$0xff]
    %v3837 = vld [vmem:[%s1 + $0x4c8] sm:$0xff]
    %v3838 = vld [vmem:[%s1 + $0x4d0] sm:$0xff]
    %v3839 = vld [vmem:[%s1 + $0x4d8] sm:$0xff]
    %v3840 = vld [vmem:[%s1 + $0x4e0] sm:$0xff]
    %v3841 = vld [vmem:[%s1 + $0x4e8] sm:$0xff]
    %v3842 = vld [vmem:[%s1 + $0x4f0] sm:$0xff]
    %v3843 = vld [vmem:[%s1 + $0x4f8] sm:$0xff]
    %v3844 = vld [vmem:[%s1 + $0x500] sm:$0xff]
    %v3845 = vld [vmem:[%s1 + $0x508] sm:$0xff]
    %v3846 = vld [vmem:[%s1 + $0x510] sm:$0xff]
    %v3847 = vld [vmem:[%s1 + $0x518] sm:$0xff]
    %v3848 = vld [vmem:[%s1 + $0x520] sm:$0xff]
    %v3849 = vld [vmem:[%s1 + $0x528] sm:$0xff]
    %v3850 = vld [vmem:[%s1 + $0x530] sm:$0xff]
    %v3851 = vld [vmem:[%s1 + $0x538] sm:$0xff]
    %v3852 = vld [vmem:[%s1 + $0x540] sm:$0xff]
    %v3853 = vld [vmem:[%s1 + $0x548] sm:$0xff]
    %v3854 = vld [vmem:[%s1 + $0x550] sm:$0xff]
    %v3855 = vld [vmem:[%s1 + $0x558] sm:$0xff]
    %v3856 = vld [vmem:[%s1 + $0x560] sm:$0xff]
    %v3857 = vld [vmem:[%s1 + $0x568] sm:$0xff]
    %v3858 = vld [vmem:[%s1 + $0x570] sm:$0xff]
    %v3859 = vld [vmem:[%s1 + $0x578] sm:$0xff]
    %v3860 = vld [vmem:[%s1 + $0x580] sm:$0xff]
    %v3861 = vld [vmem:[%s1 + $0x588] sm:$0xff]
    %v3862 = vld [vmem:[%s1 + $0x590] sm:$0xff]
    %v3863 = vld [vmem:[%s1 + $0x598] sm:$0xff]
    %v3864 = vld [vmem:[%s1 + $0x5a0] sm:$0xff]
    %v3865 = vld [vmem:[%s1 + $0x5a8] sm:$0xff]
    %v3866 = vld [vmem:[%s1 + $0x5b0] sm:$0xff]
    %v3867 = vld [vmem:[%s1 + $0x5b8] sm:$0xff]
    %v3868 = vld [vmem:[%s1 + $0x5c0] sm:$0xff]
    %v3869 = vld [vmem:[%s1 + $0x5c8] sm:$0xff]
    %v3870 = vld [vmem:[%s1 + $0x5d0] sm:$0xff]
    %v3871 = vld [vmem:[%s1 + $0x5d8] sm:$0xff]
    %v3872 = vld [vmem:[%s1 + $0x5e0] sm:$0xff]
    %v3873 = vld [vmem:[%s1 + $0x5e8] sm:$0xff]
    %v3874 = vld [vmem:[%s1 + $0x5f0] sm:$0xff]
    %v3875 = vld [vmem:[%s1 + $0x5f8] sm:$0xff]
    %v3876 = vld [vmem:[%s1 + $0x600] sm:$0xff]
    %v3877 = vld [vmem:[%s1 + $0x608] sm:$0xff]
    %v3878 = vld [vmem:[%s1 + $0x610] sm:$0xff]
    %v3879 = vld [vmem:[%s1 + $0x618] sm:$0xff]
    %v3880 = vld [vmem:[%s1 + $0x620] sm:$0xff]
    %v3881 = vld [vmem:[%s1 + $0x628] sm:$0xff]
    %v3882 = vld [vmem:[%s1 + $0x630] sm:$0xff]
    %v3883 = vld [vmem:[%s1 + $0x638] sm:$0xff]
    %v3884 = vld [vmem:[%s1 + $0x640] sm:$0xff]
    %v3885 = vld [vmem:[%s1 + $0x648] sm:$0xff]
    %v3886 = vld [vmem:[%s1 + $0x650] sm:$0xff]
    %v3887 = vld [vmem:[%s1 + $0x658] sm:$0xff]
    %v3888 = vld [vmem:[%s1 + $0x660] sm:$0xff]
    %v3889 = vld [vmem:[%s1 + $0x668] sm:$0xff]
    %v3890 = vld [vmem:[%s1 + $0x670] sm:$0xff]
    %v3891 = vld [vmem:[%s1 + $0x678] sm:$0xff]
    %v3892 = vld [vmem:[%s1 + $0x680] sm:$0xff]
    %v3893 = vld [vmem:[%s1 + $0x688] sm:$0xff]
    %v3894 = vld [vmem:[%s1 + $0x690] sm:$0xff]
    %v3895 = vld [vmem:[%s1 + $0x698] sm:$0xff]
    %v3896 = vld [vmem:[%s1 + $0x6a0] sm:$0xff]
    %v3897 = vld [vmem:[%s1 + $0x6a8] sm:$0xff]
    %v3898 = vld [vmem:[%s1 + $0x6b0] sm:$0xff]
    %v3899 = vld [vmem:[%s1 + $0x6b8] sm:$0xff]
    %v3900 = vld [vmem:[%s1 + $0x6c0] sm:$0xff]
    %v3901 = vld [vmem:[%s1 + $0x6c8] sm:$0xff]
    %v3902 = vld [vmem:[%s1 + $0x6d0] sm:$0xff]
    %v3903 = vld [vmem:[%s1 + $0x6d8] sm:$0xff]
    %v3904 = vld [vmem:[%s1 + $0x6e0] sm:$0xff]
    %v3905 = vld [vmem:[%s1 + $0x6e8] sm:$0xff]
    %v3906 = vld [vmem:[%s1 + $0x6f0] sm:$0xff]
    %v3907 = vld [vmem:[%s1 + $0x6f8] sm:$0xff]
    %v3908 = vld [vmem:[%s1 + $0x700] sm:$0xff]
    %v3909 = vld [vmem:[%s1 + $0x708] sm:$0xff]
    %v3910 = vld [vmem:[%s1 + $0x710] sm:$0xff]
    %v3911 = vld [vmem:[%s1 + $0x718] sm:$0xff]
    %v3912 = vld [vmem:[%s1 + $0x720] sm:$0xff]
    %v3913 = vld [vmem:[%s1 + $0x728] sm:$0xff]
    %v3914 = vld [vmem:[%s1 + $0x730] sm:$0xff]
    %v3915 = vld [vmem:[%s1 + $0x738] sm:$0xff]
    %v3916 = vld [vmem:[%s1 + $0x740] sm:$0xff]
    %v3917 = vld [vmem:[%s1 + $0x748] sm:$0xff]
    %v3918 = vld [vmem:[%s1 + $0x750] sm:$0xff]
    %v3919 = vld [vmem:[%s1 + $0x758] sm:$0xff]
    %v3920 = vld [vmem:[%s1 + $0x760] sm:$0xff]
    %v3921 = vld [vmem:[%s1 + $0x768] sm:$0xff]
    %v3922 = vld [vmem:[%s1 + $0x770] sm:$0xff]
    %v3923 = vld [vmem:[%s1 + $0x778] sm:$0xff]
    %v3924 = vld [vmem:[%s1 + $0x780] sm:$0xff]
    %v3925 = vld [vmem:[%s1 + $0x788] sm:$0xff]
    %v3926 = vld [vmem:[%s1 + $0x790] sm:$0xff]
    %v3927 = vld [vmem:[%s1 + $0x798] sm:$0xff]
    %v3928 = vld [vmem:[%s1 + $0x7a0] sm:$0xff]
    %v3929 = vld [vmem:[%s1 + $0x7a8] sm:$0xff]
    %v3930 = vld [vmem:[%s1 + $0x7b0] sm:$0xff]
    %v3931 = vld [vmem:[%s1 + $0x7b8] sm:$0xff]
    %v3932 = vld [vmem:[%s1 + $0x7c0] sm:$0xff]
    %v3933 = vld [vmem:[%s1 + $0x7c8] sm:$0xff]
    %v3934 = vld [vmem:[%s1 + $0x7d0] sm:$0xff]
    %v3935 = vld [vmem:[%s1 + $0x7d8] sm:$0xff]
    %v3936 = vld [vmem:[%s1 + $0x7e0] sm:$0xff]
    %v3937 = vld [vmem:[%s1 + $0x7e8] sm:$0xff]
    %v3938 = vld [vmem:[%s1 + $0x7f0] sm:$0xff]
    %v3939 = vld [vmem:[%s1 + $0x7f8] sm:$0xff]
    %3940 = vmatprep.subr.mxu0 %v3685
    %3941 = vmatpush1.msra.mxu0 %v3684
    %3942 = vmatprep.subr.mxu0 %v3693
    %3943 = vmatpush1.msra.mxu0 %v3692
    %3944 = vmatprep.subr.mxu0 %v3701
    %3945 = vmatpush1.msra.mxu0 %v3700
    %3946 = vmatprep.subr.mxu0 %v3709
    %3947 = vmatpush1.msra.mxu0 %v3708
    %3948 = vmatprep.subr.mxu0 %v3717
    %3949 = vmatpush1.msra.mxu0 %v3716
    %3950 = vmatprep.subr.mxu0 %v3725
    %3951 = vmatpush1.msra.mxu0 %v3724
    %3952 = vmatprep.subr.mxu0 %v3733
    %3953 = vmatpush1.msra.mxu0 %v3732
    %3954 = vmatprep.subr.mxu0 %v3741
    %3955 = vmatpush1.msra.mxu0 %v3740
    %3956 = vmatprep.subr.mxu0 %v3749
    %3957 = vmatpush1.msra.mxu0 %v3748
    %3958 = vmatprep.subr.mxu0 %v3757
    %3959 = vmatpush1.msra.mxu0 %v3756
    %3960 = vmatprep.subr.mxu0 %v3765
    %3961 = vmatpush1.msra.mxu0 %v3764
    %3962 = vmatprep.subr.mxu0 %v3773
    %3963 = vmatpush1.msra.mxu0 %v3772
    %3964 = vmatprep.subr.mxu0 %v3781
    %3965 = vmatpush1.msra.mxu0 %v3780
    %3966 = vmatprep.subr.mxu0 %v3789
    %3967 = vmatpush1.msra.mxu0 %v3788
    %3968 = vmatprep.subr.mxu0 %v3797
    %3969 = vmatpush1.msra.mxu0 %v3796
    %3970 = vmatprep.subr.mxu0 %v3805
    %3971 = vmatpush1.msra.mxu0 %v3804
    %3972 = vmatprep.subr.mxu0 %v3813
    %3973 = vmatpush1.msra.mxu0 %v3812
    %3974 = vmatprep.subr.mxu0 %v3821
    %3975 = vmatpush1.msra.mxu0 %v3820
    %3976 = vmatprep.subr.mxu0 %v3829
    %3977 = vmatpush1.msra.mxu0 %v3828
    %3978 = vmatprep.subr.mxu0 %v3837
    %3979 = vmatpush1.msra.mxu0 %v3836
    %3980 = vmatprep.subr.mxu0 %v3845
    %3981 = vmatpush1.msra.mxu0 %v3844
    %3982 = vmatprep.subr.mxu0 %v3853
    %3983 = vmatpush1.msra.mxu0 %v3852
    %3984 = vmatprep.subr.mxu0 %v3861
    %3985 = vmatpush1.msra.mxu0 %v3860
    %3986 = vmatprep.subr.mxu0 %v3869
    %3987 = vmatpush1.msra.mxu0 %v3868
    %3988 = vmatprep.subr.mxu0 %v3877
    %3989 = vmatpush1.msra.mxu0 %v3876
    %3990 = vmatprep.subr.mxu0 %v3885
    %3991 = vmatpush1.msra.mxu0 %v3884
    %3992 = vmatprep.subr.mxu0 %v3893
    %3993 = vmatpush1.msra.mxu0 %v3892
    %3994 = vmatprep.subr.mxu0 %v3901
    %3995 = vmatpush1.msra.mxu0 %v3900
    %3996 = vmatprep.subr.mxu0 %v3909
    %3997 = vmatpush1.msra.mxu0 %v3908
    %3998 = vmatprep.subr.mxu0 %v3917
    %3999 = vmatpush1.msra.mxu0 %v3916
    %4000 = vmatprep.subr.mxu0 %v3925
    %4001 = vmatpush1.msra.mxu0 %v3924
    %4002 = vmatprep.subr.mxu0 %v3933
    %4003 = vmatpush1.msra.mxu0 %v3932
    %4004 = vmatprep.mubr.f32.mxu0 %v3673
    %4005 = vmatmul.mubr.f32.gmra.mrb[0].mxu0 %v3672
    %v4006 = vpop.f32.mrb[0].mxu0
    %v4007 = vadd.f32 0.0, %v4006
    %v4008 = vpop.f32.mrb[0].mxu0
    %v4009 = vadd.f32 0.0, %v4008
    %4010 = vdwg.mxu0
    %4011 = vmatprep.subr.mxu0 %v3687
    %4012 = vmatpush1.msra.mxu0 %v3686
    %4013 = vmatprep.subr.mxu0 %v3695
    %4014 = vmatpush1.msra.mxu0 %v3694
    %4015 = vmatprep.subr.mxu0 %v3703
    %4016 = vmatpush1.msra.mxu0 %v3702
    %4017 = vmatprep.subr.mxu0 %v3711
    %4018 = vmatpush1.msra.mxu0 %v3710
    %4019 = vmatprep.subr.mxu0 %v3719
    %4020 = vmatpush1.msra.mxu0 %v3718
    %4021 = vmatprep.subr.mxu0 %v3727
    %4022 = vmatpush1.msra.mxu0 %v3726
    %4023 = vmatprep.subr.mxu0 %v3735
    %4024 = vmatpush1.msra.mxu0 %v3734
    %4025 = vmatprep.subr.mxu0 %v3743
    %4026 = vmatpush1.msra.mxu0 %v3742
    %4027 = vmatprep.subr.mxu0 %v3751
    %4028 = vmatpush1.msra.mxu0 %v3750
    %4029 = vmatprep.subr.mxu0 %v3759
    %4030 = vmatpush1.msra.mxu0 %v3758
    %4031 = vmatprep.subr.mxu0 %v3767
    %4032 = vmatpush1.msra.mxu0 %v3766
    %4033 = vmatprep.subr.mxu0 %v3775
    %4034 = vmatpush1.msra.mxu0 %v3774
    %4035 = vmatprep.subr.mxu0 %v3783
    %4036 = vmatpush1.msra.mxu0 %v3782
    %4037 = vmatprep.subr.mxu0 %v3791
    %4038 = vmatpush1.msra.mxu0 %v3790
    %4039 = vmatprep.subr.mxu0 %v3799
    %4040 = vmatpush1.msra.mxu0 %v3798
    %4041 = vmatprep.subr.mxu0 %v3807
    %4042 = vmatpush1.msra.mxu0 %v3806
    %4043 = vmatprep.subr.mxu0 %v3815
    %4044 = vmatpush1.msra.mxu0 %v3814
    %4045 = vmatprep.subr.mxu0 %v3823
    %4046 = vmatpush1.msra.mxu0 %v3822
    %4047 = vmatprep.subr.mxu0 %v3831
    %4048 = vmatpush1.msra.mxu0 %v3830
    %4049 = vmatprep.subr.mxu0 %v3839
    %4050 = vmatpush1.msra.mxu0 %v3838
    %4051 = vmatprep.subr.mxu0 %v3847
    %4052 = vmatpush1.msra.mxu0 %v3846
    %4053 = vmatprep.subr.mxu0 %v3855
    %4054 = vmatpush1.msra.mxu0 %v3854
    %4055 = vmatprep.subr.mxu0 %v3863
    %4056 = vmatpush1.msra.mxu0 %v3862
    %4057 = vmatprep.subr.mxu0 %v3871
    %4058 = vmatpush1.msra.mxu0 %v3870
    %4059 = vmatprep.subr.mxu0 %v3879
    %4060 = vmatpush1.msra.mxu0 %v3878
    %4061 = vmatprep.subr.mxu0 %v3887
    %4062 = vmatpush1.msra.mxu0 %v3886
    %4063 = vmatprep.subr.mxu0 %v3895
    %4064 = vmatpush1.msra.mxu0 %v3894
    %4065 = vmatprep.subr.mxu0 %v3903
    %4066 = vmatpush1.msra.mxu0 %v3902
    %4067 = vmatprep.subr.mxu0 %v3911
    %4068 = vmatpush1.msra.mxu0 %v3910
    %4069 = vmatprep.subr.mxu0 %v3919
    %4070 = vmatpush1.msra.mxu0 %v3918
    %4071 = vmatprep.subr.mxu0 %v3927
    %4072 = vmatpush1.msra.mxu0 %v3926
    %4073 = vmatprep.subr.mxu0 %v3935
    %4074 = vmatpush1.msra.mxu0 %v3934
    %4075 = vmatprep.mubr.f32.mxu0 %v3673
    %4076 = vmatmul.mubr.f32.gmra.mrb[0].mxu0 %v3672
    %v4077 = vpop.f32.mrb[0].mxu0
    %v4078 = vadd.f32 0.0, %v4077
    %v4079 = vpop.f32.mrb[0].mxu0
    %v4080 = vadd.f32 0.0, %v4079
    %4081 = vdwg.mxu0
    %4082 = vmatprep.subr.mxu0 %v3689
    %4083 = vmatpush1.msra.mxu0 %v3688
    %4084 = vmatprep.subr.mxu0 %v3697
    %4085 = vmatpush1.msra.mxu0 %v3696
    %4086 = vmatprep.subr.mxu0 %v3705
    %4087 = vmatpush1.msra.mxu0 %v3704
    %4088 = vmatprep.subr.mxu0 %v3713
    %4089 = vmatpush1.msra.mxu0 %v3712
    %4090 = vmatprep.subr.mxu0 %v3721
    %4091 = vmatpush1.msra.mxu0 %v3720
    %4092 = vmatprep.subr.mxu0 %v3729
    %4093 = vmatpush1.msra.mxu0 %v3728
    %4094 = vmatprep.subr.mxu0 %v3737
    %4095 = vmatpush1.msra.mxu0 %v3736
    %4096 = vmatprep.subr.mxu0 %v3745
    %4097 = vmatpush1.msra.mxu0 %v3744
    %4098 = vmatprep.subr.mxu0 %v3753
    %4099 = vmatpush1.msra.mxu0 %v3752
    %4100 = vmatprep.subr.mxu0 %v3761
    %4101 = vmatpush1.msra.mxu0 %v3760
    %4102 = vmatprep.subr.mxu0 %v3769
    %4103 = vmatpush1.msra.mxu0 %v3768
    %4104 = vmatprep.subr.mxu0 %v3777
    %4105 = vmatpush1.msra.mxu0 %v3776
    %4106 = vmatprep.subr.mxu0 %v3785
    %4107 = vmatpush1.msra.mxu0 %v3784
    %4108 = vmatprep.subr.mxu0 %v3793
    %4109 = vmatpush1.msra.mxu0 %v3792
    %4110 = vmatprep.subr.mxu0 %v3801
    %4111 = vmatpush1.msra.mxu0 %v3800
    %4112 = vmatprep.subr.mxu0 %v3809
    %4113 = vmatpush1.msra.mxu0 %v3808
    %4114 = vmatprep.subr.mxu0 %v3817
    %4115 = vmatpush1.msra.mxu0 %v3816
    %4116 = vmatprep.subr.mxu0 %v3825
    %4117 = vmatpush1.msra.mxu0 %v3824
    %4118 = vmatprep.subr.mxu0 %v3833
    %4119 = vmatpush1.msra.mxu0 %v3832
    %4120 = vmatprep.subr.mxu0 %v3841
    %4121 = vmatpush1.msra.mxu0 %v3840
    %4122 = vmatprep.subr.mxu0 %v3849
    %4123 = vmatpush1.msra.mxu0 %v3848
    %4124 = vmatprep.subr.mxu0 %v3857
    %4125 = vmatpush1.msra.mxu0 %v3856
    %4126 = vmatprep.subr.mxu0 %v3865
    %4127 = vmatpush1.msra.mxu0 %v3864
    %4128 = vmatprep.subr.mxu0 %v3873
    %4129 = vmatpush1.msra.mxu0 %v3872
    %4130 = vmatprep.subr.mxu0 %v3881
    %4131 = vmatpush1.msra.mxu0 %v3880
    %4132 = vmatprep.subr.mxu0 %v3889
    %4133 = vmatpush1.msra.mxu0 %v3888
    %4134 = vmatprep.subr.mxu0 %v3897
    %4135 = vmatpush1.msra.mxu0 %v3896
    %4136 = vmatprep.subr.mxu0 %v3905
    %4137 = vmatpush1.msra.mxu0 %v3904
    %4138 = vmatprep.subr.mxu0 %v3913
    %4139 = vmatpush1.msra.mxu0 %v3912
    %4140 = vmatprep.subr.mxu0 %v3921
    %4141 = vmatpush1.msra.mxu0 %v3920
    %4142 = vmatprep.subr.mxu0 %v3929
    %4143 = vmatpush1.msra.mxu0 %v3928
    %4144 = vmatprep.subr.mxu0 %v3937
    %4145 = vmatpush1.msra.mxu0 %v3936
    %4146 = vmatprep.mubr.f32.mxu0 %v3673
    %4147 = vmatmul.mubr.f32.gmra.mrb[0].mxu0 %v3672
    %v4148 = vpop.f32.mrb[0].mxu0
    %v4149 = vadd.f32 0.0, %v4148
    %v4150 = vpop.f32.mrb[0].mxu0
    %v4151 = vadd.f32 0.0, %v4150
    %4152 = vdwg.mxu0
    %4153 = vmatprep.subr.mxu0 %v3691
    %4154 = vmatpush1.msra.mxu0 %v3690
    %4155 = vmatprep.subr.mxu0 %v3699
    %4156 = vmatpush1.msra.mxu0 %v3698
    %4157 = vmatprep.subr.mxu0 %v3707
    %4158 = vmatpush1.msra.mxu0 %v3706
    %4159 = vmatprep.subr.mxu0 %v3715
    %4160 = vmatpush1.msra.mxu0 %v3714
    %4161 = vmatprep.subr.mxu0 %v3723
    %4162 = vmatpush1.msra.mxu0 %v3722
    %4163 = vmatprep.subr.mxu0 %v3731
    %4164 = vmatpush1.msra.mxu0 %v3730
    %4165 = vmatprep.subr.mxu0 %v3739
    %4166 = vmatpush1.msra.mxu0 %v3738
    %4167 = vmatprep.subr.mxu0 %v3747
    %4168 = vmatpush1.msra.mxu0 %v3746
    %4169 = vmatprep.subr.mxu0 %v3755
    %4170 = vmatpush1.msra.mxu0 %v3754
    %4171 = vmatprep.subr.mxu0 %v3763
    %4172 = vmatpush1.msra.mxu0 %v3762
    %4173 = vmatprep.subr.mxu0 %v3771
    %4174 = vmatpush1.msra.mxu0 %v3770
    %4175 = vmatprep.subr.mxu0 %v3779
    %4176 = vmatpush1.msra.mxu0 %v3778
    %4177 = vmatprep.subr.mxu0 %v3787
    %4178 = vmatpush1.msra.mxu0 %v3786
    %4179 = vmatprep.subr.mxu0 %v3795
    %4180 = vmatpush1.msra.mxu0 %v3794
    %4181 = vmatprep.subr.mxu0 %v3803
    %4182 = vmatpush1.msra.mxu0 %v3802
    %4183 = vmatprep.subr.mxu0 %v3811
    %4184 = vmatpush1.msra.mxu0 %v3810
    %4185 = vmatprep.subr.mxu0 %v3819
    %4186 = vmatpush1.msra.mxu0 %v3818
    %4187 = vmatprep.subr.mxu0 %v3827
    %4188 = vmatpush1.msra.mxu0 %v3826
    %4189 = vmatprep.subr.mxu0 %v3835
    %4190 = vmatpush1.msra.mxu0 %v3834
    %4191 = vmatprep.subr.mxu0 %v3843
    %4192 = vmatpush1.msra.mxu0 %v3842
    %4193 = vmatprep.subr.mxu0 %v3851
    %4194 = vmatpush1.msra.mxu0 %v3850
    %4195 = vmatprep.subr.mxu0 %v3859
    %4196 = vmatpush1.msra.mxu0 %v3858
    %4197 = vmatprep.subr.mxu0 %v3867
    %4198 = vmatpush1.msra.mxu0 %v3866
    %4199 = vmatprep.subr.mxu0 %v3875
    %4200 = vmatpush1.msra.mxu0 %v3874
    %4201 = vmatprep.subr.mxu0 %v3883
    %4202 = vmatpush1.msra.mxu0 %v3882
    %4203 = vmatprep.subr.mxu0 %v3891
    %4204 = vmatpush1.msra.mxu0 %v3890
    %4205 = vmatprep.subr.mxu0 %v3899
    %4206 = vmatpush1.msra.mxu0 %v3898
    %4207 = vmatprep.subr.mxu0 %v3907
    %4208 = vmatpush1.msra.mxu0 %v3906
    %4209 = vmatprep.subr.mxu0 %v3915
    %4210 = vmatpush1.msra.mxu0 %v3914
    %4211 = vmatprep.subr.mxu0 %v3923
    %4212 = vmatpush1.msra.mxu0 %v3922
    %4213 = vmatprep.subr.mxu0 %v3931
    %4214 = vmatpush1.msra.mxu0 %v3930
    %4215 = vmatprep.subr.mxu0 %v3939
    %4216 = vmatpush1.msra.mxu0 %v3938
    %4217 = vmatprep.mubr.f32.mxu0 %v3673
    %4218 = vmatmul.mubr.f32.gmra.mrb[0].mxu0 %v3672
    %v4219 = vpop.f32.mrb[0].mxu0
    %v4220 = vadd.f32 0.0, %v4219
    %v4221 = vpop.f32.mrb[0].mxu0
    %v4222 = vadd.f32 0.0, %v4221
    %4223 = vdwg.mxu0
    %v4224 = vadd.f32 %v3676, %v4007
    %v4225 = vadd.f32 %v3677, %v4009
    %v4226 = vadd.f32 %v3678, %v4078
    %v4227 = vadd.f32 %v3679, %v4080
    %v4228 = vadd.f32 %v3680, %v4149
    %v4229 = vadd.f32 %v3681, %v4151
    %v4230 = vadd.f32 %v3682, %v4220
    %v4231 = vadd.f32 %v3683, %v4222
    %v4232 = vxor.u32 %v4224, 2147483648
    %v4233 = vxor.u32 %v4225, 2147483648
    %v4234 = vmul.f32 %v4232, 1.442695
    %v4235 = vpow.pop %v4234
    %v4236 = vmul.f32 %v4233, 1.442695
    %v4237 = vpow.pop %v4236
    %v4238 = vadd.f32 %v4235, 1.0
    %v4239 = vadd.f32 %v4237, 1.0
    %v4240 = vrcp.pop %v4238
    %v4241 = vmul.f32 1.0, %v4240
    %v4242 = vrcp.pop %v4239
    %v4243 = vmul.f32 1.0, %v4242
    %v4244 = vxor.u32 %v4226, 2147483648
    %v4245 = vxor.u32 %v4227, 2147483648
    %v4246 = vmul.f32 %v4244, 1.442695
    %v4247 = vpow.pop %v4246
    %v4248 = vmul.f32 %v4245, 1.442695
    %v4249 = vpow.pop %v4248
    %v4250 = vadd.f32 %v4247, 1.0
    %v4251 = vadd.f32 %v4249, 1.0
    %v4252 = vrcp.pop %v4250
    %v4253 = vmul.f32 1.0, %v4252
    %v4254 = vrcp.pop %v4251
    %v4255 = vmul.f32 1.0, %v4254
    %v4256 = vtanh.pop %v4228
    %v4257 = vtanh.pop %v4229
    %v4258 = vxor.u32 %v4230, 2147483648
    %v4259 = vxor.u32 %v4231, 2147483648
    %v4260 = vmul.f32 %v4258, 1.442695
    %v4261 = vpow.pop %v4260
    %v4262 = vmul.f32 %v4259, 1.442695
    %v4263 = vpow.pop %v4262
    %v4264 = vadd.f32 %v4261, 1.0
    %v4265 = vadd.f32 %v4263, 1.0
    %v4266 = vrcp.pop %v4264
    %v4267 = vmul.f32 1.0, %v4266
    %v4268 = vrcp.pop %v4265
    %v4269 = vmul.f32 1.0, %v4268
    %v4270 = vmul.f32 %v4253, %v3668
    %v4271 = vmul.f32 %v4255, %v3669
    %v4272 = vmul.f32 %v4241, %v4256
    %v4273 = vmul.f32 %v4243, %v4257
    %v4274 = vadd.f32 %v4270, %v4272
    %v4275 = vadd.f32 %v4271, %v4273
    %v4276 = vtanh.pop %v4274
    %v4277 = vtanh.pop %v4275
    %v4278 = vmul.f32 %v4267, %v4276
    %v4279 = vmul.f32 %v4269, %v4277
    %4280 = vst [vmem:[#allocation2 + $0x60] sm:$0xff] %v4278
    %4281 = vst [vmem:[#allocation2 + $0x68] sm:$0xff] %v4279
    %v4282 = vld [vmem:[%s0 + $0x1c0] sm:$0xff]
    %v4283 = vld [vmem:[%s0 + $0x1c8] sm:$0xff]
    %v4284 = vld [vmem:[%s0 + $0x1d0] sm:$0xff]
    %v4285 = vld [vmem:[%s0 + $0x1d8] sm:$0xff]
    %v4286 = vld [vmem:[%s0 + $0x1e0] sm:$0xff]
    %v4287 = vld [vmem:[%s0 + $0x1e8] sm:$0xff]
    %v4288 = vld [vmem:[%s0 + $0x1f0] sm:$0xff]
    %v4289 = vld [vmem:[%s0 + $0x1f8] sm:$0xff]
    %v4290 = vld [vmem:[%s1] sm:$0xff]
    %v4291 = vld [vmem:[%s1 + $0x8] sm:$0xff]
    %v4292 = vld [vmem:[%s1 + $0x10] sm:$0xff]
    %v4293 = vld [vmem:[%s1 + $0x18] sm:$0xff]
    %v4294 = vld [vmem:[%s1 + $0x20] sm:$0xff]
    %v4295 = vld [vmem:[%s1 + $0x28] sm:$0xff]
    %v4296 = vld [vmem:[%s1 + $0x30] sm:$0xff]
    %v4297 = vld [vmem:[%s1 + $0x38] sm:$0xff]
    %v4298 = vld [vmem:[%s1 + $0x40] sm:$0xff]
    %v4299 = vld [vmem:[%s1 + $0x48] sm:$0xff]
    %v4300 = vld [vmem:[%s1 + $0x50] sm:$0xff]
    %v4301 = vld [vmem:[%s1 + $0x58] sm:$0xff]
    %v4302 = vld [vmem:[%s1 + $0x60] sm:$0xff]
    %v4303 = vld [vmem:[%s1 + $0x68] sm:$0xff]
    %v4304 = vld [vmem:[%s1 + $0x70] sm:$0xff]
    %v4305 = vld [vmem:[%s1 + $0x78] sm:$0xff]
    %v4306 = vld [vmem:[%s1 + $0x80] sm:$0xff]
    %v4307 = vld [vmem:[%s1 + $0x88] sm:$0xff]
    %v4308 = vld [vmem:[%s1 + $0x90] sm:$0xff]
    %v4309 = vld [vmem:[%s1 + $0x98] sm:$0xff]
    %v4310 = vld [vmem:[%s1 + $0xa0] sm:$0xff]
    %v4311 = vld [vmem:[%s1 + $0xa8] sm:$0xff]
    %v4312 = vld [vmem:[%s1 + $0xb0] sm:$0xff]
    %v4313 = vld [vmem:[%s1 + $0xb8] sm:$0xff]
    %v4314 = vld [vmem:[%s1 + $0xc0] sm:$0xff]
    %v4315 = vld [vmem:[%s1 + $0xc8] sm:$0xff]
    %v4316 = vld [vmem:[%s1 + $0xd0] sm:$0xff]
    %v4317 = vld [vmem:[%s1 + $0xd8] sm:$0xff]
    %v4318 = vld [vmem:[%s1 + $0xe0] sm:$0xff]
    %v4319 = vld [vmem:[%s1 + $0xe8] sm:$0xff]
    %v4320 = vld [vmem:[%s1 + $0xf0] sm:$0xff]
    %v4321 = vld [vmem:[%s1 + $0xf8] sm:$0xff]
    %v4322 = vld [vmem:[%s1 + $0x100] sm:$0xff]
    %v4323 = vld [vmem:[%s1 + $0x108] sm:$0xff]
    %v4324 = vld [vmem:[%s1 + $0x110] sm:$0xff]
    %v4325 = vld [vmem:[%s1 + $0x118] sm:$0xff]
    %v4326 = vld [vmem:[%s1 + $0x120] sm:$0xff]
    %v4327 = vld [vmem:[%s1 + $0x128] sm:$0xff]
    %v4328 = vld [vmem:[%s1 + $0x130] sm:$0xff]
    %v4329 = vld [vmem:[%s1 + $0x138] sm:$0xff]
    %v4330 = vld [vmem:[%s1 + $0x140] sm:$0xff]
    %v4331 = vld [vmem:[%s1 + $0x148] sm:$0xff]
    %v4332 = vld [vmem:[%s1 + $0x150] sm:$0xff]
    %v4333 = vld [vmem:[%s1 + $0x158] sm:$0xff]
    %v4334 = vld [vmem:[%s1 + $0x160] sm:$0xff]
    %v4335 = vld [vmem:[%s1 + $0x168] sm:$0xff]
    %v4336 = vld [vmem:[%s1 + $0x170] sm:$0xff]
    %v4337 = vld [vmem:[%s1 + $0x178] sm:$0xff]
    %v4338 = vld [vmem:[%s1 + $0x180] sm:$0xff]
    %v4339 = vld [vmem:[%s1 + $0x188] sm:$0xff]
    %v4340 = vld [vmem:[%s1 + $0x190] sm:$0xff]
    %v4341 = vld [vmem:[%s1 + $0x198] sm:$0xff]
    %v4342 = vld [vmem:[%s1 + $0x1a0] sm:$0xff]
    %v4343 = vld [vmem:[%s1 + $0x1a8] sm:$0xff]
    %v4344 = vld [vmem:[%s1 + $0x1b0] sm:$0xff]
    %v4345 = vld [vmem:[%s1 + $0x1b8] sm:$0xff]
    %v4346 = vld [vmem:[%s1 + $0x1c0] sm:$0xff]
    %v4347 = vld [vmem:[%s1 + $0x1c8] sm:$0xff]
    %v4348 = vld [vmem:[%s1 + $0x1d0] sm:$0xff]
    %v4349 = vld [vmem:[%s1 + $0x1d8] sm:$0xff]
    %v4350 = vld [vmem:[%s1 + $0x1e0] sm:$0xff]
    %v4351 = vld [vmem:[%s1 + $0x1e8] sm:$0xff]
    %v4352 = vld [vmem:[%s1 + $0x1f0] sm:$0xff]
    %v4353 = vld [vmem:[%s1 + $0x1f8] sm:$0xff]
    %v4354 = vld [vmem:[%s1 + $0x200] sm:$0xff]
    %v4355 = vld [vmem:[%s1 + $0x208] sm:$0xff]
    %v4356 = vld [vmem:[%s1 + $0x210] sm:$0xff]
    %v4357 = vld [vmem:[%s1 + $0x218] sm:$0xff]
    %v4358 = vld [vmem:[%s1 + $0x220] sm:$0xff]
    %v4359 = vld [vmem:[%s1 + $0x228] sm:$0xff]
    %v4360 = vld [vmem:[%s1 + $0x230] sm:$0xff]
    %v4361 = vld [vmem:[%s1 + $0x238] sm:$0xff]
    %v4362 = vld [vmem:[%s1 + $0x240] sm:$0xff]
    %v4363 = vld [vmem:[%s1 + $0x248] sm:$0xff]
    %v4364 = vld [vmem:[%s1 + $0x250] sm:$0xff]
    %v4365 = vld [vmem:[%s1 + $0x258] sm:$0xff]
    %v4366 = vld [vmem:[%s1 + $0x260] sm:$0xff]
    %v4367 = vld [vmem:[%s1 + $0x268] sm:$0xff]
    %v4368 = vld [vmem:[%s1 + $0x270] sm:$0xff]
    %v4369 = vld [vmem:[%s1 + $0x278] sm:$0xff]
    %v4370 = vld [vmem:[%s1 + $0x280] sm:$0xff]
    %v4371 = vld [vmem:[%s1 + $0x288] sm:$0xff]
    %v4372 = vld [vmem:[%s1 + $0x290] sm:$0xff]
    %v4373 = vld [vmem:[%s1 + $0x298] sm:$0xff]
    %v4374 = vld [vmem:[%s1 + $0x2a0] sm:$0xff]
    %v4375 = vld [vmem:[%s1 + $0x2a8] sm:$0xff]
    %v4376 = vld [vmem:[%s1 + $0x2b0] sm:$0xff]
    %v4377 = vld [vmem:[%s1 + $0x2b8] sm:$0xff]
    %v4378 = vld [vmem:[%s1 + $0x2c0] sm:$0xff]
    %v4379 = vld [vmem:[%s1 + $0x2c8] sm:$0xff]
    %v4380 = vld [vmem:[%s1 + $0x2d0] sm:$0xff]
    %v4381 = vld [vmem:[%s1 + $0x2d8] sm:$0xff]
    %v4382 = vld [vmem:[%s1 + $0x2e0] sm:$0xff]
    %v4383 = vld [vmem:[%s1 + $0x2e8] sm:$0xff]
    %v4384 = vld [vmem:[%s1 + $0x2f0] sm:$0xff]
    %v4385 = vld [vmem:[%s1 + $0x2f8] sm:$0xff]
    %v4386 = vld [vmem:[%s1 + $0x300] sm:$0xff]
    %v4387 = vld [vmem:[%s1 + $0x308] sm:$0xff]
    %v4388 = vld [vmem:[%s1 + $0x310] sm:$0xff]
    %v4389 = vld [vmem:[%s1 + $0x318] sm:$0xff]
    %v4390 = vld [vmem:[%s1 + $0x320] sm:$0xff]
    %v4391 = vld [vmem:[%s1 + $0x328] sm:$0xff]
    %v4392 = vld [vmem:[%s1 + $0x330] sm:$0xff]
    %v4393 = vld [vmem:[%s1 + $0x338] sm:$0xff]
    %v4394 = vld [vmem:[%s1 + $0x340] sm:$0xff]
    %v4395 = vld [vmem:[%s1 + $0x348] sm:$0xff]
    %v4396 = vld [vmem:[%s1 + $0x350] sm:$0xff]
    %v4397 = vld [vmem:[%s1 + $0x358] sm:$0xff]
    %v4398 = vld [vmem:[%s1 + $0x360] sm:$0xff]
    %v4399 = vld [vmem:[%s1 + $0x368] sm:$0xff]
    %v4400 = vld [vmem:[%s1 + $0x370] sm:$0xff]
    %v4401 = vld [vmem:[%s1 + $0x378] sm:$0xff]
    %v4402 = vld [vmem:[%s1 + $0x380] sm:$0xff]
    %v4403 = vld [vmem:[%s1 + $0x388] sm:$0xff]
    %v4404 = vld [vmem:[%s1 + $0x390] sm:$0xff]
    %v4405 = vld [vmem:[%s1 + $0x398] sm:$0xff]
    %v4406 = vld [vmem:[%s1 + $0x3a0] sm:$0xff]
    %v4407 = vld [vmem:[%s1 + $0x3a8] sm:$0xff]
    %v4408 = vld [vmem:[%s1 + $0x3b0] sm:$0xff]
    %v4409 = vld [vmem:[%s1 + $0x3b8] sm:$0xff]
    %v4410 = vld [vmem:[%s1 + $0x3c0] sm:$0xff]
    %v4411 = vld [vmem:[%s1 + $0x3c8] sm:$0xff]
    %v4412 = vld [vmem:[%s1 + $0x3d0] sm:$0xff]
    %v4413 = vld [vmem:[%s1 + $0x3d8] sm:$0xff]
    %v4414 = vld [vmem:[%s1 + $0x3e0] sm:$0xff]
    %v4415 = vld [vmem:[%s1 + $0x3e8] sm:$0xff]
    %v4416 = vld [vmem:[%s1 + $0x3f0] sm:$0xff]
    %v4417 = vld [vmem:[%s1 + $0x3f8] sm:$0xff]
    %v4418 = vld [vmem:[%s1 + $0x400] sm:$0xff]
    %v4419 = vld [vmem:[%s1 + $0x408] sm:$0xff]
    %v4420 = vld [vmem:[%s1 + $0x410] sm:$0xff]
    %v4421 = vld [vmem:[%s1 + $0x418] sm:$0xff]
    %v4422 = vld [vmem:[%s1 + $0x420] sm:$0xff]
    %v4423 = vld [vmem:[%s1 + $0x428] sm:$0xff]
    %v4424 = vld [vmem:[%s1 + $0x430] sm:$0xff]
    %v4425 = vld [vmem:[%s1 + $0x438] sm:$0xff]
    %v4426 = vld [vmem:[%s1 + $0x440] sm:$0xff]
    %v4427 = vld [vmem:[%s1 + $0x448] sm:$0xff]
    %v4428 = vld [vmem:[%s1 + $0x450] sm:$0xff]
    %v4429 = vld [vmem:[%s1 + $0x458] sm:$0xff]
    %v4430 = vld [vmem:[%s1 + $0x460] sm:$0xff]
    %v4431 = vld [vmem:[%s1 + $0x468] sm:$0xff]
    %v4432 = vld [vmem:[%s1 + $0x470] sm:$0xff]
    %v4433 = vld [vmem:[%s1 + $0x478] sm:$0xff]
    %v4434 = vld [vmem:[%s1 + $0x480] sm:$0xff]
    %v4435 = vld [vmem:[%s1 + $0x488] sm:$0xff]
    %v4436 = vld [vmem:[%s1 + $0x490] sm:$0xff]
    %v4437 = vld [vmem:[%s1 + $0x498] sm:$0xff]
    %v4438 = vld [vmem:[%s1 + $0x4a0] sm:$0xff]
    %v4439 = vld [vmem:[%s1 + $0x4a8] sm:$0xff]
    %v4440 = vld [vmem:[%s1 + $0x4b0] sm:$0xff]
    %v4441 = vld [vmem:[%s1 + $0x4b8] sm:$0xff]
    %v4442 = vld [vmem:[%s1 + $0x4c0] sm:$0xff]
    %v4443 = vld [vmem:[%s1 + $0x4c8] sm:$0xff]
    %v4444 = vld [vmem:[%s1 + $0x4d0] sm:$0xff]
    %v4445 = vld [vmem:[%s1 + $0x4d8] sm:$0xff]
    %v4446 = vld [vmem:[%s1 + $0x4e0] sm:$0xff]
    %v4447 = vld [vmem:[%s1 + $0x4e8] sm:$0xff]
    %v4448 = vld [vmem:[%s1 + $0x4f0] sm:$0xff]
    %v4449 = vld [vmem:[%s1 + $0x4f8] sm:$0xff]
    %v4450 = vld [vmem:[%s1 + $0x500] sm:$0xff]
    %v4451 = vld [vmem:[%s1 + $0x508] sm:$0xff]
    %v4452 = vld [vmem:[%s1 + $0x510] sm:$0xff]
    %v4453 = vld [vmem:[%s1 + $0x518] sm:$0xff]
    %v4454 = vld [vmem:[%s1 + $0x520] sm:$0xff]
    %v4455 = vld [vmem:[%s1 + $0x528] sm:$0xff]
    %v4456 = vld [vmem:[%s1 + $0x530] sm:$0xff]
    %v4457 = vld [vmem:[%s1 + $0x538] sm:$0xff]
    %v4458 = vld [vmem:[%s1 + $0x540] sm:$0xff]
    %v4459 = vld [vmem:[%s1 + $0x548] sm:$0xff]
    %v4460 = vld [vmem:[%s1 + $0x550] sm:$0xff]
    %v4461 = vld [vmem:[%s1 + $0x558] sm:$0xff]
    %v4462 = vld [vmem:[%s1 + $0x560] sm:$0xff]
    %v4463 = vld [vmem:[%s1 + $0x568] sm:$0xff]
    %v4464 = vld [vmem:[%s1 + $0x570] sm:$0xff]
    %v4465 = vld [vmem:[%s1 + $0x578] sm:$0xff]
    %v4466 = vld [vmem:[%s1 + $0x580] sm:$0xff]
    %v4467 = vld [vmem:[%s1 + $0x588] sm:$0xff]
    %v4468 = vld [vmem:[%s1 + $0x590] sm:$0xff]
    %v4469 = vld [vmem:[%s1 + $0x598] sm:$0xff]
    %v4470 = vld [vmem:[%s1 + $0x5a0] sm:$0xff]
    %v4471 = vld [vmem:[%s1 + $0x5a8] sm:$0xff]
    %v4472 = vld [vmem:[%s1 + $0x5b0] sm:$0xff]
    %v4473 = vld [vmem:[%s1 + $0x5b8] sm:$0xff]
    %v4474 = vld [vmem:[%s1 + $0x5c0] sm:$0xff]
    %v4475 = vld [vmem:[%s1 + $0x5c8] sm:$0xff]
    %v4476 = vld [vmem:[%s1 + $0x5d0] sm:$0xff]
    %v4477 = vld [vmem:[%s1 + $0x5d8] sm:$0xff]
    %v4478 = vld [vmem:[%s1 + $0x5e0] sm:$0xff]
    %v4479 = vld [vmem:[%s1 + $0x5e8] sm:$0xff]
    %v4480 = vld [vmem:[%s1 + $0x5f0] sm:$0xff]
    %v4481 = vld [vmem:[%s1 + $0x5f8] sm:$0xff]
    %v4482 = vld [vmem:[%s1 + $0x600] sm:$0xff]
    %v4483 = vld [vmem:[%s1 + $0x608] sm:$0xff]
    %v4484 = vld [vmem:[%s1 + $0x610] sm:$0xff]
    %v4485 = vld [vmem:[%s1 + $0x618] sm:$0xff]
    %v4486 = vld [vmem:[%s1 + $0x620] sm:$0xff]
    %v4487 = vld [vmem:[%s1 + $0x628] sm:$0xff]
    %v4488 = vld [vmem:[%s1 + $0x630] sm:$0xff]
    %v4489 = vld [vmem:[%s1 + $0x638] sm:$0xff]
    %v4490 = vld [vmem:[%s1 + $0x640] sm:$0xff]
    %v4491 = vld [vmem:[%s1 + $0x648] sm:$0xff]
    %v4492 = vld [vmem:[%s1 + $0x650] sm:$0xff]
    %v4493 = vld [vmem:[%s1 + $0x658] sm:$0xff]
    %v4494 = vld [vmem:[%s1 + $0x660] sm:$0xff]
    %v4495 = vld [vmem:[%s1 + $0x668] sm:$0xff]
    %v4496 = vld [vmem:[%s1 + $0x670] sm:$0xff]
    %v4497 = vld [vmem:[%s1 + $0x678] sm:$0xff]
    %v4498 = vld [vmem:[%s1 + $0x680] sm:$0xff]
    %v4499 = vld [vmem:[%s1 + $0x688] sm:$0xff]
    %v4500 = vld [vmem:[%s1 + $0x690] sm:$0xff]
    %v4501 = vld [vmem:[%s1 + $0x698] sm:$0xff]
    %v4502 = vld [vmem:[%s1 + $0x6a0] sm:$0xff]
    %v4503 = vld [vmem:[%s1 + $0x6a8] sm:$0xff]
    %v4504 = vld [vmem:[%s1 + $0x6b0] sm:$0xff]
    %v4505 = vld [vmem:[%s1 + $0x6b8] sm:$0xff]
    %v4506 = vld [vmem:[%s1 + $0x6c0] sm:$0xff]
    %v4507 = vld [vmem:[%s1 + $0x6c8] sm:$0xff]
    %v4508 = vld [vmem:[%s1 + $0x6d0] sm:$0xff]
    %v4509 = vld [vmem:[%s1 + $0x6d8] sm:$0xff]
    %v4510 = vld [vmem:[%s1 + $0x6e0] sm:$0xff]
    %v4511 = vld [vmem:[%s1 + $0x6e8] sm:$0xff]
    %v4512 = vld [vmem:[%s1 + $0x6f0] sm:$0xff]
    %v4513 = vld [vmem:[%s1 + $0x6f8] sm:$0xff]
    %v4514 = vld [vmem:[%s1 + $0x700] sm:$0xff]
    %v4515 = vld [vmem:[%s1 + $0x708] sm:$0xff]
    %v4516 = vld [vmem:[%s1 + $0x710] sm:$0xff]
    %v4517 = vld [vmem:[%s1 + $0x718] sm:$0xff]
    %v4518 = vld [vmem:[%s1 + $0x720] sm:$0xff]
    %v4519 = vld [vmem:[%s1 + $0x728] sm:$0xff]
    %v4520 = vld [vmem:[%s1 + $0x730] sm:$0xff]
    %v4521 = vld [vmem:[%s1 + $0x738] sm:$0xff]
    %v4522 = vld [vmem:[%s1 + $0x740] sm:$0xff]
    %v4523 = vld [vmem:[%s1 + $0x748] sm:$0xff]
    %v4524 = vld [vmem:[%s1 + $0x750] sm:$0xff]
    %v4525 = vld [vmem:[%s1 + $0x758] sm:$0xff]
    %v4526 = vld [vmem:[%s1 + $0x760] sm:$0xff]
    %v4527 = vld [vmem:[%s1 + $0x768] sm:$0xff]
    %v4528 = vld [vmem:[%s1 + $0x770] sm:$0xff]
    %v4529 = vld [vmem:[%s1 + $0x778] sm:$0xff]
    %v4530 = vld [vmem:[%s1 + $0x780] sm:$0xff]
    %v4531 = vld [vmem:[%s1 + $0x788] sm:$0xff]
    %v4532 = vld [vmem:[%s1 + $0x790] sm:$0xff]
    %v4533 = vld [vmem:[%s1 + $0x798] sm:$0xff]
    %v4534 = vld [vmem:[%s1 + $0x7a0] sm:$0xff]
    %v4535 = vld [vmem:[%s1 + $0x7a8] sm:$0xff]
    %v4536 = vld [vmem:[%s1 + $0x7b0] sm:$0xff]
    %v4537 = vld [vmem:[%s1 + $0x7b8] sm:$0xff]
    %v4538 = vld [vmem:[%s1 + $0x7c0] sm:$0xff]
    %v4539 = vld [vmem:[%s1 + $0x7c8] sm:$0xff]
    %v4540 = vld [vmem:[%s1 + $0x7d0] sm:$0xff]
    %v4541 = vld [vmem:[%s1 + $0x7d8] sm:$0xff]
    %v4542 = vld [vmem:[%s1 + $0x7e0] sm:$0xff]
    %v4543 = vld [vmem:[%s1 + $0x7e8] sm:$0xff]
    %v4544 = vld [vmem:[%s1 + $0x7f0] sm:$0xff]
    %v4545 = vld [vmem:[%s1 + $0x7f8] sm:$0xff]
    %4546 = vmatprep.subr.mxu0 %v4291
    %4547 = vmatpush1.msra.mxu0 %v4290
    %4548 = vmatprep.subr.mxu0 %v4299
    %4549 = vmatpush1.msra.mxu0 %v4298
    %4550 = vmatprep.subr.mxu0 %v4307
    %4551 = vmatpush1.msra.mxu0 %v4306
    %4552 = vmatprep.subr.mxu0 %v4315
    %4553 = vmatpush1.msra.mxu0 %v4314
    %4554 = vmatprep.subr.mxu0 %v4323
    %4555 = vmatpush1.msra.mxu0 %v4322
    %4556 = vmatprep.subr.mxu0 %v4331
    %4557 = vmatpush1.msra.mxu0 %v4330
    %4558 = vmatprep.subr.mxu0 %v4339
    %4559 = vmatpush1.msra.mxu0 %v4338
    %4560 = vmatprep.subr.mxu0 %v4347
    %4561 = vmatpush1.msra.mxu0 %v4346
    %4562 = vmatprep.subr.mxu0 %v4355
    %4563 = vmatpush1.msra.mxu0 %v4354
    %4564 = vmatprep.subr.mxu0 %v4363
    %4565 = vmatpush1.msra.mxu0 %v4362
    %4566 = vmatprep.subr.mxu0 %v4371
    %4567 = vmatpush1.msra.mxu0 %v4370
    %4568 = vmatprep.subr.mxu0 %v4379
    %4569 = vmatpush1.msra.mxu0 %v4378
    %4570 = vmatprep.subr.mxu0 %v4387
    %4571 = vmatpush1.msra.mxu0 %v4386
    %4572 = vmatprep.subr.mxu0 %v4395
    %4573 = vmatpush1.msra.mxu0 %v4394
    %4574 = vmatprep.subr.mxu0 %v4403
    %4575 = vmatpush1.msra.mxu0 %v4402
    %4576 = vmatprep.subr.mxu0 %v4411
    %4577 = vmatpush1.msra.mxu0 %v4410
    %4578 = vmatprep.subr.mxu0 %v4419
    %4579 = vmatpush1.msra.mxu0 %v4418
    %4580 = vmatprep.subr.mxu0 %v4427
    %4581 = vmatpush1.msra.mxu0 %v4426
    %4582 = vmatprep.subr.mxu0 %v4435
    %4583 = vmatpush1.msra.mxu0 %v4434
    %4584 = vmatprep.subr.mxu0 %v4443
    %4585 = vmatpush1.msra.mxu0 %v4442
    %4586 = vmatprep.subr.mxu0 %v4451
    %4587 = vmatpush1.msra.mxu0 %v4450
    %4588 = vmatprep.subr.mxu0 %v4459
    %4589 = vmatpush1.msra.mxu0 %v4458
    %4590 = vmatprep.subr.mxu0 %v4467
    %4591 = vmatpush1.msra.mxu0 %v4466
    %4592 = vmatprep.subr.mxu0 %v4475
    %4593 = vmatpush1.msra.mxu0 %v4474
    %4594 = vmatprep.subr.mxu0 %v4483
    %4595 = vmatpush1.msra.mxu0 %v4482
    %4596 = vmatprep.subr.mxu0 %v4491
    %4597 = vmatpush1.msra.mxu0 %v4490
    %4598 = vmatprep.subr.mxu0 %v4499
    %4599 = vmatpush1.msra.mxu0 %v4498
    %4600 = vmatprep.subr.mxu0 %v4507
    %4601 = vmatpush1.msra.mxu0 %v4506
    %4602 = vmatprep.subr.mxu0 %v4515
    %4603 = vmatpush1.msra.mxu0 %v4514
    %4604 = vmatprep.subr.mxu0 %v4523
    %4605 = vmatpush1.msra.mxu0 %v4522
    %4606 = vmatprep.subr.mxu0 %v4531
    %4607 = vmatpush1.msra.mxu0 %v4530
    %4608 = vmatprep.subr.mxu0 %v4539
    %4609 = vmatpush1.msra.mxu0 %v4538
    %4610 = vmatprep.mubr.f32.mxu0 %v4279
    %4611 = vmatmul.mubr.f32.gmra.mrb[0].mxu0 %v4278
    %v4612 = vpop.f32.mrb[0].mxu0
    %v4613 = vadd.f32 0.0, %v4612
    %v4614 = vpop.f32.mrb[0].mxu0
    %v4615 = vadd.f32 0.0, %v4614
    %4616 = vdwg.mxu0
    %4617 = vmatprep.subr.mxu0 %v4293
    %4618 = vmatpush1.msra.mxu0 %v4292
    %4619 = vmatprep.subr.mxu0 %v4301
    %4620 = vmatpush1.msra.mxu0 %v4300
    %4621 = vmatprep.subr.mxu0 %v4309
    %4622 = vmatpush1.msra.mxu0 %v4308
    %4623 = vmatprep.subr.mxu0 %v4317
    %4624 = vmatpush1.msra.mxu0 %v4316
    %4625 = vmatprep.subr.mxu0 %v4325
    %4626 = vmatpush1.msra.mxu0 %v4324
    %4627 = vmatprep.subr.mxu0 %v4333
    %4628 = vmatpush1.msra.mxu0 %v4332
    %4629 = vmatprep.subr.mxu0 %v4341
    %4630 = vmatpush1.msra.mxu0 %v4340
    %4631 = vmatprep.subr.mxu0 %v4349
    %4632 = vmatpush1.msra.mxu0 %v4348
    %4633 = vmatprep.subr.mxu0 %v4357
    %4634 = vmatpush1.msra.mxu0 %v4356
    %4635 = vmatprep.subr.mxu0 %v4365
    %4636 = vmatpush1.msra.mxu0 %v4364
    %4637 = vmatprep.subr.mxu0 %v4373
    %4638 = vmatpush1.msra.mxu0 %v4372
    %4639 = vmatprep.subr.mxu0 %v4381
    %4640 = vmatpush1.msra.mxu0 %v4380
    %4641 = vmatprep.subr.mxu0 %v4389
    %4642 = vmatpush1.msra.mxu0 %v4388
    %4643 = vmatprep.subr.mxu0 %v4397
    %4644 = vmatpush1.msra.mxu0 %v4396
    %4645 = vmatprep.subr.mxu0 %v4405
    %4646 = vmatpush1.msra.mxu0 %v4404
    %4647 = vmatprep.subr.mxu0 %v4413
    %4648 = vmatpush1.msra.mxu0 %v4412
    %4649 = vmatprep.subr.mxu0 %v4421
    %4650 = vmatpush1.msra.mxu0 %v4420
    %4651 = vmatprep.subr.mxu0 %v4429
    %4652 = vmatpush1.msra.mxu0 %v4428
    %4653 = vmatprep.subr.mxu0 %v4437
    %4654 = vmatpush1.msra.mxu0 %v4436
    %4655 = vmatprep.subr.mxu0 %v4445
    %4656 = vmatpush1.msra.mxu0 %v4444
    %4657 = vmatprep.subr.mxu0 %v4453
    %4658 = vmatpush1.msra.mxu0 %v4452
    %4659 = vmatprep.subr.mxu0 %v4461
    %4660 = vmatpush1.msra.mxu0 %v4460
    %4661 = vmatprep.subr.mxu0 %v4469
    %4662 = vmatpush1.msra.mxu0 %v4468
    %4663 = vmatprep.subr.mxu0 %v4477
    %4664 = vmatpush1.msra.mxu0 %v4476
    %4665 = vmatprep.subr.mxu0 %v4485
    %4666 = vmatpush1.msra.mxu0 %v4484
    %4667 = vmatprep.subr.mxu0 %v4493
    %4668 = vmatpush1.msra.mxu0 %v4492
    %4669 = vmatprep.subr.mxu0 %v4501
    %4670 = vmatpush1.msra.mxu0 %v4500
    %4671 = vmatprep.subr.mxu0 %v4509
    %4672 = vmatpush1.msra.mxu0 %v4508
    %4673 = vmatprep.subr.mxu0 %v4517
    %4674 = vmatpush1.msra.mxu0 %v4516
    %4675 = vmatprep.subr.mxu0 %v4525
    %4676 = vmatpush1.msra.mxu0 %v4524
    %4677 = vmatprep.subr.mxu0 %v4533
    %4678 = vmatpush1.msra.mxu0 %v4532
    %4679 = vmatprep.subr.mxu0 %v4541
    %4680 = vmatpush1.msra.mxu0 %v4540
    %4681 = vmatprep.mubr.f32.mxu0 %v4279
    %4682 = vmatmul.mubr.f32.gmra.mrb[0].mxu0 %v4278
    %v4683 = vpop.f32.mrb[0].mxu0
    %v4684 = vadd.f32 0.0, %v4683
    %v4685 = vpop.f32.mrb[0].mxu0
    %v4686 = vadd.f32 0.0, %v4685
    %4687 = vdwg.mxu0
    %4688 = vmatprep.subr.mxu0 %v4295
    %4689 = vmatpush1.msra.mxu0 %v4294
    %4690 = vmatprep.subr.mxu0 %v4303
    %4691 = vmatpush1.msra.mxu0 %v4302
    %4692 = vmatprep.subr.mxu0 %v4311
    %4693 = vmatpush1.msra.mxu0 %v4310
    %4694 = vmatprep.subr.mxu0 %v4319
    %4695 = vmatpush1.msra.mxu0 %v4318
    %4696 = vmatprep.subr.mxu0 %v4327
    %4697 = vmatpush1.msra.mxu0 %v4326
    %4698 = vmatprep.subr.mxu0 %v4335
    %4699 = vmatpush1.msra.mxu0 %v4334
    %4700 = vmatprep.subr.mxu0 %v4343
    %4701 = vmatpush1.msra.mxu0 %v4342
    %4702 = vmatprep.subr.mxu0 %v4351
    %4703 = vmatpush1.msra.mxu0 %v4350
    %4704 = vmatprep.subr.mxu0 %v4359
    %4705 = vmatpush1.msra.mxu0 %v4358
    %4706 = vmatprep.subr.mxu0 %v4367
    %4707 = vmatpush1.msra.mxu0 %v4366
    %4708 = vmatprep.subr.mxu0 %v4375
    %4709 = vmatpush1.msra.mxu0 %v4374
    %4710 = vmatprep.subr.mxu0 %v4383
    %4711 = vmatpush1.msra.mxu0 %v4382
    %4712 = vmatprep.subr.mxu0 %v4391
    %4713 = vmatpush1.msra.mxu0 %v4390
    %4714 = vmatprep.subr.mxu0 %v4399
    %4715 = vmatpush1.msra.mxu0 %v4398
    %4716 = vmatprep.subr.mxu0 %v4407
    %4717 = vmatpush1.msra.mxu0 %v4406
    %4718 = vmatprep.subr.mxu0 %v4415
    %4719 = vmatpush1.msra.mxu0 %v4414
    %4720 = vmatprep.subr.mxu0 %v4423
    %4721 = vmatpush1.msra.mxu0 %v4422
    %4722 = vmatprep.subr.mxu0 %v4431
    %4723 = vmatpush1.msra.mxu0 %v4430
    %4724 = vmatprep.subr.mxu0 %v4439
    %4725 = vmatpush1.msra.mxu0 %v4438
    %4726 = vmatprep.subr.mxu0 %v4447
    %4727 = vmatpush1.msra.mxu0 %v4446
    %4728 = vmatprep.subr.mxu0 %v4455
    %4729 = vmatpush1.msra.mxu0 %v4454
    %4730 = vmatprep.subr.mxu0 %v4463
    %4731 = vmatpush1.msra.mxu0 %v4462
    %4732 = vmatprep.subr.mxu0 %v4471
    %4733 = vmatpush1.msra.mxu0 %v4470
    %4734 = vmatprep.subr.mxu0 %v4479
    %4735 = vmatpush1.msra.mxu0 %v4478
    %4736 = vmatprep.subr.mxu0 %v4487
    %4737 = vmatpush1.msra.mxu0 %v4486
    %4738 = vmatprep.subr.mxu0 %v4495
    %4739 = vmatpush1.msra.mxu0 %v4494
    %4740 = vmatprep.subr.mxu0 %v4503
    %4741 = vmatpush1.msra.mxu0 %v4502
    %4742 = vmatprep.subr.mxu0 %v4511
    %4743 = vmatpush1.msra.mxu0 %v4510
    %4744 = vmatprep.subr.mxu0 %v4519
    %4745 = vmatpush1.msra.mxu0 %v4518
    %4746 = vmatprep.subr.mxu0 %v4527
    %4747 = vmatpush1.msra.mxu0 %v4526
    %4748 = vmatprep.subr.mxu0 %v4535
    %4749 = vmatpush1.msra.mxu0 %v4534
    %4750 = vmatprep.subr.mxu0 %v4543
    %4751 = vmatpush1.msra.mxu0 %v4542
    %4752 = vmatprep.mubr.f32.mxu0 %v4279
    %4753 = vmatmul.mubr.f32.gmra.mrb[0].mxu0 %v4278
    %v4754 = vpop.f32.mrb[0].mxu0
    %v4755 = vadd.f32 0.0, %v4754
    %v4756 = vpop.f32.mrb[0].mxu0
    %v4757 = vadd.f32 0.0, %v4756
    %4758 = vdwg.mxu0
    %4759 = vmatprep.subr.mxu0 %v4297
    %4760 = vmatpush1.msra.mxu0 %v4296
    %4761 = vmatprep.subr.mxu0 %v4305
    %4762 = vmatpush1.msra.mxu0 %v4304
    %4763 = vmatprep.subr.mxu0 %v4313
    %4764 = vmatpush1.msra.mxu0 %v4312
    %4765 = vmatprep.subr.mxu0 %v4321
    %4766 = vmatpush1.msra.mxu0 %v4320
    %4767 = vmatprep.subr.mxu0 %v4329
    %4768 = vmatpush1.msra.mxu0 %v4328
    %4769 = vmatprep.subr.mxu0 %v4337
    %4770 = vmatpush1.msra.mxu0 %v4336
    %4771 = vmatprep.subr.mxu0 %v4345
    %4772 = vmatpush1.msra.mxu0 %v4344
    %4773 = vmatprep.subr.mxu0 %v4353
    %4774 = vmatpush1.msra.mxu0 %v4352
    %4775 = vmatprep.subr.mxu0 %v4361
    %4776 = vmatpush1.msra.mxu0 %v4360
    %4777 = vmatprep.subr.mxu0 %v4369
    %4778 = vmatpush1.msra.mxu0 %v4368
    %4779 = vmatprep.subr.mxu0 %v4377
    %4780 = vmatpush1.msra.mxu0 %v4376
    %4781 = vmatprep.subr.mxu0 %v4385
    %4782 = vmatpush1.msra.mxu0 %v4384
    %4783 = vmatprep.subr.mxu0 %v4393
    %4784 = vmatpush1.msra.mxu0 %v4392
    %4785 = vmatprep.subr.mxu0 %v4401
    %4786 = vmatpush1.msra.mxu0 %v4400
    %4787 = vmatprep.subr.mxu0 %v4409
    %4788 = vmatpush1.msra.mxu0 %v4408
    %4789 = vmatprep.subr.mxu0 %v4417
    %4790 = vmatpush1.msra.mxu0 %v4416
    %4791 = vmatprep.subr.mxu0 %v4425
    %4792 = vmatpush1.msra.mxu0 %v4424
    %4793 = vmatprep.subr.mxu0 %v4433
    %4794 = vmatpush1.msra.mxu0 %v4432
    %4795 = vmatprep.subr.mxu0 %v4441
    %4796 = vmatpush1.msra.mxu0 %v4440
    %4797 = vmatprep.subr.mxu0 %v4449
    %4798 = vmatpush1.msra.mxu0 %v4448
    %4799 = vmatprep.subr.mxu0 %v4457
    %4800 = vmatpush1.msra.mxu0 %v4456
    %4801 = vmatprep.subr.mxu0 %v4465
    %4802 = vmatpush1.msra.mxu0 %v4464
    %4803 = vmatprep.subr.mxu0 %v4473
    %4804 = vmatpush1.msra.mxu0 %v4472
    %4805 = vmatprep.subr.mxu0 %v4481
    %4806 = vmatpush1.msra.mxu0 %v4480
    %4807 = vmatprep.subr.mxu0 %v4489
    %4808 = vmatpush1.msra.mxu0 %v4488
    %4809 = vmatprep.subr.mxu0 %v4497
    %4810 = vmatpush1.msra.mxu0 %v4496
    %4811 = vmatprep.subr.mxu0 %v4505
    %4812 = vmatpush1.msra.mxu0 %v4504
    %4813 = vmatprep.subr.mxu0 %v4513
    %4814 = vmatpush1.msra.mxu0 %v4512
    %4815 = vmatprep.subr.mxu0 %v4521
    %4816 = vmatpush1.msra.mxu0 %v4520
    %4817 = vmatprep.subr.mxu0 %v4529
    %4818 = vmatpush1.msra.mxu0 %v4528
    %4819 = vmatprep.subr.mxu0 %v4537
    %4820 = vmatpush1.msra.mxu0 %v4536
    %4821 = vmatprep.subr.mxu0 %v4545
    %4822 = vmatpush1.msra.mxu0 %v4544
    %4823 = vmatprep.mubr.f32.mxu0 %v4279
    %4824 = vmatmul.mubr.f32.gmra.mrb[0].mxu0 %v4278
    %v4825 = vpop.f32.mrb[0].mxu0
    %v4826 = vadd.f32 0.0, %v4825
    %v4827 = vpop.f32.mrb[0].mxu0
    %v4828 = vadd.f32 0.0, %v4827
    %4829 = vdwg.mxu0
    %v4830 = vadd.f32 %v4282, %v4613
    %v4831 = vadd.f32 %v4283, %v4615
    %v4832 = vadd.f32 %v4284, %v4684
    %v4833 = vadd.f32 %v4285, %v4686
    %v4834 = vadd.f32 %v4286, %v4755
    %v4835 = vadd.f32 %v4287, %v4757
    %v4836 = vadd.f32 %v4288, %v4826
    %v4837 = vadd.f32 %v4289, %v4828
    %v4838 = vxor.u32 %v4830, 2147483648
    %v4839 = vxor.u32 %v4831, 2147483648
    %v4840 = vmul.f32 %v4838, 1.442695
    %v4841 = vpow.pop %v4840
    %v4842 = vmul.f32 %v4839, 1.442695
    %v4843 = vpow.pop %v4842
    %v4844 = vadd.f32 %v4841, 1.0
    %v4845 = vadd.f32 %v4843, 1.0
    %v4846 = vrcp.pop %v4844
    %v4847 = vmul.f32 1.0, %v4846
    %v4848 = vrcp.pop %v4845
    %v4849 = vmul.f32 1.0, %v4848
    %v4850 = vxor.u32 %v4832, 2147483648
    %v4851 = vxor.u32 %v4833, 2147483648
    %v4852 = vmul.f32 %v4850, 1.442695
    %v4853 = vpow.pop %v4852
    %v4854 = vmul.f32 %v4851, 1.442695
    %v4855 = vpow.pop %v4854
    %v4856 = vadd.f32 %v4853, 1.0
    %v4857 = vadd.f32 %v4855, 1.0
    %v4858 = vrcp.pop %v4856
    %v4859 = vmul.f32 1.0, %v4858
    %v4860 = vrcp.pop %v4857
    %v4861 = vmul.f32 1.0, %v4860
    %v4862 = vtanh.pop %v4834
    %v4863 = vtanh.pop %v4835
    %v4864 = vxor.u32 %v4836, 2147483648
    %v4865 = vxor.u32 %v4837, 2147483648
    %v4866 = vmul.f32 %v4864, 1.442695
    %v4867 = vpow.pop %v4866
    %v4868 = vmul.f32 %v4865, 1.442695
    %v4869 = vpow.pop %v4868
    %v4870 = vadd.f32 %v4867, 1.0
    %v4871 = vadd.f32 %v4869, 1.0
    %v4872 = vrcp.pop %v4870
    %v4873 = vmul.f32 1.0, %v4872
    %v4874 = vrcp.pop %v4871
    %v4875 = vmul.f32 1.0, %v4874
    %v4876 = vmul.f32 %v4859, %v4274
    %v4877 = vmul.f32 %v4861, %v4275
    %v4878 = vmul.f32 %v4847, %v4862
    %v4879 = vmul.f32 %v4849, %v4863
    %v4880 = vadd.f32 %v4876, %v4878
    %v4881 = vadd.f32 %v4877, %v4879
    %v4882 = vtanh.pop %v4880
    %v4883 = vtanh.pop %v4881
    %v4884 = vmul.f32 %v4873, %v4882
    %v4885 = vmul.f32 %v4875, %v4883
    %4886 = vst [vmem:[#allocation2 + $0x70] sm:$0xff] %v4884
    %4887 = vst [vmem:[#allocation2 + $0x78] sm:$0xff] %v4885
    %v4888 = vld [vmem:[#allocation2] sm:$0xff]
    %v4889 = vld [vmem:[#allocation2 + $0x8] sm:$0xff]
    %v4890 = vld [vmem:[#allocation2 + $0x10] sm:$0xff]
    %v4891 = vld [vmem:[#allocation2 + $0x18] sm:$0xff]
    %v4892 = vld [vmem:[#allocation2 + $0x20] sm:$0xff]
    %v4893 = vld [vmem:[#allocation2 + $0x28] sm:$0xff]
    %v4894 = vld [vmem:[#allocation2 + $0x30] sm:$0xff]
    %v4895 = vld [vmem:[#allocation2 + $0x38] sm:$0xff]
    %v4896 = vld [vmem:[#allocation2 + $0x40] sm:$0xff]
    %v4897 = vld [vmem:[#allocation2 + $0x48] sm:$0xff]
    %v4898 = vld [vmem:[#allocation2 + $0x50] sm:$0xff]
    %v4899 = vld [vmem:[#allocation2 + $0x58] sm:$0xff]
    %v4900 = vld [vmem:[#allocation2 + $0x60] sm:$0xff]
    %v4901 = vld [vmem:[#allocation2 + $0x68] sm:$0xff]
    %v4902 = vld [vmem:[#allocation2 + $0x70] sm:$0xff]
    %v4903 = vld [vmem:[#allocation2 + $0x78] sm:$0xff]
    %v4904 = vld [vmem:[%s2] sm:$0xff]
    %v4905 = vld [vmem:[%s2 + $0x8] sm:$0xff]
    %v4906 = vld [vmem:[%s2 + $0x10] sm:$0xff]
    %v4907 = vld [vmem:[%s2 + $0x18] sm:$0xff]
    %v4908 = vld [vmem:[%s2 + $0x20] sm:$0xff]
    %v4909 = vld [vmem:[%s2 + $0x28] sm:$0xff]
    %v4910 = vld [vmem:[%s2 + $0x30] sm:$0xff]
    %v4911 = vld [vmem:[%s2 + $0x38] sm:$0xff]
    %v4912 = vld [vmem:[%s2 + $0x40] sm:$0xff]
    %v4913 = vld [vmem:[%s2 + $0x48] sm:$0xff]
    %v4914 = vld [vmem:[%s2 + $0x50] sm:$0xff]
    %v4915 = vld [vmem:[%s2 + $0x58] sm:$0xff]
    %v4916 = vld [vmem:[%s2 + $0x60] sm:$0xff]
    %v4917 = vld [vmem:[%s2 + $0x68] sm:$0xff]
    %v4918 = vld [vmem:[%s2 + $0x70] sm:$0xff]
    %v4919 = vld [vmem:[%s2 + $0x78] sm:$0xff]
    %v4920 = vld [vmem:[%s2 + $0x80] sm:$0xff]
    %v4921 = vld [vmem:[%s2 + $0x88] sm:$0xff]
    %v4922 = vld [vmem:[%s2 + $0x90] sm:$0xff]
    %v4923 = vld [vmem:[%s2 + $0x98] sm:$0xff]
    %v4924 = vld [vmem:[%s2 + $0xa0] sm:$0xff]
    %v4925 = vld [vmem:[%s2 + $0xa8] sm:$0xff]
    %v4926 = vld [vmem:[%s2 + $0xb0] sm:$0xff]
    %v4927 = vld [vmem:[%s2 + $0xb8] sm:$0xff]
    %v4928 = vld [vmem:[%s2 + $0xc0] sm:$0xff]
    %v4929 = vld [vmem:[%s2 + $0xc8] sm:$0xff]
    %v4930 = vld [vmem:[%s2 + $0xd0] sm:$0xff]
    %v4931 = vld [vmem:[%s2 + $0xd8] sm:$0xff]
    %v4932 = vld [vmem:[%s2 + $0xe0] sm:$0xff]
    %v4933 = vld [vmem:[%s2 + $0xe8] sm:$0xff]
    %v4934 = vld [vmem:[%s2 + $0xf0] sm:$0xff]
    %v4935 = vld [vmem:[%s2 + $0xf8] sm:$0xff]
    %v4936 = vld [vmem:[%s2 + $0x100] sm:$0xff]
    %v4937 = vld [vmem:[%s2 + $0x108] sm:$0xff]
    %v4938 = vld [vmem:[%s2 + $0x110] sm:$0xff]
    %v4939 = vld [vmem:[%s2 + $0x118] sm:$0xff]
    %v4940 = vld [vmem:[%s2 + $0x120] sm:$0xff]
    %v4941 = vld [vmem:[%s2 + $0x128] sm:$0xff]
    %v4942 = vld [vmem:[%s2 + $0x130] sm:$0xff]
    %v4943 = vld [vmem:[%s2 + $0x138] sm:$0xff]
    %v4944 = vld [vmem:[%s2 + $0x140] sm:$0xff]
    %v4945 = vld [vmem:[%s2 + $0x148] sm:$0xff]
    %v4946 = vld [vmem:[%s2 + $0x150] sm:$0xff]
    %v4947 = vld [vmem:[%s2 + $0x158] sm:$0xff]
    %v4948 = vld [vmem:[%s2 + $0x160] sm:$0xff]
    %v4949 = vld [vmem:[%s2 + $0x168] sm:$0xff]
    %v4950 = vld [vmem:[%s2 + $0x170] sm:$0xff]
    %v4951 = vld [vmem:[%s2 + $0x178] sm:$0xff]
    %v4952 = vld [vmem:[%s2 + $0x180] sm:$0xff]
    %v4953 = vld [vmem:[%s2 + $0x188] sm:$0xff]
    %v4954 = vld [vmem:[%s2 + $0x190] sm:$0xff]
    %v4955 = vld [vmem:[%s2 + $0x198] sm:$0xff]
    %v4956 = vld [vmem:[%s2 + $0x1a0] sm:$0xff]
    %v4957 = vld [vmem:[%s2 + $0x1a8] sm:$0xff]
    %v4958 = vld [vmem:[%s2 + $0x1b0] sm:$0xff]
    %v4959 = vld [vmem:[%s2 + $0x1b8] sm:$0xff]
    %v4960 = vld [vmem:[%s2 + $0x1c0] sm:$0xff]
    %v4961 = vld [vmem:[%s2 + $0x1c8] sm:$0xff]
    %v4962 = vld [vmem:[%s2 + $0x1d0] sm:$0xff]
    %v4963 = vld [vmem:[%s2 + $0x1d8] sm:$0xff]
    %v4964 = vld [vmem:[%s2 + $0x1e0] sm:$0xff]
    %v4965 = vld [vmem:[%s2 + $0x1e8] sm:$0xff]
    %v4966 = vld [vmem:[%s2 + $0x1f0] sm:$0xff]
    %v4967 = vld [vmem:[%s2 + $0x1f8] sm:$0xff]
    %v4968 = vld [vmem:[%s2 + $0x200] sm:$0xff]
    %v4969 = vld [vmem:[%s2 + $0x208] sm:$0xff]
    %v4970 = vld [vmem:[%s2 + $0x210] sm:$0xff]
    %v4971 = vld [vmem:[%s2 + $0x218] sm:$0xff]
    %v4972 = vld [vmem:[%s2 + $0x220] sm:$0xff]
    %v4973 = vld [vmem:[%s2 + $0x228] sm:$0xff]
    %v4974 = vld [vmem:[%s2 + $0x230] sm:$0xff]
    %v4975 = vld [vmem:[%s2 + $0x238] sm:$0xff]
    %v4976 = vld [vmem:[%s2 + $0x240] sm:$0xff]
    %v4977 = vld [vmem:[%s2 + $0x248] sm:$0xff]
    %v4978 = vld [vmem:[%s2 + $0x250] sm:$0xff]
    %v4979 = vld [vmem:[%s2 + $0x258] sm:$0xff]
    %v4980 = vld [vmem:[%s2 + $0x260] sm:$0xff]
    %v4981 = vld [vmem:[%s2 + $0x268] sm:$0xff]
    %v4982 = vld [vmem:[%s2 + $0x270] sm:$0xff]
    %v4983 = vld [vmem:[%s2 + $0x278] sm:$0xff]
    %v4984 = vld [vmem:[%s2 + $0x280] sm:$0xff]
    %v4985 = vld [vmem:[%s2 + $0x288] sm:$0xff]
    %v4986 = vld [vmem:[%s2 + $0x290] sm:$0xff]
    %v4987 = vld [vmem:[%s2 + $0x298] sm:$0xff]
    %v4988 = vld [vmem:[%s2 + $0x2a0] sm:$0xff]
    %v4989 = vld [vmem:[%s2 + $0x2a8] sm:$0xff]
    %v4990 = vld [vmem:[%s2 + $0x2b0] sm:$0xff]
    %v4991 = vld [vmem:[%s2 + $0x2b8] sm:$0xff]
    %v4992 = vld [vmem:[%s2 + $0x2c0] sm:$0xff]
    %v4993 = vld [vmem:[%s2 + $0x2c8] sm:$0xff]
    %v4994 = vld [vmem:[%s2 + $0x2d0] sm:$0xff]
    %v4995 = vld [vmem:[%s2 + $0x2d8] sm:$0xff]
    %v4996 = vld [vmem:[%s2 + $0x2e0] sm:$0xff]
    %v4997 = vld [vmem:[%s2 + $0x2e8] sm:$0xff]
    %v4998 = vld [vmem:[%s2 + $0x2f0] sm:$0xff]
    %v4999 = vld [vmem:[%s2 + $0x2f8] sm:$0xff]
    %v5000 = vld [vmem:[%s2 + $0x300] sm:$0xff]
    %v5001 = vld [vmem:[%s2 + $0x308] sm:$0xff]
    %v5002 = vld [vmem:[%s2 + $0x310] sm:$0xff]
    %v5003 = vld [vmem:[%s2 + $0x318] sm:$0xff]
    %v5004 = vld [vmem:[%s2 + $0x320] sm:$0xff]
    %v5005 = vld [vmem:[%s2 + $0x328] sm:$0xff]
    %v5006 = vld [vmem:[%s2 + $0x330] sm:$0xff]
    %v5007 = vld [vmem:[%s2 + $0x338] sm:$0xff]
    %v5008 = vld [vmem:[%s2 + $0x340] sm:$0xff]
    %v5009 = vld [vmem:[%s2 + $0x348] sm:$0xff]
    %v5010 = vld [vmem:[%s2 + $0x350] sm:$0xff]
    %v5011 = vld [vmem:[%s2 + $0x358] sm:$0xff]
    %v5012 = vld [vmem:[%s2 + $0x360] sm:$0xff]
    %v5013 = vld [vmem:[%s2 + $0x368] sm:$0xff]
    %v5014 = vld [vmem:[%s2 + $0x370] sm:$0xff]
    %v5015 = vld [vmem:[%s2 + $0x378] sm:$0xff]
    %v5016 = vld [vmem:[%s2 + $0x380] sm:$0xff]
    %v5017 = vld [vmem:[%s2 + $0x388] sm:$0xff]
    %v5018 = vld [vmem:[%s2 + $0x390] sm:$0xff]
    %v5019 = vld [vmem:[%s2 + $0x398] sm:$0xff]
    %v5020 = vld [vmem:[%s2 + $0x3a0] sm:$0xff]
    %v5021 = vld [vmem:[%s2 + $0x3a8] sm:$0xff]
    %v5022 = vld [vmem:[%s2 + $0x3b0] sm:$0xff]
    %v5023 = vld [vmem:[%s2 + $0x3b8] sm:$0xff]
    %v5024 = vld [vmem:[%s2 + $0x3c0] sm:$0xff]
    %v5025 = vld [vmem:[%s2 + $0x3c8] sm:$0xff]
    %v5026 = vld [vmem:[%s2 + $0x3d0] sm:$0xff]
    %v5027 = vld [vmem:[%s2 + $0x3d8] sm:$0xff]
    %v5028 = vld [vmem:[%s2 + $0x3e0] sm:$0xff]
    %v5029 = vld [vmem:[%s2 + $0x3e8] sm:$0xff]
    %v5030 = vld [vmem:[%s2 + $0x3f0] sm:$0xff]
    %v5031 = vld [vmem:[%s2 + $0x3f8] sm:$0xff]
    %v5032 = vld [vmem:[%s2 + $0x400] sm:$0xff]
    %v5033 = vld [vmem:[%s2 + $0x408] sm:$0xff]
    %v5034 = vld [vmem:[%s2 + $0x410] sm:$0xff]
    %v5035 = vld [vmem:[%s2 + $0x418] sm:$0xff]
    %v5036 = vld [vmem:[%s2 + $0x420] sm:$0xff]
    %v5037 = vld [vmem:[%s2 + $0x428] sm:$0xff]
    %v5038 = vld [vmem:[%s2 + $0x430] sm:$0xff]
    %v5039 = vld [vmem:[%s2 + $0x438] sm:$0xff]
    %v5040 = vld [vmem:[%s2 + $0x440] sm:$0xff]
    %v5041 = vld [vmem:[%s2 + $0x448] sm:$0xff]
    %v5042 = vld [vmem:[%s2 + $0x450] sm:$0xff]
    %v5043 = vld [vmem:[%s2 + $0x458] sm:$0xff]
    %v5044 = vld [vmem:[%s2 + $0x460] sm:$0xff]
    %v5045 = vld [vmem:[%s2 + $0x468] sm:$0xff]
    %v5046 = vld [vmem:[%s2 + $0x470] sm:$0xff]
    %v5047 = vld [vmem:[%s2 + $0x478] sm:$0xff]
    %v5048 = vld [vmem:[%s2 + $0x480] sm:$0xff]
    %v5049 = vld [vmem:[%s2 + $0x488] sm:$0xff]
    %v5050 = vld [vmem:[%s2 + $0x490] sm:$0xff]
    %v5051 = vld [vmem:[%s2 + $0x498] sm:$0xff]
    %v5052 = vld [vmem:[%s2 + $0x4a0] sm:$0xff]
    %v5053 = vld [vmem:[%s2 + $0x4a8] sm:$0xff]
    %v5054 = vld [vmem:[%s2 + $0x4b0] sm:$0xff]
    %v5055 = vld [vmem:[%s2 + $0x4b8] sm:$0xff]
    %v5056 = vld [vmem:[%s2 + $0x4c0] sm:$0xff]
    %v5057 = vld [vmem:[%s2 + $0x4c8] sm:$0xff]
    %v5058 = vld [vmem:[%s2 + $0x4d0] sm:$0xff]
    %v5059 = vld [vmem:[%s2 + $0x4d8] sm:$0xff]
    %v5060 = vld [vmem:[%s2 + $0x4e0] sm:$0xff]
    %v5061 = vld [vmem:[%s2 + $0x4e8] sm:$0xff]
    %v5062 = vld [vmem:[%s2 + $0x4f0] sm:$0xff]
    %v5063 = vld [vmem:[%s2 + $0x4f8] sm:$0xff]
    %v5064 = vld [vmem:[%s2 + $0x500] sm:$0xff]
    %v5065 = vld [vmem:[%s2 + $0x508] sm:$0xff]
    %v5066 = vld [vmem:[%s2 + $0x510] sm:$0xff]
    %v5067 = vld [vmem:[%s2 + $0x518] sm:$0xff]
    %v5068 = vld [vmem:[%s2 + $0x520] sm:$0xff]
    %v5069 = vld [vmem:[%s2 + $0x528] sm:$0xff]
    %v5070 = vld [vmem:[%s2 + $0x530] sm:$0xff]
    %v5071 = vld [vmem:[%s2 + $0x538] sm:$0xff]
    %v5072 = vld [vmem:[%s2 + $0x540] sm:$0xff]
    %v5073 = vld [vmem:[%s2 + $0x548] sm:$0xff]
    %v5074 = vld [vmem:[%s2 + $0x550] sm:$0xff]
    %v5075 = vld [vmem:[%s2 + $0x558] sm:$0xff]
    %v5076 = vld [vmem:[%s2 + $0x560] sm:$0xff]
    %v5077 = vld [vmem:[%s2 + $0x568] sm:$0xff]
    %v5078 = vld [vmem:[%s2 + $0x570] sm:$0xff]
    %v5079 = vld [vmem:[%s2 + $0x578] sm:$0xff]
    %v5080 = vld [vmem:[%s2 + $0x580] sm:$0xff]
    %v5081 = vld [vmem:[%s2 + $0x588] sm:$0xff]
    %v5082 = vld [vmem:[%s2 + $0x590] sm:$0xff]
    %v5083 = vld [vmem:[%s2 + $0x598] sm:$0xff]
    %v5084 = vld [vmem:[%s2 + $0x5a0] sm:$0xff]
    %v5085 = vld [vmem:[%s2 + $0x5a8] sm:$0xff]
    %v5086 = vld [vmem:[%s2 + $0x5b0] sm:$0xff]
    %v5087 = vld [vmem:[%s2 + $0x5b8] sm:$0xff]
    %v5088 = vld [vmem:[%s2 + $0x5c0] sm:$0xff]
    %v5089 = vld [vmem:[%s2 + $0x5c8] sm:$0xff]
    %v5090 = vld [vmem:[%s2 + $0x5d0] sm:$0xff]
    %v5091 = vld [vmem:[%s2 + $0x5d8] sm:$0xff]
    %v5092 = vld [vmem:[%s2 + $0x5e0] sm:$0xff]
    %v5093 = vld [vmem:[%s2 + $0x5e8] sm:$0xff]
    %v5094 = vld [vmem:[%s2 + $0x5f0] sm:$0xff]
    %v5095 = vld [vmem:[%s2 + $0x5f8] sm:$0xff]
    %v5096 = vld [vmem:[%s2 + $0x600] sm:$0xff]
    %v5097 = vld [vmem:[%s2 + $0x608] sm:$0xff]
    %v5098 = vld [vmem:[%s2 + $0x610] sm:$0xff]
    %v5099 = vld [vmem:[%s2 + $0x618] sm:$0xff]
    %v5100 = vld [vmem:[%s2 + $0x620] sm:$0xff]
    %v5101 = vld [vmem:[%s2 + $0x628] sm:$0xff]
    %v5102 = vld [vmem:[%s2 + $0x630] sm:$0xff]
    %v5103 = vld [vmem:[%s2 + $0x638] sm:$0xff]
    %v5104 = vld [vmem:[%s2 + $0x640] sm:$0xff]
    %v5105 = vld [vmem:[%s2 + $0x648] sm:$0xff]
    %v5106 = vld [vmem:[%s2 + $0x650] sm:$0xff]
    %v5107 = vld [vmem:[%s2 + $0x658] sm:$0xff]
    %v5108 = vld [vmem:[%s2 + $0x660] sm:$0xff]
    %v5109 = vld [vmem:[%s2 + $0x668] sm:$0xff]
    %v5110 = vld [vmem:[%s2 + $0x670] sm:$0xff]
    %v5111 = vld [vmem:[%s2 + $0x678] sm:$0xff]
    %v5112 = vld [vmem:[%s2 + $0x680] sm:$0xff]
    %v5113 = vld [vmem:[%s2 + $0x688] sm:$0xff]
    %v5114 = vld [vmem:[%s2 + $0x690] sm:$0xff]
    %v5115 = vld [vmem:[%s2 + $0x698] sm:$0xff]
    %v5116 = vld [vmem:[%s2 + $0x6a0] sm:$0xff]
    %v5117 = vld [vmem:[%s2 + $0x6a8] sm:$0xff]
    %v5118 = vld [vmem:[%s2 + $0x6b0] sm:$0xff]
    %v5119 = vld [vmem:[%s2 + $0x6b8] sm:$0xff]
    %v5120 = vld [vmem:[%s2 + $0x6c0] sm:$0xff]
    %v5121 = vld [vmem:[%s2 + $0x6c8] sm:$0xff]
    %v5122 = vld [vmem:[%s2 + $0x6d0] sm:$0xff]
    %v5123 = vld [vmem:[%s2 + $0x6d8] sm:$0xff]
    %v5124 = vld [vmem:[%s2 + $0x6e0] sm:$0xff]
    %v5125 = vld [vmem:[%s2 + $0x6e8] sm:$0xff]
    %v5126 = vld [vmem:[%s2 + $0x6f0] sm:$0xff]
    %v5127 = vld [vmem:[%s2 + $0x6f8] sm:$0xff]
    %v5128 = vld [vmem:[%s2 + $0x700] sm:$0xff]
    %v5129 = vld [vmem:[%s2 + $0x708] sm:$0xff]
    %v5130 = vld [vmem:[%s2 + $0x710] sm:$0xff]
    %v5131 = vld [vmem:[%s2 + $0x718] sm:$0xff]
    %v5132 = vld [vmem:[%s2 + $0x720] sm:$0xff]
    %v5133 = vld [vmem:[%s2 + $0x728] sm:$0xff]
    %v5134 = vld [vmem:[%s2 + $0x730] sm:$0xff]
    %v5135 = vld [vmem:[%s2 + $0x738] sm:$0xff]
    %v5136 = vld [vmem:[%s2 + $0x740] sm:$0xff]
    %v5137 = vld [vmem:[%s2 + $0x748] sm:$0xff]
    %v5138 = vld [vmem:[%s2 + $0x750] sm:$0xff]
    %v5139 = vld [vmem:[%s2 + $0x758] sm:$0xff]
    %v5140 = vld [vmem:[%s2 + $0x760] sm:$0xff]
    %v5141 = vld [vmem:[%s2 + $0x768] sm:$0xff]
    %v5142 = vld [vmem:[%s2 + $0x770] sm:$0xff]
    %v5143 = vld [vmem:[%s2 + $0x778] sm:$0xff]
    %v5144 = vld [vmem:[%s2 + $0x780] sm:$0xff]
    %v5145 = vld [vmem:[%s2 + $0x788] sm:$0xff]
    %v5146 = vld [vmem:[%s2 + $0x790] sm:$0xff]
    %v5147 = vld [vmem:[%s2 + $0x798] sm:$0xff]
    %v5148 = vld [vmem:[%s2 + $0x7a0] sm:$0xff]
    %v5149 = vld [vmem:[%s2 + $0x7a8] sm:$0xff]
    %v5150 = vld [vmem:[%s2 + $0x7b0] sm:$0xff]
    %v5151 = vld [vmem:[%s2 + $0x7b8] sm:$0xff]
    %v5152 = vld [vmem:[%s2 + $0x7c0] sm:$0xff]
    %v5153 = vld [vmem:[%s2 + $0x7c8] sm:$0xff]
    %v5154 = vld [vmem:[%s2 + $0x7d0] sm:$0xff]
    %v5155 = vld [vmem:[%s2 + $0x7d8] sm:$0xff]
    %v5156 = vld [vmem:[%s2 + $0x7e0] sm:$0xff]
    %v5157 = vld [vmem:[%s2 + $0x7e8] sm:$0xff]
    %v5158 = vld [vmem:[%s2 + $0x7f0] sm:$0xff]
    %v5159 = vld [vmem:[%s2 + $0x7f8] sm:$0xff]
    %v5160 = vld [vmem:[%s4] sm:$0xff]
    %v5162 = vlaneseq
    %v5163 = vshrl.u32 %v5162, 7
    %v5164 = vsub.s32 0, %v5163
    %v5165 = vrot.slane %v5160, %v5164
    %v5166 = vlaneseq
    %v5167 = vshrl.u32 %v5166, 7
    %v5168 = vsub.s32 1, %v5167
    %v5169 = vrot.slane %v5160, %v5168
    %v5170 = vlaneseq
    %v5171 = vshrl.u32 %v5170, 7
    %v5172 = vsub.s32 2, %v5171
    %v5173 = vrot.slane %v5160, %v5172
    %v5174 = vlaneseq
    %v5175 = vshrl.u32 %v5174, 7
    %v5176 = vsub.s32 3, %v5175
    %v5177 = vrot.slane %v5160, %v5176
    %v5178 = vlaneseq
    %v5179 = vshrl.u32 %v5178, 7
    %v5180 = vsub.s32 4, %v5179
    %v5181 = vrot.slane %v5160, %v5180
    %v5182 = vlaneseq
    %v5183 = vshrl.u32 %v5182, 7
    %v5184 = vsub.s32 5, %v5183
    %v5185 = vrot.slane %v5160, %v5184
    %v5186 = vlaneseq
    %v5187 = vshrl.u32 %v5186, 7
    %v5188 = vsub.s32 6, %v5187
    %v5189 = vrot.slane %v5160, %v5188
    %v5190 = vlaneseq
    %v5191 = vshrl.u32 %v5190, 7
    %v5192 = vsub.s32 7, %v5191
    %v5193 = vrot.slane %v5160, %v5192
    %5202 = vmatprep.subr.mxu0 %v4905
    %5203 = vmatpush1.msra.mxu0 %v4904
    %5204 = vmatprep.subr.mxu0 %v4913
    %5205 = vmatpush1.msra.mxu0 %v4912
    %5206 = vmatprep.subr.mxu0 %v4921
    %5207 = vmatpush1.msra.mxu0 %v4920
    %5208 = vmatprep.subr.mxu0 %v4929
    %5209 = vmatpush1.msra.mxu0 %v4928
    %5210 = vmatprep.subr.mxu0 %v4937
    %5211 = vmatpush1.msra.mxu0 %v4936
    %5212 = vmatprep.subr.mxu0 %v4945
    %5213 = vmatpush1.msra.mxu0 %v4944
    %5214 = vmatprep.subr.mxu0 %v4953
    %5215 = vmatpush1.msra.mxu0 %v4952
    %5216 = vmatprep.subr.mxu0 %v4961
    %5217 = vmatpush1.msra.mxu0 %v4960
    %5218 = vmatprep.subr.mxu0 %v4969
    %5219 = vmatpush1.msra.mxu0 %v4968
    %5220 = vmatprep.subr.mxu0 %v4977
    %5221 = vmatpush1.msra.mxu0 %v4976
    %5222 = vmatprep.subr.mxu0 %v4985
    %5223 = vmatpush1.msra.mxu0 %v4984
    %5224 = vmatprep.subr.mxu0 %v4993
    %5225 = vmatpush1.msra.mxu0 %v4992
    %5226 = vmatprep.subr.mxu0 %v5001
    %5227 = vmatpush1.msra.mxu0 %v5000
    %5228 = vmatprep.subr.mxu0 %v5009
    %5229 = vmatpush1.msra.mxu0 %v5008
    %5230 = vmatprep.subr.mxu0 %v5017
    %5231 = vmatpush1.msra.mxu0 %v5016
    %5232 = vmatprep.subr.mxu0 %v5025
    %5233 = vmatpush1.msra.mxu0 %v5024
    %5234 = vmatprep.subr.mxu0 %v5033
    %5235 = vmatpush1.msra.mxu0 %v5032
    %5236 = vmatprep.subr.mxu0 %v5041
    %5237 = vmatpush1.msra.mxu0 %v5040
    %5238 = vmatprep.subr.mxu0 %v5049
    %5239 = vmatpush1.msra.mxu0 %v5048
    %5240 = vmatprep.subr.mxu0 %v5057
    %5241 = vmatpush1.msra.mxu0 %v5056
    %5242 = vmatprep.subr.mxu0 %v5065
    %5243 = vmatpush1.msra.mxu0 %v5064
    %5244 = vmatprep.subr.mxu0 %v5073
    %5245 = vmatpush1.msra.mxu0 %v5072
    %5246 = vmatprep.subr.mxu0 %v5081
    %5247 = vmatpush1.msra.mxu0 %v5080
    %5248 = vmatprep.subr.mxu0 %v5089
    %5249 = vmatpush1.msra.mxu0 %v5088
    %5250 = vmatprep.subr.mxu0 %v5097
    %5251 = vmatpush1.msra.mxu0 %v5096
    %5252 = vmatprep.subr.mxu0 %v5105
    %5253 = vmatpush1.msra.mxu0 %v5104
    %5254 = vmatprep.subr.mxu0 %v5113
    %5255 = vmatpush1.msra.mxu0 %v5112
    %5256 = vmatprep.subr.mxu0 %v5121
    %5257 = vmatpush1.msra.mxu0 %v5120
    %5258 = vmatprep.subr.mxu0 %v5129
    %5259 = vmatpush1.msra.mxu0 %v5128
    %5260 = vmatprep.subr.mxu0 %v5137
    %5261 = vmatpush1.msra.mxu0 %v5136
    %5262 = vmatprep.subr.mxu0 %v5145
    %5263 = vmatpush1.msra.mxu0 %v5144
    %5264 = vmatprep.subr.mxu0 %v5153
    %5265 = vmatpush1.msra.mxu0 %v5152
    %5266 = vmatprep.mubr.f32.mxu0 %v4889
    %5267 = vmatmul.mubr.f32.gmra.mrb[0].mxu0 %v4888
    %v5268 = vpop.f32.mrb[0].mxu0
    %v5269 = vadd.f32 %v5165, %v5268
    %v5270 = vpop.f32.mrb[0].mxu0
    %v5271 = vadd.f32 %v5169, %v5270
    %5272 = vmatprep.mubr.f32.mxu0 %v4891
    %5273 = vmatmul.mubr.f32.gmra.mrb[0].mxu0 %v4890
    %v5274 = vpop.f32.mrb[0].mxu0
    %v5275 = vadd.f32 %v5165, %v5274
    %v5276 = vpop.f32.mrb[0].mxu0
    %v5277 = vadd.f32 %v5169, %v5276
    %5278 = vmatprep.mubr.f32.mxu0 %v4893
    %5279 = vmatmul.mubr.f32.gmra.mrb[0].mxu0 %v4892
    %v5280 = vpop.f32.mrb[0].mxu0
    %v5281 = vadd.f32 %v5165, %v5280
    %v5282 = vpop.f32.mrb[0].mxu0
    %v5283 = vadd.f32 %v5169, %v5282
    %5284 = vmatprep.mubr.f32.mxu0 %v4895
    %5285 = vmatmul.mubr.f32.gmra.mrb[0].mxu0 %v4894
    %v5286 = vpop.f32.mrb[0].mxu0
    %v5287 = vadd.f32 %v5165, %v5286
    %v5288 = vpop.f32.mrb[0].mxu0
    %v5289 = vadd.f32 %v5169, %v5288
    %5290 = vmatprep.mubr.f32.mxu0 %v4897
    %5291 = vmatmul.mubr.f32.gmra.mrb[0].mxu0 %v4896
    %v5292 = vpop.f32.mrb[0].mxu0
    %v5293 = vadd.f32 %v5165, %v5292
    %v5294 = vpop.f32.mrb[0].mxu0
    %v5295 = vadd.f32 %v5169, %v5294
    %5296 = vmatprep.mubr.f32.mxu0 %v4899
    %5297 = vmatmul.mubr.f32.gmra.mrb[0].mxu0 %v4898
    %v5298 = vpop.f32.mrb[0].mxu0
    %v5299 = vadd.f32 %v5165, %v5298
    %v5300 = vpop.f32.mrb[0].mxu0
    %v5301 = vadd.f32 %v5169, %v5300
    %5302 = vmatprep.mubr.f32.mxu0 %v4901
    %5303 = vmatmul.mubr.f32.gmra.mrb[0].mxu0 %v4900
    %v5304 = vpop.f32.mrb[0].mxu0
    %v5305 = vadd.f32 %v5165, %v5304
    %v5306 = vpop.f32.mrb[0].mxu0
    %v5307 = vadd.f32 %v5169, %v5306
    %5308 = vmatprep.mubr.f32.mxu0 %v4903
    %5309 = vmatmul.mubr.f32.gmra.mrb[0].mxu0 %v4902
    %v5310 = vpop.f32.mrb[0].mxu0
    %v5311 = vadd.f32 %v5165, %v5310
    %v5312 = vpop.f32.mrb[0].mxu0
    %v5313 = vadd.f32 %v5169, %v5312
    %5314 = vdwg.mxu0
    %5315 = vmatprep.subr.mxu0 %v4907
    %5316 = vmatpush1.msra.mxu0 %v4906
    %5317 = vmatprep.subr.mxu0 %v4915
    %5318 = vmatpush1.msra.mxu0 %v4914
    %5319 = vmatprep.subr.mxu0 %v4923
    %5320 = vmatpush1.msra.mxu0 %v4922
    %5321 = vmatprep.subr.mxu0 %v4931
    %5322 = vmatpush1.msra.mxu0 %v4930
    %5323 = vmatprep.subr.mxu0 %v4939
    %5324 = vmatpush1.msra.mxu0 %v4938
    %5325 = vmatprep.subr.mxu0 %v4947
    %5326 = vmatpush1.msra.mxu0 %v4946
    %5327 = vmatprep.subr.mxu0 %v4955
    %5328 = vmatpush1.msra.mxu0 %v4954
    %5329 = vmatprep.subr.mxu0 %v4963
    %5330 = vmatpush1.msra.mxu0 %v4962
    %5331 = vmatprep.subr.mxu0 %v4971
    %5332 = vmatpush1.msra.mxu0 %v4970
    %5333 = vmatprep.subr.mxu0 %v4979
    %5334 = vmatpush1.msra.mxu0 %v4978
    %5335 = vmatprep.subr.mxu0 %v4987
    %5336 = vmatpush1.msra.mxu0 %v4986
    %5337 = vmatprep.subr.mxu0 %v4995
    %5338 = vmatpush1.msra.mxu0 %v4994
    %5339 = vmatprep.subr.mxu0 %v5003
    %5340 = vmatpush1.msra.mxu0 %v5002
    %5341 = vmatprep.subr.mxu0 %v5011
    %5342 = vmatpush1.msra.mxu0 %v5010
    %5343 = vmatprep.subr.mxu0 %v5019
    %5344 = vmatpush1.msra.mxu0 %v5018
    %5345 = vmatprep.subr.mxu0 %v5027
    %5346 = vmatpush1.msra.mxu0 %v5026
    %5347 = vmatprep.subr.mxu0 %v5035
    %5348 = vmatpush1.msra.mxu0 %v5034
    %5349 = vmatprep.subr.mxu0 %v5043
    %5350 = vmatpush1.msra.mxu0 %v5042
    %5351 = vmatprep.subr.mxu0 %v5051
    %5352 = vmatpush1.msra.mxu0 %v5050
    %5353 = vmatprep.subr.mxu0 %v5059
    %5354 = vmatpush1.msra.mxu0 %v5058
    %5355 = vmatprep.subr.mxu0 %v5067
    %5356 = vmatpush1.msra.mxu0 %v5066
    %5357 = vmatprep.subr.mxu0 %v5075
    %5358 = vmatpush1.msra.mxu0 %v5074
    %5359 = vmatprep.subr.mxu0 %v5083
    %5360 = vmatpush1.msra.mxu0 %v5082
    %5361 = vmatprep.subr.mxu0 %v5091
    %5362 = vmatpush1.msra.mxu0 %v5090
    %5363 = vmatprep.subr.mxu0 %v5099
    %5364 = vmatpush1.msra.mxu0 %v5098
    %5365 = vmatprep.subr.mxu0 %v5107
    %5366 = vmatpush1.msra.mxu0 %v5106
    %5367 = vmatprep.subr.mxu0 %v5115
    %5368 = vmatpush1.msra.mxu0 %v5114
    %5369 = vmatprep.subr.mxu0 %v5123
    %5370 = vmatpush1.msra.mxu0 %v5122
    %5371 = vmatprep.subr.mxu0 %v5131
    %5372 = vmatpush1.msra.mxu0 %v5130
    %5373 = vmatprep.subr.mxu0 %v5139
    %5374 = vmatpush1.msra.mxu0 %v5138
    %5375 = vmatprep.subr.mxu0 %v5147
    %5376 = vmatpush1.msra.mxu0 %v5146
    %5377 = vmatprep.subr.mxu0 %v5155
    %5378 = vmatpush1.msra.mxu0 %v5154
    %5379 = vmatprep.mubr.f32.mxu0 %v4889
    %5380 = vmatmul.mubr.f32.gmra.mrb[0].mxu0 %v4888
    %v5381 = vpop.f32.mrb[0].mxu0
    %v5382 = vadd.f32 %v5173, %v5381
    %v5383 = vpop.f32.mrb[0].mxu0
    %v5384 = vadd.f32 %v5177, %v5383
    %5385 = vmatprep.mubr.f32.mxu0 %v4891
    %5386 = vmatmul.mubr.f32.gmra.mrb[0].mxu0 %v4890
    %v5387 = vpop.f32.mrb[0].mxu0
    %v5388 = vadd.f32 %v5173, %v5387
    %v5389 = vpop.f32.mrb[0].mxu0
    %v5390 = vadd.f32 %v5177, %v5389
    %5391 = vmatprep.mubr.f32.mxu0 %v4893
    %5392 = vmatmul.mubr.f32.gmra.mrb[0].mxu0 %v4892
    %v5393 = vpop.f32.mrb[0].mxu0
    %v5394 = vadd.f32 %v5173, %v5393
    %v5395 = vpop.f32.mrb[0].mxu0
    %v5396 = vadd.f32 %v5177, %v5395
    %5397 = vmatprep.mubr.f32.mxu0 %v4895
    %5398 = vmatmul.mubr.f32.gmra.mrb[0].mxu0 %v4894
    %v5399 = vpop.f32.mrb[0].mxu0
    %v5400 = vadd.f32 %v5173, %v5399
    %v5401 = vpop.f32.mrb[0].mxu0
    %v5402 = vadd.f32 %v5177, %v5401
    %5403 = vmatprep.mubr.f32.mxu0 %v4897
    %5404 = vmatmul.mubr.f32.gmra.mrb[0].mxu0 %v4896
    %v5405 = vpop.f32.mrb[0].mxu0
    %v5406 = vadd.f32 %v5173, %v5405
    %v5407 = vpop.f32.mrb[0].mxu0
    %v5408 = vadd.f32 %v5177, %v5407
    %5409 = vmatprep.mubr.f32.mxu0 %v4899
    %5410 = vmatmul.mubr.f32.gmra.mrb[0].mxu0 %v4898
    %v5411 = vpop.f32.mrb[0].mxu0
    %v5412 = vadd.f32 %v5173, %v5411
    %v5413 = vpop.f32.mrb[0].mxu0
    %v5414 = vadd.f32 %v5177, %v5413
    %5415 = vmatprep.mubr.f32.mxu0 %v4901
    %5416 = vmatmul.mubr.f32.gmra.mrb[0].mxu0 %v4900
    %v5417 = vpop.f32.mrb[0].mxu0
    %v5418 = vadd.f32 %v5173, %v5417
    %v5419 = vpop.f32.mrb[0].mxu0
    %v5420 = vadd.f32 %v5177, %v5419
    %5421 = vmatprep.mubr.f32.mxu0 %v4903
    %5422 = vmatmul.mubr.f32.gmra.mrb[0].mxu0 %v4902
    %v5423 = vpop.f32.mrb[0].mxu0
    %v5424 = vadd.f32 %v5173, %v5423
    %v5425 = vpop.f32.mrb[0].mxu0
    %v5426 = vadd.f32 %v5177, %v5425
    %5427 = vdwg.mxu0
    %5428 = vmatprep.subr.mxu0 %v4909
    %5429 = vmatpush1.msra.mxu0 %v4908
    %5430 = vmatprep.subr.mxu0 %v4917
    %5431 = vmatpush1.msra.mxu0 %v4916
    %5432 = vmatprep.subr.mxu0 %v4925
    %5433 = vmatpush1.msra.mxu0 %v4924
    %5434 = vmatprep.subr.mxu0 %v4933
    %5435 = vmatpush1.msra.mxu0 %v4932
    %5436 = vmatprep.subr.mxu0 %v4941
    %5437 = vmatpush1.msra.mxu0 %v4940
    %5438 = vmatprep.subr.mxu0 %v4949
    %5439 = vmatpush1.msra.mxu0 %v4948
    %5440 = vmatprep.subr.mxu0 %v4957
    %5441 = vmatpush1.msra.mxu0 %v4956
    %5442 = vmatprep.subr.mxu0 %v4965
    %5443 = vmatpush1.msra.mxu0 %v4964
    %5444 = vmatprep.subr.mxu0 %v4973
    %5445 = vmatpush1.msra.mxu0 %v4972
    %5446 = vmatprep.subr.mxu0 %v4981
    %5447 = vmatpush1.msra.mxu0 %v4980
    %5448 = vmatprep.subr.mxu0 %v4989
    %5449 = vmatpush1.msra.mxu0 %v4988
    %5450 = vmatprep.subr.mxu0 %v4997
    %5451 = vmatpush1.msra.mxu0 %v4996
    %5452 = vmatprep.subr.mxu0 %v5005
    %5453 = vmatpush1.msra.mxu0 %v5004
    %5454 = vmatprep.subr.mxu0 %v5013
    %5455 = vmatpush1.msra.mxu0 %v5012
    %5456 = vmatprep.subr.mxu0 %v5021
    %5457 = vmatpush1.msra.mxu0 %v5020
    %5458 = vmatprep.subr.mxu0 %v5029
    %5459 = vmatpush1.msra.mxu0 %v5028
    %5460 = vmatprep.subr.mxu0 %v5037
    %5461 = vmatpush1.msra.mxu0 %v5036
    %5462 = vmatprep.subr.mxu0 %v5045
    %5463 = vmatpush1.msra.mxu0 %v5044
    %5464 = vmatprep.subr.mxu0 %v5053
    %5465 = vmatpush1.msra.mxu0 %v5052
    %5466 = vmatprep.subr.mxu0 %v5061
    %5467 = vmatpush1.msra.mxu0 %v5060
    %5468 = vmatprep.subr.mxu0 %v5069
    %5469 = vmatpush1.msra.mxu0 %v5068
    %5470 = vmatprep.subr.mxu0 %v5077
    %5471 = vmatpush1.msra.mxu0 %v5076
    %5472 = vmatprep.subr.mxu0 %v5085
    %5473 = vmatpush1.msra.mxu0 %v5084
    %5474 = vmatprep.subr.mxu0 %v5093
    %5475 = vmatpush1.msra.mxu0 %v5092
    %5476 = vmatprep.subr.mxu0 %v5101
    %5477 = vmatpush1.msra.mxu0 %v5100
    %5478 = vmatprep.subr.mxu0 %v5109
    %5479 = vmatpush1.msra.mxu0 %v5108
    %5480 = vmatprep.subr.mxu0 %v5117
    %5481 = vmatpush1.msra.mxu0 %v5116
    %5482 = vmatprep.subr.mxu0 %v5125
    %5483 = vmatpush1.msra.mxu0 %v5124
    %5484 = vmatprep.subr.mxu0 %v5133
    %5485 = vmatpush1.msra.mxu0 %v5132
    %5486 = vmatprep.subr.mxu0 %v5141
    %5487 = vmatpush1.msra.mxu0 %v5140
    %5488 = vmatprep.subr.mxu0 %v5149
    %5489 = vmatpush1.msra.mxu0 %v5148
    %5490 = vmatprep.subr.mxu0 %v5157
    %5491 = vmatpush1.msra.mxu0 %v5156
    %5492 = vmatprep.mubr.f32.mxu0 %v4889
    %5493 = vmatmul.mubr.f32.gmra.mrb[0].mxu0 %v4888
    %v5494 = vpop.f32.mrb[0].mxu0
    %v5495 = vadd.f32 %v5181, %v5494
    %v5496 = vpop.f32.mrb[0].mxu0
    %v5497 = vadd.f32 %v5185, %v5496
    %5498 = vmatprep.mubr.f32.mxu0 %v4891
    %5499 = vmatmul.mubr.f32.gmra.mrb[0].mxu0 %v4890
    %v5500 = vpop.f32.mrb[0].mxu0
    %v5501 = vadd.f32 %v5181, %v5500
    %v5502 = vpop.f32.mrb[0].mxu0
    %v5503 = vadd.f32 %v5185, %v5502
    %5504 = vmatprep.mubr.f32.mxu0 %v4893
    %5505 = vmatmul.mubr.f32.gmra.mrb[0].mxu0 %v4892
    %v5506 = vpop.f32.mrb[0].mxu0
    %v5507 = vadd.f32 %v5181, %v5506
    %v5508 = vpop.f32.mrb[0].mxu0
    %v5509 = vadd.f32 %v5185, %v5508
    %5510 = vmatprep.mubr.f32.mxu0 %v4895
    %5511 = vmatmul.mubr.f32.gmra.mrb[0].mxu0 %v4894
    %v5512 = vpop.f32.mrb[0].mxu0
    %v5513 = vadd.f32 %v5181, %v5512
    %v5514 = vpop.f32.mrb[0].mxu0
    %v5515 = vadd.f32 %v5185, %v5514
    %5516 = vmatprep.mubr.f32.mxu0 %v4897
    %5517 = vmatmul.mubr.f32.gmra.mrb[0].mxu0 %v4896
    %v5518 = vpop.f32.mrb[0].mxu0
    %v5519 = vadd.f32 %v5181, %v5518
    %v5520 = vpop.f32.mrb[0].mxu0
    %v5521 = vadd.f32 %v5185, %v5520
    %5522 = vmatprep.mubr.f32.mxu0 %v4899
    %5523 = vmatmul.mubr.f32.gmra.mrb[0].mxu0 %v4898
    %v5524 = vpop.f32.mrb[0].mxu0
    %v5525 = vadd.f32 %v5181, %v5524
    %v5526 = vpop.f32.mrb[0].mxu0
    %v5527 = vadd.f32 %v5185, %v5526
    %5528 = vmatprep.mubr.f32.mxu0 %v4901
    %5529 = vmatmul.mubr.f32.gmra.mrb[0].mxu0 %v4900
    %v5530 = vpop.f32.mrb[0].mxu0
    %v5531 = vadd.f32 %v5181, %v5530
    %v5532 = vpop.f32.mrb[0].mxu0
    %v5533 = vadd.f32 %v5185, %v5532
    %5534 = vmatprep.mubr.f32.mxu0 %v4903
    %5535 = vmatmul.mubr.f32.gmra.mrb[0].mxu0 %v4902
    %v5536 = vpop.f32.mrb[0].mxu0
    %v5537 = vadd.f32 %v5181, %v5536
    %v5538 = vpop.f32.mrb[0].mxu0
    %v5539 = vadd.f32 %v5185, %v5538
    %5540 = vdwg.mxu0
    %5541 = vmatprep.subr.mxu0 %v4911
    %5542 = vmatpush1.msra.mxu0 %v4910
    %5543 = vmatprep.subr.mxu0 %v4919
    %5544 = vmatpush1.msra.mxu0 %v4918
    %5545 = vmatprep.subr.mxu0 %v4927
    %5546 = vmatpush1.msra.mxu0 %v4926
    %5547 = vmatprep.subr.mxu0 %v4935
    %5548 = vmatpush1.msra.mxu0 %v4934
    %5549 = vmatprep.subr.mxu0 %v4943
    %5550 = vmatpush1.msra.mxu0 %v4942
    %5551 = vmatprep.subr.mxu0 %v4951
    %5552 = vmatpush1.msra.mxu0 %v4950
    %5553 = vmatprep.subr.mxu0 %v4959
    %5554 = vmatpush1.msra.mxu0 %v4958
    %5555 = vmatprep.subr.mxu0 %v4967
    %5556 = vmatpush1.msra.mxu0 %v4966
    %5557 = vmatprep.subr.mxu0 %v4975
    %5558 = vmatpush1.msra.mxu0 %v4974
    %5559 = vmatprep.subr.mxu0 %v4983
    %5560 = vmatpush1.msra.mxu0 %v4982
    %5561 = vmatprep.subr.mxu0 %v4991
    %5562 = vmatpush1.msra.mxu0 %v4990
    %5563 = vmatprep.subr.mxu0 %v4999
    %5564 = vmatpush1.msra.mxu0 %v4998
    %5565 = vmatprep.subr.mxu0 %v5007
    %5566 = vmatpush1.msra.mxu0 %v5006
    %5567 = vmatprep.subr.mxu0 %v5015
    %5568 = vmatpush1.msra.mxu0 %v5014
    %5569 = vmatprep.subr.mxu0 %v5023
    %5570 = vmatpush1.msra.mxu0 %v5022
    %5571 = vmatprep.subr.mxu0 %v5031
    %5572 = vmatpush1.msra.mxu0 %v5030
    %5573 = vmatprep.subr.mxu0 %v5039
    %5574 = vmatpush1.msra.mxu0 %v5038
    %5575 = vmatprep.subr.mxu0 %v5047
    %5576 = vmatpush1.msra.mxu0 %v5046
    %5577 = vmatprep.subr.mxu0 %v5055
    %5578 = vmatpush1.msra.mxu0 %v5054
    %5579 = vmatprep.subr.mxu0 %v5063
    %5580 = vmatpush1.msra.mxu0 %v5062
    %5581 = vmatprep.subr.mxu0 %v5071
    %5582 = vmatpush1.msra.mxu0 %v5070
    %5583 = vmatprep.subr.mxu0 %v5079
    %5584 = vmatpush1.msra.mxu0 %v5078
    %5585 = vmatprep.subr.mxu0 %v5087
    %5586 = vmatpush1.msra.mxu0 %v5086
    %5587 = vmatprep.subr.mxu0 %v5095
    %5588 = vmatpush1.msra.mxu0 %v5094
    %5589 = vmatprep.subr.mxu0 %v5103
    %5590 = vmatpush1.msra.mxu0 %v5102
    %5591 = vmatprep.subr.mxu0 %v5111
    %5592 = vmatpush1.msra.mxu0 %v5110
    %5593 = vmatprep.subr.mxu0 %v5119
    %5594 = vmatpush1.msra.mxu0 %v5118
    %5595 = vmatprep.subr.mxu0 %v5127
    %5596 = vmatpush1.msra.mxu0 %v5126
    %5597 = vmatprep.subr.mxu0 %v5135
    %5598 = vmatpush1.msra.mxu0 %v5134
    %5599 = vmatprep.subr.mxu0 %v5143
    %5600 = vmatpush1.msra.mxu0 %v5142
    %5601 = vmatprep.subr.mxu0 %v5151
    %5602 = vmatpush1.msra.mxu0 %v5150
    %5603 = vmatprep.subr.mxu0 %v5159
    %5604 = vmatpush1.msra.mxu0 %v5158
    %5605 = vmatprep.mubr.f32.mxu0 %v4889
    %5606 = vmatmul.mubr.f32.gmra.mrb[0].mxu0 %v4888
    %v5607 = vpop.f32.mrb[0].mxu0
    %v5608 = vadd.f32 %v5189, %v5607
    %v5609 = vpop.f32.mrb[0].mxu0
    %v5610 = vadd.f32 %v5193, %v5609
    %5611 = vmatprep.mubr.f32.mxu0 %v4891
    %5612 = vmatmul.mubr.f32.gmra.mrb[0].mxu0 %v4890
    %v5613 = vpop.f32.mrb[0].mxu0
    %v5614 = vadd.f32 %v5189, %v5613
    %v5615 = vpop.f32.mrb[0].mxu0
    %v5616 = vadd.f32 %v5193, %v5615
    %5617 = vmatprep.mubr.f32.mxu0 %v4893
    %5618 = vmatmul.mubr.f32.gmra.mrb[0].mxu0 %v4892
    %v5619 = vpop.f32.mrb[0].mxu0
    %v5620 = vadd.f32 %v5189, %v5619
    %v5621 = vpop.f32.mrb[0].mxu0
    %v5622 = vadd.f32 %v5193, %v5621
    %5623 = vmatprep.mubr.f32.mxu0 %v4895
    %5624 = vmatmul.mubr.f32.gmra.mrb[0].mxu0 %v4894
    %v5625 = vpop.f32.mrb[0].mxu0
    %v5626 = vadd.f32 %v5189, %v5625
    %v5627 = vpop.f32.mrb[0].mxu0
    %v5628 = vadd.f32 %v5193, %v5627
    %5629 = vmatprep.mubr.f32.mxu0 %v4897
    %5630 = vmatmul.mubr.f32.gmra.mrb[0].mxu0 %v4896
    %v5631 = vpop.f32.mrb[0].mxu0
    %v5632 = vadd.f32 %v5189, %v5631
    %v5633 = vpop.f32.mrb[0].mxu0
    %v5634 = vadd.f32 %v5193, %v5633
    %5635 = vmatprep.mubr.f32.mxu0 %v4899
    %5636 = vmatmul.mubr.f32.gmra.mrb[0].mxu0 %v4898
    %v5637 = vpop.f32.mrb[0].mxu0
    %v5638 = vadd.f32 %v5189, %v5637
    %v5639 = vpop.f32.mrb[0].mxu0
    %v5640 = vadd.f32 %v5193, %v5639
    %5641 = vmatprep.mubr.f32.mxu0 %v4901
    %5642 = vmatmul.mubr.f32.gmra.mrb[0].mxu0 %v4900
    %v5643 = vpop.f32.mrb[0].mxu0
    %v5644 = vadd.f32 %v5189, %v5643
    %v5645 = vpop.f32.mrb[0].mxu0
    %v5646 = vadd.f32 %v5193, %v5645
    %5647 = vmatprep.mubr.f32.mxu0 %v4903
    %5648 = vmatmul.mubr.f32.gmra.mrb[0].mxu0 %v4902
    %v5649 = vpop.f32.mrb[0].mxu0
    %v5650 = vadd.f32 %v5189, %v5649
    %v5651 = vpop.f32.mrb[0].mxu0
    %v5652 = vadd.f32 %v5193, %v5651
    %5653 = vdwg.mxu0
    %5654 = vst [vmem:[#allocation3] sm:$0xff] %v5269
    %5655 = vst [vmem:[#allocation3 + $0x8] sm:$0xff] %v5271
    %5656 = vst [vmem:[#allocation3 + $0x10] sm:$0xff] %v5382
    %5657 = vst [vmem:[#allocation3 + $0x18] sm:$0xff] %v5384
    %5658 = vst [vmem:[#allocation3 + $0x20] sm:$0xff] %v5495
    %5659 = vst [vmem:[#allocation3 + $0x28] sm:$0xff] %v5497
    %5660 = vst [vmem:[#allocation3 + $0x30] sm:$0xff] %v5608
    %5661 = vst [vmem:[#allocation3 + $0x38] sm:$0xff] %v5610
    %5662 = vst [vmem:[#allocation3 + $0x40] sm:$0xff] %v5275
    %5663 = vst [vmem:[#allocation3 + $0x48] sm:$0xff] %v5277
    %5664 = vst [vmem:[#allocation3 + $0x50] sm:$0xff] %v5388
    %5665 = vst [vmem:[#allocation3 + $0x58] sm:$0xff] %v5390
    %5666 = vst [vmem:[#allocation3 + $0x60] sm:$0xff] %v5501
    %5667 = vst [vmem:[#allocation3 + $0x68] sm:$0xff] %v5503
    %5668 = vst [vmem:[#allocation3 + $0x70] sm:$0xff] %v5614
    %5669 = vst [vmem:[#allocation3 + $0x78] sm:$0xff] %v5616
    %5670 = vst [vmem:[#allocation3 + $0x80] sm:$0xff] %v5281
    %5671 = vst [vmem:[#allocation3 + $0x88] sm:$0xff] %v5283
    %5672 = vst [vmem:[#allocation3 + $0x90] sm:$0xff] %v5394
    %5673 = vst [vmem:[#allocation3 + $0x98] sm:$0xff] %v5396
    %5674 = vst [vmem:[#allocation3 + $0xa0] sm:$0xff] %v5507
    %5675 = vst [vmem:[#allocation3 + $0xa8] sm:$0xff] %v5509
    %5676 = vst [vmem:[#allocation3 + $0xb0] sm:$0xff] %v5620
    %5677 = vst [vmem:[#allocation3 + $0xb8] sm:$0xff] %v5622
    %5678 = vst [vmem:[#allocation3 + $0xc0] sm:$0xff] %v5287
    %5679 = vst [vmem:[#allocation3 + $0xc8] sm:$0xff] %v5289
    %5680 = vst [vmem:[#allocation3 + $0xd0] sm:$0xff] %v5400
    %5681 = vst [vmem:[#allocation3 + $0xd8] sm:$0xff] %v5402
    %5682 = vst [vmem:[#allocation3 + $0xe0] sm:$0xff] %v5513
    %5683 = vst [vmem:[#allocation3 + $0xe8] sm:$0xff] %v5515
    %5684 = vst [vmem:[#allocation3 + $0xf0] sm:$0xff] %v5626
    %5685 = vst [vmem:[#allocation3 + $0xf8] sm:$0xff] %v5628
    %5686 = vst [vmem:[#allocation3 + $0x100] sm:$0xff] %v5293
    %5687 = vst [vmem:[#allocation3 + $0x108] sm:$0xff] %v5295
    %5688 = vst [vmem:[#allocation3 + $0x110] sm:$0xff] %v5406
    %5689 = vst [vmem:[#allocation3 + $0x118] sm:$0xff] %v5408
    %5690 = vst [vmem:[#allocation3 + $0x120] sm:$0xff] %v5519
    %5691 = vst [vmem:[#allocation3 + $0x128] sm:$0xff] %v5521
    %5692 = vst [vmem:[#allocation3 + $0x130] sm:$0xff] %v5632
    %5693 = vst [vmem:[#allocation3 + $0x138] sm:$0xff] %v5634
    %5694 = vst [vmem:[#allocation3 + $0x140] sm:$0xff] %v5299
    %5695 = vst [vmem:[#allocation3 + $0x148] sm:$0xff] %v5301
    %5696 = vst [vmem:[#allocation3 + $0x150] sm:$0xff] %v5412
    %5697 = vst [vmem:[#allocation3 + $0x158] sm:$0xff] %v5414
    %5698 = vst [vmem:[#allocation3 + $0x160] sm:$0xff] %v5525
    %5699 = vst [vmem:[#allocation3 + $0x168] sm:$0xff] %v5527
    %5700 = vst [vmem:[#allocation3 + $0x170] sm:$0xff] %v5638
    %5701 = vst [vmem:[#allocation3 + $0x178] sm:$0xff] %v5640
    %5702 = vst [vmem:[#allocation3 + $0x180] sm:$0xff] %v5305
    %5703 = vst [vmem:[#allocation3 + $0x188] sm:$0xff] %v5307
    %5704 = vst [vmem:[#allocation3 + $0x190] sm:$0xff] %v5418
    %5705 = vst [vmem:[#allocation3 + $0x198] sm:$0xff] %v5420
    %5706 = vst [vmem:[#allocation3 + $0x1a0] sm:$0xff] %v5531
    %5707 = vst [vmem:[#allocation3 + $0x1a8] sm:$0xff] %v5533
    %5708 = vst [vmem:[#allocation3 + $0x1b0] sm:$0xff] %v5644
    %5709 = vst [vmem:[#allocation3 + $0x1b8] sm:$0xff] %v5646
    %5710 = vst [vmem:[#allocation3 + $0x1c0] sm:$0xff] %v5311
    %5711 = vst [vmem:[#allocation3 + $0x1c8] sm:$0xff] %v5313
    %5712 = vst [vmem:[#allocation3 + $0x1d0] sm:$0xff] %v5424
    %5713 = vst [vmem:[#allocation3 + $0x1d8] sm:$0xff] %v5426
    %5714 = vst [vmem:[#allocation3 + $0x1e0] sm:$0xff] %v5537
    %5715 = vst [vmem:[#allocation3 + $0x1e8] sm:$0xff] %v5539
    %5716 = vst [vmem:[#allocation3 + $0x1f0] sm:$0xff] %v5650
    %5717 = vst [vmem:[#allocation3 + $0x1f8] sm:$0xff] %v5652
    %v5718 = vld [vmem:[#allocation3] sm:$0xff]
    %v5719 = vld [vmem:[#allocation3 + $0x8] sm:$0xff]
    %v5720 = vld [vmem:[#allocation3 + $0x10] sm:$0xff]
    %v5721 = vld [vmem:[#allocation3 + $0x18] sm:$0xff]
    %v5722 = vld [vmem:[#allocation3 + $0x20] sm:$0xff]
    %v5723 = vld [vmem:[#allocation3 + $0x28] sm:$0xff]
    %v5724 = vld [vmem:[#allocation3 + $0x30] sm:$0xff]
    %v5725 = vld [vmem:[#allocation3 + $0x38] sm:$0xff]
    %v5726 = vld [vmem:[#allocation4] sm:$0xff]
    %v5727 = vld [vmem:[#allocation4 + $0x8] sm:$0xff]
    %v5728 = vld [vmem:[#allocation4 + $0x10] sm:$0xff]
    %v5729 = vld [vmem:[#allocation4 + $0x18] sm:$0xff]
    %v5730 = vld [vmem:[#allocation4 + $0x20] sm:$0xff]
    %v5731 = vld [vmem:[#allocation4 + $0x28] sm:$0xff]
    %v5732 = vld [vmem:[#allocation4 + $0x30] sm:$0xff]
    %v5733 = vld [vmem:[#allocation4 + $0x38] sm:$0xff]
    %v5734 = vld [vmem:[#allocation4 + $0x40] sm:$0xff]
    %v5735 = vld [vmem:[#allocation4 + $0x48] sm:$0xff]
    %v5736 = vld [vmem:[#allocation4 + $0x50] sm:$0xff]
    %v5737 = vld [vmem:[#allocation4 + $0x58] sm:$0xff]
    %v5738 = vld [vmem:[#allocation4 + $0x60] sm:$0xff]
    %v5739 = vld [vmem:[#allocation4 + $0x68] sm:$0xff]
    %v5740 = vld [vmem:[#allocation4 + $0x70] sm:$0xff]
    %v5741 = vld [vmem:[#allocation4 + $0x78] sm:$0xff]
    %v5742 = vld [vmem:[#allocation4 + $0x80] sm:$0xff]
    %v5743 = vld [vmem:[#allocation4 + $0x88] sm:$0xff]
    %v5744 = vld [vmem:[#allocation4 + $0x90] sm:$0xff]
    %v5745 = vld [vmem:[#allocation4 + $0x98] sm:$0xff]
    %v5746 = vld [vmem:[#allocation4 + $0xa0] sm:$0xff]
    %v5747 = vld [vmem:[#allocation4 + $0xa8] sm:$0xff]
    %v5748 = vld [vmem:[#allocation4 + $0xb0] sm:$0xff]
    %v5749 = vld [vmem:[#allocation4 + $0xb8] sm:$0xff]
    %v5750 = vld [vmem:[#allocation4 + $0xc0] sm:$0xff]
    %v5751 = vld [vmem:[#allocation4 + $0xc8] sm:$0xff]
    %v5752 = vld [vmem:[#allocation4 + $0xd0] sm:$0xff]
    %v5753 = vld [vmem:[#allocation4 + $0xd8] sm:$0xff]
    %v5754 = vld [vmem:[#allocation4 + $0xe0] sm:$0xff]
    %v5755 = vld [vmem:[#allocation4 + $0xe8] sm:$0xff]
    %v5756 = vld [vmem:[#allocation4 + $0xf0] sm:$0xff]
    %v5757 = vld [vmem:[#allocation4 + $0xf8] sm:$0xff]
    %v5758 = vld [vmem:[#allocation4 + $0x100] sm:$0xff]
    %v5759 = vld [vmem:[#allocation4 + $0x108] sm:$0xff]
    %v5760 = vld [vmem:[#allocation4 + $0x110] sm:$0xff]
    %v5761 = vld [vmem:[#allocation4 + $0x118] sm:$0xff]
    %v5762 = vld [vmem:[#allocation4 + $0x120] sm:$0xff]
    %v5763 = vld [vmem:[#allocation4 + $0x128] sm:$0xff]
    %v5764 = vld [vmem:[#allocation4 + $0x130] sm:$0xff]
    %v5765 = vld [vmem:[#allocation4 + $0x138] sm:$0xff]
    %v5766 = vld [vmem:[#allocation4 + $0x140] sm:$0xff]
    %v5767 = vld [vmem:[#allocation4 + $0x148] sm:$0xff]
    %v5768 = vld [vmem:[#allocation4 + $0x150] sm:$0xff]
    %v5769 = vld [vmem:[#allocation4 + $0x158] sm:$0xff]
    %v5770 = vld [vmem:[#allocation4 + $0x160] sm:$0xff]
    %v5771 = vld [vmem:[#allocation4 + $0x168] sm:$0xff]
    %v5772 = vld [vmem:[#allocation4 + $0x170] sm:$0xff]
    %v5773 = vld [vmem:[#allocation4 + $0x178] sm:$0xff]
    %v5774 = vld [vmem:[#allocation4 + $0x180] sm:$0xff]
    %v5775 = vld [vmem:[#allocation4 + $0x188] sm:$0xff]
    %v5776 = vld [vmem:[#allocation4 + $0x190] sm:$0xff]
    %v5777 = vld [vmem:[#allocation4 + $0x198] sm:$0xff]
    %v5778 = vld [vmem:[#allocation4 + $0x1a0] sm:$0xff]
    %v5779 = vld [vmem:[#allocation4 + $0x1a8] sm:$0xff]
    %v5780 = vld [vmem:[#allocation4 + $0x1b0] sm:$0xff]
    %v5781 = vld [vmem:[#allocation4 + $0x1b8] sm:$0xff]
    %v5782 = vld [vmem:[#allocation4 + $0x1c0] sm:$0xff]
    %v5783 = vld [vmem:[#allocation4 + $0x1c8] sm:$0xff]
    %v5784 = vld [vmem:[#allocation4 + $0x1d0] sm:$0xff]
    %v5785 = vld [vmem:[#allocation4 + $0x1d8] sm:$0xff]
    %v5786 = vld [vmem:[#allocation4 + $0x1e0] sm:$0xff]
    %v5787 = vld [vmem:[#allocation4 + $0x1e8] sm:$0xff]
    %v5788 = vld [vmem:[#allocation4 + $0x1f0] sm:$0xff]
    %v5789 = vld [vmem:[#allocation4 + $0x1f8] sm:$0xff]
    %v5790 = vld [vmem:[#allocation4 + $0x200] sm:$0xff]
    %v5791 = vld [vmem:[#allocation4 + $0x208] sm:$0xff]
    %v5792 = vld [vmem:[#allocation4 + $0x210] sm:$0xff]
    %v5793 = vld [vmem:[#allocation4 + $0x218] sm:$0xff]
    %v5794 = vld [vmem:[#allocation4 + $0x220] sm:$0xff]
    %v5795 = vld [vmem:[#allocation4 + $0x228] sm:$0xff]
    %v5796 = vld [vmem:[#allocation4 + $0x230] sm:$0xff]
    %v5797 = vld [vmem:[#allocation4 + $0x238] sm:$0xff]
    %v5798 = vld [vmem:[#allocation4 + $0x240] sm:$0xff]
    %v5799 = vld [vmem:[#allocation4 + $0x248] sm:$0xff]
    %v5800 = vld [vmem:[#allocation4 + $0x250] sm:$0xff]
    %v5801 = vld [vmem:[#allocation4 + $0x258] sm:$0xff]
    %v5802 = vld [vmem:[#allocation4 + $0x260] sm:$0xff]
    %v5803 = vld [vmem:[#allocation4 + $0x268] sm:$0xff]
    %v5804 = vld [vmem:[#allocation4 + $0x270] sm:$0xff]
    %v5805 = vld [vmem:[#allocation4 + $0x278] sm:$0xff]
    %v5806 = vld [vmem:[#allocation4 + $0x280] sm:$0xff]
    %v5807 = vld [vmem:[#allocation4 + $0x288] sm:$0xff]
    %v5808 = vld [vmem:[#allocation4 + $0x290] sm:$0xff]
    %v5809 = vld [vmem:[#allocation4 + $0x298] sm:$0xff]
    %v5810 = vld [vmem:[#allocation4 + $0x2a0] sm:$0xff]
    %v5811 = vld [vmem:[#allocation4 + $0x2a8] sm:$0xff]
    %v5812 = vld [vmem:[#allocation4 + $0x2b0] sm:$0xff]
    %v5813 = vld [vmem:[#allocation4 + $0x2b8] sm:$0xff]
    %v5814 = vld [vmem:[#allocation4 + $0x2c0] sm:$0xff]
    %v5815 = vld [vmem:[#allocation4 + $0x2c8] sm:$0xff]
    %v5816 = vld [vmem:[#allocation4 + $0x2d0] sm:$0xff]
    %v5817 = vld [vmem:[#allocation4 + $0x2d8] sm:$0xff]
    %v5818 = vld [vmem:[#allocation4 + $0x2e0] sm:$0xff]
    %v5819 = vld [vmem:[#allocation4 + $0x2e8] sm:$0xff]
    %v5820 = vld [vmem:[#allocation4 + $0x2f0] sm:$0xff]
    %v5821 = vld [vmem:[#allocation4 + $0x2f8] sm:$0xff]
    %v5822 = vld [vmem:[#allocation4 + $0x300] sm:$0xff]
    %v5823 = vld [vmem:[#allocation4 + $0x308] sm:$0xff]
    %v5824 = vld [vmem:[#allocation4 + $0x310] sm:$0xff]
    %v5825 = vld [vmem:[#allocation4 + $0x318] sm:$0xff]
    %v5826 = vld [vmem:[#allocation4 + $0x320] sm:$0xff]
    %v5827 = vld [vmem:[#allocation4 + $0x328] sm:$0xff]
    %v5828 = vld [vmem:[#allocation4 + $0x330] sm:$0xff]
    %v5829 = vld [vmem:[#allocation4 + $0x338] sm:$0xff]
    %v5830 = vld [vmem:[#allocation4 + $0x340] sm:$0xff]
    %v5831 = vld [vmem:[#allocation4 + $0x348] sm:$0xff]
    %v5832 = vld [vmem:[#allocation4 + $0x350] sm:$0xff]
    %v5833 = vld [vmem:[#allocation4 + $0x358] sm:$0xff]
    %v5834 = vld [vmem:[#allocation4 + $0x360] sm:$0xff]
    %v5835 = vld [vmem:[#allocation4 + $0x368] sm:$0xff]
    %v5836 = vld [vmem:[#allocation4 + $0x370] sm:$0xff]
    %v5837 = vld [vmem:[#allocation4 + $0x378] sm:$0xff]
    %v5838 = vld [vmem:[#allocation4 + $0x380] sm:$0xff]
    %v5839 = vld [vmem:[#allocation4 + $0x388] sm:$0xff]
    %v5840 = vld [vmem:[#allocation4 + $0x390] sm:$0xff]
    %v5841 = vld [vmem:[#allocation4 + $0x398] sm:$0xff]
    %v5842 = vld [vmem:[#allocation4 + $0x3a0] sm:$0xff]
    %v5843 = vld [vmem:[#allocation4 + $0x3a8] sm:$0xff]
    %v5844 = vld [vmem:[#allocation4 + $0x3b0] sm:$0xff]
    %v5845 = vld [vmem:[#allocation4 + $0x3b8] sm:$0xff]
    %v5846 = vld [vmem:[#allocation4 + $0x3c0] sm:$0xff]
    %v5847 = vld [vmem:[#allocation4 + $0x3c8] sm:$0xff]
    %v5848 = vld [vmem:[#allocation4 + $0x3d0] sm:$0xff]
    %v5849 = vld [vmem:[#allocation4 + $0x3d8] sm:$0xff]
    %v5850 = vld [vmem:[#allocation4 + $0x3e0] sm:$0xff]
    %v5851 = vld [vmem:[#allocation4 + $0x3e8] sm:$0xff]
    %v5852 = vld [vmem:[#allocation4 + $0x3f0] sm:$0xff]
    %v5853 = vld [vmem:[#allocation4 + $0x3f8] sm:$0xff]
    %v5854 = vld [vmem:[#allocation4 + $0x400] sm:$0xff]
    %v5855 = vld [vmem:[#allocation4 + $0x408] sm:$0xff]
    %v5856 = vld [vmem:[#allocation4 + $0x410] sm:$0xff]
    %v5857 = vld [vmem:[#allocation4 + $0x418] sm:$0xff]
    %v5858 = vld [vmem:[#allocation4 + $0x420] sm:$0xff]
    %v5859 = vld [vmem:[#allocation4 + $0x428] sm:$0xff]
    %v5860 = vld [vmem:[#allocation4 + $0x430] sm:$0xff]
    %v5861 = vld [vmem:[#allocation4 + $0x438] sm:$0xff]
    %v5862 = vld [vmem:[#allocation4 + $0x440] sm:$0xff]
    %v5863 = vld [vmem:[#allocation4 + $0x448] sm:$0xff]
    %v5864 = vld [vmem:[#allocation4 + $0x450] sm:$0xff]
    %v5865 = vld [vmem:[#allocation4 + $0x458] sm:$0xff]
    %v5866 = vld [vmem:[#allocation4 + $0x460] sm:$0xff]
    %v5867 = vld [vmem:[#allocation4 + $0x468] sm:$0xff]
    %v5868 = vld [vmem:[#allocation4 + $0x470] sm:$0xff]
    %v5869 = vld [vmem:[#allocation4 + $0x478] sm:$0xff]
    %v5870 = vld [vmem:[#allocation4 + $0x480] sm:$0xff]
    %v5871 = vld [vmem:[#allocation4 + $0x488] sm:$0xff]
    %v5872 = vld [vmem:[#allocation4 + $0x490] sm:$0xff]
    %v5873 = vld [vmem:[#allocation4 + $0x498] sm:$0xff]
    %v5874 = vld [vmem:[#allocation4 + $0x4a0] sm:$0xff]
    %v5875 = vld [vmem:[#allocation4 + $0x4a8] sm:$0xff]
    %v5876 = vld [vmem:[#allocation4 + $0x4b0] sm:$0xff]
    %v5877 = vld [vmem:[#allocation4 + $0x4b8] sm:$0xff]
    %v5878 = vld [vmem:[#allocation4 + $0x4c0] sm:$0xff]
    %v5879 = vld [vmem:[#allocation4 + $0x4c8] sm:$0xff]
    %v5880 = vld [vmem:[#allocation4 + $0x4d0] sm:$0xff]
    %v5881 = vld [vmem:[#allocation4 + $0x4d8] sm:$0xff]
    %v5882 = vld [vmem:[#allocation4 + $0x4e0] sm:$0xff]
    %v5883 = vld [vmem:[#allocation4 + $0x4e8] sm:$0xff]
    %v5884 = vld [vmem:[#allocation4 + $0x4f0] sm:$0xff]
    %v5885 = vld [vmem:[#allocation4 + $0x4f8] sm:$0xff]
    %v5886 = vld [vmem:[#allocation4 + $0x500] sm:$0xff]
    %v5887 = vld [vmem:[#allocation4 + $0x508] sm:$0xff]
    %v5888 = vld [vmem:[#allocation4 + $0x510] sm:$0xff]
    %v5889 = vld [vmem:[#allocation4 + $0x518] sm:$0xff]
    %v5890 = vld [vmem:[#allocation4 + $0x520] sm:$0xff]
    %v5891 = vld [vmem:[#allocation4 + $0x528] sm:$0xff]
    %v5892 = vld [vmem:[#allocation4 + $0x530] sm:$0xff]
    %v5893 = vld [vmem:[#allocation4 + $0x538] sm:$0xff]
    %v5894 = vld [vmem:[#allocation4 + $0x540] sm:$0xff]
    %v5895 = vld [vmem:[#allocation4 + $0x548] sm:$0xff]
    %v5896 = vld [vmem:[#allocation4 + $0x550] sm:$0xff]
    %v5897 = vld [vmem:[#allocation4 + $0x558] sm:$0xff]
    %v5898 = vld [vmem:[#allocation4 + $0x560] sm:$0xff]
    %v5899 = vld [vmem:[#allocation4 + $0x568] sm:$0xff]
    %v5900 = vld [vmem:[#allocation4 + $0x570] sm:$0xff]
    %v5901 = vld [vmem:[#allocation4 + $0x578] sm:$0xff]
    %v5902 = vld [vmem:[#allocation4 + $0x580] sm:$0xff]
    %v5903 = vld [vmem:[#allocation4 + $0x588] sm:$0xff]
    %v5904 = vld [vmem:[#allocation4 + $0x590] sm:$0xff]
    %v5905 = vld [vmem:[#allocation4 + $0x598] sm:$0xff]
    %v5906 = vld [vmem:[#allocation4 + $0x5a0] sm:$0xff]
    %v5907 = vld [vmem:[#allocation4 + $0x5a8] sm:$0xff]
    %v5908 = vld [vmem:[#allocation4 + $0x5b0] sm:$0xff]
    %v5909 = vld [vmem:[#allocation4 + $0x5b8] sm:$0xff]
    %v5910 = vld [vmem:[#allocation4 + $0x5c0] sm:$0xff]
    %v5911 = vld [vmem:[#allocation4 + $0x5c8] sm:$0xff]
    %v5912 = vld [vmem:[#allocation4 + $0x5d0] sm:$0xff]
    %v5913 = vld [vmem:[#allocation4 + $0x5d8] sm:$0xff]
    %v5914 = vld [vmem:[#allocation4 + $0x5e0] sm:$0xff]
    %v5915 = vld [vmem:[#allocation4 + $0x5e8] sm:$0xff]
    %v5916 = vld [vmem:[#allocation4 + $0x5f0] sm:$0xff]
    %v5917 = vld [vmem:[#allocation4 + $0x5f8] sm:$0xff]
    %v5918 = vld [vmem:[#allocation4 + $0x600] sm:$0xff]
    %v5919 = vld [vmem:[#allocation4 + $0x608] sm:$0xff]
    %v5920 = vld [vmem:[#allocation4 + $0x610] sm:$0xff]
    %v5921 = vld [vmem:[#allocation4 + $0x618] sm:$0xff]
    %v5922 = vld [vmem:[#allocation4 + $0x620] sm:$0xff]
    %v5923 = vld [vmem:[#allocation4 + $0x628] sm:$0xff]
    %v5924 = vld [vmem:[#allocation4 + $0x630] sm:$0xff]
    %v5925 = vld [vmem:[#allocation4 + $0x638] sm:$0xff]
    %v5926 = vld [vmem:[#allocation4 + $0x640] sm:$0xff]
    %v5927 = vld [vmem:[#allocation4 + $0x648] sm:$0xff]
    %v5928 = vld [vmem:[#allocation4 + $0x650] sm:$0xff]
    %v5929 = vld [vmem:[#allocation4 + $0x658] sm:$0xff]
    %v5930 = vld [vmem:[#allocation4 + $0x660] sm:$0xff]
    %v5931 = vld [vmem:[#allocation4 + $0x668] sm:$0xff]
    %v5932 = vld [vmem:[#allocation4 + $0x670] sm:$0xff]
    %v5933 = vld [vmem:[#allocation4 + $0x678] sm:$0xff]
    %v5934 = vld [vmem:[#allocation4 + $0x680] sm:$0xff]
    %v5935 = vld [vmem:[#allocation4 + $0x688] sm:$0xff]
    %v5936 = vld [vmem:[#allocation4 + $0x690] sm:$0xff]
    %v5937 = vld [vmem:[#allocation4 + $0x698] sm:$0xff]
    %v5938 = vld [vmem:[#allocation4 + $0x6a0] sm:$0xff]
    %v5939 = vld [vmem:[#allocation4 + $0x6a8] sm:$0xff]
    %v5940 = vld [vmem:[#allocation4 + $0x6b0] sm:$0xff]
    %v5941 = vld [vmem:[#allocation4 + $0x6b8] sm:$0xff]
    %v5942 = vld [vmem:[#allocation4 + $0x6c0] sm:$0xff]
    %v5943 = vld [vmem:[#allocation4 + $0x6c8] sm:$0xff]
    %v5944 = vld [vmem:[#allocation4 + $0x6d0] sm:$0xff]
    %v5945 = vld [vmem:[#allocation4 + $0x6d8] sm:$0xff]
    %v5946 = vld [vmem:[#allocation4 + $0x6e0] sm:$0xff]
    %v5947 = vld [vmem:[#allocation4 + $0x6e8] sm:$0xff]
    %v5948 = vld [vmem:[#allocation4 + $0x6f0] sm:$0xff]
    %v5949 = vld [vmem:[#allocation4 + $0x6f8] sm:$0xff]
    %v5950 = vld [vmem:[#allocation4 + $0x700] sm:$0xff]
    %v5951 = vld [vmem:[#allocation4 + $0x708] sm:$0xff]
    %v5952 = vld [vmem:[#allocation4 + $0x710] sm:$0xff]
    %v5953 = vld [vmem:[#allocation4 + $0x718] sm:$0xff]
    %v5954 = vld [vmem:[#allocation4 + $0x720] sm:$0xff]
    %v5955 = vld [vmem:[#allocation4 + $0x728] sm:$0xff]
    %v5956 = vld [vmem:[#allocation4 + $0x730] sm:$0xff]
    %v5957 = vld [vmem:[#allocation4 + $0x738] sm:$0xff]
    %v5958 = vld [vmem:[#allocation4 + $0x740] sm:$0xff]
    %v5959 = vld [vmem:[#allocation4 + $0x748] sm:$0xff]
    %v5960 = vld [vmem:[#allocation4 + $0x750] sm:$0xff]
    %v5961 = vld [vmem:[#allocation4 + $0x758] sm:$0xff]
    %v5962 = vld [vmem:[#allocation4 + $0x760] sm:$0xff]
    %v5963 = vld [vmem:[#allocation4 + $0x768] sm:$0xff]
    %v5964 = vld [vmem:[#allocation4 + $0x770] sm:$0xff]
    %v5965 = vld [vmem:[#allocation4 + $0x778] sm:$0xff]
    %v5966 = vld [vmem:[#allocation4 + $0x780] sm:$0xff]
    %v5967 = vld [vmem:[#allocation4 + $0x788] sm:$0xff]
    %v5968 = vld [vmem:[#allocation4 + $0x790] sm:$0xff]
    %v5969 = vld [vmem:[#allocation4 + $0x798] sm:$0xff]
    %v5970 = vld [vmem:[#allocation4 + $0x7a0] sm:$0xff]
    %v5971 = vld [vmem:[#allocation4 + $0x7a8] sm:$0xff]
    %v5972 = vld [vmem:[#allocation4 + $0x7b0] sm:$0xff]
    %v5973 = vld [vmem:[#allocation4 + $0x7b8] sm:$0xff]
    %v5974 = vld [vmem:[#allocation4 + $0x7c0] sm:$0xff]
    %v5975 = vld [vmem:[#allocation4 + $0x7c8] sm:$0xff]
    %v5976 = vld [vmem:[#allocation4 + $0x7d0] sm:$0xff]
    %v5977 = vld [vmem:[#allocation4 + $0x7d8] sm:$0xff]
    %v5978 = vld [vmem:[#allocation4 + $0x7e0] sm:$0xff]
    %v5979 = vld [vmem:[#allocation4 + $0x7e8] sm:$0xff]
    %v5980 = vld [vmem:[#allocation4 + $0x7f0] sm:$0xff]
    %v5981 = vld [vmem:[#allocation4 + $0x7f8] sm:$0xff]
    %5982 = vmatprep.subr.mxu0 %v5727
    %5983 = vmatpush1.msra.mxu0 %v5726
    %5984 = vmatprep.subr.mxu0 %v5735
    %5985 = vmatpush1.msra.mxu0 %v5734
    %5986 = vmatprep.subr.mxu0 %v5743
    %5987 = vmatpush1.msra.mxu0 %v5742
    %5988 = vmatprep.subr.mxu0 %v5751
    %5989 = vmatpush1.msra.mxu0 %v5750
    %5990 = vmatprep.subr.mxu0 %v5759
    %5991 = vmatpush1.msra.mxu0 %v5758
    %5992 = vmatprep.subr.mxu0 %v5767
    %5993 = vmatpush1.msra.mxu0 %v5766
    %5994 = vmatprep.subr.mxu0 %v5775
    %5995 = vmatpush1.msra.mxu0 %v5774
    %5996 = vmatprep.subr.mxu0 %v5783
    %5997 = vmatpush1.msra.mxu0 %v5782
    %5998 = vmatprep.subr.mxu0 %v5791
    %5999 = vmatpush1.msra.mxu0 %v5790
    %6000 = vmatprep.subr.mxu0 %v5799
    %6001 = vmatpush1.msra.mxu0 %v5798
    %6002 = vmatprep.subr.mxu0 %v5807
    %6003 = vmatpush1.msra.mxu0 %v5806
    %6004 = vmatprep.subr.mxu0 %v5815
    %6005 = vmatpush1.msra.mxu0 %v5814
    %6006 = vmatprep.subr.mxu0 %v5823
    %6007 = vmatpush1.msra.mxu0 %v5822
    %6008 = vmatprep.subr.mxu0 %v5831
    %6009 = vmatpush1.msra.mxu0 %v5830
    %6010 = vmatprep.subr.mxu0 %v5839
    %6011 = vmatpush1.msra.mxu0 %v5838
    %6012 = vmatprep.subr.mxu0 %v5847
    %6013 = vmatpush1.msra.mxu0 %v5846
    %6014 = vmatprep.subr.mxu0 %v5855
    %6015 = vmatpush1.msra.mxu0 %v5854
    %6016 = vmatprep.subr.mxu0 %v5863
    %6017 = vmatpush1.msra.mxu0 %v5862
    %6018 = vmatprep.subr.mxu0 %v5871
    %6019 = vmatpush1.msra.mxu0 %v5870
    %6020 = vmatprep.subr.mxu0 %v5879
    %6021 = vmatpush1.msra.mxu0 %v5878
    %6022 = vmatprep.subr.mxu0 %v5887
    %6023 = vmatpush1.msra.mxu0 %v5886
    %6024 = vmatprep.subr.mxu0 %v5895
    %6025 = vmatpush1.msra.mxu0 %v5894
    %6026 = vmatprep.subr.mxu0 %v5903
    %6027 = vmatpush1.msra.mxu0 %v5902
    %6028 = vmatprep.subr.mxu0 %v5911
    %6029 = vmatpush1.msra.mxu0 %v5910
    %6030 = vmatprep.subr.mxu0 %v5919
    %6031 = vmatpush1.msra.mxu0 %v5918
    %6032 = vmatprep.subr.mxu0 %v5927
    %6033 = vmatpush1.msra.mxu0 %v5926
    %6034 = vmatprep.subr.mxu0 %v5935
    %6035 = vmatpush1.msra.mxu0 %v5934
    %6036 = vmatprep.subr.mxu0 %v5943
    %6037 = vmatpush1.msra.mxu0 %v5942
    %6038 = vmatprep.subr.mxu0 %v5951
    %6039 = vmatpush1.msra.mxu0 %v5950
    %6040 = vmatprep.subr.mxu0 %v5959
    %6041 = vmatpush1.msra.mxu0 %v5958
    %6042 = vmatprep.subr.mxu0 %v5967
    %6043 = vmatpush1.msra.mxu0 %v5966
    %6044 = vmatprep.subr.mxu0 %v5975
    %6045 = vmatpush1.msra.mxu0 %v5974
    %6046 = vmatprep.mubr.f32.mxu0 0.0
    %6047 = vmatmul.mubr.f32.gmra.mrb[0].mxu0 0.0
    %v6048 = vpop.f32.mrb[0].mxu0
    %v6049 = vadd.f32 0.0, %v6048
    %v6050 = vpop.f32.mrb[0].mxu0
    %v6051 = vadd.f32 0.0, %v6050
    %6052 = vdwg.mxu0
    %6053 = vmatprep.subr.mxu0 %v5729
    %6054 = vmatpush1.msra.mxu0 %v5728
    %6055 = vmatprep.subr.mxu0 %v5737
    %6056 = vmatpush1.msra.mxu0 %v5736
    %6057 = vmatprep.subr.mxu0 %v5745
    %6058 = vmatpush1.msra.mxu0 %v5744
    %6059 = vmatprep.subr.mxu0 %v5753
    %6060 = vmatpush1.msra.mxu0 %v5752
    %6061 = vmatprep.subr.mxu0 %v5761
    %6062 = vmatpush1.msra.mxu0 %v5760
    %6063 = vmatprep.subr.mxu0 %v5769
    %6064 = vmatpush1.msra.mxu0 %v5768
    %6065 = vmatprep.subr.mxu0 %v5777
    %6066 = vmatpush1.msra.mxu0 %v5776
    %6067 = vmatprep.subr.mxu0 %v5785
    %6068 = vmatpush1.msra.mxu0 %v5784
    %6069 = vmatprep.subr.mxu0 %v5793
    %6070 = vmatpush1.msra.mxu0 %v5792
    %6071 = vmatprep.subr.mxu0 %v5801
    %6072 = vmatpush1.msra.mxu0 %v5800
    %6073 = vmatprep.subr.mxu0 %v5809
    %6074 = vmatpush1.msra.mxu0 %v5808
    %6075 = vmatprep.subr.mxu0 %v5817
    %6076 = vmatpush1.msra.mxu0 %v5816
    %6077 = vmatprep.subr.mxu0 %v5825
    %6078 = vmatpush1.msra.mxu0 %v5824
    %6079 = vmatprep.subr.mxu0 %v5833
    %6080 = vmatpush1.msra.mxu0 %v5832
    %6081 = vmatprep.subr.mxu0 %v5841
    %6082 = vmatpush1.msra.mxu0 %v5840
    %6083 = vmatprep.subr.mxu0 %v5849
    %6084 = vmatpush1.msra.mxu0 %v5848
    %6085 = vmatprep.subr.mxu0 %v5857
    %6086 = vmatpush1.msra.mxu0 %v5856
    %6087 = vmatprep.subr.mxu0 %v5865
    %6088 = vmatpush1.msra.mxu0 %v5864
    %6089 = vmatprep.subr.mxu0 %v5873
    %6090 = vmatpush1.msra.mxu0 %v5872
    %6091 = vmatprep.subr.mxu0 %v5881
    %6092 = vmatpush1.msra.mxu0 %v5880
    %6093 = vmatprep.subr.mxu0 %v5889
    %6094 = vmatpush1.msra.mxu0 %v5888
    %6095 = vmatprep.subr.mxu0 %v5897
    %6096 = vmatpush1.msra.mxu0 %v5896
    %6097 = vmatprep.subr.mxu0 %v5905
    %6098 = vmatpush1.msra.mxu0 %v5904
    %6099 = vmatprep.subr.mxu0 %v5913
    %6100 = vmatpush1.msra.mxu0 %v5912
    %6101 = vmatprep.subr.mxu0 %v5921
    %6102 = vmatpush1.msra.mxu0 %v5920
    %6103 = vmatprep.subr.mxu0 %v5929
    %6104 = vmatpush1.msra.mxu0 %v5928
    %6105 = vmatprep.subr.mxu0 %v5937
    %6106 = vmatpush1.msra.mxu0 %v5936
    %6107 = vmatprep.subr.mxu0 %v5945
    %6108 = vmatpush1.msra.mxu0 %v5944
    %6109 = vmatprep.subr.mxu0 %v5953
    %6110 = vmatpush1.msra.mxu0 %v5952
    %6111 = vmatprep.subr.mxu0 %v5961
    %6112 = vmatpush1.msra.mxu0 %v5960
    %6113 = vmatprep.subr.mxu0 %v5969
    %6114 = vmatpush1.msra.mxu0 %v5968
    %6115 = vmatprep.subr.mxu0 %v5977
    %6116 = vmatpush1.msra.mxu0 %v5976
    %6117 = vmatprep.mubr.f32.mxu0 0.0
    %6118 = vmatmul.mubr.f32.gmra.mrb[0].mxu0 0.0
    %v6119 = vpop.f32.mrb[0].mxu0
    %v6120 = vadd.f32 0.0, %v6119
    %v6121 = vpop.f32.mrb[0].mxu0
    %v6122 = vadd.f32 0.0, %v6121
    %6123 = vdwg.mxu0
    %6124 = vmatprep.subr.mxu0 %v5731
    %6125 = vmatpush1.msra.mxu0 %v5730
    %6126 = vmatprep.subr.mxu0 %v5739
    %6127 = vmatpush1.msra.mxu0 %v5738
    %6128 = vmatprep.subr.mxu0 %v5747
    %6129 = vmatpush1.msra.mxu0 %v5746
    %6130 = vmatprep.subr.mxu0 %v5755
    %6131 = vmatpush1.msra.mxu0 %v5754
    %6132 = vmatprep.subr.mxu0 %v5763
    %6133 = vmatpush1.msra.mxu0 %v5762
    %6134 = vmatprep.subr.mxu0 %v5771
    %6135 = vmatpush1.msra.mxu0 %v5770
    %6136 = vmatprep.subr.mxu0 %v5779
    %6137 = vmatpush1.msra.mxu0 %v5778
    %6138 = vmatprep.subr.mxu0 %v5787
    %6139 = vmatpush1.msra.mxu0 %v5786
    %6140 = vmatprep.subr.mxu0 %v5795
    %6141 = vmatpush1.msra.mxu0 %v5794
    %6142 = vmatprep.subr.mxu0 %v5803
    %6143 = vmatpush1.msra.mxu0 %v5802
    %6144 = vmatprep.subr.mxu0 %v5811
    %6145 = vmatpush1.msra.mxu0 %v5810
    %6146 = vmatprep.subr.mxu0 %v5819
    %6147 = vmatpush1.msra.mxu0 %v5818
    %6148 = vmatprep.subr.mxu0 %v5827
    %6149 = vmatpush1.msra.mxu0 %v5826
    %6150 = vmatprep.subr.mxu0 %v5835
    %6151 = vmatpush1.msra.mxu0 %v5834
    %6152 = vmatprep.subr.mxu0 %v5843
    %6153 = vmatpush1.msra.mxu0 %v5842
    %6154 = vmatprep.subr.mxu0 %v5851
    %6155 = vmatpush1.msra.mxu0 %v5850
    %6156 = vmatprep.subr.mxu0 %v5859
    %6157 = vmatpush1.msra.mxu0 %v5858
    %6158 = vmatprep.subr.mxu0 %v5867
    %6159 = vmatpush1.msra.mxu0 %v5866
    %6160 = vmatprep.subr.mxu0 %v5875
    %6161 = vmatpush1.msra.mxu0 %v5874
    %6162 = vmatprep.subr.mxu0 %v5883
    %6163 = vmatpush1.msra.mxu0 %v5882
    %6164 = vmatprep.subr.mxu0 %v5891
    %6165 = vmatpush1.msra.mxu0 %v5890
    %6166 = vmatprep.subr.mxu0 %v5899
    %6167 = vmatpush1.msra.mxu0 %v5898
    %6168 = vmatprep.subr.mxu0 %v5907
    %6169 = vmatpush1.msra.mxu0 %v5906
    %6170 = vmatprep.subr.mxu0 %v5915
    %6171 = vmatpush1.msra.mxu0 %v5914
    %6172 = vmatprep.subr.mxu0 %v5923
    %6173 = vmatpush1.msra.mxu0 %v5922
    %6174 = vmatprep.subr.mxu0 %v5931
    %6175 = vmatpush1.msra.mxu0 %v5930
    %6176 = vmatprep.subr.mxu0 %v5939
    %6177 = vmatpush1.msra.mxu0 %v5938
    %6178 = vmatprep.subr.mxu0 %v5947
    %6179 = vmatpush1.msra.mxu0 %v5946
    %6180 = vmatprep.subr.mxu0 %v5955
    %6181 = vmatpush1.msra.mxu0 %v5954
    %6182 = vmatprep.subr.mxu0 %v5963
    %6183 = vmatpush1.msra.mxu0 %v5962
    %6184 = vmatprep.subr.mxu0 %v5971
    %6185 = vmatpush1.msra.mxu0 %v5970
    %6186 = vmatprep.subr.mxu0 %v5979
    %6187 = vmatpush1.msra.mxu0 %v5978
    %6188 = vmatprep.mubr.f32.mxu0 0.0
    %6189 = vmatmul.mubr.f32.gmra.mrb[0].mxu0 0.0
    %v6190 = vpop.f32.mrb[0].mxu0
    %v6191 = vadd.f32 0.0, %v6190
    %v6192 = vpop.f32.mrb[0].mxu0
    %v6193 = vadd.f32 0.0, %v6192
    %6194 = vdwg.mxu0
    %6195 = vmatprep.subr.mxu0 %v5733
    %6196 = vmatpush1.msra.mxu0 %v5732
    %6197 = vmatprep.subr.mxu0 %v5741
    %6198 = vmatpush1.msra.mxu0 %v5740
    %6199 = vmatprep.subr.mxu0 %v5749
    %6200 = vmatpush1.msra.mxu0 %v5748
    %6201 = vmatprep.subr.mxu0 %v5757
    %6202 = vmatpush1.msra.mxu0 %v5756
    %6203 = vmatprep.subr.mxu0 %v5765
    %6204 = vmatpush1.msra.mxu0 %v5764
    %6205 = vmatprep.subr.mxu0 %v5773
    %6206 = vmatpush1.msra.mxu0 %v5772
    %6207 = vmatprep.subr.mxu0 %v5781
    %6208 = vmatpush1.msra.mxu0 %v5780
    %6209 = vmatprep.subr.mxu0 %v5789
    %6210 = vmatpush1.msra.mxu0 %v5788
    %6211 = vmatprep.subr.mxu0 %v5797
    %6212 = vmatpush1.msra.mxu0 %v5796
    %6213 = vmatprep.subr.mxu0 %v5805
    %6214 = vmatpush1.msra.mxu0 %v5804
    %6215 = vmatprep.subr.mxu0 %v5813
    %6216 = vmatpush1.msra.mxu0 %v5812
    %6217 = vmatprep.subr.mxu0 %v5821
    %6218 = vmatpush1.msra.mxu0 %v5820
    %6219 = vmatprep.subr.mxu0 %v5829
    %6220 = vmatpush1.msra.mxu0 %v5828
    %6221 = vmatprep.subr.mxu0 %v5837
    %6222 = vmatpush1.msra.mxu0 %v5836
    %6223 = vmatprep.subr.mxu0 %v5845
    %6224 = vmatpush1.msra.mxu0 %v5844
    %6225 = vmatprep.subr.mxu0 %v5853
    %6226 = vmatpush1.msra.mxu0 %v5852
    %6227 = vmatprep.subr.mxu0 %v5861
    %6228 = vmatpush1.msra.mxu0 %v5860
    %6229 = vmatprep.subr.mxu0 %v5869
    %6230 = vmatpush1.msra.mxu0 %v5868
    %6231 = vmatprep.subr.mxu0 %v5877
    %6232 = vmatpush1.msra.mxu0 %v5876
    %6233 = vmatprep.subr.mxu0 %v5885
    %6234 = vmatpush1.msra.mxu0 %v5884
    %6235 = vmatprep.subr.mxu0 %v5893
    %6236 = vmatpush1.msra.mxu0 %v5892
    %6237 = vmatprep.subr.mxu0 %v5901
    %6238 = vmatpush1.msra.mxu0 %v5900
    %6239 = vmatprep.subr.mxu0 %v5909
    %6240 = vmatpush1.msra.mxu0 %v5908
    %6241 = vmatprep.subr.mxu0 %v5917
    %6242 = vmatpush1.msra.mxu0 %v5916
    %6243 = vmatprep.subr.mxu0 %v5925
    %6244 = vmatpush1.msra.mxu0 %v5924
    %6245 = vmatprep.subr.mxu0 %v5933
    %6246 = vmatpush1.msra.mxu0 %v5932
    %6247 = vmatprep.subr.mxu0 %v5941
    %6248 = vmatpush1.msra.mxu0 %v5940
    %6249 = vmatprep.subr.mxu0 %v5949
    %6250 = vmatpush1.msra.mxu0 %v5948
    %6251 = vmatprep.subr.mxu0 %v5957
    %6252 = vmatpush1.msra.mxu0 %v5956
    %6253 = vmatprep.subr.mxu0 %v5965
    %6254 = vmatpush1.msra.mxu0 %v5964
    %6255 = vmatprep.subr.mxu0 %v5973
    %6256 = vmatpush1.msra.mxu0 %v5972
    %6257 = vmatprep.subr.mxu0 %v5981
    %6258 = vmatpush1.msra.mxu0 %v5980
    %6259 = vmatprep.mubr.f32.mxu0 0.0
    %6260 = vmatmul.mubr.f32.gmra.mrb[0].mxu0 0.0
    %v6261 = vpop.f32.mrb[0].mxu0
    %v6262 = vadd.f32 0.0, %v6261
    %v6263 = vpop.f32.mrb[0].mxu0
    %v6264 = vadd.f32 0.0, %v6263
    %6265 = vdwg.mxu0
    %v6266 = vadd.f32 %v5718, %v6049
    %v6267 = vadd.f32 %v5719, %v6051
    %v6268 = vadd.f32 %v5720, %v6120
    %v6269 = vadd.f32 %v5721, %v6122
    %v6270 = vadd.f32 %v5722, %v6191
    %v6271 = vadd.f32 %v5723, %v6193
    %v6272 = vadd.f32 %v5724, %v6262
    %v6273 = vadd.f32 %v5725, %v6264
    %v6274 = vxor.u32 %v6266, 2147483648
    %v6275 = vxor.u32 %v6267, 2147483648
    %v6276 = vmul.f32 %v6274, 1.442695
    %v6277 = vpow.pop %v6276
    %v6278 = vmul.f32 %v6275, 1.442695
    %v6279 = vpow.pop %v6278
    %v6280 = vadd.f32 %v6277, 1.0
    %v6281 = vadd.f32 %v6279, 1.0
    %v6282 = vrcp.pop %v6280
    %v6283 = vmul.f32 1.0, %v6282
    %v6284 = vrcp.pop %v6281
    %v6285 = vmul.f32 1.0, %v6284
    %v6286 = vxor.u32 %v6268, 2147483648
    %v6287 = vxor.u32 %v6269, 2147483648
    %v6288 = vmul.f32 %v6286, 1.442695
    %v6289 = vpow.pop %v6288
    %v6290 = vmul.f32 %v6287, 1.442695
    %v6291 = vpow.pop %v6290
    %v6292 = vadd.f32 %v6289, 1.0
    %v6293 = vadd.f32 %v6291, 1.0
    %v6294 = vrcp.pop %v6292
    %v6295 = vmul.f32 1.0, %v6294
    %v6296 = vrcp.pop %v6293
    %v6297 = vmul.f32 1.0, %v6296
    %v6298 = vtanh.pop %v6270
    %v6299 = vtanh.pop %v6271
    %v6300 = vxor.u32 %v6272, 2147483648
    %v6301 = vxor.u32 %v6273, 2147483648
    %v6302 = vmul.f32 %v6300, 1.442695
    %v6303 = vpow.pop %v6302
    %v6304 = vmul.f32 %v6301, 1.442695
    %v6305 = vpow.pop %v6304
    %v6306 = vadd.f32 %v6303, 1.0
    %v6307 = vadd.f32 %v6305, 1.0
    %v6308 = vrcp.pop %v6306
    %v6309 = vmul.f32 1.0, %v6308
    %v6310 = vrcp.pop %v6307
    %v6311 = vmul.f32 1.0, %v6310
    %v6312 = vmul.f32 %v6295, 0.0
    %v6313 = vmul.f32 %v6297, 0.0
    %v6314 = vmul.f32 %v6283, %v6298
    %v6315 = vmul.f32 %v6285, %v6299
    %v6316 = vadd.f32 %v6312, %v6314
    %v6317 = vadd.f32 %v6313, %v6315
    %v6318 = vtanh.pop %v6316
    %v6319 = vtanh.pop %v6317
    %v6320 = vmul.f32 %v6309, %v6318
    %v6321 = vmul.f32 %v6311, %v6319
    %v6322 = vld [vmem:[#allocation3 + $0x40] sm:$0xff]
    %v6323 = vld [vmem:[#allocation3 + $0x48] sm:$0xff]
    %v6324 = vld [vmem:[#allocation3 + $0x50] sm:$0xff]
    %v6325 = vld [vmem:[#allocation3 + $0x58] sm:$0xff]
    %v6326 = vld [vmem:[#allocation3 + $0x60] sm:$0xff]
    %v6327 = vld [vmem:[#allocation3 + $0x68] sm:$0xff]
    %v6328 = vld [vmem:[#allocation3 + $0x70] sm:$0xff]
    %v6329 = vld [vmem:[#allocation3 + $0x78] sm:$0xff]
    %6330 = vmatprep.subr.mxu0 %v5727
    %6331 = vmatpush1.msra.mxu0 %v5726
    %6332 = vmatprep.subr.mxu0 %v5735
    %6333 = vmatpush1.msra.mxu0 %v5734
    %6334 = vmatprep.subr.mxu0 %v5743
    %6335 = vmatpush1.msra.mxu0 %v5742
    %6336 = vmatprep.subr.mxu0 %v5751
    %6337 = vmatpush1.msra.mxu0 %v5750
    %6338 = vmatprep.subr.mxu0 %v5759
    %6339 = vmatpush1.msra.mxu0 %v5758
    %6340 = vmatprep.subr.mxu0 %v5767
    %6341 = vmatpush1.msra.mxu0 %v5766
    %6342 = vmatprep.subr.mxu0 %v5775
    %6343 = vmatpush1.msra.mxu0 %v5774
    %6344 = vmatprep.subr.mxu0 %v5783
    %6345 = vmatpush1.msra.mxu0 %v5782
    %6346 = vmatprep.subr.mxu0 %v5791
    %6347 = vmatpush1.msra.mxu0 %v5790
    %6348 = vmatprep.subr.mxu0 %v5799
    %6349 = vmatpush1.msra.mxu0 %v5798
    %6350 = vmatprep.subr.mxu0 %v5807
    %6351 = vmatpush1.msra.mxu0 %v5806
    %6352 = vmatprep.subr.mxu0 %v5815
    %6353 = vmatpush1.msra.mxu0 %v5814
    %6354 = vmatprep.subr.mxu0 %v5823
    %6355 = vmatpush1.msra.mxu0 %v5822
    %6356 = vmatprep.subr.mxu0 %v5831
    %6357 = vmatpush1.msra.mxu0 %v5830
    %6358 = vmatprep.subr.mxu0 %v5839
    %6359 = vmatpush1.msra.mxu0 %v5838
    %6360 = vmatprep.subr.mxu0 %v5847
    %6361 = vmatpush1.msra.mxu0 %v5846
    %6362 = vmatprep.subr.mxu0 %v5855
    %6363 = vmatpush1.msra.mxu0 %v5854
    %6364 = vmatprep.subr.mxu0 %v5863
    %6365 = vmatpush1.msra.mxu0 %v5862
    %6366 = vmatprep.subr.mxu0 %v5871
    %6367 = vmatpush1.msra.mxu0 %v5870
    %6368 = vmatprep.subr.mxu0 %v5879
    %6369 = vmatpush1.msra.mxu0 %v5878
    %6370 = vmatprep.subr.mxu0 %v5887
    %6371 = vmatpush1.msra.mxu0 %v5886
    %6372 = vmatprep.subr.mxu0 %v5895
    %6373 = vmatpush1.msra.mxu0 %v5894
    %6374 = vmatprep.subr.mxu0 %v5903
    %6375 = vmatpush1.msra.mxu0 %v5902
    %6376 = vmatprep.subr.mxu0 %v5911
    %6377 = vmatpush1.msra.mxu0 %v5910
    %6378 = vmatprep.subr.mxu0 %v5919
    %6379 = vmatpush1.msra.mxu0 %v5918
    %6380 = vmatprep.subr.mxu0 %v5927
    %6381 = vmatpush1.msra.mxu0 %v5926
    %6382 = vmatprep.subr.mxu0 %v5935
    %6383 = vmatpush1.msra.mxu0 %v5934
    %6384 = vmatprep.subr.mxu0 %v5943
    %6385 = vmatpush1.msra.mxu0 %v5942
    %6386 = vmatprep.subr.mxu0 %v5951
    %6387 = vmatpush1.msra.mxu0 %v5950
    %6388 = vmatprep.subr.mxu0 %v5959
    %6389 = vmatpush1.msra.mxu0 %v5958
    %6390 = vmatprep.subr.mxu0 %v5967
    %6391 = vmatpush1.msra.mxu0 %v5966
    %6392 = vmatprep.subr.mxu0 %v5975
    %6393 = vmatpush1.msra.mxu0 %v5974
    %6394 = vmatprep.mubr.f32.mxu0 %v6321
    %6395 = vmatmul.mubr.f32.gmra.mrb[0].mxu0 %v6320
    %v6396 = vpop.f32.mrb[0].mxu0
    %v6397 = vadd.f32 0.0, %v6396
    %v6398 = vpop.f32.mrb[0].mxu0
    %v6399 = vadd.f32 0.0, %v6398
    %6400 = vdwg.mxu0
    %6401 = vmatprep.subr.mxu0 %v5729
    %6402 = vmatpush1.msra.mxu0 %v5728
    %6403 = vmatprep.subr.mxu0 %v5737
    %6404 = vmatpush1.msra.mxu0 %v5736
    %6405 = vmatprep.subr.mxu0 %v5745
    %6406 = vmatpush1.msra.mxu0 %v5744
    %6407 = vmatprep.subr.mxu0 %v5753
    %6408 = vmatpush1.msra.mxu0 %v5752
    %6409 = vmatprep.subr.mxu0 %v5761
    %6410 = vmatpush1.msra.mxu0 %v5760
    %6411 = vmatprep.subr.mxu0 %v5769
    %6412 = vmatpush1.msra.mxu0 %v5768
    %6413 = vmatprep.subr.mxu0 %v5777
    %6414 = vmatpush1.msra.mxu0 %v5776
    %6415 = vmatprep.subr.mxu0 %v5785
    %6416 = vmatpush1.msra.mxu0 %v5784
    %6417 = vmatprep.subr.mxu0 %v5793
    %6418 = vmatpush1.msra.mxu0 %v5792
    %6419 = vmatprep.subr.mxu0 %v5801
    %6420 = vmatpush1.msra.mxu0 %v5800
    %6421 = vmatprep.subr.mxu0 %v5809
    %6422 = vmatpush1.msra.mxu0 %v5808
    %6423 = vmatprep.subr.mxu0 %v5817
    %6424 = vmatpush1.msra.mxu0 %v5816
    %6425 = vmatprep.subr.mxu0 %v5825
    %6426 = vmatpush1.msra.mxu0 %v5824
    %6427 = vmatprep.subr.mxu0 %v5833
    %6428 = vmatpush1.msra.mxu0 %v5832
    %6429 = vmatprep.subr.mxu0 %v5841
    %6430 = vmatpush1.msra.mxu0 %v5840
    %6431 = vmatprep.subr.mxu0 %v5849
    %6432 = vmatpush1.msra.mxu0 %v5848
    %6433 = vmatprep.subr.mxu0 %v5857
    %6434 = vmatpush1.msra.mxu0 %v5856
    %6435 = vmatprep.subr.mxu0 %v5865
    %6436 = vmatpush1.msra.mxu0 %v5864
    %6437 = vmatprep.subr.mxu0 %v5873
    %6438 = vmatpush1.msra.mxu0 %v5872
    %6439 = vmatprep.subr.mxu0 %v5881
    %6440 = vmatpush1.msra.mxu0 %v5880
    %6441 = vmatprep.subr.mxu0 %v5889
    %6442 = vmatpush1.msra.mxu0 %v5888
    %6443 = vmatprep.subr.mxu0 %v5897
    %6444 = vmatpush1.msra.mxu0 %v5896
    %6445 = vmatprep.subr.mxu0 %v5905
    %6446 = vmatpush1.msra.mxu0 %v5904
    %6447 = vmatprep.subr.mxu0 %v5913
    %6448 = vmatpush1.msra.mxu0 %v5912
    %6449 = vmatprep.subr.mxu0 %v5921
    %6450 = vmatpush1.msra.mxu0 %v5920
    %6451 = vmatprep.subr.mxu0 %v5929
    %6452 = vmatpush1.msra.mxu0 %v5928
    %6453 = vmatprep.subr.mxu0 %v5937
    %6454 = vmatpush1.msra.mxu0 %v5936
    %6455 = vmatprep.subr.mxu0 %v5945
    %6456 = vmatpush1.msra.mxu0 %v5944
    %6457 = vmatprep.subr.mxu0 %v5953
    %6458 = vmatpush1.msra.mxu0 %v5952
    %6459 = vmatprep.subr.mxu0 %v5961
    %6460 = vmatpush1.msra.mxu0 %v5960
    %6461 = vmatprep.subr.mxu0 %v5969
    %6462 = vmatpush1.msra.mxu0 %v5968
    %6463 = vmatprep.subr.mxu0 %v5977
    %6464 = vmatpush1.msra.mxu0 %v5976
    %6465 = vmatprep.mubr.f32.mxu0 %v6321
    %6466 = vmatmul.mubr.f32.gmra.mrb[0].mxu0 %v6320
    %v6467 = vpop.f32.mrb[0].mxu0
    %v6468 = vadd.f32 0.0, %v6467
    %v6469 = vpop.f32.mrb[0].mxu0
    %v6470 = vadd.f32 0.0, %v6469
    %6471 = vdwg.mxu0
    %6472 = vmatprep.subr.mxu0 %v5731
    %6473 = vmatpush1.msra.mxu0 %v5730
    %6474 = vmatprep.subr.mxu0 %v5739
    %6475 = vmatpush1.msra.mxu0 %v5738
    %6476 = vmatprep.subr.mxu0 %v5747
    %6477 = vmatpush1.msra.mxu0 %v5746
    %6478 = vmatprep.subr.mxu0 %v5755
    %6479 = vmatpush1.msra.mxu0 %v5754
    %6480 = vmatprep.subr.mxu0 %v5763
    %6481 = vmatpush1.msra.mxu0 %v5762
    %6482 = vmatprep.subr.mxu0 %v5771
    %6483 = vmatpush1.msra.mxu0 %v5770
    %6484 = vmatprep.subr.mxu0 %v5779
    %6485 = vmatpush1.msra.mxu0 %v5778
    %6486 = vmatprep.subr.mxu0 %v5787
    %6487 = vmatpush1.msra.mxu0 %v5786
    %6488 = vmatprep.subr.mxu0 %v5795
    %6489 = vmatpush1.msra.mxu0 %v5794
    %6490 = vmatprep.subr.mxu0 %v5803
    %6491 = vmatpush1.msra.mxu0 %v5802
    %6492 = vmatprep.subr.mxu0 %v5811
    %6493 = vmatpush1.msra.mxu0 %v5810
    %6494 = vmatprep.subr.mxu0 %v5819
    %6495 = vmatpush1.msra.mxu0 %v5818
    %6496 = vmatprep.subr.mxu0 %v5827
    %6497 = vmatpush1.msra.mxu0 %v5826
    %6498 = vmatprep.subr.mxu0 %v5835
    %6499 = vmatpush1.msra.mxu0 %v5834
    %6500 = vmatprep.subr.mxu0 %v5843
    %6501 = vmatpush1.msra.mxu0 %v5842
    %6502 = vmatprep.subr.mxu0 %v5851
    %6503 = vmatpush1.msra.mxu0 %v5850
    %6504 = vmatprep.subr.mxu0 %v5859
    %6505 = vmatpush1.msra.mxu0 %v5858
    %6506 = vmatprep.subr.mxu0 %v5867
    %6507 = vmatpush1.msra.mxu0 %v5866
    %6508 = vmatprep.subr.mxu0 %v5875
    %6509 = vmatpush1.msra.mxu0 %v5874
    %6510 = vmatprep.subr.mxu0 %v5883
    %6511 = vmatpush1.msra.mxu0 %v5882
    %6512 = vmatprep.subr.mxu0 %v5891
    %6513 = vmatpush1.msra.mxu0 %v5890
    %6514 = vmatprep.subr.mxu0 %v5899
    %6515 = vmatpush1.msra.mxu0 %v5898
    %6516 = vmatprep.subr.mxu0 %v5907
    %6517 = vmatpush1.msra.mxu0 %v5906
    %6518 = vmatprep.subr.mxu0 %v5915
    %6519 = vmatpush1.msra.mxu0 %v5914
    %6520 = vmatprep.subr.mxu0 %v5923
    %6521 = vmatpush1.msra.mxu0 %v5922
    %6522 = vmatprep.subr.mxu0 %v5931
    %6523 = vmatpush1.msra.mxu0 %v5930
    %6524 = vmatprep.subr.mxu0 %v5939
    %6525 = vmatpush1.msra.mxu0 %v5938
    %6526 = vmatprep.subr.mxu0 %v5947
    %6527 = vmatpush1.msra.mxu0 %v5946
    %6528 = vmatprep.subr.mxu0 %v5955
    %6529 = vmatpush1.msra.mxu0 %v5954
    %6530 = vmatprep.subr.mxu0 %v5963
    %6531 = vmatpush1.msra.mxu0 %v5962
    %6532 = vmatprep.subr.mxu0 %v5971
    %6533 = vmatpush1.msra.mxu0 %v5970
    %6534 = vmatprep.subr.mxu0 %v5979
    %6535 = vmatpush1.msra.mxu0 %v5978
    %6536 = vmatprep.mubr.f32.mxu0 %v6321
    %6537 = vmatmul.mubr.f32.gmra.mrb[0].mxu0 %v6320
    %v6538 = vpop.f32.mrb[0].mxu0
    %v6539 = vadd.f32 0.0, %v6538
    %v6540 = vpop.f32.mrb[0].mxu0
    %v6541 = vadd.f32 0.0, %v6540
    %6542 = vdwg.mxu0
    %6543 = vmatprep.subr.mxu0 %v5733
    %6544 = vmatpush1.msra.mxu0 %v5732
    %6545 = vmatprep.subr.mxu0 %v5741
    %6546 = vmatpush1.msra.mxu0 %v5740
    %6547 = vmatprep.subr.mxu0 %v5749
    %6548 = vmatpush1.msra.mxu0 %v5748
    %6549 = vmatprep.subr.mxu0 %v5757
    %6550 = vmatpush1.msra.mxu0 %v5756
    %6551 = vmatprep.subr.mxu0 %v5765
    %6552 = vmatpush1.msra.mxu0 %v5764
    %6553 = vmatprep.subr.mxu0 %v5773
    %6554 = vmatpush1.msra.mxu0 %v5772
    %6555 = vmatprep.subr.mxu0 %v5781
    %6556 = vmatpush1.msra.mxu0 %v5780
    %6557 = vmatprep.subr.mxu0 %v5789
    %6558 = vmatpush1.msra.mxu0 %v5788
    %6559 = vmatprep.subr.mxu0 %v5797
    %6560 = vmatpush1.msra.mxu0 %v5796
    %6561 = vmatprep.subr.mxu0 %v5805
    %6562 = vmatpush1.msra.mxu0 %v5804
    %6563 = vmatprep.subr.mxu0 %v5813
    %6564 = vmatpush1.msra.mxu0 %v5812
    %6565 = vmatprep.subr.mxu0 %v5821
    %6566 = vmatpush1.msra.mxu0 %v5820
    %6567 = vmatprep.subr.mxu0 %v5829
    %6568 = vmatpush1.msra.mxu0 %v5828
    %6569 = vmatprep.subr.mxu0 %v5837
    %6570 = vmatpush1.msra.mxu0 %v5836
    %6571 = vmatprep.subr.mxu0 %v5845
    %6572 = vmatpush1.msra.mxu0 %v5844
    %6573 = vmatprep.subr.mxu0 %v5853
    %6574 = vmatpush1.msra.mxu0 %v5852
    %6575 = vmatprep.subr.mxu0 %v5861
    %6576 = vmatpush1.msra.mxu0 %v5860
    %6577 = vmatprep.subr.mxu0 %v5869
    %6578 = vmatpush1.msra.mxu0 %v5868
    %6579 = vmatprep.subr.mxu0 %v5877
    %6580 = vmatpush1.msra.mxu0 %v5876
    %6581 = vmatprep.subr.mxu0 %v5885
    %6582 = vmatpush1.msra.mxu0 %v5884
    %6583 = vmatprep.subr.mxu0 %v5893
    %6584 = vmatpush1.msra.mxu0 %v5892
    %6585 = vmatprep.subr.mxu0 %v5901
    %6586 = vmatpush1.msra.mxu0 %v5900
    %6587 = vmatprep.subr.mxu0 %v5909
    %6588 = vmatpush1.msra.mxu0 %v5908
    %6589 = vmatprep.subr.mxu0 %v5917
    %6590 = vmatpush1.msra.mxu0 %v5916
    %6591 = vmatprep.subr.mxu0 %v5925
    %6592 = vmatpush1.msra.mxu0 %v5924
    %6593 = vmatprep.subr.mxu0 %v5933
    %6594 = vmatpush1.msra.mxu0 %v5932
    %6595 = vmatprep.subr.mxu0 %v5941
    %6596 = vmatpush1.msra.mxu0 %v5940
    %6597 = vmatprep.subr.mxu0 %v5949
    %6598 = vmatpush1.msra.mxu0 %v5948
    %6599 = vmatprep.subr.mxu0 %v5957
    %6600 = vmatpush1.msra.mxu0 %v5956
    %6601 = vmatprep.subr.mxu0 %v5965
    %6602 = vmatpush1.msra.mxu0 %v5964
    %6603 = vmatprep.subr.mxu0 %v5973
    %6604 = vmatpush1.msra.mxu0 %v5972
    %6605 = vmatprep.subr.mxu0 %v5981
    %6606 = vmatpush1.msra.mxu0 %v5980
    %6607 = vmatprep.mubr.f32.mxu0 %v6321
    %6608 = vmatmul.mubr.f32.gmra.mrb[0].mxu0 %v6320
    %v6609 = vpop.f32.mrb[0].mxu0
    %v6610 = vadd.f32 0.0, %v6609
    %v6611 = vpop.f32.mrb[0].mxu0
    %v6612 = vadd.f32 0.0, %v6611
    %6613 = vdwg.mxu0
    %v6614 = vadd.f32 %v6322, %v6397
    %v6615 = vadd.f32 %v6323, %v6399
    %v6616 = vadd.f32 %v6324, %v6468
    %v6617 = vadd.f32 %v6325, %v6470
    %v6618 = vadd.f32 %v6326, %v6539
    %v6619 = vadd.f32 %v6327, %v6541
    %v6620 = vadd.f32 %v6328, %v6610
    %v6621 = vadd.f32 %v6329, %v6612
    %v6622 = vxor.u32 %v6614, 2147483648
    %v6623 = vxor.u32 %v6615, 2147483648
    %v6624 = vmul.f32 %v6622, 1.442695
    %v6625 = vpow.pop %v6624
    %v6626 = vmul.f32 %v6623, 1.442695
    %v6627 = vpow.pop %v6626
    %v6628 = vadd.f32 %v6625, 1.0
    %v6629 = vadd.f32 %v6627, 1.0
    %v6630 = vrcp.pop %v6628
    %v6631 = vmul.f32 1.0, %v6630
    %v6632 = vrcp.pop %v6629
    %v6633 = vmul.f32 1.0, %v6632
    %v6634 = vxor.u32 %v6616, 2147483648
    %v6635 = vxor.u32 %v6617, 2147483648
    %v6636 = vmul.f32 %v6634, 1.442695
    %v6637 = vpow.pop %v6636
    %v6638 = vmul.f32 %v6635, 1.442695
    %v6639 = vpow.pop %v6638
    %v6640 = vadd.f32 %v6637, 1.0
    %v6641 = vadd.f32 %v6639, 1.0
    %v6642 = vrcp.pop %v6640
    %v6643 = vmul.f32 1.0, %v6642
    %v6644 = vrcp.pop %v6641
    %v6645 = vmul.f32 1.0, %v6644
    %v6646 = vtanh.pop %v6618
    %v6647 = vtanh.pop %v6619
    %v6648 = vxor.u32 %v6620, 2147483648
    %v6649 = vxor.u32 %v6621, 2147483648
    %v6650 = vmul.f32 %v6648, 1.442695
    %v6651 = vpow.pop %v6650
    %v6652 = vmul.f32 %v6649, 1.442695
    %v6653 = vpow.pop %v6652
    %v6654 = vadd.f32 %v6651, 1.0
    %v6655 = vadd.f32 %v6653, 1.0
    %v6656 = vrcp.pop %v6654
    %v6657 = vmul.f32 1.0, %v6656
    %v6658 = vrcp.pop %v6655
    %v6659 = vmul.f32 1.0, %v6658
    %v6660 = vmul.f32 %v6643, %v6316
    %v6661 = vmul.f32 %v6645, %v6317
    %v6662 = vmul.f32 %v6631, %v6646
    %v6663 = vmul.f32 %v6633, %v6647
    %v6664 = vadd.f32 %v6660, %v6662
    %v6665 = vadd.f32 %v6661, %v6663
    %v6666 = vtanh.pop %v6664
    %v6667 = vtanh.pop %v6665
    %v6668 = vmul.f32 %v6657, %v6666
    %v6669 = vmul.f32 %v6659, %v6667
    %v6670 = vld [vmem:[#allocation3 + $0x80] sm:$0xff]
    %v6671 = vld [vmem:[#allocation3 + $0x88] sm:$0xff]
    %v6672 = vld [vmem:[#allocation3 + $0x90] sm:$0xff]
    %v6673 = vld [vmem:[#allocation3 + $0x98] sm:$0xff]
    %v6674 = vld [vmem:[#allocation3 + $0xa0] sm:$0xff]
    %v6675 = vld [vmem:[#allocation3 + $0xa8] sm:$0xff]
    %v6676 = vld [vmem:[#allocation3 + $0xb0] sm:$0xff]
    %v6677 = vld [vmem:[#allocation3 + $0xb8] sm:$0xff]
    %6678 = vmatprep.subr.mxu0 %v5727
    %6679 = vmatpush1.msra.mxu0 %v5726
    %6680 = vmatprep.subr.mxu0 %v5735
    %6681 = vmatpush1.msra.mxu0 %v5734
    %6682 = vmatprep.subr.mxu0 %v5743
    %6683 = vmatpush1.msra.mxu0 %v5742
    %6684 = vmatprep.subr.mxu0 %v5751
    %6685 = vmatpush1.msra.mxu0 %v5750
    %6686 = vmatprep.subr.mxu0 %v5759
    %6687 = vmatpush1.msra.mxu0 %v5758
    %6688 = vmatprep.subr.mxu0 %v5767
    %6689 = vmatpush1.msra.mxu0 %v5766
    %6690 = vmatprep.subr.mxu0 %v5775
    %6691 = vmatpush1.msra.mxu0 %v5774
    %6692 = vmatprep.subr.mxu0 %v5783
    %6693 = vmatpush1.msra.mxu0 %v5782
    %6694 = vmatprep.subr.mxu0 %v5791
    %6695 = vmatpush1.msra.mxu0 %v5790
    %6696 = vmatprep.subr.mxu0 %v5799
    %6697 = vmatpush1.msra.mxu0 %v5798
    %6698 = vmatprep.subr.mxu0 %v5807
    %6699 = vmatpush1.msra.mxu0 %v5806
    %6700 = vmatprep.subr.mxu0 %v5815
    %6701 = vmatpush1.msra.mxu0 %v5814
    %6702 = vmatprep.subr.mxu0 %v5823
    %6703 = vmatpush1.msra.mxu0 %v5822
    %6704 = vmatprep.subr.mxu0 %v5831
    %6705 = vmatpush1.msra.mxu0 %v5830
    %6706 = vmatprep.subr.mxu0 %v5839
    %6707 = vmatpush1.msra.mxu0 %v5838
    %6708 = vmatprep.subr.mxu0 %v5847
    %6709 = vmatpush1.msra.mxu0 %v5846
    %6710 = vmatprep.subr.mxu0 %v5855
    %6711 = vmatpush1.msra.mxu0 %v5854
    %6712 = vmatprep.subr.mxu0 %v5863
    %6713 = vmatpush1.msra.mxu0 %v5862
    %6714 = vmatprep.subr.mxu0 %v5871
    %6715 = vmatpush1.msra.mxu0 %v5870
    %6716 = vmatprep.subr.mxu0 %v5879
    %6717 = vmatpush1.msra.mxu0 %v5878
    %6718 = vmatprep.subr.mxu0 %v5887
    %6719 = vmatpush1.msra.mxu0 %v5886
    %6720 = vmatprep.subr.mxu0 %v5895
    %6721 = vmatpush1.msra.mxu0 %v5894
    %6722 = vmatprep.subr.mxu0 %v5903
    %6723 = vmatpush1.msra.mxu0 %v5902
    %6724 = vmatprep.subr.mxu0 %v5911
    %6725 = vmatpush1.msra.mxu0 %v5910
    %6726 = vmatprep.subr.mxu0 %v5919
    %6727 = vmatpush1.msra.mxu0 %v5918
    %6728 = vmatprep.subr.mxu0 %v5927
    %6729 = vmatpush1.msra.mxu0 %v5926
    %6730 = vmatprep.subr.mxu0 %v5935
    %6731 = vmatpush1.msra.mxu0 %v5934
    %6732 = vmatprep.subr.mxu0 %v5943
    %6733 = vmatpush1.msra.mxu0 %v5942
    %6734 = vmatprep.subr.mxu0 %v5951
    %6735 = vmatpush1.msra.mxu0 %v5950
    %6736 = vmatprep.subr.mxu0 %v5959
    %6737 = vmatpush1.msra.mxu0 %v5958
    %6738 = vmatprep.subr.mxu0 %v5967
    %6739 = vmatpush1.msra.mxu0 %v5966
    %6740 = vmatprep.subr.mxu0 %v5975
    %6741 = vmatpush1.msra.mxu0 %v5974
    %6742 = vmatprep.mubr.f32.mxu0 %v6669
    %6743 = vmatmul.mubr.f32.gmra.mrb[0].mxu0 %v6668
    %v6744 = vpop.f32.mrb[0].mxu0
    %v6745 = vadd.f32 0.0, %v6744
    %v6746 = vpop.f32.mrb[0].mxu0
    %v6747 = vadd.f32 0.0, %v6746
    %6748 = vdwg.mxu0
    %6749 = vmatprep.subr.mxu0 %v5729
    %6750 = vmatpush1.msra.mxu0 %v5728
    %6751 = vmatprep.subr.mxu0 %v5737
    %6752 = vmatpush1.msra.mxu0 %v5736
    %6753 = vmatprep.subr.mxu0 %v5745
    %6754 = vmatpush1.msra.mxu0 %v5744
    %6755 = vmatprep.subr.mxu0 %v5753
    %6756 = vmatpush1.msra.mxu0 %v5752
    %6757 = vmatprep.subr.mxu0 %v5761
    %6758 = vmatpush1.msra.mxu0 %v5760
    %6759 = vmatprep.subr.mxu0 %v5769
    %6760 = vmatpush1.msra.mxu0 %v5768
    %6761 = vmatprep.subr.mxu0 %v5777
    %6762 = vmatpush1.msra.mxu0 %v5776
    %6763 = vmatprep.subr.mxu0 %v5785
    %6764 = vmatpush1.msra.mxu0 %v5784
    %6765 = vmatprep.subr.mxu0 %v5793
    %6766 = vmatpush1.msra.mxu0 %v5792
    %6767 = vmatprep.subr.mxu0 %v5801
    %6768 = vmatpush1.msra.mxu0 %v5800
    %6769 = vmatprep.subr.mxu0 %v5809
    %6770 = vmatpush1.msra.mxu0 %v5808
    %6771 = vmatprep.subr.mxu0 %v5817
    %6772 = vmatpush1.msra.mxu0 %v5816
    %6773 = vmatprep.subr.mxu0 %v5825
    %6774 = vmatpush1.msra.mxu0 %v5824
    %6775 = vmatprep.subr.mxu0 %v5833
    %6776 = vmatpush1.msra.mxu0 %v5832
    %6777 = vmatprep.subr.mxu0 %v5841
    %6778 = vmatpush1.msra.mxu0 %v5840
    %6779 = vmatprep.subr.mxu0 %v5849
    %6780 = vmatpush1.msra.mxu0 %v5848
    %6781 = vmatprep.subr.mxu0 %v5857
    %6782 = vmatpush1.msra.mxu0 %v5856
    %6783 = vmatprep.subr.mxu0 %v5865
    %6784 = vmatpush1.msra.mxu0 %v5864
    %6785 = vmatprep.subr.mxu0 %v5873
    %6786 = vmatpush1.msra.mxu0 %v5872
    %6787 = vmatprep.subr.mxu0 %v5881
    %6788 = vmatpush1.msra.mxu0 %v5880
    %6789 = vmatprep.subr.mxu0 %v5889
    %6790 = vmatpush1.msra.mxu0 %v5888
    %6791 = vmatprep.subr.mxu0 %v5897
    %6792 = vmatpush1.msra.mxu0 %v5896
    %6793 = vmatprep.subr.mxu0 %v5905
    %6794 = vmatpush1.msra.mxu0 %v5904
    %6795 = vmatprep.subr.mxu0 %v5913
    %6796 = vmatpush1.msra.mxu0 %v5912
    %6797 = vmatprep.subr.mxu0 %v5921
    %6798 = vmatpush1.msra.mxu0 %v5920
    %6799 = vmatprep.subr.mxu0 %v5929
    %6800 = vmatpush1.msra.mxu0 %v5928
    %6801 = vmatprep.subr.mxu0 %v5937
    %6802 = vmatpush1.msra.mxu0 %v5936
    %6803 = vmatprep.subr.mxu0 %v5945
    %6804 = vmatpush1.msra.mxu0 %v5944
    %6805 = vmatprep.subr.mxu0 %v5953
    %6806 = vmatpush1.msra.mxu0 %v5952
    %6807 = vmatprep.subr.mxu0 %v5961
    %6808 = vmatpush1.msra.mxu0 %v5960
    %6809 = vmatprep.subr.mxu0 %v5969
    %6810 = vmatpush1.msra.mxu0 %v5968
    %6811 = vmatprep.subr.mxu0 %v5977
    %6812 = vmatpush1.msra.mxu0 %v5976
    %6813 = vmatprep.mubr.f32.mxu0 %v6669
    %6814 = vmatmul.mubr.f32.gmra.mrb[0].mxu0 %v6668
    %v6815 = vpop.f32.mrb[0].mxu0
    %v6816 = vadd.f32 0.0, %v6815
    %v6817 = vpop.f32.mrb[0].mxu0
    %v6818 = vadd.f32 0.0, %v6817
    %6819 = vdwg.mxu0
    %6820 = vmatprep.subr.mxu0 %v5731
    %6821 = vmatpush1.msra.mxu0 %v5730
    %6822 = vmatprep.subr.mxu0 %v5739
    %6823 = vmatpush1.msra.mxu0 %v5738
    %6824 = vmatprep.subr.mxu0 %v5747
    %6825 = vmatpush1.msra.mxu0 %v5746
    %6826 = vmatprep.subr.mxu0 %v5755
    %6827 = vmatpush1.msra.mxu0 %v5754
    %6828 = vmatprep.subr.mxu0 %v5763
    %6829 = vmatpush1.msra.mxu0 %v5762
    %6830 = vmatprep.subr.mxu0 %v5771
    %6831 = vmatpush1.msra.mxu0 %v5770
    %6832 = vmatprep.subr.mxu0 %v5779
    %6833 = vmatpush1.msra.mxu0 %v5778
    %6834 = vmatprep.subr.mxu0 %v5787
    %6835 = vmatpush1.msra.mxu0 %v5786
    %6836 = vmatprep.subr.mxu0 %v5795
    %6837 = vmatpush1.msra.mxu0 %v5794
    %6838 = vmatprep.subr.mxu0 %v5803
    %6839 = vmatpush1.msra.mxu0 %v5802
    %6840 = vmatprep.subr.mxu0 %v5811
    %6841 = vmatpush1.msra.mxu0 %v5810
    %6842 = vmatprep.subr.mxu0 %v5819
    %6843 = vmatpush1.msra.mxu0 %v5818
    %6844 = vmatprep.subr.mxu0 %v5827
    %6845 = vmatpush1.msra.mxu0 %v5826
    %6846 = vmatprep.subr.mxu0 %v5835
    %6847 = vmatpush1.msra.mxu0 %v5834
    %6848 = vmatprep.subr.mxu0 %v5843
    %6849 = vmatpush1.msra.mxu0 %v5842
    %6850 = vmatprep.subr.mxu0 %v5851
    %6851 = vmatpush1.msra.mxu0 %v5850
    %6852 = vmatprep.subr.mxu0 %v5859
    %6853 = vmatpush1.msra.mxu0 %v5858
    %6854 = vmatprep.subr.mxu0 %v5867
    %6855 = vmatpush1.msra.mxu0 %v5866
    %6856 = vmatprep.subr.mxu0 %v5875
    %6857 = vmatpush1.msra.mxu0 %v5874
    %6858 = vmatprep.subr.mxu0 %v5883
    %6859 = vmatpush1.msra.mxu0 %v5882
    %6860 = vmatprep.subr.mxu0 %v5891
    %6861 = vmatpush1.msra.mxu0 %v5890
    %6862 = vmatprep.subr.mxu0 %v5899
    %6863 = vmatpush1.msra.mxu0 %v5898
    %6864 = vmatprep.subr.mxu0 %v5907
    %6865 = vmatpush1.msra.mxu0 %v5906
    %6866 = vmatprep.subr.mxu0 %v5915
    %6867 = vmatpush1.msra.mxu0 %v5914
    %6868 = vmatprep.subr.mxu0 %v5923
    %6869 = vmatpush1.msra.mxu0 %v5922
    %6870 = vmatprep.subr.mxu0 %v5931
    %6871 = vmatpush1.msra.mxu0 %v5930
    %6872 = vmatprep.subr.mxu0 %v5939
    %6873 = vmatpush1.msra.mxu0 %v5938
    %6874 = vmatprep.subr.mxu0 %v5947
    %6875 = vmatpush1.msra.mxu0 %v5946
    %6876 = vmatprep.subr.mxu0 %v5955
    %6877 = vmatpush1.msra.mxu0 %v5954
    %6878 = vmatprep.subr.mxu0 %v5963
    %6879 = vmatpush1.msra.mxu0 %v5962
    %6880 = vmatprep.subr.mxu0 %v5971
    %6881 = vmatpush1.msra.mxu0 %v5970
    %6882 = vmatprep.subr.mxu0 %v5979
    %6883 = vmatpush1.msra.mxu0 %v5978
    %6884 = vmatprep.mubr.f32.mxu0 %v6669
    %6885 = vmatmul.mubr.f32.gmra.mrb[0].mxu0 %v6668
    %v6886 = vpop.f32.mrb[0].mxu0
    %v6887 = vadd.f32 0.0, %v6886
    %v6888 = vpop.f32.mrb[0].mxu0
    %v6889 = vadd.f32 0.0, %v6888
    %6890 = vdwg.mxu0
    %6891 = vmatprep.subr.mxu0 %v5733
    %6892 = vmatpush1.msra.mxu0 %v5732
    %6893 = vmatprep.subr.mxu0 %v5741
    %6894 = vmatpush1.msra.mxu0 %v5740
    %6895 = vmatprep.subr.mxu0 %v5749
    %6896 = vmatpush1.msra.mxu0 %v5748
    %6897 = vmatprep.subr.mxu0 %v5757
    %6898 = vmatpush1.msra.mxu0 %v5756
    %6899 = vmatprep.subr.mxu0 %v5765
    %6900 = vmatpush1.msra.mxu0 %v5764
    %6901 = vmatprep.subr.mxu0 %v5773
    %6902 = vmatpush1.msra.mxu0 %v5772
    %6903 = vmatprep.subr.mxu0 %v5781
    %6904 = vmatpush1.msra.mxu0 %v5780
    %6905 = vmatprep.subr.mxu0 %v5789
    %6906 = vmatpush1.msra.mxu0 %v5788
    %6907 = vmatprep.subr.mxu0 %v5797
    %6908 = vmatpush1.msra.mxu0 %v5796
    %6909 = vmatprep.subr.mxu0 %v5805
    %6910 = vmatpush1.msra.mxu0 %v5804
    %6911 = vmatprep.subr.mxu0 %v5813
    %6912 = vmatpush1.msra.mxu0 %v5812
    %6913 = vmatprep.subr.mxu0 %v5821
    %6914 = vmatpush1.msra.mxu0 %v5820
    %6915 = vmatprep.subr.mxu0 %v5829
    %6916 = vmatpush1.msra.mxu0 %v5828
    %6917 = vmatprep.subr.mxu0 %v5837
    %6918 = vmatpush1.msra.mxu0 %v5836
    %6919 = vmatprep.subr.mxu0 %v5845
    %6920 = vmatpush1.msra.mxu0 %v5844
    %6921 = vmatprep.subr.mxu0 %v5853
    %6922 = vmatpush1.msra.mxu0 %v5852
    %6923 = vmatprep.subr.mxu0 %v5861
    %6924 = vmatpush1.msra.mxu0 %v5860
    %6925 = vmatprep.subr.mxu0 %v5869
    %6926 = vmatpush1.msra.mxu0 %v5868
    %6927 = vmatprep.subr.mxu0 %v5877
    %6928 = vmatpush1.msra.mxu0 %v5876
    %6929 = vmatprep.subr.mxu0 %v5885
    %6930 = vmatpush1.msra.mxu0 %v5884
    %6931 = vmatprep.subr.mxu0 %v5893
    %6932 = vmatpush1.msra.mxu0 %v5892
    %6933 = vmatprep.subr.mxu0 %v5901
    %6934 = vmatpush1.msra.mxu0 %v5900
    %6935 = vmatprep.subr.mxu0 %v5909
    %6936 = vmatpush1.msra.mxu0 %v5908
    %6937 = vmatprep.subr.mxu0 %v5917
    %6938 = vmatpush1.msra.mxu0 %v5916
    %6939 = vmatprep.subr.mxu0 %v5925
    %6940 = vmatpush1.msra.mxu0 %v5924
    %6941 = vmatprep.subr.mxu0 %v5933
    %6942 = vmatpush1.msra.mxu0 %v5932
    %6943 = vmatprep.subr.mxu0 %v5941
    %6944 = vmatpush1.msra.mxu0 %v5940
    %6945 = vmatprep.subr.mxu0 %v5949
    %6946 = vmatpush1.msra.mxu0 %v5948
    %6947 = vmatprep.subr.mxu0 %v5957
    %6948 = vmatpush1.msra.mxu0 %v5956
    %6949 = vmatprep.subr.mxu0 %v5965
    %6950 = vmatpush1.msra.mxu0 %v5964
    %6951 = vmatprep.subr.mxu0 %v5973
    %6952 = vmatpush1.msra.mxu0 %v5972
    %6953 = vmatprep.subr.mxu0 %v5981
    %6954 = vmatpush1.msra.mxu0 %v5980
    %6955 = vmatprep.mubr.f32.mxu0 %v6669
    %6956 = vmatmul.mubr.f32.gmra.mrb[0].mxu0 %v6668
    %v6957 = vpop.f32.mrb[0].mxu0
    %v6958 = vadd.f32 0.0, %v6957
    %v6959 = vpop.f32.mrb[0].mxu0
    %v6960 = vadd.f32 0.0, %v6959
    %6961 = vdwg.mxu0
    %v6962 = vadd.f32 %v6670, %v6745
    %v6963 = vadd.f32 %v6671, %v6747
    %v6964 = vadd.f32 %v6672, %v6816
    %v6965 = vadd.f32 %v6673, %v6818
    %v6966 = vadd.f32 %v6674, %v6887
    %v6967 = vadd.f32 %v6675, %v6889
    %v6968 = vadd.f32 %v6676, %v6958
    %v6969 = vadd.f32 %v6677, %v6960
    %v6970 = vxor.u32 %v6962, 2147483648
    %v6971 = vxor.u32 %v6963, 2147483648
    %v6972 = vmul.f32 %v6970, 1.442695
    %v6973 = vpow.pop %v6972
    %v6974 = vmul.f32 %v6971, 1.442695
    %v6975 = vpow.pop %v6974
    %v6976 = vadd.f32 %v6973, 1.0
    %v6977 = vadd.f32 %v6975, 1.0
    %v6978 = vrcp.pop %v6976
    %v6979 = vmul.f32 1.0, %v6978
    %v6980 = vrcp.pop %v6977
    %v6981 = vmul.f32 1.0, %v6980
    %v6982 = vxor.u32 %v6964, 2147483648
    %v6983 = vxor.u32 %v6965, 2147483648
    %v6984 = vmul.f32 %v6982, 1.442695
    %v6985 = vpow.pop %v6984
    %v6986 = vmul.f32 %v6983, 1.442695
    %v6987 = vpow.pop %v6986
    %v6988 = vadd.f32 %v6985, 1.0
    %v6989 = vadd.f32 %v6987, 1.0
    %v6990 = vrcp.pop %v6988
    %v6991 = vmul.f32 1.0, %v6990
    %v6992 = vrcp.pop %v6989
    %v6993 = vmul.f32 1.0, %v6992
    %v6994 = vtanh.pop %v6966
    %v6995 = vtanh.pop %v6967
    %v6996 = vxor.u32 %v6968, 2147483648
    %v6997 = vxor.u32 %v6969, 2147483648
    %v6998 = vmul.f32 %v6996, 1.442695
    %v6999 = vpow.pop %v6998
    %v7000 = vmul.f32 %v6997, 1.442695
    %v7001 = vpow.pop %v7000
    %v7002 = vadd.f32 %v6999, 1.0
    %v7003 = vadd.f32 %v7001, 1.0
    %v7004 = vrcp.pop %v7002
    %v7005 = vmul.f32 1.0, %v7004
    %v7006 = vrcp.pop %v7003
    %v7007 = vmul.f32 1.0, %v7006
    %v7008 = vmul.f32 %v6991, %v6664
    %v7009 = vmul.f32 %v6993, %v6665
    %v7010 = vmul.f32 %v6979, %v6994
    %v7011 = vmul.f32 %v6981, %v6995
    %v7012 = vadd.f32 %v7008, %v7010
    %v7013 = vadd.f32 %v7009, %v7011
    %v7014 = vtanh.pop %v7012
    %v7015 = vtanh.pop %v7013
    %v7016 = vmul.f32 %v7005, %v7014
    %v7017 = vmul.f32 %v7007, %v7015
    %v7018 = vld [vmem:[#allocation3 + $0xc0] sm:$0xff]
    %v7019 = vld [vmem:[#allocation3 + $0xc8] sm:$0xff]
    %v7020 = vld [vmem:[#allocation3 + $0xd0] sm:$0xff]
    %v7021 = vld [vmem:[#allocation3 + $0xd8] sm:$0xff]
    %v7022 = vld [vmem:[#allocation3 + $0xe0] sm:$0xff]
    %v7023 = vld [vmem:[#allocation3 + $0xe8] sm:$0xff]
    %v7024 = vld [vmem:[#allocation3 + $0xf0] sm:$0xff]
    %v7025 = vld [vmem:[#allocation3 + $0xf8] sm:$0xff]
    %7026 = vmatprep.subr.mxu0 %v5727
    %7027 = vmatpush1.msra.mxu0 %v5726
    %7028 = vmatprep.subr.mxu0 %v5735
    %7029 = vmatpush1.msra.mxu0 %v5734
    %7030 = vmatprep.subr.mxu0 %v5743
    %7031 = vmatpush1.msra.mxu0 %v5742
    %7032 = vmatprep.subr.mxu0 %v5751
    %7033 = vmatpush1.msra.mxu0 %v5750
    %7034 = vmatprep.subr.mxu0 %v5759
    %7035 = vmatpush1.msra.mxu0 %v5758
    %7036 = vmatprep.subr.mxu0 %v5767
    %7037 = vmatpush1.msra.mxu0 %v5766
    %7038 = vmatprep.subr.mxu0 %v5775
    %7039 = vmatpush1.msra.mxu0 %v5774
    %7040 = vmatprep.subr.mxu0 %v5783
    %7041 = vmatpush1.msra.mxu0 %v5782
    %7042 = vmatprep.subr.mxu0 %v5791
    %7043 = vmatpush1.msra.mxu0 %v5790
    %7044 = vmatprep.subr.mxu0 %v5799
    %7045 = vmatpush1.msra.mxu0 %v5798
    %7046 = vmatprep.subr.mxu0 %v5807
    %7047 = vmatpush1.msra.mxu0 %v5806
    %7048 = vmatprep.subr.mxu0 %v5815
    %7049 = vmatpush1.msra.mxu0 %v5814
    %7050 = vmatprep.subr.mxu0 %v5823
    %7051 = vmatpush1.msra.mxu0 %v5822
    %7052 = vmatprep.subr.mxu0 %v5831
    %7053 = vmatpush1.msra.mxu0 %v5830
    %7054 = vmatprep.subr.mxu0 %v5839
    %7055 = vmatpush1.msra.mxu0 %v5838
    %7056 = vmatprep.subr.mxu0 %v5847
    %7057 = vmatpush1.msra.mxu0 %v5846
    %7058 = vmatprep.subr.mxu0 %v5855
    %7059 = vmatpush1.msra.mxu0 %v5854
    %7060 = vmatprep.subr.mxu0 %v5863
    %7061 = vmatpush1.msra.mxu0 %v5862
    %7062 = vmatprep.subr.mxu0 %v5871
    %7063 = vmatpush1.msra.mxu0 %v5870
    %7064 = vmatprep.subr.mxu0 %v5879
    %7065 = vmatpush1.msra.mxu0 %v5878
    %7066 = vmatprep.subr.mxu0 %v5887
    %7067 = vmatpush1.msra.mxu0 %v5886
    %7068 = vmatprep.subr.mxu0 %v5895
    %7069 = vmatpush1.msra.mxu0 %v5894
    %7070 = vmatprep.subr.mxu0 %v5903
    %7071 = vmatpush1.msra.mxu0 %v5902
    %7072 = vmatprep.subr.mxu0 %v5911
    %7073 = vmatpush1.msra.mxu0 %v5910
    %7074 = vmatprep.subr.mxu0 %v5919
    %7075 = vmatpush1.msra.mxu0 %v5918
    %7076 = vmatprep.subr.mxu0 %v5927
    %7077 = vmatpush1.msra.mxu0 %v5926
    %7078 = vmatprep.subr.mxu0 %v5935
    %7079 = vmatpush1.msra.mxu0 %v5934
    %7080 = vmatprep.subr.mxu0 %v5943
    %7081 = vmatpush1.msra.mxu0 %v5942
    %7082 = vmatprep.subr.mxu0 %v5951
    %7083 = vmatpush1.msra.mxu0 %v5950
    %7084 = vmatprep.subr.mxu0 %v5959
    %7085 = vmatpush1.msra.mxu0 %v5958
    %7086 = vmatprep.subr.mxu0 %v5967
    %7087 = vmatpush1.msra.mxu0 %v5966
    %7088 = vmatprep.subr.mxu0 %v5975
    %7089 = vmatpush1.msra.mxu0 %v5974
    %7090 = vmatprep.mubr.f32.mxu0 %v7017
    %7091 = vmatmul.mubr.f32.gmra.mrb[0].mxu0 %v7016
    %v7092 = vpop.f32.mrb[0].mxu0
    %v7093 = vadd.f32 0.0, %v7092
    %v7094 = vpop.f32.mrb[0].mxu0
    %v7095 = vadd.f32 0.0, %v7094
    %7096 = vdwg.mxu0
    %7097 = vmatprep.subr.mxu0 %v5729
    %7098 = vmatpush1.msra.mxu0 %v5728
    %7099 = vmatprep.subr.mxu0 %v5737
    %7100 = vmatpush1.msra.mxu0 %v5736
    %7101 = vmatprep.subr.mxu0 %v5745
    %7102 = vmatpush1.msra.mxu0 %v5744
    %7103 = vmatprep.subr.mxu0 %v5753
    %7104 = vmatpush1.msra.mxu0 %v5752
    %7105 = vmatprep.subr.mxu0 %v5761
    %7106 = vmatpush1.msra.mxu0 %v5760
    %7107 = vmatprep.subr.mxu0 %v5769
    %7108 = vmatpush1.msra.mxu0 %v5768
    %7109 = vmatprep.subr.mxu0 %v5777
    %7110 = vmatpush1.msra.mxu0 %v5776
    %7111 = vmatprep.subr.mxu0 %v5785
    %7112 = vmatpush1.msra.mxu0 %v5784
    %7113 = vmatprep.subr.mxu0 %v5793
    %7114 = vmatpush1.msra.mxu0 %v5792
    %7115 = vmatprep.subr.mxu0 %v5801
    %7116 = vmatpush1.msra.mxu0 %v5800
    %7117 = vmatprep.subr.mxu0 %v5809
    %7118 = vmatpush1.msra.mxu0 %v5808
    %7119 = vmatprep.subr.mxu0 %v5817
    %7120 = vmatpush1.msra.mxu0 %v5816
    %7121 = vmatprep.subr.mxu0 %v5825
    %7122 = vmatpush1.msra.mxu0 %v5824
    %7123 = vmatprep.subr.mxu0 %v5833
    %7124 = vmatpush1.msra.mxu0 %v5832
    %7125 = vmatprep.subr.mxu0 %v5841
    %7126 = vmatpush1.msra.mxu0 %v5840
    %7127 = vmatprep.subr.mxu0 %v5849
    %7128 = vmatpush1.msra.mxu0 %v5848
    %7129 = vmatprep.subr.mxu0 %v5857
    %7130 = vmatpush1.msra.mxu0 %v5856
    %7131 = vmatprep.subr.mxu0 %v5865
    %7132 = vmatpush1.msra.mxu0 %v5864
    %7133 = vmatprep.subr.mxu0 %v5873
    %7134 = vmatpush1.msra.mxu0 %v5872
    %7135 = vmatprep.subr.mxu0 %v5881
    %7136 = vmatpush1.msra.mxu0 %v5880
    %7137 = vmatprep.subr.mxu0 %v5889
    %7138 = vmatpush1.msra.mxu0 %v5888
    %7139 = vmatprep.subr.mxu0 %v5897
    %7140 = vmatpush1.msra.mxu0 %v5896
    %7141 = vmatprep.subr.mxu0 %v5905
    %7142 = vmatpush1.msra.mxu0 %v5904
    %7143 = vmatprep.subr.mxu0 %v5913
    %7144 = vmatpush1.msra.mxu0 %v5912
    %7145 = vmatprep.subr.mxu0 %v5921
    %7146 = vmatpush1.msra.mxu0 %v5920
    %7147 = vmatprep.subr.mxu0 %v5929
    %7148 = vmatpush1.msra.mxu0 %v5928
    %7149 = vmatprep.subr.mxu0 %v5937
    %7150 = vmatpush1.msra.mxu0 %v5936
    %7151 = vmatprep.subr.mxu0 %v5945
    %7152 = vmatpush1.msra.mxu0 %v5944
    %7153 = vmatprep.subr.mxu0 %v5953
    %7154 = vmatpush1.msra.mxu0 %v5952
    %7155 = vmatprep.subr.mxu0 %v5961
    %7156 = vmatpush1.msra.mxu0 %v5960
    %7157 = vmatprep.subr.mxu0 %v5969
    %7158 = vmatpush1.msra.mxu0 %v5968
    %7159 = vmatprep.subr.mxu0 %v5977
    %7160 = vmatpush1.msra.mxu0 %v5976
    %7161 = vmatprep.mubr.f32.mxu0 %v7017
    %7162 = vmatmul.mubr.f32.gmra.mrb[0].mxu0 %v7016
    %v7163 = vpop.f32.mrb[0].mxu0
    %v7164 = vadd.f32 0.0, %v7163
    %v7165 = vpop.f32.mrb[0].mxu0
    %v7166 = vadd.f32 0.0, %v7165
    %7167 = vdwg.mxu0
    %7168 = vmatprep.subr.mxu0 %v5731
    %7169 = vmatpush1.msra.mxu0 %v5730
    %7170 = vmatprep.subr.mxu0 %v5739
    %7171 = vmatpush1.msra.mxu0 %v5738
    %7172 = vmatprep.subr.mxu0 %v5747
    %7173 = vmatpush1.msra.mxu0 %v5746
    %7174 = vmatprep.subr.mxu0 %v5755
    %7175 = vmatpush1.msra.mxu0 %v5754
    %7176 = vmatprep.subr.mxu0 %v5763
    %7177 = vmatpush1.msra.mxu0 %v5762
    %7178 = vmatprep.subr.mxu0 %v5771
    %7179 = vmatpush1.msra.mxu0 %v5770
    %7180 = vmatprep.subr.mxu0 %v5779
    %7181 = vmatpush1.msra.mxu0 %v5778
    %7182 = vmatprep.subr.mxu0 %v5787
    %7183 = vmatpush1.msra.mxu0 %v5786
    %7184 = vmatprep.subr.mxu0 %v5795
    %7185 = vmatpush1.msra.mxu0 %v5794
    %7186 = vmatprep.subr.mxu0 %v5803
    %7187 = vmatpush1.msra.mxu0 %v5802
    %7188 = vmatprep.subr.mxu0 %v5811
    %7189 = vmatpush1.msra.mxu0 %v5810
    %7190 = vmatprep.subr.mxu0 %v5819
    %7191 = vmatpush1.msra.mxu0 %v5818
    %7192 = vmatprep.subr.mxu0 %v5827
    %7193 = vmatpush1.msra.mxu0 %v5826
    %7194 = vmatprep.subr.mxu0 %v5835
    %7195 = vmatpush1.msra.mxu0 %v5834
    %7196 = vmatprep.subr.mxu0 %v5843
    %7197 = vmatpush1.msra.mxu0 %v5842
    %7198 = vmatprep.subr.mxu0 %v5851
    %7199 = vmatpush1.msra.mxu0 %v5850
    %7200 = vmatprep.subr.mxu0 %v5859
    %7201 = vmatpush1.msra.mxu0 %v5858
    %7202 = vmatprep.subr.mxu0 %v5867
    %7203 = vmatpush1.msra.mxu0 %v5866
    %7204 = vmatprep.subr.mxu0 %v5875
    %7205 = vmatpush1.msra.mxu0 %v5874
    %7206 = vmatprep.subr.mxu0 %v5883
    %7207 = vmatpush1.msra.mxu0 %v5882
    %7208 = vmatprep.subr.mxu0 %v5891
    %7209 = vmatpush1.msra.mxu0 %v5890
    %7210 = vmatprep.subr.mxu0 %v5899
    %7211 = vmatpush1.msra.mxu0 %v5898
    %7212 = vmatprep.subr.mxu0 %v5907
    %7213 = vmatpush1.msra.mxu0 %v5906
    %7214 = vmatprep.subr.mxu0 %v5915
    %7215 = vmatpush1.msra.mxu0 %v5914
    %7216 = vmatprep.subr.mxu0 %v5923
    %7217 = vmatpush1.msra.mxu0 %v5922
    %7218 = vmatprep.subr.mxu0 %v5931
    %7219 = vmatpush1.msra.mxu0 %v5930
    %7220 = vmatprep.subr.mxu0 %v5939
    %7221 = vmatpush1.msra.mxu0 %v5938
    %7222 = vmatprep.subr.mxu0 %v5947
    %7223 = vmatpush1.msra.mxu0 %v5946
    %7224 = vmatprep.subr.mxu0 %v5955
    %7225 = vmatpush1.msra.mxu0 %v5954
    %7226 = vmatprep.subr.mxu0 %v5963
    %7227 = vmatpush1.msra.mxu0 %v5962
    %7228 = vmatprep.subr.mxu0 %v5971
    %7229 = vmatpush1.msra.mxu0 %v5970
    %7230 = vmatprep.subr.mxu0 %v5979
    %7231 = vmatpush1.msra.mxu0 %v5978
    %7232 = vmatprep.mubr.f32.mxu0 %v7017
    %7233 = vmatmul.mubr.f32.gmra.mrb[0].mxu0 %v7016
    %v7234 = vpop.f32.mrb[0].mxu0
    %v7235 = vadd.f32 0.0, %v7234
    %v7236 = vpop.f32.mrb[0].mxu0
    %v7237 = vadd.f32 0.0, %v7236
    %7238 = vdwg.mxu0
    %7239 = vmatprep.subr.mxu0 %v5733
    %7240 = vmatpush1.msra.mxu0 %v5732
    %7241 = vmatprep.subr.mxu0 %v5741
    %7242 = vmatpush1.msra.mxu0 %v5740
    %7243 = vmatprep.subr.mxu0 %v5749
    %7244 = vmatpush1.msra.mxu0 %v5748
    %7245 = vmatprep.subr.mxu0 %v5757
    %7246 = vmatpush1.msra.mxu0 %v5756
    %7247 = vmatprep.subr.mxu0 %v5765
    %7248 = vmatpush1.msra.mxu0 %v5764
    %7249 = vmatprep.subr.mxu0 %v5773
    %7250 = vmatpush1.msra.mxu0 %v5772
    %7251 = vmatprep.subr.mxu0 %v5781
    %7252 = vmatpush1.msra.mxu0 %v5780
    %7253 = vmatprep.subr.mxu0 %v5789
    %7254 = vmatpush1.msra.mxu0 %v5788
    %7255 = vmatprep.subr.mxu0 %v5797
    %7256 = vmatpush1.msra.mxu0 %v5796
    %7257 = vmatprep.subr.mxu0 %v5805
    %7258 = vmatpush1.msra.mxu0 %v5804
    %7259 = vmatprep.subr.mxu0 %v5813
    %7260 = vmatpush1.msra.mxu0 %v5812
    %7261 = vmatprep.subr.mxu0 %v5821
    %7262 = vmatpush1.msra.mxu0 %v5820
    %7263 = vmatprep.subr.mxu0 %v5829
    %7264 = vmatpush1.msra.mxu0 %v5828
    %7265 = vmatprep.subr.mxu0 %v5837
    %7266 = vmatpush1.msra.mxu0 %v5836
    %7267 = vmatprep.subr.mxu0 %v5845
    %7268 = vmatpush1.msra.mxu0 %v5844
    %7269 = vmatprep.subr.mxu0 %v5853
    %7270 = vmatpush1.msra.mxu0 %v5852
    %7271 = vmatprep.subr.mxu0 %v5861
    %7272 = vmatpush1.msra.mxu0 %v5860
    %7273 = vmatprep.subr.mxu0 %v5869
    %7274 = vmatpush1.msra.mxu0 %v5868
    %7275 = vmatprep.subr.mxu0 %v5877
    %7276 = vmatpush1.msra.mxu0 %v5876
    %7277 = vmatprep.subr.mxu0 %v5885
    %7278 = vmatpush1.msra.mxu0 %v5884
    %7279 = vmatprep.subr.mxu0 %v5893
    %7280 = vmatpush1.msra.mxu0 %v5892
    %7281 = vmatprep.subr.mxu0 %v5901
    %7282 = vmatpush1.msra.mxu0 %v5900
    %7283 = vmatprep.subr.mxu0 %v5909
    %7284 = vmatpush1.msra.mxu0 %v5908
    %7285 = vmatprep.subr.mxu0 %v5917
    %7286 = vmatpush1.msra.mxu0 %v5916
    %7287 = vmatprep.subr.mxu0 %v5925
    %7288 = vmatpush1.msra.mxu0 %v5924
    %7289 = vmatprep.subr.mxu0 %v5933
    %7290 = vmatpush1.msra.mxu0 %v5932
    %7291 = vmatprep.subr.mxu0 %v5941
    %7292 = vmatpush1.msra.mxu0 %v5940
    %7293 = vmatprep.subr.mxu0 %v5949
    %7294 = vmatpush1.msra.mxu0 %v5948
    %7295 = vmatprep.subr.mxu0 %v5957
    %7296 = vmatpush1.msra.mxu0 %v5956
    %7297 = vmatprep.subr.mxu0 %v5965
    %7298 = vmatpush1.msra.mxu0 %v5964
    %7299 = vmatprep.subr.mxu0 %v5973
    %7300 = vmatpush1.msra.mxu0 %v5972
    %7301 = vmatprep.subr.mxu0 %v5981
    %7302 = vmatpush1.msra.mxu0 %v5980
    %7303 = vmatprep.mubr.f32.mxu0 %v7017
    %7304 = vmatmul.mubr.f32.gmra.mrb[0].mxu0 %v7016
    %v7305 = vpop.f32.mrb[0].mxu0
    %v7306 = vadd.f32 0.0, %v7305
    %v7307 = vpop.f32.mrb[0].mxu0
    %v7308 = vadd.f32 0.0, %v7307
    %7309 = vdwg.mxu0
    %v7310 = vadd.f32 %v7018, %v7093
    %v7311 = vadd.f32 %v7019, %v7095
    %v7312 = vadd.f32 %v7020, %v7164
    %v7313 = vadd.f32 %v7021, %v7166
    %v7314 = vadd.f32 %v7022, %v7235
    %v7315 = vadd.f32 %v7023, %v7237
    %v7316 = vadd.f32 %v7024, %v7306
    %v7317 = vadd.f32 %v7025, %v7308
    %v7318 = vxor.u32 %v7310, 2147483648
    %v7319 = vxor.u32 %v7311, 2147483648
    %v7320 = vmul.f32 %v7318, 1.442695
    %v7321 = vpow.pop %v7320
    %v7322 = vmul.f32 %v7319, 1.442695
    %v7323 = vpow.pop %v7322
    %v7324 = vadd.f32 %v7321, 1.0
    %v7325 = vadd.f32 %v7323, 1.0
    %v7326 = vrcp.pop %v7324
    %v7327 = vmul.f32 1.0, %v7326
    %v7328 = vrcp.pop %v7325
    %v7329 = vmul.f32 1.0, %v7328
    %v7330 = vxor.u32 %v7312, 2147483648
    %v7331 = vxor.u32 %v7313, 2147483648
    %v7332 = vmul.f32 %v7330, 1.442695
    %v7333 = vpow.pop %v7332
    %v7334 = vmul.f32 %v7331, 1.442695
    %v7335 = vpow.pop %v7334
    %v7336 = vadd.f32 %v7333, 1.0
    %v7337 = vadd.f32 %v7335, 1.0
    %v7338 = vrcp.pop %v7336
    %v7339 = vmul.f32 1.0, %v7338
    %v7340 = vrcp.pop %v7337
    %v7341 = vmul.f32 1.0, %v7340
    %v7342 = vtanh.pop %v7314
    %v7343 = vtanh.pop %v7315
    %v7344 = vxor.u32 %v7316, 2147483648
    %v7345 = vxor.u32 %v7317, 2147483648
    %v7346 = vmul.f32 %v7344, 1.442695
    %v7347 = vpow.pop %v7346
    %v7348 = vmul.f32 %v7345, 1.442695
    %v7349 = vpow.pop %v7348
    %v7350 = vadd.f32 %v7347, 1.0
    %v7351 = vadd.f32 %v7349, 1.0
    %v7352 = vrcp.pop %v7350
    %v7353 = vmul.f32 1.0, %v7352
    %v7354 = vrcp.pop %v7351
    %v7355 = vmul.f32 1.0, %v7354
    %v7356 = vmul.f32 %v7339, %v7012
    %v7357 = vmul.f32 %v7341, %v7013
    %v7358 = vmul.f32 %v7327, %v7342
    %v7359 = vmul.f32 %v7329, %v7343
    %v7360 = vadd.f32 %v7356, %v7358
    %v7361 = vadd.f32 %v7357, %v7359
    %v7362 = vtanh.pop %v7360
    %v7363 = vtanh.pop %v7361
    %v7364 = vmul.f32 %v7353, %v7362
    %v7365 = vmul.f32 %v7355, %v7363
    %v7366 = vld [vmem:[#allocation3 + $0x100] sm:$0xff]
    %v7367 = vld [vmem:[#allocation3 + $0x108] sm:$0xff]
    %v7368 = vld [vmem:[#allocation3 + $0x110] sm:$0xff]
    %v7369 = vld [vmem:[#allocation3 + $0x118] sm:$0xff]
    %v7370 = vld [vmem:[#allocation3 + $0x120] sm:$0xff]
    %v7371 = vld [vmem:[#allocation3 + $0x128] sm:$0xff]
    %v7372 = vld [vmem:[#allocation3 + $0x130] sm:$0xff]
    %v7373 = vld [vmem:[#allocation3 + $0x138] sm:$0xff]
    %7374 = vmatprep.subr.mxu0 %v5727
    %7375 = vmatpush1.msra.mxu0 %v5726
    %7376 = vmatprep.subr.mxu0 %v5735
    %7377 = vmatpush1.msra.mxu0 %v5734
    %7378 = vmatprep.subr.mxu0 %v5743
    %7379 = vmatpush1.msra.mxu0 %v5742
    %7380 = vmatprep.subr.mxu0 %v5751
    %7381 = vmatpush1.msra.mxu0 %v5750
    %7382 = vmatprep.subr.mxu0 %v5759
    %7383 = vmatpush1.msra.mxu0 %v5758
    %7384 = vmatprep.subr.mxu0 %v5767
    %7385 = vmatpush1.msra.mxu0 %v5766
    %7386 = vmatprep.subr.mxu0 %v5775
    %7387 = vmatpush1.msra.mxu0 %v5774
    %7388 = vmatprep.subr.mxu0 %v5783
    %7389 = vmatpush1.msra.mxu0 %v5782
    %7390 = vmatprep.subr.mxu0 %v5791
    %7391 = vmatpush1.msra.mxu0 %v5790
    %7392 = vmatprep.subr.mxu0 %v5799
    %7393 = vmatpush1.msra.mxu0 %v5798
    %7394 = vmatprep.subr.mxu0 %v5807
    %7395 = vmatpush1.msra.mxu0 %v5806
    %7396 = vmatprep.subr.mxu0 %v5815
    %7397 = vmatpush1.msra.mxu0 %v5814
    %7398 = vmatprep.subr.mxu0 %v5823
    %7399 = vmatpush1.msra.mxu0 %v5822
    %7400 = vmatprep.subr.mxu0 %v5831
    %7401 = vmatpush1.msra.mxu0 %v5830
    %7402 = vmatprep.subr.mxu0 %v5839
    %7403 = vmatpush1.msra.mxu0 %v5838
    %7404 = vmatprep.subr.mxu0 %v5847
    %7405 = vmatpush1.msra.mxu0 %v5846
    %7406 = vmatprep.subr.mxu0 %v5855
    %7407 = vmatpush1.msra.mxu0 %v5854
    %7408 = vmatprep.subr.mxu0 %v5863
    %7409 = vmatpush1.msra.mxu0 %v5862
    %7410 = vmatprep.subr.mxu0 %v5871
    %7411 = vmatpush1.msra.mxu0 %v5870
    %7412 = vmatprep.subr.mxu0 %v5879
    %7413 = vmatpush1.msra.mxu0 %v5878
    %7414 = vmatprep.subr.mxu0 %v5887
    %7415 = vmatpush1.msra.mxu0 %v5886
    %7416 = vmatprep.subr.mxu0 %v5895
    %7417 = vmatpush1.msra.mxu0 %v5894
    %7418 = vmatprep.subr.mxu0 %v5903
    %7419 = vmatpush1.msra.mxu0 %v5902
    %7420 = vmatprep.subr.mxu0 %v5911
    %7421 = vmatpush1.msra.mxu0 %v5910
    %7422 = vmatprep.subr.mxu0 %v5919
    %7423 = vmatpush1.msra.mxu0 %v5918
    %7424 = vmatprep.subr.mxu0 %v5927
    %7425 = vmatpush1.msra.mxu0 %v5926
    %7426 = vmatprep.subr.mxu0 %v5935
    %7427 = vmatpush1.msra.mxu0 %v5934
    %7428 = vmatprep.subr.mxu0 %v5943
    %7429 = vmatpush1.msra.mxu0 %v5942
    %7430 = vmatprep.subr.mxu0 %v5951
    %7431 = vmatpush1.msra.mxu0 %v5950
    %7432 = vmatprep.subr.mxu0 %v5959
    %7433 = vmatpush1.msra.mxu0 %v5958
    %7434 = vmatprep.subr.mxu0 %v5967
    %7435 = vmatpush1.msra.mxu0 %v5966
    %7436 = vmatprep.subr.mxu0 %v5975
    %7437 = vmatpush1.msra.mxu0 %v5974
    %7438 = vmatprep.mubr.f32.mxu0 %v7365
    %7439 = vmatmul.mubr.f32.gmra.mrb[0].mxu0 %v7364
    %v7440 = vpop.f32.mrb[0].mxu0
    %v7441 = vadd.f32 0.0, %v7440
    %v7442 = vpop.f32.mrb[0].mxu0
    %v7443 = vadd.f32 0.0, %v7442
    %7444 = vdwg.mxu0
    %7445 = vmatprep.subr.mxu0 %v5729
    %7446 = vmatpush1.msra.mxu0 %v5728
    %7447 = vmatprep.subr.mxu0 %v5737
    %7448 = vmatpush1.msra.mxu0 %v5736
    %7449 = vmatprep.subr.mxu0 %v5745
    %7450 = vmatpush1.msra.mxu0 %v5744
    %7451 = vmatprep.subr.mxu0 %v5753
    %7452 = vmatpush1.msra.mxu0 %v5752
    %7453 = vmatprep.subr.mxu0 %v5761
    %7454 = vmatpush1.msra.mxu0 %v5760
    %7455 = vmatprep.subr.mxu0 %v5769
    %7456 = vmatpush1.msra.mxu0 %v5768
    %7457 = vmatprep.subr.mxu0 %v5777
    %7458 = vmatpush1.msra.mxu0 %v5776
    %7459 = vmatprep.subr.mxu0 %v5785
    %7460 = vmatpush1.msra.mxu0 %v5784
    %7461 = vmatprep.subr.mxu0 %v5793
    %7462 = vmatpush1.msra.mxu0 %v5792
    %7463 = vmatprep.subr.mxu0 %v5801
    %7464 = vmatpush1.msra.mxu0 %v5800
    %7465 = vmatprep.subr.mxu0 %v5809
    %7466 = vmatpush1.msra.mxu0 %v5808
    %7467 = vmatprep.subr.mxu0 %v5817
    %7468 = vmatpush1.msra.mxu0 %v5816
    %7469 = vmatprep.subr.mxu0 %v5825
    %7470 = vmatpush1.msra.mxu0 %v5824
    %7471 = vmatprep.subr.mxu0 %v5833
    %7472 = vmatpush1.msra.mxu0 %v5832
    %7473 = vmatprep.subr.mxu0 %v5841
    %7474 = vmatpush1.msra.mxu0 %v5840
    %7475 = vmatprep.subr.mxu0 %v5849
    %7476 = vmatpush1.msra.mxu0 %v5848
    %7477 = vmatprep.subr.mxu0 %v5857
    %7478 = vmatpush1.msra.mxu0 %v5856
    %7479 = vmatprep.subr.mxu0 %v5865
    %7480 = vmatpush1.msra.mxu0 %v5864
    %7481 = vmatprep.subr.mxu0 %v5873
    %7482 = vmatpush1.msra.mxu0 %v5872
    %7483 = vmatprep.subr.mxu0 %v5881
    %7484 = vmatpush1.msra.mxu0 %v5880
    %7485 = vmatprep.subr.mxu0 %v5889
    %7486 = vmatpush1.msra.mxu0 %v5888
    %7487 = vmatprep.subr.mxu0 %v5897
    %7488 = vmatpush1.msra.mxu0 %v5896
    %7489 = vmatprep.subr.mxu0 %v5905
    %7490 = vmatpush1.msra.mxu0 %v5904
    %7491 = vmatprep.subr.mxu0 %v5913
    %7492 = vmatpush1.msra.mxu0 %v5912
    %7493 = vmatprep.subr.mxu0 %v5921
    %7494 = vmatpush1.msra.mxu0 %v5920
    %7495 = vmatprep.subr.mxu0 %v5929
    %7496 = vmatpush1.msra.mxu0 %v5928
    %7497 = vmatprep.subr.mxu0 %v5937
    %7498 = vmatpush1.msra.mxu0 %v5936
    %7499 = vmatprep.subr.mxu0 %v5945
    %7500 = vmatpush1.msra.mxu0 %v5944
    %7501 = vmatprep.subr.mxu0 %v5953
    %7502 = vmatpush1.msra.mxu0 %v5952
    %7503 = vmatprep.subr.mxu0 %v5961
    %7504 = vmatpush1.msra.mxu0 %v5960
    %7505 = vmatprep.subr.mxu0 %v5969
    %7506 = vmatpush1.msra.mxu0 %v5968
    %7507 = vmatprep.subr.mxu0 %v5977
    %7508 = vmatpush1.msra.mxu0 %v5976
    %7509 = vmatprep.mubr.f32.mxu0 %v7365
    %7510 = vmatmul.mubr.f32.gmra.mrb[0].mxu0 %v7364
    %v7511 = vpop.f32.mrb[0].mxu0
    %v7512 = vadd.f32 0.0, %v7511
    %v7513 = vpop.f32.mrb[0].mxu0
    %v7514 = vadd.f32 0.0, %v7513
    %7515 = vdwg.mxu0
    %7516 = vmatprep.subr.mxu0 %v5731
    %7517 = vmatpush1.msra.mxu0 %v5730
    %7518 = vmatprep.subr.mxu0 %v5739
    %7519 = vmatpush1.msra.mxu0 %v5738
    %7520 = vmatprep.subr.mxu0 %v5747
    %7521 = vmatpush1.msra.mxu0 %v5746
    %7522 = vmatprep.subr.mxu0 %v5755
    %7523 = vmatpush1.msra.mxu0 %v5754
    %7524 = vmatprep.subr.mxu0 %v5763
    %7525 = vmatpush1.msra.mxu0 %v5762
    %7526 = vmatprep.subr.mxu0 %v5771
    %7527 = vmatpush1.msra.mxu0 %v5770
    %7528 = vmatprep.subr.mxu0 %v5779
    %7529 = vmatpush1.msra.mxu0 %v5778
    %7530 = vmatprep.subr.mxu0 %v5787
    %7531 = vmatpush1.msra.mxu0 %v5786
    %7532 = vmatprep.subr.mxu0 %v5795
    %7533 = vmatpush1.msra.mxu0 %v5794
    %7534 = vmatprep.subr.mxu0 %v5803
    %7535 = vmatpush1.msra.mxu0 %v5802
    %7536 = vmatprep.subr.mxu0 %v5811
    %7537 = vmatpush1.msra.mxu0 %v5810
    %7538 = vmatprep.subr.mxu0 %v5819
    %7539 = vmatpush1.msra.mxu0 %v5818
    %7540 = vmatprep.subr.mxu0 %v5827
    %7541 = vmatpush1.msra.mxu0 %v5826
    %7542 = vmatprep.subr.mxu0 %v5835
    %7543 = vmatpush1.msra.mxu0 %v5834
    %7544 = vmatprep.subr.mxu0 %v5843
    %7545 = vmatpush1.msra.mxu0 %v5842
    %7546 = vmatprep.subr.mxu0 %v5851
    %7547 = vmatpush1.msra.mxu0 %v5850
    %7548 = vmatprep.subr.mxu0 %v5859
    %7549 = vmatpush1.msra.mxu0 %v5858
    %7550 = vmatprep.subr.mxu0 %v5867
    %7551 = vmatpush1.msra.mxu0 %v5866
    %7552 = vmatprep.subr.mxu0 %v5875
    %7553 = vmatpush1.msra.mxu0 %v5874
    %7554 = vmatprep.subr.mxu0 %v5883
    %7555 = vmatpush1.msra.mxu0 %v5882
    %7556 = vmatprep.subr.mxu0 %v5891
    %7557 = vmatpush1.msra.mxu0 %v5890
    %7558 = vmatprep.subr.mxu0 %v5899
    %7559 = vmatpush1.msra.mxu0 %v5898
    %7560 = vmatprep.subr.mxu0 %v5907
    %7561 = vmatpush1.msra.mxu0 %v5906
    %7562 = vmatprep.subr.mxu0 %v5915
    %7563 = vmatpush1.msra.mxu0 %v5914
    %7564 = vmatprep.subr.mxu0 %v5923
    %7565 = vmatpush1.msra.mxu0 %v5922
    %7566 = vmatprep.subr.mxu0 %v5931
    %7567 = vmatpush1.msra.mxu0 %v5930
    %7568 = vmatprep.subr.mxu0 %v5939
    %7569 = vmatpush1.msra.mxu0 %v5938
    %7570 = vmatprep.subr.mxu0 %v5947
    %7571 = vmatpush1.msra.mxu0 %v5946
    %7572 = vmatprep.subr.mxu0 %v5955
    %7573 = vmatpush1.msra.mxu0 %v5954
    %7574 = vmatprep.subr.mxu0 %v5963
    %7575 = vmatpush1.msra.mxu0 %v5962
    %7576 = vmatprep.subr.mxu0 %v5971
    %7577 = vmatpush1.msra.mxu0 %v5970
    %7578 = vmatprep.subr.mxu0 %v5979
    %7579 = vmatpush1.msra.mxu0 %v5978
    %7580 = vmatprep.mubr.f32.mxu0 %v7365
    %7581 = vmatmul.mubr.f32.gmra.mrb[0].mxu0 %v7364
    %v7582 = vpop.f32.mrb[0].mxu0
    %v7583 = vadd.f32 0.0, %v7582
    %v7584 = vpop.f32.mrb[0].mxu0
    %v7585 = vadd.f32 0.0, %v7584
    %7586 = vdwg.mxu0
    %7587 = vmatprep.subr.mxu0 %v5733
    %7588 = vmatpush1.msra.mxu0 %v5732
    %7589 = vmatprep.subr.mxu0 %v5741
    %7590 = vmatpush1.msra.mxu0 %v5740
    %7591 = vmatprep.subr.mxu0 %v5749
    %7592 = vmatpush1.msra.mxu0 %v5748
    %7593 = vmatprep.subr.mxu0 %v5757
    %7594 = vmatpush1.msra.mxu0 %v5756
    %7595 = vmatprep.subr.mxu0 %v5765
    %7596 = vmatpush1.msra.mxu0 %v5764
    %7597 = vmatprep.subr.mxu0 %v5773
    %7598 = vmatpush1.msra.mxu0 %v5772
    %7599 = vmatprep.subr.mxu0 %v5781
    %7600 = vmatpush1.msra.mxu0 %v5780
    %7601 = vmatprep.subr.mxu0 %v5789
    %7602 = vmatpush1.msra.mxu0 %v5788
    %7603 = vmatprep.subr.mxu0 %v5797
    %7604 = vmatpush1.msra.mxu0 %v5796
    %7605 = vmatprep.subr.mxu0 %v5805
    %7606 = vmatpush1.msra.mxu0 %v5804
    %7607 = vmatprep.subr.mxu0 %v5813
    %7608 = vmatpush1.msra.mxu0 %v5812
    %7609 = vmatprep.subr.mxu0 %v5821
    %7610 = vmatpush1.msra.mxu0 %v5820
    %7611 = vmatprep.subr.mxu0 %v5829
    %7612 = vmatpush1.msra.mxu0 %v5828
    %7613 = vmatprep.subr.mxu0 %v5837
    %7614 = vmatpush1.msra.mxu0 %v5836
    %7615 = vmatprep.subr.mxu0 %v5845
    %7616 = vmatpush1.msra.mxu0 %v5844
    %7617 = vmatprep.subr.mxu0 %v5853
    %7618 = vmatpush1.msra.mxu0 %v5852
    %7619 = vmatprep.subr.mxu0 %v5861
    %7620 = vmatpush1.msra.mxu0 %v5860
    %7621 = vmatprep.subr.mxu0 %v5869
    %7622 = vmatpush1.msra.mxu0 %v5868
    %7623 = vmatprep.subr.mxu0 %v5877
    %7624 = vmatpush1.msra.mxu0 %v5876
    %7625 = vmatprep.subr.mxu0 %v5885
    %7626 = vmatpush1.msra.mxu0 %v5884
    %7627 = vmatprep.subr.mxu0 %v5893
    %7628 = vmatpush1.msra.mxu0 %v5892
    %7629 = vmatprep.subr.mxu0 %v5901
    %7630 = vmatpush1.msra.mxu0 %v5900
    %7631 = vmatprep.subr.mxu0 %v5909
    %7632 = vmatpush1.msra.mxu0 %v5908
    %7633 = vmatprep.subr.mxu0 %v5917
    %7634 = vmatpush1.msra.mxu0 %v5916
    %7635 = vmatprep.subr.mxu0 %v5925
    %7636 = vmatpush1.msra.mxu0 %v5924
    %7637 = vmatprep.subr.mxu0 %v5933
    %7638 = vmatpush1.msra.mxu0 %v5932
    %7639 = vmatprep.subr.mxu0 %v5941
    %7640 = vmatpush1.msra.mxu0 %v5940
    %7641 = vmatprep.subr.mxu0 %v5949
    %7642 = vmatpush1.msra.mxu0 %v5948
    %7643 = vmatprep.subr.mxu0 %v5957
    %7644 = vmatpush1.msra.mxu0 %v5956
    %7645 = vmatprep.subr.mxu0 %v5965
    %7646 = vmatpush1.msra.mxu0 %v5964
    %7647 = vmatprep.subr.mxu0 %v5973
    %7648 = vmatpush1.msra.mxu0 %v5972
    %7649 = vmatprep.subr.mxu0 %v5981
    %7650 = vmatpush1.msra.mxu0 %v5980
    %7651 = vmatprep.mubr.f32.mxu0 %v7365
    %7652 = vmatmul.mubr.f32.gmra.mrb[0].mxu0 %v7364
    %v7653 = vpop.f32.mrb[0].mxu0
    %v7654 = vadd.f32 0.0, %v7653
    %v7655 = vpop.f32.mrb[0].mxu0
    %v7656 = vadd.f32 0.0, %v7655
    %7657 = vdwg.mxu0
    %v7658 = vadd.f32 %v7366, %v7441
    %v7659 = vadd.f32 %v7367, %v7443
    %v7660 = vadd.f32 %v7368, %v7512
    %v7661 = vadd.f32 %v7369, %v7514
    %v7662 = vadd.f32 %v7370, %v7583
    %v7663 = vadd.f32 %v7371, %v7585
    %v7664 = vadd.f32 %v7372, %v7654
    %v7665 = vadd.f32 %v7373, %v7656
    %v7666 = vxor.u32 %v7658, 2147483648
    %v7667 = vxor.u32 %v7659, 2147483648
    %v7668 = vmul.f32 %v7666, 1.442695
    %v7669 = vpow.pop %v7668
    %v7670 = vmul.f32 %v7667, 1.442695
    %v7671 = vpow.pop %v7670
    %v7672 = vadd.f32 %v7669, 1.0
    %v7673 = vadd.f32 %v7671, 1.0
    %v7674 = vrcp.pop %v7672
    %v7675 = vmul.f32 1.0, %v7674
    %v7676 = vrcp.pop %v7673
    %v7677 = vmul.f32 1.0, %v7676
    %v7678 = vxor.u32 %v7660, 2147483648
    %v7679 = vxor.u32 %v7661, 2147483648
    %v7680 = vmul.f32 %v7678, 1.442695
    %v7681 = vpow.pop %v7680
    %v7682 = vmul.f32 %v7679, 1.442695
    %v7683 = vpow.pop %v7682
    %v7684 = vadd.f32 %v7681, 1.0
    %v7685 = vadd.f32 %v7683, 1.0
    %v7686 = vrcp.pop %v7684
    %v7687 = vmul.f32 1.0, %v7686
    %v7688 = vrcp.pop %v7685
    %v7689 = vmul.f32 1.0, %v7688
    %v7690 = vtanh.pop %v7662
    %v7691 = vtanh.pop %v7663
    %v7692 = vxor.u32 %v7664, 2147483648
    %v7693 = vxor.u32 %v7665, 2147483648
    %v7694 = vmul.f32 %v7692, 1.442695
    %v7695 = vpow.pop %v7694
    %v7696 = vmul.f32 %v7693, 1.442695
    %v7697 = vpow.pop %v7696
    %v7698 = vadd.f32 %v7695, 1.0
    %v7699 = vadd.f32 %v7697, 1.0
    %v7700 = vrcp.pop %v7698
    %v7701 = vmul.f32 1.0, %v7700
    %v7702 = vrcp.pop %v7699
    %v7703 = vmul.f32 1.0, %v7702
    %v7704 = vmul.f32 %v7687, %v7360
    %v7705 = vmul.f32 %v7689, %v7361
    %v7706 = vmul.f32 %v7675, %v7690
    %v7707 = vmul.f32 %v7677, %v7691
    %v7708 = vadd.f32 %v7704, %v7706
    %v7709 = vadd.f32 %v7705, %v7707
    %v7710 = vtanh.pop %v7708
    %v7711 = vtanh.pop %v7709
    %v7712 = vmul.f32 %v7701, %v7710
    %v7713 = vmul.f32 %v7703, %v7711
    %v7714 = vld [vmem:[#allocation3 + $0x140] sm:$0xff]
    %v7715 = vld [vmem:[#allocation3 + $0x148] sm:$0xff]
    %v7716 = vld [vmem:[#allocation3 + $0x150] sm:$0xff]
    %v7717 = vld [vmem:[#allocation3 + $0x158] sm:$0xff]
    %v7718 = vld [vmem:[#allocation3 + $0x160] sm:$0xff]
    %v7719 = vld [vmem:[#allocation3 + $0x168] sm:$0xff]
    %v7720 = vld [vmem:[#allocation3 + $0x170] sm:$0xff]
    %v7721 = vld [vmem:[#allocation3 + $0x178] sm:$0xff]
    %7722 = vmatprep.subr.mxu0 %v5727
    %7723 = vmatpush1.msra.mxu0 %v5726
    %7724 = vmatprep.subr.mxu0 %v5735
    %7725 = vmatpush1.msra.mxu0 %v5734
    %7726 = vmatprep.subr.mxu0 %v5743
    %7727 = vmatpush1.msra.mxu0 %v5742
    %7728 = vmatprep.subr.mxu0 %v5751
    %7729 = vmatpush1.msra.mxu0 %v5750
    %7730 = vmatprep.subr.mxu0 %v5759
    %7731 = vmatpush1.msra.mxu0 %v5758
    %7732 = vmatprep.subr.mxu0 %v5767
    %7733 = vmatpush1.msra.mxu0 %v5766
    %7734 = vmatprep.subr.mxu0 %v5775
    %7735 = vmatpush1.msra.mxu0 %v5774
    %7736 = vmatprep.subr.mxu0 %v5783
    %7737 = vmatpush1.msra.mxu0 %v5782
    %7738 = vmatprep.subr.mxu0 %v5791
    %7739 = vmatpush1.msra.mxu0 %v5790
    %7740 = vmatprep.subr.mxu0 %v5799
    %7741 = vmatpush1.msra.mxu0 %v5798
    %7742 = vmatprep.subr.mxu0 %v5807
    %7743 = vmatpush1.msra.mxu0 %v5806
    %7744 = vmatprep.subr.mxu0 %v5815
    %7745 = vmatpush1.msra.mxu0 %v5814
    %7746 = vmatprep.subr.mxu0 %v5823
    %7747 = vmatpush1.msra.mxu0 %v5822
    %7748 = vmatprep.subr.mxu0 %v5831
    %7749 = vmatpush1.msra.mxu0 %v5830
    %7750 = vmatprep.subr.mxu0 %v5839
    %7751 = vmatpush1.msra.mxu0 %v5838
    %7752 = vmatprep.subr.mxu0 %v5847
    %7753 = vmatpush1.msra.mxu0 %v5846
    %7754 = vmatprep.subr.mxu0 %v5855
    %7755 = vmatpush1.msra.mxu0 %v5854
    %7756 = vmatprep.subr.mxu0 %v5863
    %7757 = vmatpush1.msra.mxu0 %v5862
    %7758 = vmatprep.subr.mxu0 %v5871
    %7759 = vmatpush1.msra.mxu0 %v5870
    %7760 = vmatprep.subr.mxu0 %v5879
    %7761 = vmatpush1.msra.mxu0 %v5878
    %7762 = vmatprep.subr.mxu0 %v5887
    %7763 = vmatpush1.msra.mxu0 %v5886
    %7764 = vmatprep.subr.mxu0 %v5895
    %7765 = vmatpush1.msra.mxu0 %v5894
    %7766 = vmatprep.subr.mxu0 %v5903
    %7767 = vmatpush1.msra.mxu0 %v5902
    %7768 = vmatprep.subr.mxu0 %v5911
    %7769 = vmatpush1.msra.mxu0 %v5910
    %7770 = vmatprep.subr.mxu0 %v5919
    %7771 = vmatpush1.msra.mxu0 %v5918
    %7772 = vmatprep.subr.mxu0 %v5927
    %7773 = vmatpush1.msra.mxu0 %v5926
    %7774 = vmatprep.subr.mxu0 %v5935
    %7775 = vmatpush1.msra.mxu0 %v5934
    %7776 = vmatprep.subr.mxu0 %v5943
    %7777 = vmatpush1.msra.mxu0 %v5942
    %7778 = vmatprep.subr.mxu0 %v5951
    %7779 = vmatpush1.msra.mxu0 %v5950
    %7780 = vmatprep.subr.mxu0 %v5959
    %7781 = vmatpush1.msra.mxu0 %v5958
    %7782 = vmatprep.subr.mxu0 %v5967
    %7783 = vmatpush1.msra.mxu0 %v5966
    %7784 = vmatprep.subr.mxu0 %v5975
    %7785 = vmatpush1.msra.mxu0 %v5974
    %7786 = vmatprep.mubr.f32.mxu0 %v7713
    %7787 = vmatmul.mubr.f32.gmra.mrb[0].mxu0 %v7712
    %v7788 = vpop.f32.mrb[0].mxu0
    %v7789 = vadd.f32 0.0, %v7788
    %v7790 = vpop.f32.mrb[0].mxu0
    %v7791 = vadd.f32 0.0, %v7790
    %7792 = vdwg.mxu0
    %7793 = vmatprep.subr.mxu0 %v5729
    %7794 = vmatpush1.msra.mxu0 %v5728
    %7795 = vmatprep.subr.mxu0 %v5737
    %7796 = vmatpush1.msra.mxu0 %v5736
    %7797 = vmatprep.subr.mxu0 %v5745
    %7798 = vmatpush1.msra.mxu0 %v5744
    %7799 = vmatprep.subr.mxu0 %v5753
    %7800 = vmatpush1.msra.mxu0 %v5752
    %7801 = vmatprep.subr.mxu0 %v5761
    %7802 = vmatpush1.msra.mxu0 %v5760
    %7803 = vmatprep.subr.mxu0 %v5769
    %7804 = vmatpush1.msra.mxu0 %v5768
    %7805 = vmatprep.subr.mxu0 %v5777
    %7806 = vmatpush1.msra.mxu0 %v5776
    %7807 = vmatprep.subr.mxu0 %v5785
    %7808 = vmatpush1.msra.mxu0 %v5784
    %7809 = vmatprep.subr.mxu0 %v5793
    %7810 = vmatpush1.msra.mxu0 %v5792
    %7811 = vmatprep.subr.mxu0 %v5801
    %7812 = vmatpush1.msra.mxu0 %v5800
    %7813 = vmatprep.subr.mxu0 %v5809
    %7814 = vmatpush1.msra.mxu0 %v5808
    %7815 = vmatprep.subr.mxu0 %v5817
    %7816 = vmatpush1.msra.mxu0 %v5816
    %7817 = vmatprep.subr.mxu0 %v5825
    %7818 = vmatpush1.msra.mxu0 %v5824
    %7819 = vmatprep.subr.mxu0 %v5833
    %7820 = vmatpush1.msra.mxu0 %v5832
    %7821 = vmatprep.subr.mxu0 %v5841
    %7822 = vmatpush1.msra.mxu0 %v5840
    %7823 = vmatprep.subr.mxu0 %v5849
    %7824 = vmatpush1.msra.mxu0 %v5848
    %7825 = vmatprep.subr.mxu0 %v5857
    %7826 = vmatpush1.msra.mxu0 %v5856
    %7827 = vmatprep.subr.mxu0 %v5865
    %7828 = vmatpush1.msra.mxu0 %v5864
    %7829 = vmatprep.subr.mxu0 %v5873
    %7830 = vmatpush1.msra.mxu0 %v5872
    %7831 = vmatprep.subr.mxu0 %v5881
    %7832 = vmatpush1.msra.mxu0 %v5880
    %7833 = vmatprep.subr.mxu0 %v5889
    %7834 = vmatpush1.msra.mxu0 %v5888
    %7835 = vmatprep.subr.mxu0 %v5897
    %7836 = vmatpush1.msra.mxu0 %v5896
    %7837 = vmatprep.subr.mxu0 %v5905
    %7838 = vmatpush1.msra.mxu0 %v5904
    %7839 = vmatprep.subr.mxu0 %v5913
    %7840 = vmatpush1.msra.mxu0 %v5912
    %7841 = vmatprep.subr.mxu0 %v5921
    %7842 = vmatpush1.msra.mxu0 %v5920
    %7843 = vmatprep.subr.mxu0 %v5929
    %7844 = vmatpush1.msra.mxu0 %v5928
    %7845 = vmatprep.subr.mxu0 %v5937
    %7846 = vmatpush1.msra.mxu0 %v5936
    %7847 = vmatprep.subr.mxu0 %v5945
    %7848 = vmatpush1.msra.mxu0 %v5944
    %7849 = vmatprep.subr.mxu0 %v5953
    %7850 = vmatpush1.msra.mxu0 %v5952
    %7851 = vmatprep.subr.mxu0 %v5961
    %7852 = vmatpush1.msra.mxu0 %v5960
    %7853 = vmatprep.subr.mxu0 %v5969
    %7854 = vmatpush1.msra.mxu0 %v5968
    %7855 = vmatprep.subr.mxu0 %v5977
    %7856 = vmatpush1.msra.mxu0 %v5976
    %7857 = vmatprep.mubr.f32.mxu0 %v7713
    %7858 = vmatmul.mubr.f32.gmra.mrb[0].mxu0 %v7712
    %v7859 = vpop.f32.mrb[0].mxu0
    %v7860 = vadd.f32 0.0, %v7859
    %v7861 = vpop.f32.mrb[0].mxu0
    %v7862 = vadd.f32 0.0, %v7861
    %7863 = vdwg.mxu0
    %7864 = vmatprep.subr.mxu0 %v5731
    %7865 = vmatpush1.msra.mxu0 %v5730
    %7866 = vmatprep.subr.mxu0 %v5739
    %7867 = vmatpush1.msra.mxu0 %v5738
    %7868 = vmatprep.subr.mxu0 %v5747
    %7869 = vmatpush1.msra.mxu0 %v5746
    %7870 = vmatprep.subr.mxu0 %v5755
    %7871 = vmatpush1.msra.mxu0 %v5754
    %7872 = vmatprep.subr.mxu0 %v5763
    %7873 = vmatpush1.msra.mxu0 %v5762
    %7874 = vmatprep.subr.mxu0 %v5771
    %7875 = vmatpush1.msra.mxu0 %v5770
    %7876 = vmatprep.subr.mxu0 %v5779
    %7877 = vmatpush1.msra.mxu0 %v5778
    %7878 = vmatprep.subr.mxu0 %v5787
    %7879 = vmatpush1.msra.mxu0 %v5786
    %7880 = vmatprep.subr.mxu0 %v5795
    %7881 = vmatpush1.msra.mxu0 %v5794
    %7882 = vmatprep.subr.mxu0 %v5803
    %7883 = vmatpush1.msra.mxu0 %v5802
    %7884 = vmatprep.subr.mxu0 %v5811
    %7885 = vmatpush1.msra.mxu0 %v5810
    %7886 = vmatprep.subr.mxu0 %v5819
    %7887 = vmatpush1.msra.mxu0 %v5818
    %7888 = vmatprep.subr.mxu0 %v5827
    %7889 = vmatpush1.msra.mxu0 %v5826
    %7890 = vmatprep.subr.mxu0 %v5835
    %7891 = vmatpush1.msra.mxu0 %v5834
    %7892 = vmatprep.subr.mxu0 %v5843
    %7893 = vmatpush1.msra.mxu0 %v5842
    %7894 = vmatprep.subr.mxu0 %v5851
    %7895 = vmatpush1.msra.mxu0 %v5850
    %7896 = vmatprep.subr.mxu0 %v5859
    %7897 = vmatpush1.msra.mxu0 %v5858
    %7898 = vmatprep.subr.mxu0 %v5867
    %7899 = vmatpush1.msra.mxu0 %v5866
    %7900 = vmatprep.subr.mxu0 %v5875
    %7901 = vmatpush1.msra.mxu0 %v5874
    %7902 = vmatprep.subr.mxu0 %v5883
    %7903 = vmatpush1.msra.mxu0 %v5882
    %7904 = vmatprep.subr.mxu0 %v5891
    %7905 = vmatpush1.msra.mxu0 %v5890
    %7906 = vmatprep.subr.mxu0 %v5899
    %7907 = vmatpush1.msra.mxu0 %v5898
    %7908 = vmatprep.subr.mxu0 %v5907
    %7909 = vmatpush1.msra.mxu0 %v5906
    %7910 = vmatprep.subr.mxu0 %v5915
    %7911 = vmatpush1.msra.mxu0 %v5914
    %7912 = vmatprep.subr.mxu0 %v5923
    %7913 = vmatpush1.msra.mxu0 %v5922
    %7914 = vmatprep.subr.mxu0 %v5931
    %7915 = vmatpush1.msra.mxu0 %v5930
    %7916 = vmatprep.subr.mxu0 %v5939
    %7917 = vmatpush1.msra.mxu0 %v5938
    %7918 = vmatprep.subr.mxu0 %v5947
    %7919 = vmatpush1.msra.mxu0 %v5946
    %7920 = vmatprep.subr.mxu0 %v5955
    %7921 = vmatpush1.msra.mxu0 %v5954
    %7922 = vmatprep.subr.mxu0 %v5963
    %7923 = vmatpush1.msra.mxu0 %v5962
    %7924 = vmatprep.subr.mxu0 %v5971
    %7925 = vmatpush1.msra.mxu0 %v5970
    %7926 = vmatprep.subr.mxu0 %v5979
    %7927 = vmatpush1.msra.mxu0 %v5978
    %7928 = vmatprep.mubr.f32.mxu0 %v7713
    %7929 = vmatmul.mubr.f32.gmra.mrb[0].mxu0 %v7712
    %v7930 = vpop.f32.mrb[0].mxu0
    %v7931 = vadd.f32 0.0, %v7930
    %v7932 = vpop.f32.mrb[0].mxu0
    %v7933 = vadd.f32 0.0, %v7932
    %7934 = vdwg.mxu0
    %7935 = vmatprep.subr.mxu0 %v5733
    %7936 = vmatpush1.msra.mxu0 %v5732
    %7937 = vmatprep.subr.mxu0 %v5741
    %7938 = vmatpush1.msra.mxu0 %v5740
    %7939 = vmatprep.subr.mxu0 %v5749
    %7940 = vmatpush1.msra.mxu0 %v5748
    %7941 = vmatprep.subr.mxu0 %v5757
    %7942 = vmatpush1.msra.mxu0 %v5756
    %7943 = vmatprep.subr.mxu0 %v5765
    %7944 = vmatpush1.msra.mxu0 %v5764
    %7945 = vmatprep.subr.mxu0 %v5773
    %7946 = vmatpush1.msra.mxu0 %v5772
    %7947 = vmatprep.subr.mxu0 %v5781
    %7948 = vmatpush1.msra.mxu0 %v5780
    %7949 = vmatprep.subr.mxu0 %v5789
    %7950 = vmatpush1.msra.mxu0 %v5788
    %7951 = vmatprep.subr.mxu0 %v5797
    %7952 = vmatpush1.msra.mxu0 %v5796
    %7953 = vmatprep.subr.mxu0 %v5805
    %7954 = vmatpush1.msra.mxu0 %v5804
    %7955 = vmatprep.subr.mxu0 %v5813
    %7956 = vmatpush1.msra.mxu0 %v5812
    %7957 = vmatprep.subr.mxu0 %v5821
    %7958 = vmatpush1.msra.mxu0 %v5820
    %7959 = vmatprep.subr.mxu0 %v5829
    %7960 = vmatpush1.msra.mxu0 %v5828
    %7961 = vmatprep.subr.mxu0 %v5837
    %7962 = vmatpush1.msra.mxu0 %v5836
    %7963 = vmatprep.subr.mxu0 %v5845
    %7964 = vmatpush1.msra.mxu0 %v5844
    %7965 = vmatprep.subr.mxu0 %v5853
    %7966 = vmatpush1.msra.mxu0 %v5852
    %7967 = vmatprep.subr.mxu0 %v5861
    %7968 = vmatpush1.msra.mxu0 %v5860
    %7969 = vmatprep.subr.mxu0 %v5869
    %7970 = vmatpush1.msra.mxu0 %v5868
    %7971 = vmatprep.subr.mxu0 %v5877
    %7972 = vmatpush1.msra.mxu0 %v5876
    %7973 = vmatprep.subr.mxu0 %v5885
    %7974 = vmatpush1.msra.mxu0 %v5884
    %7975 = vmatprep.subr.mxu0 %v5893
    %7976 = vmatpush1.msra.mxu0 %v5892
    %7977 = vmatprep.subr.mxu0 %v5901
    %7978 = vmatpush1.msra.mxu0 %v5900
    %7979 = vmatprep.subr.mxu0 %v5909
    %7980 = vmatpush1.msra.mxu0 %v5908
    %7981 = vmatprep.subr.mxu0 %v5917
    %7982 = vmatpush1.msra.mxu0 %v5916
    %7983 = vmatprep.subr.mxu0 %v5925
    %7984 = vmatpush1.msra.mxu0 %v5924
    %7985 = vmatprep.subr.mxu0 %v5933
    %7986 = vmatpush1.msra.mxu0 %v5932
    %7987 = vmatprep.subr.mxu0 %v5941
    %7988 = vmatpush1.msra.mxu0 %v5940
    %7989 = vmatprep.subr.mxu0 %v5949
    %7990 = vmatpush1.msra.mxu0 %v5948
    %7991 = vmatprep.subr.mxu0 %v5957
    %7992 = vmatpush1.msra.mxu0 %v5956
    %7993 = vmatprep.subr.mxu0 %v5965
    %7994 = vmatpush1.msra.mxu0 %v5964
    %7995 = vmatprep.subr.mxu0 %v5973
    %7996 = vmatpush1.msra.mxu0 %v5972
    %7997 = vmatprep.subr.mxu0 %v5981
    %7998 = vmatpush1.msra.mxu0 %v5980
    %7999 = vmatprep.mubr.f32.mxu0 %v7713
    %8000 = vmatmul.mubr.f32.gmra.mrb[0].mxu0 %v7712
    %v8001 = vpop.f32.mrb[0].mxu0
    %v8002 = vadd.f32 0.0, %v8001
    %v8003 = vpop.f32.mrb[0].mxu0
    %v8004 = vadd.f32 0.0, %v8003
    %8005 = vdwg.mxu0
    %v8006 = vadd.f32 %v7714, %v7789
    %v8007 = vadd.f32 %v7715, %v7791
    %v8008 = vadd.f32 %v7716, %v7860
    %v8009 = vadd.f32 %v7717, %v7862
    %v8010 = vadd.f32 %v7718, %v7931
    %v8011 = vadd.f32 %v7719, %v7933
    %v8012 = vadd.f32 %v7720, %v8002
    %v8013 = vadd.f32 %v7721, %v8004
    %v8014 = vxor.u32 %v8006, 2147483648
    %v8015 = vxor.u32 %v8007, 2147483648
    %v8016 = vmul.f32 %v8014, 1.442695
    %v8017 = vpow.pop %v8016
    %v8018 = vmul.f32 %v8015, 1.442695
    %v8019 = vpow.pop %v8018
    %v8020 = vadd.f32 %v8017, 1.0
    %v8021 = vadd.f32 %v8019, 1.0
    %v8022 = vrcp.pop %v8020
    %v8023 = vmul.f32 1.0, %v8022
    %v8024 = vrcp.pop %v8021
    %v8025 = vmul.f32 1.0, %v8024
    %v8026 = vxor.u32 %v8008, 2147483648
    %v8027 = vxor.u32 %v8009, 2147483648
    %v8028 = vmul.f32 %v8026, 1.442695
    %v8029 = vpow.pop %v8028
    %v8030 = vmul.f32 %v8027, 1.442695
    %v8031 = vpow.pop %v8030
    %v8032 = vadd.f32 %v8029, 1.0
    %v8033 = vadd.f32 %v8031, 1.0
    %v8034 = vrcp.pop %v8032
    %v8035 = vmul.f32 1.0, %v8034
    %v8036 = vrcp.pop %v8033
    %v8037 = vmul.f32 1.0, %v8036
    %v8038 = vtanh.pop %v8010
    %v8039 = vtanh.pop %v8011
    %v8040 = vxor.u32 %v8012, 2147483648
    %v8041 = vxor.u32 %v8013, 2147483648
    %v8042 = vmul.f32 %v8040, 1.442695
    %v8043 = vpow.pop %v8042
    %v8044 = vmul.f32 %v8041, 1.442695
    %v8045 = vpow.pop %v8044
    %v8046 = vadd.f32 %v8043, 1.0
    %v8047 = vadd.f32 %v8045, 1.0
    %v8048 = vrcp.pop %v8046
    %v8049 = vmul.f32 1.0, %v8048
    %v8050 = vrcp.pop %v8047
    %v8051 = vmul.f32 1.0, %v8050
    %v8052 = vmul.f32 %v8035, %v7708
    %v8053 = vmul.f32 %v8037, %v7709
    %v8054 = vmul.f32 %v8023, %v8038
    %v8055 = vmul.f32 %v8025, %v8039
    %v8056 = vadd.f32 %v8052, %v8054
    %v8057 = vadd.f32 %v8053, %v8055
    %v8058 = vtanh.pop %v8056
    %v8059 = vtanh.pop %v8057
    %v8060 = vmul.f32 %v8049, %v8058
    %v8061 = vmul.f32 %v8051, %v8059
    %v8062 = vld [vmem:[#allocation3 + $0x180] sm:$0xff]
    %v8063 = vld [vmem:[#allocation3 + $0x188] sm:$0xff]
    %v8064 = vld [vmem:[#allocation3 + $0x190] sm:$0xff]
    %v8065 = vld [vmem:[#allocation3 + $0x198] sm:$0xff]
    %v8066 = vld [vmem:[#allocation3 + $0x1a0] sm:$0xff]
    %v8067 = vld [vmem:[#allocation3 + $0x1a8] sm:$0xff]
    %v8068 = vld [vmem:[#allocation3 + $0x1b0] sm:$0xff]
    %v8069 = vld [vmem:[#allocation3 + $0x1b8] sm:$0xff]
    %8070 = vmatprep.subr.mxu0 %v5727
    %8071 = vmatpush1.msra.mxu0 %v5726
    %8072 = vmatprep.subr.mxu0 %v5735
    %8073 = vmatpush1.msra.mxu0 %v5734
    %8074 = vmatprep.subr.mxu0 %v5743
    %8075 = vmatpush1.msra.mxu0 %v5742
    %8076 = vmatprep.subr.mxu0 %v5751
    %8077 = vmatpush1.msra.mxu0 %v5750
    %8078 = vmatprep.subr.mxu0 %v5759
    %8079 = vmatpush1.msra.mxu0 %v5758
    %8080 = vmatprep.subr.mxu0 %v5767
    %8081 = vmatpush1.msra.mxu0 %v5766
    %8082 = vmatprep.subr.mxu0 %v5775
    %8083 = vmatpush1.msra.mxu0 %v5774
    %8084 = vmatprep.subr.mxu0 %v5783
    %8085 = vmatpush1.msra.mxu0 %v5782
    %8086 = vmatprep.subr.mxu0 %v5791
    %8087 = vmatpush1.msra.mxu0 %v5790
    %8088 = vmatprep.subr.mxu0 %v5799
    %8089 = vmatpush1.msra.mxu0 %v5798
    %8090 = vmatprep.subr.mxu0 %v5807
    %8091 = vmatpush1.msra.mxu0 %v5806
    %8092 = vmatprep.subr.mxu0 %v5815
    %8093 = vmatpush1.msra.mxu0 %v5814
    %8094 = vmatprep.subr.mxu0 %v5823
    %8095 = vmatpush1.msra.mxu0 %v5822
    %8096 = vmatprep.subr.mxu0 %v5831
    %8097 = vmatpush1.msra.mxu0 %v5830
    %8098 = vmatprep.subr.mxu0 %v5839
    %8099 = vmatpush1.msra.mxu0 %v5838
    %8100 = vmatprep.subr.mxu0 %v5847
    %8101 = vmatpush1.msra.mxu0 %v5846
    %8102 = vmatprep.subr.mxu0 %v5855
    %8103 = vmatpush1.msra.mxu0 %v5854
    %8104 = vmatprep.subr.mxu0 %v5863
    %8105 = vmatpush1.msra.mxu0 %v5862
    %8106 = vmatprep.subr.mxu0 %v5871
    %8107 = vmatpush1.msra.mxu0 %v5870
    %8108 = vmatprep.subr.mxu0 %v5879
    %8109 = vmatpush1.msra.mxu0 %v5878
    %8110 = vmatprep.subr.mxu0 %v5887
    %8111 = vmatpush1.msra.mxu0 %v5886
    %8112 = vmatprep.subr.mxu0 %v5895
    %8113 = vmatpush1.msra.mxu0 %v5894
    %8114 = vmatprep.subr.mxu0 %v5903
    %8115 = vmatpush1.msra.mxu0 %v5902
    %8116 = vmatprep.subr.mxu0 %v5911
    %8117 = vmatpush1.msra.mxu0 %v5910
    %8118 = vmatprep.subr.mxu0 %v5919
    %8119 = vmatpush1.msra.mxu0 %v5918
    %8120 = vmatprep.subr.mxu0 %v5927
    %8121 = vmatpush1.msra.mxu0 %v5926
    %8122 = vmatprep.subr.mxu0 %v5935
    %8123 = vmatpush1.msra.mxu0 %v5934
    %8124 = vmatprep.subr.mxu0 %v5943
    %8125 = vmatpush1.msra.mxu0 %v5942
    %8126 = vmatprep.subr.mxu0 %v5951
    %8127 = vmatpush1.msra.mxu0 %v5950
    %8128 = vmatprep.subr.mxu0 %v5959
    %8129 = vmatpush1.msra.mxu0 %v5958
    %8130 = vmatprep.subr.mxu0 %v5967
    %8131 = vmatpush1.msra.mxu0 %v5966
    %8132 = vmatprep.subr.mxu0 %v5975
    %8133 = vmatpush1.msra.mxu0 %v5974
    %8134 = vmatprep.mubr.f32.mxu0 %v8061
    %8135 = vmatmul.mubr.f32.gmra.mrb[0].mxu0 %v8060
    %v8136 = vpop.f32.mrb[0].mxu0
    %v8137 = vadd.f32 0.0, %v8136
    %v8138 = vpop.f32.mrb[0].mxu0
    %v8139 = vadd.f32 0.0, %v8138
    %8140 = vdwg.mxu0
    %8141 = vmatprep.subr.mxu0 %v5729
    %8142 = vmatpush1.msra.mxu0 %v5728
    %8143 = vmatprep.subr.mxu0 %v5737
    %8144 = vmatpush1.msra.mxu0 %v5736
    %8145 = vmatprep.subr.mxu0 %v5745
    %8146 = vmatpush1.msra.mxu0 %v5744
    %8147 = vmatprep.subr.mxu0 %v5753
    %8148 = vmatpush1.msra.mxu0 %v5752
    %8149 = vmatprep.subr.mxu0 %v5761
    %8150 = vmatpush1.msra.mxu0 %v5760
    %8151 = vmatprep.subr.mxu0 %v5769
    %8152 = vmatpush1.msra.mxu0 %v5768
    %8153 = vmatprep.subr.mxu0 %v5777
    %8154 = vmatpush1.msra.mxu0 %v5776
    %8155 = vmatprep.subr.mxu0 %v5785
    %8156 = vmatpush1.msra.mxu0 %v5784
    %8157 = vmatprep.subr.mxu0 %v5793
    %8158 = vmatpush1.msra.mxu0 %v5792
    %8159 = vmatprep.subr.mxu0 %v5801
    %8160 = vmatpush1.msra.mxu0 %v5800
    %8161 = vmatprep.subr.mxu0 %v5809
    %8162 = vmatpush1.msra.mxu0 %v5808
    %8163 = vmatprep.subr.mxu0 %v5817
    %8164 = vmatpush1.msra.mxu0 %v5816
    %8165 = vmatprep.subr.mxu0 %v5825
    %8166 = vmatpush1.msra.mxu0 %v5824
    %8167 = vmatprep.subr.mxu0 %v5833
    %8168 = vmatpush1.msra.mxu0 %v5832
    %8169 = vmatprep.subr.mxu0 %v5841
    %8170 = vmatpush1.msra.mxu0 %v5840
    %8171 = vmatprep.subr.mxu0 %v5849
    %8172 = vmatpush1.msra.mxu0 %v5848
    %8173 = vmatprep.subr.mxu0 %v5857
    %8174 = vmatpush1.msra.mxu0 %v5856
    %8175 = vmatprep.subr.mxu0 %v5865
    %8176 = vmatpush1.msra.mxu0 %v5864
    %8177 = vmatprep.subr.mxu0 %v5873
    %8178 = vmatpush1.msra.mxu0 %v5872
    %8179 = vmatprep.subr.mxu0 %v5881
    %8180 = vmatpush1.msra.mxu0 %v5880
    %8181 = vmatprep.subr.mxu0 %v5889
    %8182 = vmatpush1.msra.mxu0 %v5888
    %8183 = vmatprep.subr.mxu0 %v5897
    %8184 = vmatpush1.msra.mxu0 %v5896
    %8185 = vmatprep.subr.mxu0 %v5905
    %8186 = vmatpush1.msra.mxu0 %v5904
    %8187 = vmatprep.subr.mxu0 %v5913
    %8188 = vmatpush1.msra.mxu0 %v5912
    %8189 = vmatprep.subr.mxu0 %v5921
    %8190 = vmatpush1.msra.mxu0 %v5920
    %8191 = vmatprep.subr.mxu0 %v5929
    %8192 = vmatpush1.msra.mxu0 %v5928
    %8193 = vmatprep.subr.mxu0 %v5937
    %8194 = vmatpush1.msra.mxu0 %v5936
    %8195 = vmatprep.subr.mxu0 %v5945
    %8196 = vmatpush1.msra.mxu0 %v5944
    %8197 = vmatprep.subr.mxu0 %v5953
    %8198 = vmatpush1.msra.mxu0 %v5952
    %8199 = vmatprep.subr.mxu0 %v5961
    %8200 = vmatpush1.msra.mxu0 %v5960
    %8201 = vmatprep.subr.mxu0 %v5969
    %8202 = vmatpush1.msra.mxu0 %v5968
    %8203 = vmatprep.subr.mxu0 %v5977
    %8204 = vmatpush1.msra.mxu0 %v5976
    %8205 = vmatprep.mubr.f32.mxu0 %v8061
    %8206 = vmatmul.mubr.f32.gmra.mrb[0].mxu0 %v8060
    %v8207 = vpop.f32.mrb[0].mxu0
    %v8208 = vadd.f32 0.0, %v8207
    %v8209 = vpop.f32.mrb[0].mxu0
    %v8210 = vadd.f32 0.0, %v8209
    %8211 = vdwg.mxu0
    %8212 = vmatprep.subr.mxu0 %v5731
    %8213 = vmatpush1.msra.mxu0 %v5730
    %8214 = vmatprep.subr.mxu0 %v5739
    %8215 = vmatpush1.msra.mxu0 %v5738
    %8216 = vmatprep.subr.mxu0 %v5747
    %8217 = vmatpush1.msra.mxu0 %v5746
    %8218 = vmatprep.subr.mxu0 %v5755
    %8219 = vmatpush1.msra.mxu0 %v5754
    %8220 = vmatprep.subr.mxu0 %v5763
    %8221 = vmatpush1.msra.mxu0 %v5762
    %8222 = vmatprep.subr.mxu0 %v5771
    %8223 = vmatpush1.msra.mxu0 %v5770
    %8224 = vmatprep.subr.mxu0 %v5779
    %8225 = vmatpush1.msra.mxu0 %v5778
    %8226 = vmatprep.subr.mxu0 %v5787
    %8227 = vmatpush1.msra.mxu0 %v5786
    %8228 = vmatprep.subr.mxu0 %v5795
    %8229 = vmatpush1.msra.mxu0 %v5794
    %8230 = vmatprep.subr.mxu0 %v5803
    %8231 = vmatpush1.msra.mxu0 %v5802
    %8232 = vmatprep.subr.mxu0 %v5811
    %8233 = vmatpush1.msra.mxu0 %v5810
    %8234 = vmatprep.subr.mxu0 %v5819
    %8235 = vmatpush1.msra.mxu0 %v5818
    %8236 = vmatprep.subr.mxu0 %v5827
    %8237 = vmatpush1.msra.mxu0 %v5826
    %8238 = vmatprep.subr.mxu0 %v5835
    %8239 = vmatpush1.msra.mxu0 %v5834
    %8240 = vmatprep.subr.mxu0 %v5843
    %8241 = vmatpush1.msra.mxu0 %v5842
    %8242 = vmatprep.subr.mxu0 %v5851
    %8243 = vmatpush1.msra.mxu0 %v5850
    %8244 = vmatprep.subr.mxu0 %v5859
    %8245 = vmatpush1.msra.mxu0 %v5858
    %8246 = vmatprep.subr.mxu0 %v5867
    %8247 = vmatpush1.msra.mxu0 %v5866
    %8248 = vmatprep.subr.mxu0 %v5875
    %8249 = vmatpush1.msra.mxu0 %v5874
    %8250 = vmatprep.subr.mxu0 %v5883
    %8251 = vmatpush1.msra.mxu0 %v5882
    %8252 = vmatprep.subr.mxu0 %v5891
    %8253 = vmatpush1.msra.mxu0 %v5890
    %8254 = vmatprep.subr.mxu0 %v5899
    %8255 = vmatpush1.msra.mxu0 %v5898
    %8256 = vmatprep.subr.mxu0 %v5907
    %8257 = vmatpush1.msra.mxu0 %v5906
    %8258 = vmatprep.subr.mxu0 %v5915
    %8259 = vmatpush1.msra.mxu0 %v5914
    %8260 = vmatprep.subr.mxu0 %v5923
    %8261 = vmatpush1.msra.mxu0 %v5922
    %8262 = vmatprep.subr.mxu0 %v5931
    %8263 = vmatpush1.msra.mxu0 %v5930
    %8264 = vmatprep.subr.mxu0 %v5939
    %8265 = vmatpush1.msra.mxu0 %v5938
    %8266 = vmatprep.subr.mxu0 %v5947
    %8267 = vmatpush1.msra.mxu0 %v5946
    %8268 = vmatprep.subr.mxu0 %v5955
    %8269 = vmatpush1.msra.mxu0 %v5954
    %8270 = vmatprep.subr.mxu0 %v5963
    %8271 = vmatpush1.msra.mxu0 %v5962
    %8272 = vmatprep.subr.mxu0 %v5971
    %8273 = vmatpush1.msra.mxu0 %v5970
    %8274 = vmatprep.subr.mxu0 %v5979
    %8275 = vmatpush1.msra.mxu0 %v5978
    %8276 = vmatprep.mubr.f32.mxu0 %v8061
    %8277 = vmatmul.mubr.f32.gmra.mrb[0].mxu0 %v8060
    %v8278 = vpop.f32.mrb[0].mxu0
    %v8279 = vadd.f32 0.0, %v8278
    %v8280 = vpop.f32.mrb[0].mxu0
    %v8281 = vadd.f32 0.0, %v8280
    %8282 = vdwg.mxu0
    %8283 = vmatprep.subr.mxu0 %v5733
    %8284 = vmatpush1.msra.mxu0 %v5732
    %8285 = vmatprep.subr.mxu0 %v5741
    %8286 = vmatpush1.msra.mxu0 %v5740
    %8287 = vmatprep.subr.mxu0 %v5749
    %8288 = vmatpush1.msra.mxu0 %v5748
    %8289 = vmatprep.subr.mxu0 %v5757
    %8290 = vmatpush1.msra.mxu0 %v5756
    %8291 = vmatprep.subr.mxu0 %v5765
    %8292 = vmatpush1.msra.mxu0 %v5764
    %8293 = vmatprep.subr.mxu0 %v5773
    %8294 = vmatpush1.msra.mxu0 %v5772
    %8295 = vmatprep.subr.mxu0 %v5781
    %8296 = vmatpush1.msra.mxu0 %v5780
    %8297 = vmatprep.subr.mxu0 %v5789
    %8298 = vmatpush1.msra.mxu0 %v5788
    %8299 = vmatprep.subr.mxu0 %v5797
    %8300 = vmatpush1.msra.mxu0 %v5796
    %8301 = vmatprep.subr.mxu0 %v5805
    %8302 = vmatpush1.msra.mxu0 %v5804
    %8303 = vmatprep.subr.mxu0 %v5813
    %8304 = vmatpush1.msra.mxu0 %v5812
    %8305 = vmatprep.subr.mxu0 %v5821
    %8306 = vmatpush1.msra.mxu0 %v5820
    %8307 = vmatprep.subr.mxu0 %v5829
    %8308 = vmatpush1.msra.mxu0 %v5828
    %8309 = vmatprep.subr.mxu0 %v5837
    %8310 = vmatpush1.msra.mxu0 %v5836
    %8311 = vmatprep.subr.mxu0 %v5845
    %8312 = vmatpush1.msra.mxu0 %v5844
    %8313 = vmatprep.subr.mxu0 %v5853
    %8314 = vmatpush1.msra.mxu0 %v5852
    %8315 = vmatprep.subr.mxu0 %v5861
    %8316 = vmatpush1.msra.mxu0 %v5860
    %8317 = vmatprep.subr.mxu0 %v5869
    %8318 = vmatpush1.msra.mxu0 %v5868
    %8319 = vmatprep.subr.mxu0 %v5877
    %8320 = vmatpush1.msra.mxu0 %v5876
    %8321 = vmatprep.subr.mxu0 %v5885
    %8322 = vmatpush1.msra.mxu0 %v5884
    %8323 = vmatprep.subr.mxu0 %v5893
    %8324 = vmatpush1.msra.mxu0 %v5892
    %8325 = vmatprep.subr.mxu0 %v5901
    %8326 = vmatpush1.msra.mxu0 %v5900
    %8327 = vmatprep.subr.mxu0 %v5909
    %8328 = vmatpush1.msra.mxu0 %v5908
    %8329 = vmatprep.subr.mxu0 %v5917
    %8330 = vmatpush1.msra.mxu0 %v5916
    %8331 = vmatprep.subr.mxu0 %v5925
    %8332 = vmatpush1.msra.mxu0 %v5924
    %8333 = vmatprep.subr.mxu0 %v5933
    %8334 = vmatpush1.msra.mxu0 %v5932
    %8335 = vmatprep.subr.mxu0 %v5941
    %8336 = vmatpush1.msra.mxu0 %v5940
    %8337 = vmatprep.subr.mxu0 %v5949
    %8338 = vmatpush1.msra.mxu0 %v5948
    %8339 = vmatprep.subr.mxu0 %v5957
    %8340 = vmatpush1.msra.mxu0 %v5956
    %8341 = vmatprep.subr.mxu0 %v5965
    %8342 = vmatpush1.msra.mxu0 %v5964
    %8343 = vmatprep.subr.mxu0 %v5973
    %8344 = vmatpush1.msra.mxu0 %v5972
    %8345 = vmatprep.subr.mxu0 %v5981
    %8346 = vmatpush1.msra.mxu0 %v5980
    %8347 = vmatprep.mubr.f32.mxu0 %v8061
    %8348 = vmatmul.mubr.f32.gmra.mrb[0].mxu0 %v8060
    %v8349 = vpop.f32.mrb[0].mxu0
    %v8350 = vadd.f32 0.0, %v8349
    %v8351 = vpop.f32.mrb[0].mxu0
    %v8352 = vadd.f32 0.0, %v8351
    %8353 = vdwg.mxu0
    %v8354 = vadd.f32 %v8062, %v8137
    %v8355 = vadd.f32 %v8063, %v8139
    %v8356 = vadd.f32 %v8064, %v8208
    %v8357 = vadd.f32 %v8065, %v8210
    %v8358 = vadd.f32 %v8066, %v8279
    %v8359 = vadd.f32 %v8067, %v8281
    %v8360 = vadd.f32 %v8068, %v8350
    %v8361 = vadd.f32 %v8069, %v8352
    %v8362 = vxor.u32 %v8354, 2147483648
    %v8363 = vxor.u32 %v8355, 2147483648
    %v8364 = vmul.f32 %v8362, 1.442695
    %v8365 = vpow.pop %v8364
    %v8366 = vmul.f32 %v8363, 1.442695
    %v8367 = vpow.pop %v8366
    %v8368 = vadd.f32 %v8365, 1.0
    %v8369 = vadd.f32 %v8367, 1.0
    %v8370 = vrcp.pop %v8368
    %v8371 = vmul.f32 1.0, %v8370
    %v8372 = vrcp.pop %v8369
    %v8373 = vmul.f32 1.0, %v8372
    %v8374 = vxor.u32 %v8356, 2147483648
    %v8375 = vxor.u32 %v8357, 2147483648
    %v8376 = vmul.f32 %v8374, 1.442695
    %v8377 = vpow.pop %v8376
    %v8378 = vmul.f32 %v8375, 1.442695
    %v8379 = vpow.pop %v8378
    %v8380 = vadd.f32 %v8377, 1.0
    %v8381 = vadd.f32 %v8379, 1.0
    %v8382 = vrcp.pop %v8380
    %v8383 = vmul.f32 1.0, %v8382
    %v8384 = vrcp.pop %v8381
    %v8385 = vmul.f32 1.0, %v8384
    %v8386 = vtanh.pop %v8358
    %v8387 = vtanh.pop %v8359
    %v8388 = vxor.u32 %v8360, 2147483648
    %v8389 = vxor.u32 %v8361, 2147483648
    %v8390 = vmul.f32 %v8388, 1.442695
    %v8391 = vpow.pop %v8390
    %v8392 = vmul.f32 %v8389, 1.442695
    %v8393 = vpow.pop %v8392
    %v8394 = vadd.f32 %v8391, 1.0
    %v8395 = vadd.f32 %v8393, 1.0
    %v8396 = vrcp.pop %v8394
    %v8397 = vmul.f32 1.0, %v8396
    %v8398 = vrcp.pop %v8395
    %v8399 = vmul.f32 1.0, %v8398
    %v8400 = vmul.f32 %v8383, %v8056
    %v8401 = vmul.f32 %v8385, %v8057
    %v8402 = vmul.f32 %v8371, %v8386
    %v8403 = vmul.f32 %v8373, %v8387
    %v8404 = vadd.f32 %v8400, %v8402
    %v8405 = vadd.f32 %v8401, %v8403
    %v8406 = vtanh.pop %v8404
    %v8407 = vtanh.pop %v8405
    %v8408 = vmul.f32 %v8397, %v8406
    %v8409 = vmul.f32 %v8399, %v8407
    %v8410 = vld [vmem:[#allocation3 + $0x1c0] sm:$0xff]
    %v8411 = vld [vmem:[#allocation3 + $0x1c8] sm:$0xff]
    %v8412 = vld [vmem:[#allocation3 + $0x1d0] sm:$0xff]
    %v8413 = vld [vmem:[#allocation3 + $0x1d8] sm:$0xff]
    %v8414 = vld [vmem:[#allocation3 + $0x1e0] sm:$0xff]
    %v8415 = vld [vmem:[#allocation3 + $0x1e8] sm:$0xff]
    %v8416 = vld [vmem:[#allocation3 + $0x1f0] sm:$0xff]
    %v8417 = vld [vmem:[#allocation3 + $0x1f8] sm:$0xff]
    %8418 = vmatprep.subr.mxu0 %v5727
    %8419 = vmatpush1.msra.mxu0 %v5726
    %8420 = vmatprep.subr.mxu0 %v5735
    %8421 = vmatpush1.msra.mxu0 %v5734
    %8422 = vmatprep.subr.mxu0 %v5743
    %8423 = vmatpush1.msra.mxu0 %v5742
    %8424 = vmatprep.subr.mxu0 %v5751
    %8425 = vmatpush1.msra.mxu0 %v5750
    %8426 = vmatprep.subr.mxu0 %v5759
    %8427 = vmatpush1.msra.mxu0 %v5758
    %8428 = vmatprep.subr.mxu0 %v5767
    %8429 = vmatpush1.msra.mxu0 %v5766
    %8430 = vmatprep.subr.mxu0 %v5775
    %8431 = vmatpush1.msra.mxu0 %v5774
    %8432 = vmatprep.subr.mxu0 %v5783
    %8433 = vmatpush1.msra.mxu0 %v5782
    %8434 = vmatprep.subr.mxu0 %v5791
    %8435 = vmatpush1.msra.mxu0 %v5790
    %8436 = vmatprep.subr.mxu0 %v5799
    %8437 = vmatpush1.msra.mxu0 %v5798
    %8438 = vmatprep.subr.mxu0 %v5807
    %8439 = vmatpush1.msra.mxu0 %v5806
    %8440 = vmatprep.subr.mxu0 %v5815
    %8441 = vmatpush1.msra.mxu0 %v5814
    %8442 = vmatprep.subr.mxu0 %v5823
    %8443 = vmatpush1.msra.mxu0 %v5822
    %8444 = vmatprep.subr.mxu0 %v5831
    %8445 = vmatpush1.msra.mxu0 %v5830
    %8446 = vmatprep.subr.mxu0 %v5839
    %8447 = vmatpush1.msra.mxu0 %v5838
    %8448 = vmatprep.subr.mxu0 %v5847
    %8449 = vmatpush1.msra.mxu0 %v5846
    %8450 = vmatprep.subr.mxu0 %v5855
    %8451 = vmatpush1.msra.mxu0 %v5854
    %8452 = vmatprep.subr.mxu0 %v5863
    %8453 = vmatpush1.msra.mxu0 %v5862
    %8454 = vmatprep.subr.mxu0 %v5871
    %8455 = vmatpush1.msra.mxu0 %v5870
    %8456 = vmatprep.subr.mxu0 %v5879
    %8457 = vmatpush1.msra.mxu0 %v5878
    %8458 = vmatprep.subr.mxu0 %v5887
    %8459 = vmatpush1.msra.mxu0 %v5886
    %8460 = vmatprep.subr.mxu0 %v5895
    %8461 = vmatpush1.msra.mxu0 %v5894
    %8462 = vmatprep.subr.mxu0 %v5903
    %8463 = vmatpush1.msra.mxu0 %v5902
    %8464 = vmatprep.subr.mxu0 %v5911
    %8465 = vmatpush1.msra.mxu0 %v5910
    %8466 = vmatprep.subr.mxu0 %v5919
    %8467 = vmatpush1.msra.mxu0 %v5918
    %8468 = vmatprep.subr.mxu0 %v5927
    %8469 = vmatpush1.msra.mxu0 %v5926
    %8470 = vmatprep.subr.mxu0 %v5935
    %8471 = vmatpush1.msra.mxu0 %v5934
    %8472 = vmatprep.subr.mxu0 %v5943
    %8473 = vmatpush1.msra.mxu0 %v5942
    %8474 = vmatprep.subr.mxu0 %v5951
    %8475 = vmatpush1.msra.mxu0 %v5950
    %8476 = vmatprep.subr.mxu0 %v5959
    %8477 = vmatpush1.msra.mxu0 %v5958
    %8478 = vmatprep.subr.mxu0 %v5967
    %8479 = vmatpush1.msra.mxu0 %v5966
    %8480 = vmatprep.subr.mxu0 %v5975
    %8481 = vmatpush1.msra.mxu0 %v5974
    %8482 = vmatprep.mubr.f32.mxu0 %v8409
    %8483 = vmatmul.mubr.f32.gmra.mrb[0].mxu0 %v8408
    %v8484 = vpop.f32.mrb[0].mxu0
    %v8485 = vadd.f32 0.0, %v8484
    %v8486 = vpop.f32.mrb[0].mxu0
    %v8487 = vadd.f32 0.0, %v8486
    %8488 = vdwg.mxu0
    %8489 = vmatprep.subr.mxu0 %v5729
    %8490 = vmatpush1.msra.mxu0 %v5728
    %8491 = vmatprep.subr.mxu0 %v5737
    %8492 = vmatpush1.msra.mxu0 %v5736
    %8493 = vmatprep.subr.mxu0 %v5745
    %8494 = vmatpush1.msra.mxu0 %v5744
    %8495 = vmatprep.subr.mxu0 %v5753
    %8496 = vmatpush1.msra.mxu0 %v5752
    %8497 = vmatprep.subr.mxu0 %v5761
    %8498 = vmatpush1.msra.mxu0 %v5760
    %8499 = vmatprep.subr.mxu0 %v5769
    %8500 = vmatpush1.msra.mxu0 %v5768
    %8501 = vmatprep.subr.mxu0 %v5777
    %8502 = vmatpush1.msra.mxu0 %v5776
    %8503 = vmatprep.subr.mxu0 %v5785
    %8504 = vmatpush1.msra.mxu0 %v5784
    %8505 = vmatprep.subr.mxu0 %v5793
    %8506 = vmatpush1.msra.mxu0 %v5792
    %8507 = vmatprep.subr.mxu0 %v5801
    %8508 = vmatpush1.msra.mxu0 %v5800
    %8509 = vmatprep.subr.mxu0 %v5809
    %8510 = vmatpush1.msra.mxu0 %v5808
    %8511 = vmatprep.subr.mxu0 %v5817
    %8512 = vmatpush1.msra.mxu0 %v5816
    %8513 = vmatprep.subr.mxu0 %v5825
    %8514 = vmatpush1.msra.mxu0 %v5824
    %8515 = vmatprep.subr.mxu0 %v5833
    %8516 = vmatpush1.msra.mxu0 %v5832
    %8517 = vmatprep.subr.mxu0 %v5841
    %8518 = vmatpush1.msra.mxu0 %v5840
    %8519 = vmatprep.subr.mxu0 %v5849
    %8520 = vmatpush1.msra.mxu0 %v5848
    %8521 = vmatprep.subr.mxu0 %v5857
    %8522 = vmatpush1.msra.mxu0 %v5856
    %8523 = vmatprep.subr.mxu0 %v5865
    %8524 = vmatpush1.msra.mxu0 %v5864
    %8525 = vmatprep.subr.mxu0 %v5873
    %8526 = vmatpush1.msra.mxu0 %v5872
    %8527 = vmatprep.subr.mxu0 %v5881
    %8528 = vmatpush1.msra.mxu0 %v5880
    %8529 = vmatprep.subr.mxu0 %v5889
    %8530 = vmatpush1.msra.mxu0 %v5888
    %8531 = vmatprep.subr.mxu0 %v5897
    %8532 = vmatpush1.msra.mxu0 %v5896
    %8533 = vmatprep.subr.mxu0 %v5905
    %8534 = vmatpush1.msra.mxu0 %v5904
    %8535 = vmatprep.subr.mxu0 %v5913
    %8536 = vmatpush1.msra.mxu0 %v5912
    %8537 = vmatprep.subr.mxu0 %v5921
    %8538 = vmatpush1.msra.mxu0 %v5920
    %8539 = vmatprep.subr.mxu0 %v5929
    %8540 = vmatpush1.msra.mxu0 %v5928
    %8541 = vmatprep.subr.mxu0 %v5937
    %8542 = vmatpush1.msra.mxu0 %v5936
    %8543 = vmatprep.subr.mxu0 %v5945
    %8544 = vmatpush1.msra.mxu0 %v5944
    %8545 = vmatprep.subr.mxu0 %v5953
    %8546 = vmatpush1.msra.mxu0 %v5952
    %8547 = vmatprep.subr.mxu0 %v5961
    %8548 = vmatpush1.msra.mxu0 %v5960
    %8549 = vmatprep.subr.mxu0 %v5969
    %8550 = vmatpush1.msra.mxu0 %v5968
    %8551 = vmatprep.subr.mxu0 %v5977
    %8552 = vmatpush1.msra.mxu0 %v5976
    %8553 = vmatprep.mubr.f32.mxu0 %v8409
    %8554 = vmatmul.mubr.f32.gmra.mrb[0].mxu0 %v8408
    %v8555 = vpop.f32.mrb[0].mxu0
    %v8556 = vadd.f32 0.0, %v8555
    %v8557 = vpop.f32.mrb[0].mxu0
    %v8558 = vadd.f32 0.0, %v8557
    %8559 = vdwg.mxu0
    %8560 = vmatprep.subr.mxu0 %v5731
    %8561 = vmatpush1.msra.mxu0 %v5730
    %8562 = vmatprep.subr.mxu0 %v5739
    %8563 = vmatpush1.msra.mxu0 %v5738
    %8564 = vmatprep.subr.mxu0 %v5747
    %8565 = vmatpush1.msra.mxu0 %v5746
    %8566 = vmatprep.subr.mxu0 %v5755
    %8567 = vmatpush1.msra.mxu0 %v5754
    %8568 = vmatprep.subr.mxu0 %v5763
    %8569 = vmatpush1.msra.mxu0 %v5762
    %8570 = vmatprep.subr.mxu0 %v5771
    %8571 = vmatpush1.msra.mxu0 %v5770
    %8572 = vmatprep.subr.mxu0 %v5779
    %8573 = vmatpush1.msra.mxu0 %v5778
    %8574 = vmatprep.subr.mxu0 %v5787
    %8575 = vmatpush1.msra.mxu0 %v5786
    %8576 = vmatprep.subr.mxu0 %v5795
    %8577 = vmatpush1.msra.mxu0 %v5794
    %8578 = vmatprep.subr.mxu0 %v5803
    %8579 = vmatpush1.msra.mxu0 %v5802
    %8580 = vmatprep.subr.mxu0 %v5811
    %8581 = vmatpush1.msra.mxu0 %v5810
    %8582 = vmatprep.subr.mxu0 %v5819
    %8583 = vmatpush1.msra.mxu0 %v5818
    %8584 = vmatprep.subr.mxu0 %v5827
    %8585 = vmatpush1.msra.mxu0 %v5826
    %8586 = vmatprep.subr.mxu0 %v5835
    %8587 = vmatpush1.msra.mxu0 %v5834
    %8588 = vmatprep.subr.mxu0 %v5843
    %8589 = vmatpush1.msra.mxu0 %v5842
    %8590 = vmatprep.subr.mxu0 %v5851
    %8591 = vmatpush1.msra.mxu0 %v5850
    %8592 = vmatprep.subr.mxu0 %v5859
    %8593 = vmatpush1.msra.mxu0 %v5858
    %8594 = vmatprep.subr.mxu0 %v5867
    %8595 = vmatpush1.msra.mxu0 %v5866
    %8596 = vmatprep.subr.mxu0 %v5875
    %8597 = vmatpush1.msra.mxu0 %v5874
    %8598 = vmatprep.subr.mxu0 %v5883
    %8599 = vmatpush1.msra.mxu0 %v5882
    %8600 = vmatprep.subr.mxu0 %v5891
    %8601 = vmatpush1.msra.mxu0 %v5890
    %8602 = vmatprep.subr.mxu0 %v5899
    %8603 = vmatpush1.msra.mxu0 %v5898
    %8604 = vmatprep.subr.mxu0 %v5907
    %8605 = vmatpush1.msra.mxu0 %v5906
    %8606 = vmatprep.subr.mxu0 %v5915
    %8607 = vmatpush1.msra.mxu0 %v5914
    %8608 = vmatprep.subr.mxu0 %v5923
    %8609 = vmatpush1.msra.mxu0 %v5922
    %8610 = vmatprep.subr.mxu0 %v5931
    %8611 = vmatpush1.msra.mxu0 %v5930
    %8612 = vmatprep.subr.mxu0 %v5939
    %8613 = vmatpush1.msra.mxu0 %v5938
    %8614 = vmatprep.subr.mxu0 %v5947
    %8615 = vmatpush1.msra.mxu0 %v5946
    %8616 = vmatprep.subr.mxu0 %v5955
    %8617 = vmatpush1.msra.mxu0 %v5954
    %8618 = vmatprep.subr.mxu0 %v5963
    %8619 = vmatpush1.msra.mxu0 %v5962
    %8620 = vmatprep.subr.mxu0 %v5971
    %8621 = vmatpush1.msra.mxu0 %v5970
    %8622 = vmatprep.subr.mxu0 %v5979
    %8623 = vmatpush1.msra.mxu0 %v5978
    %8624 = vmatprep.mubr.f32.mxu0 %v8409
    %8625 = vmatmul.mubr.f32.gmra.mrb[0].mxu0 %v8408
    %v8626 = vpop.f32.mrb[0].mxu0
    %v8627 = vadd.f32 0.0, %v8626
    %v8628 = vpop.f32.mrb[0].mxu0
    %v8629 = vadd.f32 0.0, %v8628
    %8630 = vdwg.mxu0
    %8631 = vmatprep.subr.mxu0 %v5733
    %8632 = vmatpush1.msra.mxu0 %v5732
    %8633 = vmatprep.subr.mxu0 %v5741
    %8634 = vmatpush1.msra.mxu0 %v5740
    %8635 = vmatprep.subr.mxu0 %v5749
    %8636 = vmatpush1.msra.mxu0 %v5748
    %8637 = vmatprep.subr.mxu0 %v5757
    %8638 = vmatpush1.msra.mxu0 %v5756
    %8639 = vmatprep.subr.mxu0 %v5765
    %8640 = vmatpush1.msra.mxu0 %v5764
    %8641 = vmatprep.subr.mxu0 %v5773
    %8642 = vmatpush1.msra.mxu0 %v5772
    %8643 = vmatprep.subr.mxu0 %v5781
    %8644 = vmatpush1.msra.mxu0 %v5780
    %8645 = vmatprep.subr.mxu0 %v5789
    %8646 = vmatpush1.msra.mxu0 %v5788
    %8647 = vmatprep.subr.mxu0 %v5797
    %8648 = vmatpush1.msra.mxu0 %v5796
    %8649 = vmatprep.subr.mxu0 %v5805
    %8650 = vmatpush1.msra.mxu0 %v5804
    %8651 = vmatprep.subr.mxu0 %v5813
    %8652 = vmatpush1.msra.mxu0 %v5812
    %8653 = vmatprep.subr.mxu0 %v5821
    %8654 = vmatpush1.msra.mxu0 %v5820
    %8655 = vmatprep.subr.mxu0 %v5829
    %8656 = vmatpush1.msra.mxu0 %v5828
    %8657 = vmatprep.subr.mxu0 %v5837
    %8658 = vmatpush1.msra.mxu0 %v5836
    %8659 = vmatprep.subr.mxu0 %v5845
    %8660 = vmatpush1.msra.mxu0 %v5844
    %8661 = vmatprep.subr.mxu0 %v5853
    %8662 = vmatpush1.msra.mxu0 %v5852
    %8663 = vmatprep.subr.mxu0 %v5861
    %8664 = vmatpush1.msra.mxu0 %v5860
    %8665 = vmatprep.subr.mxu0 %v5869
    %8666 = vmatpush1.msra.mxu0 %v5868
    %8667 = vmatprep.subr.mxu0 %v5877
    %8668 = vmatpush1.msra.mxu0 %v5876
    %8669 = vmatprep.subr.mxu0 %v5885
    %8670 = vmatpush1.msra.mxu0 %v5884
    %8671 = vmatprep.subr.mxu0 %v5893
    %8672 = vmatpush1.msra.mxu0 %v5892
    %8673 = vmatprep.subr.mxu0 %v5901
    %8674 = vmatpush1.msra.mxu0 %v5900
    %8675 = vmatprep.subr.mxu0 %v5909
    %8676 = vmatpush1.msra.mxu0 %v5908
    %8677 = vmatprep.subr.mxu0 %v5917
    %8678 = vmatpush1.msra.mxu0 %v5916
    %8679 = vmatprep.subr.mxu0 %v5925
    %8680 = vmatpush1.msra.mxu0 %v5924
    %8681 = vmatprep.subr.mxu0 %v5933
    %8682 = vmatpush1.msra.mxu0 %v5932
    %8683 = vmatprep.subr.mxu0 %v5941
    %8684 = vmatpush1.msra.mxu0 %v5940
    %8685 = vmatprep.subr.mxu0 %v5949
    %8686 = vmatpush1.msra.mxu0 %v5948
    %8687 = vmatprep.subr.mxu0 %v5957
    %8688 = vmatpush1.msra.mxu0 %v5956
    %8689 = vmatprep.subr.mxu0 %v5965
    %8690 = vmatpush1.msra.mxu0 %v5964
    %8691 = vmatprep.subr.mxu0 %v5973
    %8692 = vmatpush1.msra.mxu0 %v5972
    %8693 = vmatprep.subr.mxu0 %v5981
    %8694 = vmatpush1.msra.mxu0 %v5980
    %8695 = vmatprep.mubr.f32.mxu0 %v8409
    %8696 = vmatmul.mubr.f32.gmra.mrb[0].mxu0 %v8408
    %v8697 = vpop.f32.mrb[0].mxu0
    %v8698 = vadd.f32 0.0, %v8697
    %v8699 = vpop.f32.mrb[0].mxu0
    %v8700 = vadd.f32 0.0, %v8699
    %8701 = vdwg.mxu0
    %v8702 = vadd.f32 %v8410, %v8485
    %v8703 = vadd.f32 %v8411, %v8487
    %v8704 = vadd.f32 %v8412, %v8556
    %v8705 = vadd.f32 %v8413, %v8558
    %v8706 = vadd.f32 %v8414, %v8627
    %v8707 = vadd.f32 %v8415, %v8629
    %v8708 = vadd.f32 %v8416, %v8698
    %v8709 = vadd.f32 %v8417, %v8700
    %v8710 = vxor.u32 %v8702, 2147483648
    %v8711 = vxor.u32 %v8703, 2147483648
    %v8712 = vmul.f32 %v8710, 1.442695
    %v8713 = vpow.pop %v8712
    %v8714 = vmul.f32 %v8711, 1.442695
    %v8715 = vpow.pop %v8714
    %v8716 = vadd.f32 %v8713, 1.0
    %v8717 = vadd.f32 %v8715, 1.0
    %v8718 = vrcp.pop %v8716
    %v8719 = vmul.f32 1.0, %v8718
    %v8720 = vrcp.pop %v8717
    %v8721 = vmul.f32 1.0, %v8720
    %v8722 = vxor.u32 %v8704, 2147483648
    %v8723 = vxor.u32 %v8705, 2147483648
    %v8724 = vmul.f32 %v8722, 1.442695
    %v8725 = vpow.pop %v8724
    %v8726 = vmul.f32 %v8723, 1.442695
    %v8727 = vpow.pop %v8726
    %v8728 = vadd.f32 %v8725, 1.0
    %v8729 = vadd.f32 %v8727, 1.0
    %v8730 = vrcp.pop %v8728
    %v8731 = vmul.f32 1.0, %v8730
    %v8732 = vrcp.pop %v8729
    %v8733 = vmul.f32 1.0, %v8732
    %v8734 = vtanh.pop %v8706
    %v8735 = vtanh.pop %v8707
    %v8736 = vxor.u32 %v8708, 2147483648
    %v8737 = vxor.u32 %v8709, 2147483648
    %v8738 = vmul.f32 %v8736, 1.442695
    %v8739 = vpow.pop %v8738
    %v8740 = vmul.f32 %v8737, 1.442695
    %v8741 = vpow.pop %v8740
    %v8742 = vadd.f32 %v8739, 1.0
    %v8743 = vadd.f32 %v8741, 1.0
    %v8744 = vrcp.pop %v8742
    %v8745 = vmul.f32 1.0, %v8744
    %v8746 = vrcp.pop %v8743
    %v8747 = vmul.f32 1.0, %v8746
    %v8748 = vmul.f32 %v8731, %v8404
    %v8749 = vmul.f32 %v8733, %v8405
    %v8750 = vmul.f32 %v8719, %v8734
    %v8751 = vmul.f32 %v8721, %v8735
    %v8752 = vadd.f32 %v8748, %v8750
    %v8753 = vadd.f32 %v8749, %v8751
    %v8754 = vtanh.pop %v8752
    %v8755 = vtanh.pop %v8753
    %v8756 = vmul.f32 %v8745, %v8754
    %v8757 = vmul.f32 %v8747, %v8755
    %v8758 = vld [vmem:[%s5] sm:$0xff]
    %v8759 = vld [vmem:[%s5 + $0x8] sm:$0xff]
    %v8760 = vld [vmem:[%s5 + $0x10] sm:$0xff]
    %v8761 = vld [vmem:[%s5 + $0x18] sm:$0xff]
    %v8762 = vld [vmem:[%s5 + $0x20] sm:$0xff]
    %v8763 = vld [vmem:[%s5 + $0x28] sm:$0xff]
    %v8764 = vld [vmem:[%s5 + $0x30] sm:$0xff]
    %v8765 = vld [vmem:[%s5 + $0x38] sm:$0xff]
    %v8766 = vld [vmem:[%s5 + $0x40] sm:$0xff]
    %v8767 = vld [vmem:[%s5 + $0x48] sm:$0xff]
    %v8768 = vld [vmem:[%s5 + $0x50] sm:$0xff]
    %v8769 = vld [vmem:[%s5 + $0x58] sm:$0xff]
    %v8770 = vld [vmem:[%s5 + $0x60] sm:$0xff]
    %v8771 = vld [vmem:[%s5 + $0x68] sm:$0xff]
    %v8772 = vld [vmem:[%s5 + $0x70] sm:$0xff]
    %v8773 = vld [vmem:[%s5 + $0x78] sm:$0xff]
    %v8774 = vld [vmem:[%s5 + $0x80] sm:$0xff]
    %v8775 = vld [vmem:[%s5 + $0x88] sm:$0xff]
    %v8776 = vld [vmem:[%s5 + $0x90] sm:$0xff]
    %v8777 = vld [vmem:[%s5 + $0x98] sm:$0xff]
    %v8778 = vld [vmem:[%s5 + $0xa0] sm:$0xff]
    %v8779 = vld [vmem:[%s5 + $0xa8] sm:$0xff]
    %v8780 = vld [vmem:[%s5 + $0xb0] sm:$0xff]
    %v8781 = vld [vmem:[%s5 + $0xb8] sm:$0xff]
    %v8782 = vld [vmem:[%s5 + $0xc0] sm:$0xff]
    %v8783 = vld [vmem:[%s5 + $0xc8] sm:$0xff]
    %v8784 = vld [vmem:[%s5 + $0xd0] sm:$0xff]
    %v8785 = vld [vmem:[%s5 + $0xd8] sm:$0xff]
    %v8786 = vld [vmem:[%s5 + $0xe0] sm:$0xff]
    %v8787 = vld [vmem:[%s5 + $0xe8] sm:$0xff]
    %v8788 = vld [vmem:[%s5 + $0xf0] sm:$0xff]
    %v8789 = vld [vmem:[%s5 + $0xf8] sm:$0xff]
    %v8790 = vld [vmem:[%s6] sm:$0x1]
    %v8792 = vlaneseq
    %v8793 = vshrl.u32 %v8792, 7
    %v8794 = vsub.s32 0, %v8793
    %v8795 = vrot.slane %v8790, %v8794
    %8797 = vmatprep.subr.mxu0 0.0
    %8798 = vmatpush1.msra.mxu0 %v8758
    %8799 = vmatprep.subr.mxu0 0.0
    %8800 = vmatpush1.msra.mxu0 %v8759
    %8801 = vmatprep.subr.mxu0 0.0
    %8802 = vmatpush1.msra.mxu0 %v8760
    %8803 = vmatprep.subr.mxu0 0.0
    %8804 = vmatpush1.msra.mxu0 %v8761
    %8805 = vmatprep.subr.mxu0 0.0
    %8806 = vmatpush1.msra.mxu0 %v8762
    %8807 = vmatprep.subr.mxu0 0.0
    %8808 = vmatpush1.msra.mxu0 %v8763
    %8809 = vmatprep.subr.mxu0 0.0
    %8810 = vmatpush1.msra.mxu0 %v8764
    %8811 = vmatprep.subr.mxu0 0.0
    %8812 = vmatpush1.msra.mxu0 %v8765
    %8813 = vmatprep.subr.mxu0 0.0
    %8814 = vmatpush1.msra.mxu0 %v8766
    %8815 = vmatprep.subr.mxu0 0.0
    %8816 = vmatpush1.msra.mxu0 %v8767
    %8817 = vmatprep.subr.mxu0 0.0
    %8818 = vmatpush1.msra.mxu0 %v8768
    %8819 = vmatprep.subr.mxu0 0.0
    %8820 = vmatpush1.msra.mxu0 %v8769
    %8821 = vmatprep.subr.mxu0 0.0
    %8822 = vmatpush1.msra.mxu0 %v8770
    %8823 = vmatprep.subr.mxu0 0.0
    %8824 = vmatpush1.msra.mxu0 %v8771
    %8825 = vmatprep.subr.mxu0 0.0
    %8826 = vmatpush1.msra.mxu0 %v8772
    %8827 = vmatprep.subr.mxu0 0.0
    %8828 = vmatpush1.msra.mxu0 %v8773
    %8829 = vmatprep.subr.mxu0 0.0
    %8830 = vmatpush1.msra.mxu0 %v8774
    %8831 = vmatprep.subr.mxu0 0.0
    %8832 = vmatpush1.msra.mxu0 %v8775
    %8833 = vmatprep.subr.mxu0 0.0
    %8834 = vmatpush1.msra.mxu0 %v8776
    %8835 = vmatprep.subr.mxu0 0.0
    %8836 = vmatpush1.msra.mxu0 %v8777
    %8837 = vmatprep.subr.mxu0 0.0
    %8838 = vmatpush1.msra.mxu0 %v8778
    %8839 = vmatprep.subr.mxu0 0.0
    %8840 = vmatpush1.msra.mxu0 %v8779
    %8841 = vmatprep.subr.mxu0 0.0
    %8842 = vmatpush1.msra.mxu0 %v8780
    %8843 = vmatprep.subr.mxu0 0.0
    %8844 = vmatpush1.msra.mxu0 %v8781
    %8845 = vmatprep.subr.mxu0 0.0
    %8846 = vmatpush1.msra.mxu0 %v8782
    %8847 = vmatprep.subr.mxu0 0.0
    %8848 = vmatpush1.msra.mxu0 %v8783
    %8849 = vmatprep.subr.mxu0 0.0
    %8850 = vmatpush1.msra.mxu0 %v8784
    %8851 = vmatprep.subr.mxu0 0.0
    %8852 = vmatpush1.msra.mxu0 %v8785
    %8853 = vmatprep.subr.mxu0 0.0
    %8854 = vmatpush1.msra.mxu0 %v8786
    %8855 = vmatprep.subr.mxu0 0.0
    %8856 = vmatpush1.msra.mxu0 %v8787
    %8857 = vmatprep.subr.mxu0 0.0
    %8858 = vmatpush1.msra.mxu0 %v8788
    %8859 = vmatprep.subr.mxu0 0.0
    %8860 = vmatpush1.msra.mxu0 %v8789
    %8861 = vmatprep.mubr.f32.mxu0 %v8757
    %8862 = vmatmul.mubr.f32.gmra.mrb[0].mxu0 %v8756
    %v8863 = vpop.f32.mrb[0].mxu0
    %v8864 = vadd.f32 %v8795, %v8863
    %v8865 = vpop.f32.mrb[0].mxu0
    %8866 = vdwg.mxu0
    %8867 = vst [vmem:[%s7] sm:$0xff] %v8864
    // Predicated region
    $region34: #{lstm_model_forward.1} parent=1 // pred_check
      _
    $region35: #{lstm_model_forward.1} parent=1 // pred_check_branch
      %8869 = sbr.rel (0) target = $region37
    $region36: #{lstm_model_forward.1} parent=1 // pred_region
      _
    $region37: #{lstm_model_forward.1} parent=1 // pred_fallthru
      _
    // Predicated region
    $region38: #{lstm_model_forward.1} parent=1 // pred_check
      _
    $region39: #{lstm_model_forward.1} parent=1 // pred_check_branch
      %8871 = sbr.rel (0) target = $region41
    $region40: #{lstm_model_forward.1} parent=1 // pred_region
      _
    $region41: #{lstm_model_forward.1} parent=1 // pred_fallthru
      _
    %8872 = vsyncpa [#allocation5], 1

</llo_original>
